<compile_context>
chip_gen: v7x
topology: tpu7x:2x2x1
jax: 0.10.0
libtpu: 0.0.40
codegen_flags: <defaults>
</compile_context>

<pallas_src>
import functools
import math

import jax
import jax.numpy as jnp
from jax import lax
from jax.experimental import pallas as pl
from jax.experimental.pallas import tpu as pltpu

MULTI_INPUTS = ("source", "persona", "event")
NEG_INF = -1e9
LN_EPS = 1e-5


# ---------------------------------------------------------------------------
# helpers
# ---------------------------------------------------------------------------
def _round_up(n, m):
    return (n + m - 1) // m * m


def _pad_rows(x, rows):
    if rows == x.shape[0]:
        return x
    return jnp.pad(x, ((0, rows - x.shape[0]), (0, 0)))


def _layernorm_f32(y, g, beta):
    mu = jnp.mean(y, axis=-1, keepdims=True)
    var = jnp.mean(jnp.square(y - mu), axis=-1, keepdims=True)
    return (y - mu) * lax.rsqrt(var + LN_EPS) * g + beta


# ---------------------------------------------------------------------------
# kernel 1: plain linear  y = x @ W + b
# ---------------------------------------------------------------------------
def _linear_kernel(x_ref, w_ref, b_ref, o_ref):
    y = jnp.dot(x_ref[...], w_ref[...], preferred_element_type=jnp.float32)
    y = y + b_ref[...].astype(jnp.float32)
    o_ref[...] = y.astype(o_ref.dtype)


def linear(x, w, b, *, max_tile_m=256):
    M, K = x.shape
    N = w.shape[1]
    tm = min(max_tile_m, _round_up(M, 8))
    Mp = _round_up(M, tm)
    out = pl.pallas_call(
        _linear_kernel,
        out_shape=jax.ShapeDtypeStruct((Mp, N), x.dtype),
        grid=(Mp // tm,),
        in_specs=[
            pl.BlockSpec((tm, K), lambda i: (i, 0)),
            pl.BlockSpec((K, N), lambda i: (0, 0)),
            pl.BlockSpec((1, N), lambda i: (0, 0)),
        ],
        out_specs=pl.BlockSpec((tm, N), lambda i: (i, 0)),
        compiler_params=pltpu.CompilerParams(dimension_semantics=("parallel",)),
    )(_pad_rows(x, Mp), w, b)
    return out[:M] if Mp != M else out


# ---------------------------------------------------------------------------
# kernel 2: fused  LN(residual + x @ W + b)
# ---------------------------------------------------------------------------
def _linear_add_ln_kernel(x_ref, w_ref, b_ref, res_ref, g_ref, beta_ref, o_ref):
    y = jnp.dot(x_ref[...], w_ref[...], preferred_element_type=jnp.float32)
    y = y + b_ref[...].astype(jnp.float32) + res_ref[...].astype(jnp.float32)
    y = _layernorm_f32(y, g_ref[...].astype(jnp.float32), beta_ref[...].astype(jnp.float32))
    o_ref[...] = y.astype(o_ref.dtype)


def linear_add_ln(x, w, b, res, g, beta, *, max_tile_m=256):
    M, K = x.shape
    N = w.shape[1]
    tm = min(max_tile_m, _round_up(M, 8))
    Mp = _round_up(M, tm)
    out = pl.pallas_call(
        _linear_add_ln_kernel,
        out_shape=jax.ShapeDtypeStruct((Mp, N), x.dtype),
        grid=(Mp // tm,),
        in_specs=[
            pl.BlockSpec((tm, K), lambda i: (i, 0)),
            pl.BlockSpec((K, N), lambda i: (0, 0)),
            pl.BlockSpec((1, N), lambda i: (0, 0)),
            pl.BlockSpec((tm, N), lambda i: (i, 0)),
            pl.BlockSpec((1, N), lambda i: (0, 0)),
            pl.BlockSpec((1, N), lambda i: (0, 0)),
        ],
        out_specs=pl.BlockSpec((tm, N), lambda i: (i, 0)),
        compiler_params=pltpu.CompilerParams(dimension_semantics=("parallel",)),
    )(_pad_rows(x, Mp), w, b, _pad_rows(res, Mp), g, beta)
    return out[:M] if Mp != M else out


# ---------------------------------------------------------------------------
# kernel 3: fused FFN block  LN(residual + gelu(x @ W1 + b1) @ W2 + b2)
# ---------------------------------------------------------------------------
def _ffn_add_ln_kernel(x_ref, w1_ref, b1_ref, w2_ref, b2_ref, res_ref, g_ref, beta_ref, o_ref):
    h = jnp.dot(x_ref[...], w1_ref[...], preferred_element_type=jnp.float32)
    h = jax.nn.gelu(h + b1_ref[...].astype(jnp.float32), approximate=True)
    y = jnp.dot(h.astype(x_ref.dtype), w2_ref[...], preferred_element_type=jnp.float32)
    y = y + b2_ref[...].astype(jnp.float32) + res_ref[...].astype(jnp.float32)
    y = _layernorm_f32(y, g_ref[...].astype(jnp.float32), beta_ref[...].astype(jnp.float32))
    o_ref[...] = y.astype(o_ref.dtype)


def ffn_add_ln(x, w1, b1, w2, b2, res, g, beta, *, max_tile_m=256):
    M, E = x.shape
    F = w1.shape[1]
    tm = min(max_tile_m, _round_up(M, 8))
    Mp = _round_up(M, tm)
    out = pl.pallas_call(
        _ffn_add_ln_kernel,
        out_shape=jax.ShapeDtypeStruct((Mp, E), x.dtype),
        grid=(Mp // tm,),
        in_specs=[
            pl.BlockSpec((tm, E), lambda i: (i, 0)),
            pl.BlockSpec((E, F), lambda i: (0, 0)),
            pl.BlockSpec((1, F), lambda i: (0, 0)),
            pl.BlockSpec((F, E), lambda i: (0, 0)),
            pl.BlockSpec((1, E), lambda i: (0, 0)),
            pl.BlockSpec((tm, E), lambda i: (i, 0)),
            pl.BlockSpec((1, E), lambda i: (0, 0)),
            pl.BlockSpec((1, E), lambda i: (0, 0)),
        ],
        out_specs=pl.BlockSpec((tm, E), lambda i: (i, 0)),
        compiler_params=pltpu.CompilerParams(dimension_semantics=("parallel",)),
    )(_pad_rows(x, Mp), w1, b1, w2, b2, _pad_rows(res, Mp), g, beta)
    return out[:M] if Mp != M else out


# ---------------------------------------------------------------------------
# kernel 4: multi-head attention core (one batch element per grid step,
#           all heads batched onto the MXU; bias = causal + key-padding)
# ---------------------------------------------------------------------------
def _mha_kernel(q_ref, k_ref, v_ref, bias_ref, o_ref, *, scaling):
    q = q_ref[...] * scaling                                   # (H, Tq, Dh)
    s = jnp.einsum("htd,hsd->hts", q, k_ref[...],
                   preferred_element_type=jnp.float32)          # (H, Tq, Tk)
    s = s + bias_ref[...][None, :, :].astype(jnp.float32)
    s = s - jnp.max(s, axis=-1, keepdims=True)
    p = jnp.exp(s)
    p = p / jnp.sum(p, axis=-1, keepdims=True)
    o = jnp.einsum("hts,hsd->htd", p.astype(v_ref.dtype), v_ref[...],
                   preferred_element_type=jnp.float32)          # (H, Tq, Dh)
    o_ref[...] = o.astype(o_ref.dtype)


def mha(q, k, v, bias, scaling):
    B, H, Tq, Dh = q.shape
    Tk = k.shape[2]
    kernel = functools.partial(_mha_kernel, scaling=scaling)
    return pl.pallas_call(
        kernel,
        out_shape=jax.ShapeDtypeStruct((B, H, Tq, Dh), q.dtype),
        grid=(B,),
        in_specs=[
            pl.BlockSpec((None, H, Tq, Dh), lambda b: (b, 0, 0, 0)),
            pl.BlockSpec((None, H, Tk, Dh), lambda b: (b, 0, 0, 0)),
            pl.BlockSpec((None, H, Tk, Dh), lambda b: (b, 0, 0, 0)),
            pl.BlockSpec((None, Tq, Tk), lambda b: (b, 0, 0)),
        ],
        out_specs=pl.BlockSpec((None, H, Tq, Dh), lambda b: (b, 0, 0, 0)),
        compiler_params=pltpu.CompilerParams(dimension_semantics=("parallel",)),
    )(q, k, v, bias)


# ---------------------------------------------------------------------------
# Attention module (projections + fused attention core).  Returns the
# pre-out_proj output (Tq*B, E) so the caller can fuse out_proj downstream.
# ---------------------------------------------------------------------------
def attention_forward(p, query, key, key_padding_mask, attn_mask, num_heads):
    Tq, B, E = query.shape
    H, Dh = num_heads, E // num_heads
    scaling = float(Dh) ** -0.5

    if key is None:  # self-attention: fused, lane-dense 3E-wide QKV projection
        Tk = Tq
        w_qkv = jnp.concatenate([p["wq"], p["wk"], p["wv"]], axis=1)
        b_qkv = jnp.concatenate([p["bq"], p["bk"], p["bv"]], axis=1)
        qkv = linear(query.reshape(Tq * B, E), w_qkv, b_qkv)
        q2, k2, v2 = jnp.split(qkv, 3, axis=-1)
    else:            # cross-attention: fused KV projection on encoder states
        Tk = key.shape[0]
        q2 = linear(query.reshape(Tq * B, E), p["wq"], p["bq"])
        w_kv = jnp.concatenate([p["wk"], p["wv"]], axis=1)
        b_kv = jnp.concatenate([p["bk"], p["bv"]], axis=1)
        kv = linear(key.reshape(Tk * B, E), w_kv, b_kv)
        k2, v2 = jnp.split(kv, 2, axis=-1)

    # (T*B, E) -> (B, H, T, Dh)  (matches PyTorch _shape: b-major, h-minor)
    q4 = q2.reshape(Tq, B, H, Dh).transpose(1, 2, 0, 3)
    k4 = k2.reshape(Tk, B, H, Dh).transpose(1, 2, 0, 3)
    v4 = v2.reshape(Tk, B, H, Dh).transpose(1, 2, 0, 3)

    bias = jnp.zeros((B, Tq, Tk), jnp.float32)
    if attn_mask is not None:
        bias = bias + attn_mask[None, :, :].astype(jnp.float32)
    if key_padding_mask is not None:
        bias = bias + jnp.where(key_padding_mask, NEG_INF, 0.0)[:, None, :]

    o4 = mha(q4, k4, v4, bias.astype(q4.dtype), scaling)       # (B, H, Tq, Dh)
    o = o4.transpose(2, 0, 1, 3).reshape(Tq * B, E)
    cache = dict(prev_key=k4, prev_value=v4)                   # (B, H, Tk, Dh)
    return o, cache


# ---------------------------------------------------------------------------
# multiDecoderLayer forward
# ---------------------------------------------------------------------------
def multi_decoder_layer(params, x, encoder_hidden_states, encoder_attn_mask,
                        causal_mask=None, decoder_padding_mask=None, *, num_heads):
    T, B, E = x.shape
    M = T * B
    x2d = x.reshape(M, E)
    layer_state = {}

    # --- self attention block (post-norm: add residual then LN) ---
    residual = x2d
    sa, self_cache = attention_forward(params["self_attn"], x, None,
                                       decoder_padding_mask, causal_mask, num_heads)
    layer_state["self"] = self_cache
    x2d = linear_add_ln(sa, params["self_attn"]["wo"], params["self_attn"]["bo"],
                        residual, params["self_ln"]["g"], params["self_ln"]["b"])

    # --- multi-source cross attention block ---
    residual = x2d
    x3 = x2d.reshape(T, B, E)
    cache_keys = {"source": "encoder_decoder", "persona": "encoder_decoder_p",
                  "event": "encoder_decoder_i"}
    cross_outs = []
    for name in MULTI_INPUTS:
        p = params["cross"][name]
        a, cache = attention_forward(p, x3, encoder_hidden_states[name],
                                     encoder_attn_mask[name], None, num_heads)
        cross_outs.append(linear(a, p["wo"], p["bo"]))          # per-stream out_proj
        layer_state[cache_keys[name]] = cache
    cat = jnp.concatenate(cross_outs, axis=-1)                  # (M, 3E)
    x2d = linear_add_ln(cat, params["weight_attn"]["w"], params["weight_attn"]["b"],
                        residual, params["enc_ln"]["g"], params["enc_ln"]["b"])

    # --- feed-forward block (fc1 + gelu + fc2 + residual + LN fused) ---
    x2d = ffn_add_ln(x2d, params["fc1"]["w"], params["fc1"]["b"],
                     params["fc2"]["w"], params["fc2"]["b"],
                     x2d, params["final_ln"]["g"], params["final_ln"]["b"])

    out = x2d.reshape(T, B, E)
    # output_attentions=False path: attention weights are not materialized.
    return out, None, layer_state, {k: None for k in MULTI_INPUTS}


# ---------------------------------------------------------------------------
# parameter init (nn.Linear-style; weights stored transposed (in, out))
# ---------------------------------------------------------------------------
def _init_linear(key, fan_in, fan_out, dtype=jnp.float32):
    kw, kb = jax.random.split(key)
    bound = 1.0 / math.sqrt(fan_in)
    w = jax.random.uniform(kw, (fan_in, fan_out), dtype, -bound, bound)
    b = jax.random.uniform(kb, (1, fan_out), dtype, -bound, bound)
    return w, b


def _init_attention(key, embed_dim, dtype=jnp.float32):
    ks = jax.random.split(key, 4)
    wq, bq = _init_linear(ks[0], embed_dim, embed_dim, dtype)
    wk, bk = _init_linear(ks[1], embed_dim, embed_dim, dtype)
    wv, bv = _init_linear(ks[2], embed_dim, embed_dim, dtype)
    wo, bo = _init_linear(ks[3], embed_dim, embed_dim, dtype)
    return dict(wq=wq, bq=bq, wk=wk, bk=bk, wv=wv, bv=bv, wo=wo, bo=bo)


def _init_ln(embed_dim, dtype=jnp.float32):
    return dict(g=jnp.ones((1, embed_dim), dtype), b=jnp.zeros((1, embed_dim), dtype))


def init_params(key, embed_dim, ffn_dim, dtype=jnp.float32):
    ks = jax.random.split(key, 7)
    w_wa, b_wa = _init_linear(ks[4], 3 * embed_dim, embed_dim, dtype)
    w1, b1 = _init_linear(ks[5], embed_dim, ffn_dim, dtype)
    w2, b2 = _init_linear(ks[6], ffn_dim, embed_dim, dtype)
    return {
        "self_attn": _init_attention(ks[0], embed_dim, dtype),
        "self_ln": _init_ln(embed_dim, dtype),
        "cross": {
            "source": _init_attention(ks[1], embed_dim, dtype),
            "persona": _init_attention(ks[2], embed_dim, dtype),
            "event": _init_attention(ks[3], embed_dim, dtype),
        },
        "enc_ln": _init_ln(embed_dim, dtype),
        "weight_attn": dict(w=w_wa, b=b_wa),
        "fc1": dict(w=w1, b=b1),
        "fc2": dict(w=w2, b=b2),
        "final_ln": _init_ln(embed_dim, dtype),
    }


# ---------------------------------------------------------------------------
# pure-JAX reference (mirrors the PyTorch module, inference mode)
# ---------------------------------------------------------------------------
def _ref_layernorm(y, g, b):
    mu = y.mean(-1, keepdims=True)
    var = ((y - mu) ** 2).mean(-1, keepdims=True)
    return (y - mu) / jnp.sqrt(var + LN_EPS) * g[0] + b[0]


def _ref_attention(p, query, key, key_padding_mask, attn_mask, num_heads):
    Tq, B, E = query.shape
    Tk = key.shape[0]
    H, Dh = num_heads, E // num_heads
    scaling = float(Dh) ** -0.5
    q = (query @ p["wq"] + p["bq"][0]) * scaling
    k = key @ p["wk"] + p["bk"][0]
    v = key @ p["wv"] + p["bv"][0]

    def shp(t, T):
        return t.reshape(T, B, H, Dh).transpose(1, 2, 0, 3).reshape(B * H, T, Dh)

    q, k, v = shp(q, Tq), shp(k, Tk), shp(v, Tk)
    w = jnp.einsum("btd,bsd->bts", q, k)
    if attn_mask is not None:
        w = (w.reshape(B, H, Tq, Tk) + attn_mask).reshape(B * H, Tq, Tk)
    if key_padding_mask is not None:
        w = w.reshape(B, H, Tq, Tk)
        w = jnp.where(key_padding_mask[:, None, None, :], NEG_INF, w)
        w = w.reshape(B * H, Tq, Tk)
    w = jax.nn.softmax(w, axis=-1)
    o = jnp.einsum("bts,bsd->btd", w, v)
    o = o.reshape(B, H, Tq, Dh).transpose(2, 0, 1, 3).reshape(Tq, B, E)
    return o @ p["wo"] + p["bo"][0]


def ref_multi_decoder_layer(params, x, enc_h, enc_mask, causal_mask, dec_pad_mask, num_heads):
    residual = x
    a = _ref_attention(params["self_attn"], x, x, dec_pad_mask, causal_mask, num_heads)
    x = _ref_layernorm(residual + a, params["self_ln"]["g"], params["self_ln"]["b"])
    residual = x
    outs = [_ref_attention(params["cross"][k], x, enc_h[k], enc_mask[k], None, num_heads)
            for k in MULTI_INPUTS]
    cat = jnp.concatenate(outs, axis=-1)
    w = cat @ params["weight_attn"]["w"] + params["weight_attn"]["b"][0]
    x = _ref_layernorm(residual + w, params["enc_ln"]["g"], params["enc_ln"]["b"])
    residual = x
    h = jax.nn.gelu(x @ params["fc1"]["w"] + params["fc1"]["b"][0], approximate=True)
    h = h @ params["fc2"]["w"] + params["fc2"]["b"][0]
    x = _ref_layernorm(residual + h, params["final_ln"]["g"], params["final_ln"]["b"])
    return x


# ---------------------------------------------------------------------------
if __name__ == "__main__":
    T, B, E, H, FFN = 8, 2, 64, 4, 128
    src_lens = {"source": 12, "persona": 10, "event": 6}

    key = jax.random.PRNGKey(0)
    keys = jax.random.split(key, 2 + len(MULTI_INPUTS))
    kx, kp, kh = keys[0], keys[1], keys[2:]

    x = jax.random.normal(kx, (T, B, E), jnp.float32)
    params = init_params(kp, E, FFN)
    enc_h = {name: jax.random.normal(kh[i], (src_lens[name], B, E), jnp.float32)
             for i, name in enumerate(MULTI_INPUTS)}

    # boolean key-padding masks (True = padded position)
    dec_valid = jnp.array([T, T - 2])
    dec_pad_mask = jnp.arange(T)[None, :] >= dec_valid[:, None]
    enc_valid = {"source": jnp.array([12, 9]), "persona": jnp.array([10, 7]),
                 "event": jnp.array([6, 4])}
    enc_mask = {name: jnp.arange(src_lens[name])[None, :] >= enc_valid[name][:, None]
                for name in MULTI_INPUTS}

    # additive causal mask (upper triangle masked)
    causal_mask = jnp.triu(jnp.full((T, T), NEG_INF, jnp.float32), k=1)

    fwd = jax.jit(functools.partial(multi_decoder_layer, num_heads=H))
    out, self_w, layer_state, cross_w = fwd(params, x, enc_h, enc_mask,
                                            causal_mask, dec_pad_mask)
    out = jax.block_until_ready(out)

    assert out.shape == (T, B, E)
    assert layer_state["self"]["prev_key"].shape == (B, H, T, E // H)
    assert layer_state["encoder_decoder"]["prev_key"].shape == (B, H, src_lens["source"], E // H)

    with jax.default_matmul_precision("highest"):
        ref = ref_multi_decoder_layer(params, x, enc_h, enc_mask,
                                      causal_mask, dec_pad_mask, H)
    max_err = float(jnp.max(jnp.abs(out - ref)))
    assert jnp.allclose(out, ref, atol=2e-3, rtol=2e-3), f"max abs err {max_err}"

    print("KERNEL_OK")
</pallas_src>

<mosaic_0001>
module attributes {stable_mosaic.version = 11 : i64} {
  func.func @_linear_kernel(%arg0: i32, %arg1: memref<16x64xf32, #tpu.memory_space<vmem>>, %arg2: memref<64x192xf32, #tpu.memory_space<vmem>>, %arg3: memref<1x192xf32, #tpu.memory_space<vmem>>, %arg4: memref<16x192xf32, #tpu.memory_space<vmem>>) attributes {dimension_semantics = [#tpu.dimension_semantics<parallel>], iteration_bounds = array<i64: 1>, scalar_prefetch = 0 : i64, scratch_operands = 0 : i64, tpu.core_type = #tpu.core_type<tc>, window_params = [{transform_indices = @transform_0, window_bounds = array<i64: 16, 64>}, {pipeline_mode = #tpu.pipeline_mode<synchronous>, transform_indices = @transform_1, window_bounds = array<i64: 64, 192>}, {pipeline_mode = #tpu.pipeline_mode<synchronous>, transform_indices = @transform_2, window_bounds = array<i64: 1, 192>}, {transform_indices = @transform_3, window_bounds = array<i64: 16, 192>}]} {
    %c0 = arith.constant 0 : index
    %c0_0 = arith.constant 0 : index
    %0 = vector.load %arg1[%c0, %c0_0] : memref<16x64xf32, #tpu.memory_space<vmem>>, vector<16x64xf32>
    %c0_1 = arith.constant 0 : index
    %c0_2 = arith.constant 0 : index
    %1 = vector.load %arg2[%c0_1, %c0_2] : memref<64x192xf32, #tpu.memory_space<vmem>>, vector<64x192xf32>
    %cst = arith.constant dense<0.000000e+00> : vector<16x192xf32>
    %2 = tpu.matmul %0, %1, %cst {dimension_numbers = #tpu.dot_dimension_numbers<[1], [0], [0], [1], [0, 0, 1, 1], [], []>} : vector<16x64xf32>, vector<64x192xf32>, vector<16x192xf32> -> vector<16x192xf32>
    %c0_3 = arith.constant 0 : index
    %c0_4 = arith.constant 0 : index
    %3 = vector.load %arg3[%c0_3, %c0_4] : memref<1x192xf32, #tpu.memory_space<vmem>>, vector<1x192xf32>
    %4 = vector.broadcast %3 : vector<1x192xf32> to vector<16x192xf32>
    %5 = arith.addf %2, %4 : vector<16x192xf32>
    %c0_5 = arith.constant 0 : index
    %c0_6 = arith.constant 0 : index
    %6 = vector.load %arg4[%c0_5, %c0_6] : memref<16x192xf32, #tpu.memory_space<vmem>>, vector<16x192xf32>
    tpu.vector_store %arg4[%c0_5, %c0_6], %5 {strides = array<i32>} : memref<16x192xf32, #tpu.memory_space<vmem>>, vector<16x192xf32>,
    return
  }
  func.func @transform_0(%arg0: i32) -> (i32, i32) {
    %c0_i32 = arith.constant 0 : i32
    %c0_i32_0 = arith.constant 0 : i32
    return %arg0, %c0_i32 : i32, i32
  }
  func.func @transform_1(%arg0: i32) -> (i32, i32) {
    %c0_i32 = arith.constant 0 : i32
    %c0_i32_0 = arith.constant 0 : i32
    %c0_i32_1 = arith.constant 0 : i32
    return %c0_i32, %c0_i32_0 : i32, i32
  }
  func.func @transform_2(%arg0: i32) -> (i32, i32) {
    %c0_i32 = arith.constant 0 : i32
    %c0_i32_0 = arith.constant 0 : i32
    %c0_i32_1 = arith.constant 0 : i32
    return %c0_i32, %c0_i32_0 : i32, i32
  }
  func.func @transform_3(%arg0: i32) -> (i32, i32) {
    %c0_i32 = arith.constant 0 : i32
    %c0_i32_0 = arith.constant 0 : i32
    return %arg0, %c0_i32 : i32, i32
  }
}

module attributes {stable_mosaic.version = 11 : i64} {
  func.func @_linear_add_ln_kernel(%arg0: i32, %arg1: memref<16x64xf32, #tpu.memory_space<vmem>>, %arg2: memref<64x64xf32, #tpu.memory_space<vmem>>, %arg3: memref<1x64xf32, #tpu.memory_space<vmem>>, %arg4: memref<16x64xf32, #tpu.memory_space<vmem>>, %arg5: memref<1x64xf32, #tpu.memory_space<vmem>>, %arg6: memref<1x64xf32, #tpu.memory_space<vmem>>, %arg7: memref<16x64xf32, #tpu.memory_space<vmem>>) attributes {dimension_semantics = [#tpu.dimension_semantics<parallel>], iteration_bounds = array<i64: 1>, scalar_prefetch = 0 : i64, scratch_operands = 0 : i64, tpu.core_type = #tpu.core_type<tc>, window_params = [{transform_indices = @transform_0, window_bounds = array<i64: 16, 64>}, {pipeline_mode = #tpu.pipeline_mode<synchronous>, transform_indices = @transform_1, window_bounds = array<i64: 64, 64>}, {pipeline_mode = #tpu.pipeline_mode<synchronous>, transform_indices = @transform_2, window_bounds = array<i64: 1, 64>}, {transform_indices = @transform_3, window_bounds = array<i64: 16, 64>}, {pipeline_mode = #tpu.pipeline_mode<synchronous>, transform_indices = @transform_4, window_bounds = array<i64: 1, 64>}, {pipeline_mode = #tpu.pipeline_mode<synchronous>, transform_indices = @transform_5, window_bounds = array<i64: 1, 64>}, {transform_indices = @transform_6, window_bounds = array<i64: 16, 64>}]} {
    %c0 = arith.constant 0 : index
    %c0_0 = arith.constant 0 : index
    %0 = vector.load %arg1[%c0, %c0_0] : memref<16x64xf32, #tpu.memory_space<vmem>>, vector<16x64xf32>
    %c0_1 = arith.constant 0 : index
    %c0_2 = arith.constant 0 : index
    %1 = vector.load %arg2[%c0_1, %c0_2] : memref<64x64xf32, #tpu.memory_space<vmem>>, vector<64x64xf32>
    %cst = arith.constant dense<0.000000e+00> : vector<16x64xf32>
    %2 = tpu.matmul %0, %1, %cst {dimension_numbers = #tpu.dot_dimension_numbers<[1], [0], [0], [1], [0, 0, 1, 1], [], []>} : vector<16x64xf32>, vector<64x64xf32>, vector<16x64xf32> -> vector<16x64xf32>
    %c0_3 = arith.constant 0 : index
    %c0_4 = arith.constant 0 : index
    %3 = vector.load %arg3[%c0_3, %c0_4] : memref<1x64xf32, #tpu.memory_space<vmem>>, vector<1x64xf32>
    %4 = vector.broadcast %3 : vector<1x64xf32> to vector<16x64xf32>
    %5 = arith.addf %2, %4 : vector<16x64xf32>
    %c0_5 = arith.constant 0 : index
    %c0_6 = arith.constant 0 : index
    %6 = vector.load %arg4[%c0_5, %c0_6] : memref<16x64xf32, #tpu.memory_space<vmem>>, vector<16x64xf32>
    %7 = arith.addf %5, %6 : vector<16x64xf32>
    %c0_7 = arith.constant 0 : index
    %c0_8 = arith.constant 0 : index
    %8 = vector.load %arg5[%c0_7, %c0_8] : memref<1x64xf32, #tpu.memory_space<vmem>>, vector<1x64xf32>
    %c0_9 = arith.constant 0 : index
    %c0_10 = arith.constant 0 : index
    %9 = vector.load %arg6[%c0_9, %c0_10] : memref<1x64xf32, #tpu.memory_space<vmem>>, vector<1x64xf32>
    %cst_11 = arith.constant dense<0.000000e+00> : vector<16xf32>
    %10 = vector.multi_reduction <add>, %7, %cst_11 [1] : vector<16x64xf32> to vector<16xf32>
    %11 = vector.shape_cast %10 : vector<16xf32> to vector<16x1xf32>
    %cst_12 = arith.constant 6.400000e+01 : f32
    %12 = vector.broadcast %cst_12 : f32 to vector<16x1xf32>
    %13 = arith.divf %11, %12 : vector<16x1xf32>
    %14 = vector.broadcast %13 : vector<16x1xf32> to vector<16x64xf32>
    %15 = arith.subf %7, %14 : vector<16x64xf32>
    %16 = arith.mulf %15, %15 : vector<16x64xf32>
    %cst_13 = arith.constant dense<0.000000e+00> : vector<16xf32>
    %17 = vector.multi_reduction <add>, %16, %cst_13 [1] : vector<16x64xf32> to vector<16xf32>
    %18 = vector.shape_cast %17 : vector<16xf32> to vector<16x1xf32>
    %cst_14 = arith.constant 6.400000e+01 : f32
    %19 = vector.broadcast %cst_14 : f32 to vector<16x1xf32>
    %20 = arith.divf %18, %19 : vector<16x1xf32>
    %21 = vector.broadcast %13 : vector<16x1xf32> to vector<16x64xf32>
    %22 = arith.subf %7, %21 : vector<16x64xf32>
    %cst_15 = arith.constant 9.99999974E-6 : f32
    %23 = vector.broadcast %cst_15 : f32 to vector<16x1xf32>
    %24 = arith.addf %20, %23 : vector<16x1xf32>
    %25 = math.rsqrt %24 : vector<16x1xf32>
    %26 = vector.broadcast %25 : vector<16x1xf32> to vector<16x64xf32>
    %27 = arith.mulf %22, %26 : vector<16x64xf32>
    %28 = vector.broadcast %8 : vector<1x64xf32> to vector<16x64xf32>
    %29 = arith.mulf %27, %28 : vector<16x64xf32>
    %30 = vector.broadcast %9 : vector<1x64xf32> to vector<16x64xf32>
    %31 = arith.addf %29, %30 : vector<16x64xf32>
    %c0_16 = arith.constant 0 : index
    %c0_17 = arith.constant 0 : index
    %32 = vector.load %arg7[%c0_16, %c0_17] : memref<16x64xf32, #tpu.memory_space<vmem>>, vector<16x64xf32>
    tpu.vector_store %arg7[%c0_16, %c0_17], %31 {strides = array<i32>} : memref<16x64xf32, #tpu.memory_space<vmem>>, vector<16x64xf32>,
    return
  }
  func.func @transform_0(%arg0: i32) -> (i32, i32) {
    %c0_i32 = arith.constant 0 : i32
    %c0_i32_0 = arith.constant 0 : i32
    return %arg0, %c0_i32 : i32, i32
  }
  func.func @transform_1(%arg0: i32) -> (i32, i32) {
    %c0_i32 = arith.constant 0 : i32
    %c0_i32_0 = arith.constant 0 : i32
    %c0_i32_1 = arith.constant 0 : i32
    return %c0_i32, %c0_i32_0 : i32, i32
  }
  func.func @transform_2(%arg0: i32) -> (i32, i32) {
    %c0_i32 = arith.constant 0 : i32
    %c0_i32_0 = arith.constant 0 : i32
    %c0_i32_1 = arith.constant 0 : i32
    return %c0_i32, %c0_i32_0 : i32, i32
  }
  func.func @transform_3(%arg0: i32) -> (i32, i32) {
    %c0_i32 = arith.constant 0 : i32
    %c0_i32_0 = arith.constant 0 : i32
    return %arg0, %c0_i32 : i32, i32
  }
  func.func @transform_4(%arg0: i32) -> (i32, i32) {
    %c0_i32 = arith.constant 0 : i32
    %c0_i32_0 = arith.constant 0 : i32
    %c0_i32_1 = arith.constant 0 : i32
    return %c0_i32, %c0_i32_0 : i32, i32
  }
  func.func @transform_5(%arg0: i32) -> (i32, i32) {
    %c0_i32 = arith.constant 0 : i32
    %c0_i32_0 = arith.constant 0 : i32
    %c0_i32_1 = arith.constant 0 : i32
    return %c0_i32, %c0_i32_0 : i32, i32
  }
  func.func @transform_6(%arg0: i32) -> (i32, i32) {
    %c0_i32 = arith.constant 0 : i32
    %c0_i32_0 = arith.constant 0 : i32
    return %arg0, %c0_i32 : i32, i32
  }
}

module attributes {stable_mosaic.version = 11 : i64} {
  func.func @_linear_kernel(%arg0: i32, %arg1: memref<16x64xf32, #tpu.memory_space<vmem>>, %arg2: memref<64x64xf32, #tpu.memory_space<vmem>>, %arg3: memref<1x64xf32, #tpu.memory_space<vmem>>, %arg4: memref<16x64xf32, #tpu.memory_space<vmem>>) attributes {dimension_semantics = [#tpu.dimension_semantics<parallel>], iteration_bounds = array<i64: 1>, scalar_prefetch = 0 : i64, scratch_operands = 0 : i64, tpu.core_type = #tpu.core_type<tc>, window_params = [{transform_indices = @transform_0, window_bounds = array<i64: 16, 64>}, {pipeline_mode = #tpu.pipeline_mode<synchronous>, transform_indices = @transform_1, window_bounds = array<i64: 64, 64>}, {pipeline_mode = #tpu.pipeline_mode<synchronous>, transform_indices = @transform_2, window_bounds = array<i64: 1, 64>}, {transform_indices = @transform_3, window_bounds = array<i64: 16, 64>}]} {
    %c0 = arith.constant 0 : index
    %c0_0 = arith.constant 0 : index
    %0 = vector.load %arg1[%c0, %c0_0] : memref<16x64xf32, #tpu.memory_space<vmem>>, vector<16x64xf32>
    %c0_1 = arith.constant 0 : index
    %c0_2 = arith.constant 0 : index
    %1 = vector.load %arg2[%c0_1, %c0_2] : memref<64x64xf32, #tpu.memory_space<vmem>>, vector<64x64xf32>
    %cst = arith.constant dense<0.000000e+00> : vector<16x64xf32>
    %2 = tpu.matmul %0, %1, %cst {dimension_numbers = #tpu.dot_dimension_numbers<[1], [0], [0], [1], [0, 0, 1, 1], [], []>} : vector<16x64xf32>, vector<64x64xf32>, vector<16x64xf32> -> vector<16x64xf32>
    %c0_3 = arith.constant 0 : index
    %c0_4 = arith.constant 0 : index
    %3 = vector.load %arg3[%c0_3, %c0_4] : memref<1x64xf32, #tpu.memory_space<vmem>>, vector<1x64xf32>
    %4 = vector.broadcast %3 : vector<1x64xf32> to vector<16x64xf32>
    %5 = arith.addf %2, %4 : vector<16x64xf32>
    %c0_5 = arith.constant 0 : index
    %c0_6 = arith.constant 0 : index
    %6 = vector.load %arg4[%c0_5, %c0_6] : memref<16x64xf32, #tpu.memory_space<vmem>>, vector<16x64xf32>
    tpu.vector_store %arg4[%c0_5, %c0_6], %5 {strides = array<i32>} : memref<16x64xf32, #tpu.memory_space<vmem>>, vector<16x64xf32>,
    return
  }
  func.func @transform_0(%arg0: i32) -> (i32, i32) {
    %c0_i32 = arith.constant 0 : i32
    %c0_i32_0 = arith.constant 0 : i32
    return %arg0, %c0_i32 : i32, i32
  }
  func.func @transform_1(%arg0: i32) -> (i32, i32) {
    %c0_i32 = arith.constant 0 : i32
    %c0_i32_0 = arith.constant 0 : i32
    %c0_i32_1 = arith.constant 0 : i32
    return %c0_i32, %c0_i32_0 : i32, i32
  }
  func.func @transform_2(%arg0: i32) -> (i32, i32) {
    %c0_i32 = arith.constant 0 : i32
    %c0_i32_0 = arith.constant 0 : i32
    %c0_i32_1 = arith.constant 0 : i32
    return %c0_i32, %c0_i32_0 : i32, i32
  }
  func.func @transform_3(%arg0: i32) -> (i32, i32) {
    %c0_i32 = arith.constant 0 : i32
    %c0_i32_0 = arith.constant 0 : i32
    return %arg0, %c0_i32 : i32, i32
  }
}

module attributes {stable_mosaic.version = 11 : i64} {
  func.func @_mha_kernel(%arg0: i32, %arg1: memref<1x4x8x16xf32, #tpu.memory_space<vmem>>, %arg2: memref<1x4x8x16xf32, #tpu.memory_space<vmem>>, %arg3: memref<1x4x8x16xf32, #tpu.memory_space<vmem>>, %arg4: memref<1x8x8xf32, #tpu.memory_space<vmem>>, %arg5: memref<1x4x8x16xf32, #tpu.memory_space<vmem>>) attributes {dimension_semantics = [#tpu.dimension_semantics<parallel>], iteration_bounds = array<i64: 2>, scalar_prefetch = 0 : i64, scratch_operands = 0 : i64, tpu.core_type = #tpu.core_type<tc>, window_params = [{transform_indices = @transform_0, window_bounds = array<i64: 1, 4, 8, 16>}, {transform_indices = @transform_1, window_bounds = array<i64: 1, 4, 8, 16>}, {transform_indices = @transform_2, window_bounds = array<i64: 1, 4, 8, 16>}, {transform_indices = @transform_3, window_bounds = array<i64: 1, 8, 8>}, {transform_indices = @transform_4, window_bounds = array<i64: 1, 4, 8, 16>}]} {
    %c0 = arith.constant 0 : index
    %c0_0 = arith.constant 0 : index
    %c0_1 = arith.constant 0 : index
    %c0_2 = arith.constant 0 : index
    %0 = vector.load %arg1[%c0, %c0_0, %c0_1, %c0_2] : memref<1x4x8x16xf32, #tpu.memory_space<vmem>>, vector<1x4x8x16xf32>
    %1 = vector.shape_cast %0 : vector<1x4x8x16xf32> to vector<4x8x16xf32>
    %cst = arith.constant 2.500000e-01 : f32
    %2 = vector.broadcast %cst : f32 to vector<4x8x16xf32>
    %3 = arith.mulf %1, %2 : vector<4x8x16xf32>
    %c0_3 = arith.constant 0 : index
    %c0_4 = arith.constant 0 : index
    %c0_5 = arith.constant 0 : index
    %c0_6 = arith.constant 0 : index
    %4 = vector.load %arg2[%c0_3, %c0_4, %c0_5, %c0_6] : memref<1x4x8x16xf32, #tpu.memory_space<vmem>>, vector<1x4x8x16xf32>
    %5 = vector.shape_cast %4 : vector<1x4x8x16xf32> to vector<4x8x16xf32>
    "tpu.trace_start"() <{level = 10 : i32, message = "htd,hsd->hts"}> : () -> ()
    %cst_7 = arith.constant dense<0.000000e+00> : vector<4x8x8xf32>
    %6 = tpu.matmul %3, %5, %cst_7 {dimension_numbers = #tpu.dot_dimension_numbers<[2], [2], [1], [1], [0, 0, 0, 1, 1, 1], [0], [0]>} : vector<4x8x16xf32>, vector<4x8x16xf32>, vector<4x8x8xf32> -> vector<4x8x8xf32>
    "tpu.trace_stop"() : () -> ()
    %c0_8 = arith.constant 0 : index
    %c0_9 = arith.constant 0 : index
    %c0_10 = arith.constant 0 : index
    %7 = vector.load %arg4[%c0_8, %c0_9, %c0_10] : memref<1x8x8xf32, #tpu.memory_space<vmem>>, vector<1x8x8xf32>
    %8 = vector.shape_cast %7 : vector<1x8x8xf32> to vector<8x8xf32>
    %9 = vector.shape_cast %8 : vector<8x8xf32> to vector<1x8x8xf32>
    %10 = vector.broadcast %9 : vector<1x8x8xf32> to vector<4x8x8xf32>
    %11 = arith.addf %6, %10 : vector<4x8x8xf32>
    %cst_11 = arith.constant dense<0xFF800000> : vector<4x8xf32>
    %12 = vector.multi_reduction <maximumf>, %11, %cst_11 [2] : vector<4x8x8xf32> to vector<4x8xf32>
    %13 = vector.shape_cast %12 : vector<4x8xf32> to vector<4x8x1xf32>
    %14 = vector.broadcast %13 : vector<4x8x1xf32> to vector<4x8x8xf32>
    %15 = arith.subf %11, %14 : vector<4x8x8xf32>
    %16 = math.exp %15 : vector<4x8x8xf32>
    %cst_12 = arith.constant dense<0.000000e+00> : vector<4x8xf32>
    %17 = vector.multi_reduction <add>, %16, %cst_12 [2] : vector<4x8x8xf32> to vector<4x8xf32>
    %18 = vector.shape_cast %17 : vector<4x8xf32> to vector<4x8x1xf32>
    %19 = vector.broadcast %18 : vector<4x8x1xf32> to vector<4x8x8xf32>
    %20 = arith.divf %16, %19 : vector<4x8x8xf32>
    %c0_13 = arith.constant 0 : index
    %c0_14 = arith.constant 0 : index
    %c0_15 = arith.constant 0 : index
    %c0_16 = arith.constant 0 : index
    %21 = vector.load %arg3[%c0_13, %c0_14, %c0_15, %c0_16] : memref<1x4x8x16xf32, #tpu.memory_space<vmem>>, vector<1x4x8x16xf32>
    %22 = vector.shape_cast %21 : vector<1x4x8x16xf32> to vector<4x8x16xf32>
    "tpu.trace_start"() <{level = 10 : i32, message = "hts,hsd->htd"}> : () -> ()
    %cst_17 = arith.constant dense<0.000000e+00> : vector<4x8x16xf32>
    %23 = tpu.matmul %20, %22, %cst_17 {dimension_numbers = #tpu.dot_dimension_numbers<[2], [1], [1], [2], [0, 0, 0, 1, 1, 2], [0], [0]>} : vector<4x8x8xf32>, vector<4x8x16xf32>, vector<4x8x16xf32> -> vector<4x8x16xf32>
    "tpu.trace_stop"() : () -> ()
    %c0_18 = arith.constant 0 : index
    %c0_19 = arith.constant 0 : index
    %c0_20 = arith.constant 0 : index
    %c0_21 = arith.constant 0 : index
    %24 = vector.load %arg5[%c0_18, %c0_19, %c0_20, %c0_21] : memref<1x4x8x16xf32, #tpu.memory_space<vmem>>, vector<1x4x8x16xf32>
    %25 = vector.shape_cast %24 : vector<1x4x8x16xf32> to vector<4x8x16xf32>
    %26 = vector.shape_cast %23 : vector<4x8x16xf32> to vector<1x4x8x16xf32>
    tpu.vector_store %arg5[%c0_18, %c0_19, %c0_20, %c0_21], %26 {strides = array<i32>} : memref<1x4x8x16xf32, #tpu.memory_space<vmem>>, vector<1x4x8x16xf32>,
    return
  }
  func.func @transform_0(%arg0: i32) -> (i32, i32, i32, i32) {
    %c0_i32 = arith.constant 0 : i32
    %c0_i32_0 = arith.constant 0 : i32
    %c0_i32_1 = arith.constant 0 : i32
    %c0_i32_2 = arith.constant 0 : i32
    return %arg0, %c0_i32, %c0_i32_0, %c0_i32_1 : i32, i32, i32, i32
  }
  func.func @transform_1(%arg0: i32) -> (i32, i32, i32, i32) {
    %c0_i32 = arith.constant 0 : i32
    %c0_i32_0 = arith.constant 0 : i32
    %c0_i32_1 = arith.constant 0 : i32
    %c0_i32_2 = arith.constant 0 : i32
    return %arg0, %c0_i32, %c0_i32_0, %c0_i32_1 : i32, i32, i32, i32
  }
  func.func @transform_2(%arg0: i32) -> (i32, i32, i32, i32) {
    %c0_i32 = arith.constant 0 : i32
    %c0_i32_0 = arith.constant 0 : i32
    %c0_i32_1 = arith.constant 0 : i32
    %c0_i32_2 = arith.constant 0 : i32
    return %arg0, %c0_i32, %c0_i32_0, %c0_i32_1 : i32, i32, i32, i32
  }
  func.func @transform_3(%arg0: i32) -> (i32, i32, i32) {
    %c0_i32 = arith.constant 0 : i32
    %c0_i32_0 = arith.constant 0 : i32
    %c0_i32_1 = arith.constant 0 : i32
    return %arg0, %c0_i32, %c0_i32_0 : i32, i32, i32
  }
  func.func @transform_4(%arg0: i32) -> (i32, i32, i32, i32) {
    %c0_i32 = arith.constant 0 : i32
    %c0_i32_0 = arith.constant 0 : i32
    %c0_i32_1 = arith.constant 0 : i32
    %c0_i32_2 = arith.constant 0 : i32
    return %arg0, %c0_i32, %c0_i32_0, %c0_i32_1 : i32, i32, i32, i32
  }
}

module attributes {stable_mosaic.version = 11 : i64} {
  func.func @_linear_kernel(%arg0: i32, %arg1: memref<24x64xf32, #tpu.memory_space<vmem>>, %arg2: memref<64x128xf32, #tpu.memory_space<vmem>>, %arg3: memref<1x128xf32, #tpu.memory_space<vmem>>, %arg4: memref<24x128xf32, #tpu.memory_space<vmem>>) attributes {dimension_semantics = [#tpu.dimension_semantics<parallel>], iteration_bounds = array<i64: 1>, scalar_prefetch = 0 : i64, scratch_operands = 0 : i64, tpu.core_type = #tpu.core_type<tc>, window_params = [{transform_indices = @transform_0, window_bounds = array<i64: 24, 64>}, {pipeline_mode = #tpu.pipeline_mode<synchronous>, transform_indices = @transform_1, window_bounds = array<i64: 64, 128>}, {pipeline_mode = #tpu.pipeline_mode<synchronous>, transform_indices = @transform_2, window_bounds = array<i64: 1, 128>}, {transform_indices = @transform_3, window_bounds = array<i64: 24, 128>}]} {
    %c0 = arith.constant 0 : index
    %c0_0 = arith.constant 0 : index
    %0 = vector.load %arg1[%c0, %c0_0] : memref<24x64xf32, #tpu.memory_space<vmem>>, vector<24x64xf32>
    %c0_1 = arith.constant 0 : index
    %c0_2 = arith.constant 0 : index
    %1 = vector.load %arg2[%c0_1, %c0_2] : memref<64x128xf32, #tpu.memory_space<vmem>>, vector<64x128xf32>
    %cst = arith.constant dense<0.000000e+00> : vector<24x128xf32>
    %2 = tpu.matmul %0, %1, %cst {dimension_numbers = #tpu.dot_dimension_numbers<[1], [0], [0], [1], [0, 0, 1, 1], [], []>} : vector<24x64xf32>, vector<64x128xf32>, vector<24x128xf32> -> vector<24x128xf32>
    %c0_3 = arith.constant 0 : index
    %c0_4 = arith.constant 0 : index
    %3 = vector.load %arg3[%c0_3, %c0_4] : memref<1x128xf32, #tpu.memory_space<vmem>>, vector<1x128xf32>
    %4 = vector.broadcast %3 : vector<1x128xf32> to vector<24x128xf32>
    %5 = arith.addf %2, %4 : vector<24x128xf32>
    %c0_5 = arith.constant 0 : index
    %c0_6 = arith.constant 0 : index
    %6 = vector.load %arg4[%c0_5, %c0_6] : memref<24x128xf32, #tpu.memory_space<vmem>>, vector<24x128xf32>
    tpu.vector_store %arg4[%c0_5, %c0_6], %5 {strides = array<i32>} : memref<24x128xf32, #tpu.memory_space<vmem>>, vector<24x128xf32>,
    return
  }
  func.func @transform_0(%arg0: i32) -> (i32, i32) {
    %c0_i32 = arith.constant 0 : i32
    %c0_i32_0 = arith.constant 0 : i32
    return %arg0, %c0_i32 : i32, i32
  }
  func.func @transform_1(%arg0: i32) -> (i32, i32) {
    %c0_i32 = arith.constant 0 : i32
    %c0_i32_0 = arith.constant 0 : i32
    %c0_i32_1 = arith.constant 0 : i32
    return %c0_i32, %c0_i32_0 : i32, i32
  }
  func.func @transform_2(%arg0: i32) -> (i32, i32) {
    %c0_i32 = arith.constant 0 : i32
    %c0_i32_0 = arith.constant 0 : i32
    %c0_i32_1 = arith.constant 0 : i32
    return %c0_i32, %c0_i32_0 : i32, i32
  }
  func.func @transform_3(%arg0: i32) -> (i32, i32) {
    %c0_i32 = arith.constant 0 : i32
    %c0_i32_0 = arith.constant 0 : i32
    return %arg0, %c0_i32 : i32, i32
  }
}

module attributes {stable_mosaic.version = 11 : i64} {
  func.func @_mha_kernel(%arg0: i32, %arg1: memref<1x4x8x16xf32, #tpu.memory_space<vmem>>, %arg2: memref<1x4x12x16xf32, #tpu.memory_space<vmem>>, %arg3: memref<1x4x12x16xf32, #tpu.memory_space<vmem>>, %arg4: memref<1x8x12xf32, #tpu.memory_space<vmem>>, %arg5: memref<1x4x8x16xf32, #tpu.memory_space<vmem>>) attributes {dimension_semantics = [#tpu.dimension_semantics<parallel>], iteration_bounds = array<i64: 2>, scalar_prefetch = 0 : i64, scratch_operands = 0 : i64, tpu.core_type = #tpu.core_type<tc>, window_params = [{transform_indices = @transform_0, window_bounds = array<i64: 1, 4, 8, 16>}, {transform_indices = @transform_1, window_bounds = array<i64: 1, 4, 12, 16>}, {transform_indices = @transform_2, window_bounds = array<i64: 1, 4, 12, 16>}, {transform_indices = @transform_3, window_bounds = array<i64: 1, 8, 12>}, {transform_indices = @transform_4, window_bounds = array<i64: 1, 4, 8, 16>}]} {
    %c0 = arith.constant 0 : index
    %c0_0 = arith.constant 0 : index
    %c0_1 = arith.constant 0 : index
    %c0_2 = arith.constant 0 : index
    %0 = vector.load %arg1[%c0, %c0_0, %c0_1, %c0_2] : memref<1x4x8x16xf32, #tpu.memory_space<vmem>>, vector<1x4x8x16xf32>
    %1 = vector.shape_cast %0 : vector<1x4x8x16xf32> to vector<4x8x16xf32>
    %cst = arith.constant 2.500000e-01 : f32
    %2 = vector.broadcast %cst : f32 to vector<4x8x16xf32>
    %3 = arith.mulf %1, %2 : vector<4x8x16xf32>
    %c0_3 = arith.constant 0 : index
    %c0_4 = arith.constant 0 : index
    %c0_5 = arith.constant 0 : index
    %c0_6 = arith.constant 0 : index
    %4 = vector.load %arg2[%c0_3, %c0_4, %c0_5, %c0_6] : memref<1x4x12x16xf32, #tpu.memory_space<vmem>>, vector<1x4x12x16xf32>
    %5 = vector.shape_cast %4 : vector<1x4x12x16xf32> to vector<4x12x16xf32>
    "tpu.trace_start"() <{level = 10 : i32, message = "htd,hsd->hts"}> : () -> ()
    %cst_7 = arith.constant dense<0.000000e+00> : vector<4x8x12xf32>
    %6 = tpu.matmul %3, %5, %cst_7 {dimension_numbers = #tpu.dot_dimension_numbers<[2], [2], [1], [1], [0, 0, 0, 1, 1, 1], [0], [0]>} : vector<4x8x16xf32>, vector<4x12x16xf32>, vector<4x8x12xf32> -> vector<4x8x12xf32>
    "tpu.trace_stop"() : () -> ()
    %c0_8 = arith.constant 0 : index
    %c0_9 = arith.constant 0 : index
    %c0_10 = arith.constant 0 : index
    %7 = vector.load %arg4[%c0_8, %c0_9, %c0_10] : memref<1x8x12xf32, #tpu.memory_space<vmem>>, vector<1x8x12xf32>
    %8 = vector.shape_cast %7 : vector<1x8x12xf32> to vector<8x12xf32>
    %9 = vector.shape_cast %8 : vector<8x12xf32> to vector<1x8x12xf32>
    %10 = vector.broadcast %9 : vector<1x8x12xf32> to vector<4x8x12xf32>
    %11 = arith.addf %6, %10 : vector<4x8x12xf32>
    %cst_11 = arith.constant dense<0xFF800000> : vector<4x8xf32>
    %12 = vector.multi_reduction <maximumf>, %11, %cst_11 [2] : vector<4x8x12xf32> to vector<4x8xf32>
    %13 = vector.shape_cast %12 : vector<4x8xf32> to vector<4x8x1xf32>
    %14 = vector.broadcast %13 : vector<4x8x1xf32> to vector<4x8x12xf32>
    %15 = arith.subf %11, %14 : vector<4x8x12xf32>
    %16 = math.exp %15 : vector<4x8x12xf32>
    %cst_12 = arith.constant dense<0.000000e+00> : vector<4x8xf32>
    %17 = vector.multi_reduction <add>, %16, %cst_12 [2] : vector<4x8x12xf32> to vector<4x8xf32>
    %18 = vector.shape_cast %17 : vector<4x8xf32> to vector<4x8x1xf32>
    %19 = vector.broadcast %18 : vector<4x8x1xf32> to vector<4x8x12xf32>
    %20 = arith.divf %16, %19 : vector<4x8x12xf32>
    %c0_13 = arith.constant 0 : index
    %c0_14 = arith.constant 0 : index
    %c0_15 = arith.constant 0 : index
    %c0_16 = arith.constant 0 : index
    %21 = vector.load %arg3[%c0_13, %c0_14, %c0_15, %c0_16] : memref<1x4x12x16xf32, #tpu.memory_space<vmem>>, vector<1x4x12x16xf32>
    %22 = vector.shape_cast %21 : vector<1x4x12x16xf32> to vector<4x12x16xf32>
    "tpu.trace_start"() <{level = 10 : i32, message = "hts,hsd->htd"}> : () -> ()
    %cst_17 = arith.constant dense<0.000000e+00> : vector<4x8x16xf32>
    %23 = tpu.matmul %20, %22, %cst_17 {dimension_numbers = #tpu.dot_dimension_numbers<[2], [1], [1], [2], [0, 0, 0, 1, 1, 2], [0], [0]>} : vector<4x8x12xf32>, vector<4x12x16xf32>, vector<4x8x16xf32> -> vector<4x8x16xf32>
    "tpu.trace_stop"() : () -> ()
    %c0_18 = arith.constant 0 : index
    %c0_19 = arith.constant 0 : index
    %c0_20 = arith.constant 0 : index
    %c0_21 = arith.constant 0 : index
    %24 = vector.load %arg5[%c0_18, %c0_19, %c0_20, %c0_21] : memref<1x4x8x16xf32, #tpu.memory_space<vmem>>, vector<1x4x8x16xf32>
    %25 = vector.shape_cast %24 : vector<1x4x8x16xf32> to vector<4x8x16xf32>
    %26 = vector.shape_cast %23 : vector<4x8x16xf32> to vector<1x4x8x16xf32>
    tpu.vector_store %arg5[%c0_18, %c0_19, %c0_20, %c0_21], %26 {strides = array<i32>} : memref<1x4x8x16xf32, #tpu.memory_space<vmem>>, vector<1x4x8x16xf32>,
    return
  }
  func.func @transform_0(%arg0: i32) -> (i32, i32, i32, i32) {
    %c0_i32 = arith.constant 0 : i32
    %c0_i32_0 = arith.constant 0 : i32
    %c0_i32_1 = arith.constant 0 : i32
    %c0_i32_2 = arith.constant 0 : i32
    return %arg0, %c0_i32, %c0_i32_0, %c0_i32_1 : i32, i32, i32, i32
  }
  func.func @transform_1(%arg0: i32) -> (i32, i32, i32, i32) {
    %c0_i32 = arith.constant 0 : i32
    %c0_i32_0 = arith.constant 0 : i32
    %c0_i32_1 = arith.constant 0 : i32
    %c0_i32_2 = arith.constant 0 : i32
    return %arg0, %c0_i32, %c0_i32_0, %c0_i32_1 : i32, i32, i32, i32
  }
  func.func @transform_2(%arg0: i32) -> (i32, i32, i32, i32) {
    %c0_i32 = arith.constant 0 : i32
    %c0_i32_0 = arith.constant 0 : i32
    %c0_i32_1 = arith.constant 0 : i32
    %c0_i32_2 = arith.constant 0 : i32
    return %arg0, %c0_i32, %c0_i32_0, %c0_i32_1 : i32, i32, i32, i32
  }
  func.func @transform_3(%arg0: i32) -> (i32, i32, i32) {
    %c0_i32 = arith.constant 0 : i32
    %c0_i32_0 = arith.constant 0 : i32
    %c0_i32_1 = arith.constant 0 : i32
    return %arg0, %c0_i32, %c0_i32_0 : i32, i32, i32
  }
  func.func @transform_4(%arg0: i32) -> (i32, i32, i32, i32) {
    %c0_i32 = arith.constant 0 : i32
    %c0_i32_0 = arith.constant 0 : i32
    %c0_i32_1 = arith.constant 0 : i32
    %c0_i32_2 = arith.constant 0 : i32
    return %arg0, %c0_i32, %c0_i32_0, %c0_i32_1 : i32, i32, i32, i32
  }
}

module attributes {stable_mosaic.version = 11 : i64} {
  func.func @_mha_kernel(%arg0: i32, %arg1: memref<1x4x8x16xf32, #tpu.memory_space<vmem>>, %arg2: memref<1x4x10x16xf32, #tpu.memory_space<vmem>>, %arg3: memref<1x4x10x16xf32, #tpu.memory_space<vmem>>, %arg4: memref<1x8x10xf32, #tpu.memory_space<vmem>>, %arg5: memref<1x4x8x16xf32, #tpu.memory_space<vmem>>) attributes {dimension_semantics = [#tpu.dimension_semantics<parallel>], iteration_bounds = array<i64: 2>, scalar_prefetch = 0 : i64, scratch_operands = 0 : i64, tpu.core_type = #tpu.core_type<tc>, window_params = [{transform_indices = @transform_0, window_bounds = array<i64: 1, 4, 8, 16>}, {transform_indices = @transform_1, window_bounds = array<i64: 1, 4, 10, 16>}, {transform_indices = @transform_2, window_bounds = array<i64: 1, 4, 10, 16>}, {transform_indices = @transform_3, window_bounds = array<i64: 1, 8, 10>}, {transform_indices = @transform_4, window_bounds = array<i64: 1, 4, 8, 16>}]} {
    %c0 = arith.constant 0 : index
    %c0_0 = arith.constant 0 : index
    %c0_1 = arith.constant 0 : index
    %c0_2 = arith.constant 0 : index
    %0 = vector.load %arg1[%c0, %c0_0, %c0_1, %c0_2] : memref<1x4x8x16xf32, #tpu.memory_space<vmem>>, vector<1x4x8x16xf32>
    %1 = vector.shape_cast %0 : vector<1x4x8x16xf32> to vector<4x8x16xf32>
    %cst = arith.constant 2.500000e-01 : f32
    %2 = vector.broadcast %cst : f32 to vector<4x8x16xf32>
    %3 = arith.mulf %1, %2 : vector<4x8x16xf32>
    %c0_3 = arith.constant 0 : index
    %c0_4 = arith.constant 0 : index
    %c0_5 = arith.constant 0 : index
    %c0_6 = arith.constant 0 : index
    %4 = vector.load %arg2[%c0_3, %c0_4, %c0_5, %c0_6] : memref<1x4x10x16xf32, #tpu.memory_space<vmem>>, vector<1x4x10x16xf32>
    %5 = vector.shape_cast %4 : vector<1x4x10x16xf32> to vector<4x10x16xf32>
    "tpu.trace_start"() <{level = 10 : i32, message = "htd,hsd->hts"}> : () -> ()
    %cst_7 = arith.constant dense<0.000000e+00> : vector<4x8x10xf32>
    %6 = tpu.matmul %3, %5, %cst_7 {dimension_numbers = #tpu.dot_dimension_numbers<[2], [2], [1], [1], [0, 0, 0, 1, 1, 1], [0], [0]>} : vector<4x8x16xf32>, vector<4x10x16xf32>, vector<4x8x10xf32> -> vector<4x8x10xf32>
    "tpu.trace_stop"() : () -> ()
    %c0_8 = arith.constant 0 : index
    %c0_9 = arith.constant 0 : index
    %c0_10 = arith.constant 0 : index
    %7 = vector.load %arg4[%c0_8, %c0_9, %c0_10] : memref<1x8x10xf32, #tpu.memory_space<vmem>>, vector<1x8x10xf32>
    %8 = vector.shape_cast %7 : vector<1x8x10xf32> to vector<8x10xf32>
    %9 = vector.shape_cast %8 : vector<8x10xf32> to vector<1x8x10xf32>
    %10 = vector.broadcast %9 : vector<1x8x10xf32> to vector<4x8x10xf32>
    %11 = arith.addf %6, %10 : vector<4x8x10xf32>
    %cst_11 = arith.constant dense<0xFF800000> : vector<4x8xf32>
    %12 = vector.multi_reduction <maximumf>, %11, %cst_11 [2] : vector<4x8x10xf32> to vector<4x8xf32>
    %13 = vector.shape_cast %12 : vector<4x8xf32> to vector<4x8x1xf32>
    %14 = vector.broadcast %13 : vector<4x8x1xf32> to vector<4x8x10xf32>
    %15 = arith.subf %11, %14 : vector<4x8x10xf32>
    %16 = math.exp %15 : vector<4x8x10xf32>
    %cst_12 = arith.constant dense<0.000000e+00> : vector<4x8xf32>
    %17 = vector.multi_reduction <add>, %16, %cst_12 [2] : vector<4x8x10xf32> to vector<4x8xf32>
    %18 = vector.shape_cast %17 : vector<4x8xf32> to vector<4x8x1xf32>
    %19 = vector.broadcast %18 : vector<4x8x1xf32> to vector<4x8x10xf32>
    %20 = arith.divf %16, %19 : vector<4x8x10xf32>
    %c0_13 = arith.constant 0 : index
    %c0_14 = arith.constant 0 : index
    %c0_15 = arith.constant 0 : index
    %c0_16 = arith.constant 0 : index
    %21 = vector.load %arg3[%c0_13, %c0_14, %c0_15, %c0_16] : memref<1x4x10x16xf32, #tpu.memory_space<vmem>>, vector<1x4x10x16xf32>
    %22 = vector.shape_cast %21 : vector<1x4x10x16xf32> to vector<4x10x16xf32>
    "tpu.trace_start"() <{level = 10 : i32, message = "hts,hsd->htd"}> : () -> ()
    %cst_17 = arith.constant dense<0.000000e+00> : vector<4x8x16xf32>
    %23 = tpu.matmul %20, %22, %cst_17 {dimension_numbers = #tpu.dot_dimension_numbers<[2], [1], [1], [2], [0, 0, 0, 1, 1, 2], [0], [0]>} : vector<4x8x10xf32>, vector<4x10x16xf32>, vector<4x8x16xf32> -> vector<4x8x16xf32>
    "tpu.trace_stop"() : () -> ()
    %c0_18 = arith.constant 0 : index
    %c0_19 = arith.constant 0 : index
    %c0_20 = arith.constant 0 : index
    %c0_21 = arith.constant 0 : index
    %24 = vector.load %arg5[%c0_18, %c0_19, %c0_20, %c0_21] : memref<1x4x8x16xf32, #tpu.memory_space<vmem>>, vector<1x4x8x16xf32>
    %25 = vector.shape_cast %24 : vector<1x4x8x16xf32> to vector<4x8x16xf32>
    %26 = vector.shape_cast %23 : vector<4x8x16xf32> to vector<1x4x8x16xf32>
    tpu.vector_store %arg5[%c0_18, %c0_19, %c0_20, %c0_21], %26 {strides = array<i32>} : memref<1x4x8x16xf32, #tpu.memory_space<vmem>>, vector<1x4x8x16xf32>,
    return
  }
  func.func @transform_0(%arg0: i32) -> (i32, i32, i32, i32) {
    %c0_i32 = arith.constant 0 : i32
    %c0_i32_0 = arith.constant 0 : i32
    %c0_i32_1 = arith.constant 0 : i32
    %c0_i32_2 = arith.constant 0 : i32
    return %arg0, %c0_i32, %c0_i32_0, %c0_i32_1 : i32, i32, i32, i32
  }
  func.func @transform_1(%arg0: i32) -> (i32, i32, i32, i32) {
    %c0_i32 = arith.constant 0 : i32
    %c0_i32_0 = arith.constant 0 : i32
    %c0_i32_1 = arith.constant 0 : i32
    %c0_i32_2 = arith.constant 0 : i32
    return %arg0, %c0_i32, %c0_i32_0, %c0_i32_1 : i32, i32, i32, i32
  }
  func.func @transform_2(%arg0: i32) -> (i32, i32, i32, i32) {
    %c0_i32 = arith.constant 0 : i32
    %c0_i32_0 = arith.constant 0 : i32
    %c0_i32_1 = arith.constant 0 : i32
    %c0_i32_2 = arith.constant 0 : i32
    return %arg0, %c0_i32, %c0_i32_0, %c0_i32_1 : i32, i32, i32, i32
  }
  func.func @transform_3(%arg0: i32) -> (i32, i32, i32) {
    %c0_i32 = arith.constant 0 : i32
    %c0_i32_0 = arith.constant 0 : i32
    %c0_i32_1 = arith.constant 0 : i32
    return %arg0, %c0_i32, %c0_i32_0 : i32, i32, i32
  }
  func.func @transform_4(%arg0: i32) -> (i32, i32, i32, i32) {
    %c0_i32 = arith.constant 0 : i32
    %c0_i32_0 = arith.constant 0 : i32
    %c0_i32_1 = arith.constant 0 : i32
    %c0_i32_2 = arith.constant 0 : i32
    return %arg0, %c0_i32, %c0_i32_0, %c0_i32_1 : i32, i32, i32, i32
  }
}

module attributes {stable_mosaic.version = 11 : i64} {
  func.func @_linear_kernel(%arg0: i32, %arg1: memref<16x64xf32, #tpu.memory_space<vmem>>, %arg2: memref<64x128xf32, #tpu.memory_space<vmem>>, %arg3: memref<1x128xf32, #tpu.memory_space<vmem>>, %arg4: memref<16x128xf32, #tpu.memory_space<vmem>>) attributes {dimension_semantics = [#tpu.dimension_semantics<parallel>], iteration_bounds = array<i64: 1>, scalar_prefetch = 0 : i64, scratch_operands = 0 : i64, tpu.core_type = #tpu.core_type<tc>, window_params = [{transform_indices = @transform_0, window_bounds = array<i64: 16, 64>}, {pipeline_mode = #tpu.pipeline_mode<synchronous>, transform_indices = @transform_1, window_bounds = array<i64: 64, 128>}, {pipeline_mode = #tpu.pipeline_mode<synchronous>, transform_indices = @transform_2, window_bounds = array<i64: 1, 128>}, {transform_indices = @transform_3, window_bounds = array<i64: 16, 128>}]} {
    %c0 = arith.constant 0 : index
    %c0_0 = arith.constant 0 : index
    %0 = vector.load %arg1[%c0, %c0_0] : memref<16x64xf32, #tpu.memory_space<vmem>>, vector<16x64xf32>
    %c0_1 = arith.constant 0 : index
    %c0_2 = arith.constant 0 : index
    %1 = vector.load %arg2[%c0_1, %c0_2] : memref<64x128xf32, #tpu.memory_space<vmem>>, vector<64x128xf32>
    %cst = arith.constant dense<0.000000e+00> : vector<16x128xf32>
    %2 = tpu.matmul %0, %1, %cst {dimension_numbers = #tpu.dot_dimension_numbers<[1], [0], [0], [1], [0, 0, 1, 1], [], []>} : vector<16x64xf32>, vector<64x128xf32>, vector<16x128xf32> -> vector<16x128xf32>
    %c0_3 = arith.constant 0 : index
    %c0_4 = arith.constant 0 : index
    %3 = vector.load %arg3[%c0_3, %c0_4] : memref<1x128xf32, #tpu.memory_space<vmem>>, vector<1x128xf32>
    %4 = vector.broadcast %3 : vector<1x128xf32> to vector<16x128xf32>
    %5 = arith.addf %2, %4 : vector<16x128xf32>
    %c0_5 = arith.constant 0 : index
    %c0_6 = arith.constant 0 : index
    %6 = vector.load %arg4[%c0_5, %c0_6] : memref<16x128xf32, #tpu.memory_space<vmem>>, vector<16x128xf32>
    tpu.vector_store %arg4[%c0_5, %c0_6], %5 {strides = array<i32>} : memref<16x128xf32, #tpu.memory_space<vmem>>, vector<16x128xf32>,
    return
  }
  func.func @transform_0(%arg0: i32) -> (i32, i32) {
    %c0_i32 = arith.constant 0 : i32
    %c0_i32_0 = arith.constant 0 : i32
    return %arg0, %c0_i32 : i32, i32
  }
  func.func @transform_1(%arg0: i32) -> (i32, i32) {
    %c0_i32 = arith.constant 0 : i32
    %c0_i32_0 = arith.constant 0 : i32
    %c0_i32_1 = arith.constant 0 : i32
    return %c0_i32, %c0_i32_0 : i32, i32
  }
  func.func @transform_2(%arg0: i32) -> (i32, i32) {
    %c0_i32 = arith.constant 0 : i32
    %c0_i32_0 = arith.constant 0 : i32
    %c0_i32_1 = arith.constant 0 : i32
    return %c0_i32, %c0_i32_0 : i32, i32
  }
  func.func @transform_3(%arg0: i32) -> (i32, i32) {
    %c0_i32 = arith.constant 0 : i32
    %c0_i32_0 = arith.constant 0 : i32
    return %arg0, %c0_i32 : i32, i32
  }
}

module attributes {stable_mosaic.version = 11 : i64} {
  func.func @_mha_kernel(%arg0: i32, %arg1: memref<1x4x8x16xf32, #tpu.memory_space<vmem>>, %arg2: memref<1x4x6x16xf32, #tpu.memory_space<vmem>>, %arg3: memref<1x4x6x16xf32, #tpu.memory_space<vmem>>, %arg4: memref<1x8x6xf32, #tpu.memory_space<vmem>>, %arg5: memref<1x4x8x16xf32, #tpu.memory_space<vmem>>) attributes {dimension_semantics = [#tpu.dimension_semantics<parallel>], iteration_bounds = array<i64: 2>, scalar_prefetch = 0 : i64, scratch_operands = 0 : i64, tpu.core_type = #tpu.core_type<tc>, window_params = [{transform_indices = @transform_0, window_bounds = array<i64: 1, 4, 8, 16>}, {transform_indices = @transform_1, window_bounds = array<i64: 1, 4, 6, 16>}, {transform_indices = @transform_2, window_bounds = array<i64: 1, 4, 6, 16>}, {transform_indices = @transform_3, window_bounds = array<i64: 1, 8, 6>}, {transform_indices = @transform_4, window_bounds = array<i64: 1, 4, 8, 16>}]} {
    %c0 = arith.constant 0 : index
    %c0_0 = arith.constant 0 : index
    %c0_1 = arith.constant 0 : index
    %c0_2 = arith.constant 0 : index
    %0 = vector.load %arg1[%c0, %c0_0, %c0_1, %c0_2] : memref<1x4x8x16xf32, #tpu.memory_space<vmem>>, vector<1x4x8x16xf32>
    %1 = vector.shape_cast %0 : vector<1x4x8x16xf32> to vector<4x8x16xf32>
    %cst = arith.constant 2.500000e-01 : f32
    %2 = vector.broadcast %cst : f32 to vector<4x8x16xf32>
    %3 = arith.mulf %1, %2 : vector<4x8x16xf32>
    %c0_3 = arith.constant 0 : index
    %c0_4 = arith.constant 0 : index
    %c0_5 = arith.constant 0 : index
    %c0_6 = arith.constant 0 : index
    %4 = vector.load %arg2[%c0_3, %c0_4, %c0_5, %c0_6] : memref<1x4x6x16xf32, #tpu.memory_space<vmem>>, vector<1x4x6x16xf32>
    %5 = vector.shape_cast %4 : vector<1x4x6x16xf32> to vector<4x6x16xf32>
    "tpu.trace_start"() <{level = 10 : i32, message = "htd,hsd->hts"}> : () -> ()
    %cst_7 = arith.constant dense<0.000000e+00> : vector<4x8x6xf32>
    %6 = tpu.matmul %3, %5, %cst_7 {dimension_numbers = #tpu.dot_dimension_numbers<[2], [2], [1], [1], [0, 0, 0, 1, 1, 1], [0], [0]>} : vector<4x8x16xf32>, vector<4x6x16xf32>, vector<4x8x6xf32> -> vector<4x8x6xf32>
    "tpu.trace_stop"() : () -> ()
    %c0_8 = arith.constant 0 : index
    %c0_9 = arith.constant 0 : index
    %c0_10 = arith.constant 0 : index
    %7 = vector.load %arg4[%c0_8, %c0_9, %c0_10] : memref<1x8x6xf32, #tpu.memory_space<vmem>>, vector<1x8x6xf32>
    %8 = vector.shape_cast %7 : vector<1x8x6xf32> to vector<8x6xf32>
    %9 = vector.shape_cast %8 : vector<8x6xf32> to vector<1x8x6xf32>
    %10 = vector.broadcast %9 : vector<1x8x6xf32> to vector<4x8x6xf32>
    %11 = arith.addf %6, %10 : vector<4x8x6xf32>
    %cst_11 = arith.constant dense<0xFF800000> : vector<4x8xf32>
    %12 = vector.multi_reduction <maximumf>, %11, %cst_11 [2] : vector<4x8x6xf32> to vector<4x8xf32>
    %13 = vector.shape_cast %12 : vector<4x8xf32> to vector<4x8x1xf32>
    %14 = vector.broadcast %13 : vector<4x8x1xf32> to vector<4x8x6xf32>
    %15 = arith.subf %11, %14 : vector<4x8x6xf32>
    %16 = math.exp %15 : vector<4x8x6xf32>
    %cst_12 = arith.constant dense<0.000000e+00> : vector<4x8xf32>
    %17 = vector.multi_reduction <add>, %16, %cst_12 [2] : vector<4x8x6xf32> to vector<4x8xf32>
    %18 = vector.shape_cast %17 : vector<4x8xf32> to vector<4x8x1xf32>
    %19 = vector.broadcast %18 : vector<4x8x1xf32> to vector<4x8x6xf32>
    %20 = arith.divf %16, %19 : vector<4x8x6xf32>
    %c0_13 = arith.constant 0 : index
    %c0_14 = arith.constant 0 : index
    %c0_15 = arith.constant 0 : index
    %c0_16 = arith.constant 0 : index
    %21 = vector.load %arg3[%c0_13, %c0_14, %c0_15, %c0_16] : memref<1x4x6x16xf32, #tpu.memory_space<vmem>>, vector<1x4x6x16xf32>
    %22 = vector.shape_cast %21 : vector<1x4x6x16xf32> to vector<4x6x16xf32>
    "tpu.trace_start"() <{level = 10 : i32, message = "hts,hsd->htd"}> : () -> ()
    %cst_17 = arith.constant dense<0.000000e+00> : vector<4x8x16xf32>
    %23 = tpu.matmul %20, %22, %cst_17 {dimension_numbers = #tpu.dot_dimension_numbers<[2], [1], [1], [2], [0, 0, 0, 1, 1, 2], [0], [0]>} : vector<4x8x6xf32>, vector<4x6x16xf32>, vector<4x8x16xf32> -> vector<4x8x16xf32>
    "tpu.trace_stop"() : () -> ()
    %c0_18 = arith.constant 0 : index
    %c0_19 = arith.constant 0 : index
    %c0_20 = arith.constant 0 : index
    %c0_21 = arith.constant 0 : index
    %24 = vector.load %arg5[%c0_18, %c0_19, %c0_20, %c0_21] : memref<1x4x8x16xf32, #tpu.memory_space<vmem>>, vector<1x4x8x16xf32>
    %25 = vector.shape_cast %24 : vector<1x4x8x16xf32> to vector<4x8x16xf32>
    %26 = vector.shape_cast %23 : vector<4x8x16xf32> to vector<1x4x8x16xf32>
    tpu.vector_store %arg5[%c0_18, %c0_19, %c0_20, %c0_21], %26 {strides = array<i32>} : memref<1x4x8x16xf32, #tpu.memory_space<vmem>>, vector<1x4x8x16xf32>,
    return
  }
  func.func @transform_0(%arg0: i32) -> (i32, i32, i32, i32) {
    %c0_i32 = arith.constant 0 : i32
    %c0_i32_0 = arith.constant 0 : i32
    %c0_i32_1 = arith.constant 0 : i32
    %c0_i32_2 = arith.constant 0 : i32
    return %arg0, %c0_i32, %c0_i32_0, %c0_i32_1 : i32, i32, i32, i32
  }
  func.func @transform_1(%arg0: i32) -> (i32, i32, i32, i32) {
    %c0_i32 = arith.constant 0 : i32
    %c0_i32_0 = arith.constant 0 : i32
    %c0_i32_1 = arith.constant 0 : i32
    %c0_i32_2 = arith.constant 0 : i32
    return %arg0, %c0_i32, %c0_i32_0, %c0_i32_1 : i32, i32, i32, i32
  }
  func.func @transform_2(%arg0: i32) -> (i32, i32, i32, i32) {
    %c0_i32 = arith.constant 0 : i32
    %c0_i32_0 = arith.constant 0 : i32
    %c0_i32_1 = arith.constant 0 : i32
    %c0_i32_2 = arith.constant 0 : i32
    return %arg0, %c0_i32, %c0_i32_0, %c0_i32_1 : i32, i32, i32, i32
  }
  func.func @transform_3(%arg0: i32) -> (i32, i32, i32) {
    %c0_i32 = arith.constant 0 : i32
    %c0_i32_0 = arith.constant 0 : i32
    %c0_i32_1 = arith.constant 0 : i32
    return %arg0, %c0_i32, %c0_i32_0 : i32, i32, i32
  }
  func.func @transform_4(%arg0: i32) -> (i32, i32, i32, i32) {
    %c0_i32 = arith.constant 0 : i32
    %c0_i32_0 = arith.constant 0 : i32
    %c0_i32_1 = arith.constant 0 : i32
    %c0_i32_2 = arith.constant 0 : i32
    return %arg0, %c0_i32, %c0_i32_0, %c0_i32_1 : i32, i32, i32, i32
  }
}

module attributes {stable_mosaic.version = 11 : i64} {
  func.func @_linear_add_ln_kernel(%arg0: i32, %arg1: memref<16x192xf32, #tpu.memory_space<vmem>>, %arg2: memref<192x64xf32, #tpu.memory_space<vmem>>, %arg3: memref<1x64xf32, #tpu.memory_space<vmem>>, %arg4: memref<16x64xf32, #tpu.memory_space<vmem>>, %arg5: memref<1x64xf32, #tpu.memory_space<vmem>>, %arg6: memref<1x64xf32, #tpu.memory_space<vmem>>, %arg7: memref<16x64xf32, #tpu.memory_space<vmem>>) attributes {dimension_semantics = [#tpu.dimension_semantics<parallel>], iteration_bounds = array<i64: 1>, scalar_prefetch = 0 : i64, scratch_operands = 0 : i64, tpu.core_type = #tpu.core_type<tc>, window_params = [{transform_indices = @transform_0, window_bounds = array<i64: 16, 192>}, {pipeline_mode = #tpu.pipeline_mode<synchronous>, transform_indices = @transform_1, window_bounds = array<i64: 192, 64>}, {pipeline_mode = #tpu.pipeline_mode<synchronous>, transform_indices = @transform_2, window_bounds = array<i64: 1, 64>}, {transform_indices = @transform_3, window_bounds = array<i64: 16, 64>}, {pipeline_mode = #tpu.pipeline_mode<synchronous>, transform_indices = @transform_4, window_bounds = array<i64: 1, 64>}, {pipeline_mode = #tpu.pipeline_mode<synchronous>, transform_indices = @transform_5, window_bounds = array<i64: 1, 64>}, {transform_indices = @transform_6, window_bounds = array<i64: 16, 64>}]} {
    %c0 = arith.constant 0 : index
    %c0_0 = arith.constant 0 : index
    %0 = vector.load %arg1[%c0, %c0_0] : memref<16x192xf32, #tpu.memory_space<vmem>>, vector<16x192xf32>
    %c0_1 = arith.constant 0 : index
    %c0_2 = arith.constant 0 : index
    %1 = vector.load %arg2[%c0_1, %c0_2] : memref<192x64xf32, #tpu.memory_space<vmem>>, vector<192x64xf32>
    %cst = arith.constant dense<0.000000e+00> : vector<16x64xf32>
    %2 = tpu.matmul %0, %1, %cst {dimension_numbers = #tpu.dot_dimension_numbers<[1], [0], [0], [1], [0, 0, 1, 1], [], []>} : vector<16x192xf32>, vector<192x64xf32>, vector<16x64xf32> -> vector<16x64xf32>
    %c0_3 = arith.constant 0 : index
    %c0_4 = arith.constant 0 : index
    %3 = vector.load %arg3[%c0_3, %c0_4] : memref<1x64xf32, #tpu.memory_space<vmem>>, vector<1x64xf32>
    %4 = vector.broadcast %3 : vector<1x64xf32> to vector<16x64xf32>
    %5 = arith.addf %2, %4 : vector<16x64xf32>
    %c0_5 = arith.constant 0 : index
    %c0_6 = arith.constant 0 : index
    %6 = vector.load %arg4[%c0_5, %c0_6] : memref<16x64xf32, #tpu.memory_space<vmem>>, vector<16x64xf32>
    %7 = arith.addf %5, %6 : vector<16x64xf32>
    %c0_7 = arith.constant 0 : index
    %c0_8 = arith.constant 0 : index
    %8 = vector.load %arg5[%c0_7, %c0_8] : memref<1x64xf32, #tpu.memory_space<vmem>>, vector<1x64xf32>
    %c0_9 = arith.constant 0 : index
    %c0_10 = arith.constant 0 : index
    %9 = vector.load %arg6[%c0_9, %c0_10] : memref<1x64xf32, #tpu.memory_space<vmem>>, vector<1x64xf32>
    %cst_11 = arith.constant dense<0.000000e+00> : vector<16xf32>
    %10 = vector.multi_reduction <add>, %7, %cst_11 [1] : vector<16x64xf32> to vector<16xf32>
    %11 = vector.shape_cast %10 : vector<16xf32> to vector<16x1xf32>
    %cst_12 = arith.constant 6.400000e+01 : f32
    %12 = vector.broadcast %cst_12 : f32 to vector<16x1xf32>
    %13 = arith.divf %11, %12 : vector<16x1xf32>
    %14 = vector.broadcast %13 : vector<16x1xf32> to vector<16x64xf32>
    %15 = arith.subf %7, %14 : vector<16x64xf32>
    %16 = arith.mulf %15, %15 : vector<16x64xf32>
    %cst_13 = arith.constant dense<0.000000e+00> : vector<16xf32>
    %17 = vector.multi_reduction <add>, %16, %cst_13 [1] : vector<16x64xf32> to vector<16xf32>
    %18 = vector.shape_cast %17 : vector<16xf32> to vector<16x1xf32>
    %cst_14 = arith.constant 6.400000e+01 : f32
    %19 = vector.broadcast %cst_14 : f32 to vector<16x1xf32>
    %20 = arith.divf %18, %19 : vector<16x1xf32>
    %21 = vector.broadcast %13 : vector<16x1xf32> to vector<16x64xf32>
    %22 = arith.subf %7, %21 : vector<16x64xf32>
    %cst_15 = arith.constant 9.99999974E-6 : f32
    %23 = vector.broadcast %cst_15 : f32 to vector<16x1xf32>
    %24 = arith.addf %20, %23 : vector<16x1xf32>
    %25 = math.rsqrt %24 : vector<16x1xf32>
    %26 = vector.broadcast %25 : vector<16x1xf32> to vector<16x64xf32>
    %27 = arith.mulf %22, %26 : vector<16x64xf32>
    %28 = vector.broadcast %8 : vector<1x64xf32> to vector<16x64xf32>
    %29 = arith.mulf %27, %28 : vector<16x64xf32>
    %30 = vector.broadcast %9 : vector<1x64xf32> to vector<16x64xf32>
    %31 = arith.addf %29, %30 : vector<16x64xf32>
    %c0_16 = arith.constant 0 : index
    %c0_17 = arith.constant 0 : index
    %32 = vector.load %arg7[%c0_16, %c0_17] : memref<16x64xf32, #tpu.memory_space<vmem>>, vector<16x64xf32>
    tpu.vector_store %arg7[%c0_16, %c0_17], %31 {strides = array<i32>} : memref<16x64xf32, #tpu.memory_space<vmem>>, vector<16x64xf32>,
    return
  }
  func.func @transform_0(%arg0: i32) -> (i32, i32) {
    %c0_i32 = arith.constant 0 : i32
    %c0_i32_0 = arith.constant 0 : i32
    return %arg0, %c0_i32 : i32, i32
  }
  func.func @transform_1(%arg0: i32) -> (i32, i32) {
    %c0_i32 = arith.constant 0 : i32
    %c0_i32_0 = arith.constant 0 : i32
    %c0_i32_1 = arith.constant 0 : i32
    return %c0_i32, %c0_i32_0 : i32, i32
  }
  func.func @transform_2(%arg0: i32) -> (i32, i32) {
    %c0_i32 = arith.constant 0 : i32
    %c0_i32_0 = arith.constant 0 : i32
    %c0_i32_1 = arith.constant 0 : i32
    return %c0_i32, %c0_i32_0 : i32, i32
  }
  func.func @transform_3(%arg0: i32) -> (i32, i32) {
    %c0_i32 = arith.constant 0 : i32
    %c0_i32_0 = arith.constant 0 : i32
    return %arg0, %c0_i32 : i32, i32
  }
  func.func @transform_4(%arg0: i32) -> (i32, i32) {
    %c0_i32 = arith.constant 0 : i32
    %c0_i32_0 = arith.constant 0 : i32
    %c0_i32_1 = arith.constant 0 : i32
    return %c0_i32, %c0_i32_0 : i32, i32
  }
  func.func @transform_5(%arg0: i32) -> (i32, i32) {
    %c0_i32 = arith.constant 0 : i32
    %c0_i32_0 = arith.constant 0 : i32
    %c0_i32_1 = arith.constant 0 : i32
    return %c0_i32, %c0_i32_0 : i32, i32
  }
  func.func @transform_6(%arg0: i32) -> (i32, i32) {
    %c0_i32 = arith.constant 0 : i32
    %c0_i32_0 = arith.constant 0 : i32
    return %arg0, %c0_i32 : i32, i32
  }
}

module attributes {stable_mosaic.version = 11 : i64} {
  func.func @_ffn_add_ln_kernel(%arg0: i32, %arg1: memref<16x64xf32, #tpu.memory_space<vmem>>, %arg2: memref<64x128xf32, #tpu.memory_space<vmem>>, %arg3: memref<1x128xf32, #tpu.memory_space<vmem>>, %arg4: memref<128x64xf32, #tpu.memory_space<vmem>>, %arg5: memref<1x64xf32, #tpu.memory_space<vmem>>, %arg6: memref<16x64xf32, #tpu.memory_space<vmem>>, %arg7: memref<1x64xf32, #tpu.memory_space<vmem>>, %arg8: memref<1x64xf32, #tpu.memory_space<vmem>>, %arg9: memref<16x64xf32, #tpu.memory_space<vmem>>) attributes {dimension_semantics = [#tpu.dimension_semantics<parallel>], iteration_bounds = array<i64: 1>, scalar_prefetch = 0 : i64, scratch_operands = 0 : i64, tpu.core_type = #tpu.core_type<tc>, window_params = [{transform_indices = @transform_0, window_bounds = array<i64: 16, 64>}, {pipeline_mode = #tpu.pipeline_mode<synchronous>, transform_indices = @transform_1, window_bounds = array<i64: 64, 128>}, {pipeline_mode = #tpu.pipeline_mode<synchronous>, transform_indices = @transform_2, window_bounds = array<i64: 1, 128>}, {pipeline_mode = #tpu.pipeline_mode<synchronous>, transform_indices = @transform_3, window_bounds = array<i64: 128, 64>}, {pipeline_mode = #tpu.pipeline_mode<synchronous>, transform_indices = @transform_4, window_bounds = array<i64: 1, 64>}, {transform_indices = @transform_5, window_bounds = array<i64: 16, 64>}, {pipeline_mode = #tpu.pipeline_mode<synchronous>, transform_indices = @transform_6, window_bounds = array<i64: 1, 64>}, {pipeline_mode = #tpu.pipeline_mode<synchronous>, transform_indices = @transform_7, window_bounds = array<i64: 1, 64>}, {transform_indices = @transform_8, window_bounds = array<i64: 16, 64>}]} {
    %c0 = arith.constant 0 : index
    %c0_0 = arith.constant 0 : index
    %0 = vector.load %arg1[%c0, %c0_0] : memref<16x64xf32, #tpu.memory_space<vmem>>, vector<16x64xf32>
    %c0_1 = arith.constant 0 : index
    %c0_2 = arith.constant 0 : index
    %1 = vector.load %arg2[%c0_1, %c0_2] : memref<64x128xf32, #tpu.memory_space<vmem>>, vector<64x128xf32>
    %cst = arith.constant dense<0.000000e+00> : vector<16x128xf32>
    %2 = tpu.matmul %0, %1, %cst {dimension_numbers = #tpu.dot_dimension_numbers<[1], [0], [0], [1], [0, 0, 1, 1], [], []>} : vector<16x64xf32>, vector<64x128xf32>, vector<16x128xf32> -> vector<16x128xf32>
    %c0_3 = arith.constant 0 : index
    %c0_4 = arith.constant 0 : index
    %3 = vector.load %arg3[%c0_3, %c0_4] : memref<1x128xf32, #tpu.memory_space<vmem>>, vector<1x128xf32>
    %4 = vector.broadcast %3 : vector<1x128xf32> to vector<16x128xf32>
    %5 = arith.addf %2, %4 : vector<16x128xf32>
    %6 = arith.mulf %5, %5 : vector<16x128xf32>
    %7 = arith.mulf %5, %6 : vector<16x128xf32>
    %cst_5 = arith.constant 4.471500e-02 : f32
    %8 = vector.broadcast %cst_5 : f32 to vector<16x128xf32>
    %9 = arith.mulf %8, %7 : vector<16x128xf32>
    %10 = arith.addf %5, %9 : vector<16x128xf32>
    %cst_6 = arith.constant 0.797884583 : f32
    %11 = vector.broadcast %cst_6 : f32 to vector<16x128xf32>
    %12 = arith.mulf %11, %10 : vector<16x128xf32>
    %13 = math.tanh %12 : vector<16x128xf32>
    %cst_7 = arith.constant 1.000000e+00 : f32
    %14 = vector.broadcast %cst_7 : f32 to vector<16x128xf32>
    %15 = arith.addf %14, %13 : vector<16x128xf32>
    %cst_8 = arith.constant 5.000000e-01 : f32
    %16 = vector.broadcast %cst_8 : f32 to vector<16x128xf32>
    %17 = arith.mulf %16, %15 : vector<16x128xf32>
    %18 = arith.mulf %5, %17 : vector<16x128xf32>
    %c0_9 = arith.constant 0 : index
    %c0_10 = arith.constant 0 : index
    %19 = vector.load %arg4[%c0_9, %c0_10] : memref<128x64xf32, #tpu.memory_space<vmem>>, vector<128x64xf32>
    %cst_11 = arith.constant dense<0.000000e+00> : vector<16x64xf32>
    %20 = tpu.matmul %18, %19, %cst_11 {dimension_numbers = #tpu.dot_dimension_numbers<[1], [0], [0], [1], [0, 0, 1, 1], [], []>} : vector<16x128xf32>, vector<128x64xf32>, vector<16x64xf32> -> vector<16x64xf32>
    %c0_12 = arith.constant 0 : index
    %c0_13 = arith.constant 0 : index
    %21 = vector.load %arg5[%c0_12, %c0_13] : memref<1x64xf32, #tpu.memory_space<vmem>>, vector<1x64xf32>
    %22 = vector.broadcast %21 : vector<1x64xf32> to vector<16x64xf32>
    %23 = arith.addf %20, %22 : vector<16x64xf32>
    %c0_14 = arith.constant 0 : index
    %c0_15 = arith.constant 0 : index
    %24 = vector.load %arg6[%c0_14, %c0_15] : memref<16x64xf32, #tpu.memory_space<vmem>>, vector<16x64xf32>
    %25 = arith.addf %23, %24 : vector<16x64xf32>
    %c0_16 = arith.constant 0 : index
    %c0_17 = arith.constant 0 : index
    %26 = vector.load %arg7[%c0_16, %c0_17] : memref<1x64xf32, #tpu.memory_space<vmem>>, vector<1x64xf32>
    %c0_18 = arith.constant 0 : index
    %c0_19 = arith.constant 0 : index
    %27 = vector.load %arg8[%c0_18, %c0_19] : memref<1x64xf32, #tpu.memory_space<vmem>>, vector<1x64xf32>
    %cst_20 = arith.constant dense<0.000000e+00> : vector<16xf32>
    %28 = vector.multi_reduction <add>, %25, %cst_20 [1] : vector<16x64xf32> to vector<16xf32>
    %29 = vector.shape_cast %28 : vector<16xf32> to vector<16x1xf32>
    %cst_21 = arith.constant 6.400000e+01 : f32
    %30 = vector.broadcast %cst_21 : f32 to vector<16x1xf32>
    %31 = arith.divf %29, %30 : vector<16x1xf32>
    %32 = vector.broadcast %31 : vector<16x1xf32> to vector<16x64xf32>
    %33 = arith.subf %25, %32 : vector<16x64xf32>
    %34 = arith.mulf %33, %33 : vector<16x64xf32>
    %cst_22 = arith.constant dense<0.000000e+00> : vector<16xf32>
    %35 = vector.multi_reduction <add>, %34, %cst_22 [1] : vector<16x64xf32> to vector<16xf32>
    %36 = vector.shape_cast %35 : vector<16xf32> to vector<16x1xf32>
    %cst_23 = arith.constant 6.400000e+01 : f32
    %37 = vector.broadcast %cst_23 : f32 to vector<16x1xf32>
    %38 = arith.divf %36, %37 : vector<16x1xf32>
    %39 = vector.broadcast %31 : vector<16x1xf32> to vector<16x64xf32>
    %40 = arith.subf %25, %39 : vector<16x64xf32>
    %cst_24 = arith.constant 9.99999974E-6 : f32
    %41 = vector.broadcast %cst_24 : f32 to vector<16x1xf32>
    %42 = arith.addf %38, %41 : vector<16x1xf32>
    %43 = math.rsqrt %42 : vector<16x1xf32>
    %44 = vector.broadcast %43 : vector<16x1xf32> to vector<16x64xf32>
    %45 = arith.mulf %40, %44 : vector<16x64xf32>
    %46 = vector.broadcast %26 : vector<1x64xf32> to vector<16x64xf32>
    %47 = arith.mulf %45, %46 : vector<16x64xf32>
    %48 = vector.broadcast %27 : vector<1x64xf32> to vector<16x64xf32>
    %49 = arith.addf %47, %48 : vector<16x64xf32>
    %c0_25 = arith.constant 0 : index
    %c0_26 = arith.constant 0 : index
    %50 = vector.load %arg9[%c0_25, %c0_26] : memref<16x64xf32, #tpu.memory_space<vmem>>, vector<16x64xf32>
    tpu.vector_store %arg9[%c0_25, %c0_26], %49 {strides = array<i32>} : memref<16x64xf32, #tpu.memory_space<vmem>>, vector<16x64xf32>,
    return
  }
  func.func @transform_0(%arg0: i32) -> (i32, i32) {
    %c0_i32 = arith.constant 0 : i32
    %c0_i32_0 = arith.constant 0 : i32
    return %arg0, %c0_i32 : i32, i32
  }
  func.func @transform_1(%arg0: i32) -> (i32, i32) {
    %c0_i32 = arith.constant 0 : i32
    %c0_i32_0 = arith.constant 0 : i32
    %c0_i32_1 = arith.constant 0 : i32
    return %c0_i32, %c0_i32_0 : i32, i32
  }
  func.func @transform_2(%arg0: i32) -> (i32, i32) {
    %c0_i32 = arith.constant 0 : i32
    %c0_i32_0 = arith.constant 0 : i32
    %c0_i32_1 = arith.constant 0 : i32
    return %c0_i32, %c0_i32_0 : i32, i32
  }
  func.func @transform_3(%arg0: i32) -> (i32, i32) {
    %c0_i32 = arith.constant 0 : i32
    %c0_i32_0 = arith.constant 0 : i32
    %c0_i32_1 = arith.constant 0 : i32
    return %c0_i32, %c0_i32_0 : i32, i32
  }
  func.func @transform_4(%arg0: i32) -> (i32, i32) {
    %c0_i32 = arith.constant 0 : i32
    %c0_i32_0 = arith.constant 0 : i32
    %c0_i32_1 = arith.constant 0 : i32
    return %c0_i32, %c0_i32_0 : i32, i32
  }
  func.func @transform_5(%arg0: i32) -> (i32, i32) {
    %c0_i32 = arith.constant 0 : i32
    %c0_i32_0 = arith.constant 0 : i32
    return %arg0, %c0_i32 : i32, i32
  }
  func.func @transform_6(%arg0: i32) -> (i32, i32) {
    %c0_i32 = arith.constant 0 : i32
    %c0_i32_0 = arith.constant 0 : i32
    %c0_i32_1 = arith.constant 0 : i32
    return %c0_i32, %c0_i32_0 : i32, i32
  }
  func.func @transform_7(%arg0: i32) -> (i32, i32) {
    %c0_i32 = arith.constant 0 : i32
    %c0_i32_0 = arith.constant 0 : i32
    %c0_i32_1 = arith.constant 0 : i32
    return %c0_i32, %c0_i32_0 : i32, i32
  }
  func.func @transform_8(%arg0: i32) -> (i32, i32) {
    %c0_i32 = arith.constant 0 : i32
    %c0_i32_0 = arith.constant 0 : i32
    return %arg0, %c0_i32 : i32, i32
  }
}

</mosaic_0001>

<llo_original>
// kernel: multi_decoder_layer.17
$region0: #{multi_decoder_layer.17}
  #allocation0 [shape = 'u32[]', space=smem, size = 0x4, offset = 0x4, fixed_abs, tag = 'smem constant byte address 0x4 - core index']
  #allocation1 [shape = 'u32[144,128]{1,0:T(1,128)}', space=vmem, size = 0x12000, scoped, tag = 'internal scratch']
  %s0 = inlined_call_operand.vmem [shape: f32[16,64], index: 0, kind: input, shape index: {}]
  %s1 = inlined_call_operand.vmem [shape: f32[64,192], index: 1, kind: input, shape index: {}]
  %s2 = inlined_call_operand.vmem [shape: f32[1,192], index: 2, kind: input, shape index: {}]
  %s3 = inlined_call_operand.vmem [shape: f32[16,192], index: 3, kind: output, shape index: {}]
  %s4 = sld [smem:[#allocation0]]
  $region22: #{multi_decoder_layer.17} parent=0
    _
  %s6 = ssub.s32 1, %s4
  %s7 = scalar_select 0, %s6, %s4
  // Predicated region
  $region2: #{multi_decoder_layer.17} parent=0 // pred_check
    _
  $region3: #{multi_decoder_layer.17} parent=0 // pred_check_branch
    %9 = sbr.rel (0) target = $region5
  $region4: #{multi_decoder_layer.17} parent=0 // pred_region
    _
  $region5: #{multi_decoder_layer.17} parent=0 // pred_fallthru
    _
  // Predicated region
  $region6: #{multi_decoder_layer.17} parent=0 // pred_check
    _
  $region7: #{multi_decoder_layer.17} parent=0 // pred_check_branch
    %11 = sbr.rel (0) target = $region9
  $region8: #{multi_decoder_layer.17} parent=0 // pred_region
    _
  $region9: #{multi_decoder_layer.17} parent=0 // pred_fallthru
    _
  // Predicated region
  $region10: #{multi_decoder_layer.17} parent=0 // pred_check
    _
  $region11: #{multi_decoder_layer.17} parent=0 // pred_check_branch
    %13 = sbr.rel (0) target = $region13
  $region12: #{multi_decoder_layer.17} parent=0 // pred_region
    _
  $region13: #{multi_decoder_layer.17} parent=0 // pred_fallthru
    _
  %v14 = vld [vmem:[%s0] sm:$0xff]
  %v15 = vld [vmem:[%s0 + $0x8] sm:$0xff]
  %v16 = vld [vmem:[%s1] sm:$0xff]
  %v17 = vld [vmem:[%s1 + $0x8] sm:$0xff]
  %v18 = vld [vmem:[%s1 + $0x10] sm:$0xff]
  %v19 = vld [vmem:[%s1 + $0x18] sm:$0xff]
  %v20 = vld [vmem:[%s1 + $0x20] sm:$0xff]
  %v21 = vld [vmem:[%s1 + $0x28] sm:$0xff]
  %v22 = vld [vmem:[%s1 + $0x30] sm:$0xff]
  %v23 = vld [vmem:[%s1 + $0x38] sm:$0xff]
  %v24 = vld [vmem:[%s1 + $0x40] sm:$0xff]
  %v25 = vld [vmem:[%s1 + $0x48] sm:$0xff]
  %v26 = vld [vmem:[%s1 + $0x50] sm:$0xff]
  %v27 = vld [vmem:[%s1 + $0x58] sm:$0xff]
  %v28 = vld [vmem:[%s1 + $0x60] sm:$0xff]
  %v29 = vld [vmem:[%s1 + $0x68] sm:$0xff]
  %v30 = vld [vmem:[%s1 + $0x70] sm:$0xff]
  %v31 = vld [vmem:[%s1 + $0x78] sm:$0xff]
  %v32 = vld [vmem:[%s2] sm:$0x3]
  %v34 = vlaneseq
  %v35 = vshrl.u32 %v34, 7
  %v36 = vsub.s32 0, %v35
  %v37 = vrot.slane %v32, %v36
  %v38 = vlaneseq
  %v39 = vshrl.u32 %v38, 7
  %v40 = vsub.s32 1, %v39
  %v41 = vrot.slane %v32, %v40
  %vm44 = vcmask 523264
  %v46 = vsel %vm44, %v14, 0
  %v49 = vsel %vm44, %v15, 0
  %51 = vmatprep.subr.mxu0 %v17
  %52 = vmatpush1.msra.mxu0 %v16
  %53 = vmatprep.subr.mxu0 %v19
  %54 = vmatpush1.msra.mxu0 %v18
  %55 = vmatprep.subr.mxu0 %v21
  %56 = vmatpush1.msra.mxu0 %v20
  %57 = vmatprep.subr.mxu0 %v23
  %58 = vmatpush1.msra.mxu0 %v22
  %59 = vmatprep.subr.mxu0 %v25
  %60 = vmatpush1.msra.mxu0 %v24
  %61 = vmatprep.subr.mxu0 %v27
  %62 = vmatpush1.msra.mxu0 %v26
  %63 = vmatprep.subr.mxu0 %v29
  %64 = vmatpush1.msra.mxu0 %v28
  %65 = vmatprep.subr.mxu0 %v31
  %66 = vmatpush1.msra.mxu0 %v30
  %67 = vmatprep.subr.mxu0 0.0
  %68 = vmatpush1.msra.mxu0 0.0
  %69 = vmatprep.subr.mxu0 0.0
  %70 = vmatpush1.msra.mxu0 0.0
  %71 = vmatprep.subr.mxu0 0.0
  %72 = vmatpush1.msra.mxu0 0.0
  %73 = vmatprep.subr.mxu0 0.0
  %74 = vmatpush1.msra.mxu0 0.0
  %75 = vmatprep.subr.mxu0 0.0
  %76 = vmatpush1.msra.mxu0 0.0
  %77 = vmatprep.subr.mxu0 0.0
  %78 = vmatpush1.msra.mxu0 0.0
  %79 = vmatprep.subr.mxu0 0.0
  %80 = vmatpush1.msra.mxu0 0.0
  %81 = vmatprep.subr.mxu0 0.0
  %82 = vmatpush1.msra.mxu0 0.0
  %83 = vmatprep.subr.mxu0 0.0
  %84 = vmatpush1.msra.mxu0 0.0
  %85 = vmatprep.subr.mxu0 0.0
  %86 = vmatpush1.msra.mxu0 0.0
  %87 = vmatprep.subr.mxu0 0.0
  %88 = vmatpush1.msra.mxu0 0.0
  %89 = vmatprep.subr.mxu0 0.0
  %90 = vmatpush1.msra.mxu0 0.0
  %91 = vmatprep.subr.mxu0 0.0
  %92 = vmatpush1.msra.mxu0 0.0
  %93 = vmatprep.subr.mxu0 0.0
  %94 = vmatpush1.msra.mxu0 0.0
  %95 = vmatprep.subr.mxu0 0.0
  %96 = vmatpush1.msra.mxu0 0.0
  %97 = vmatprep.subr.mxu0 0.0
  %98 = vmatpush1.msra.mxu0 0.0
  %99 = vmatprep.subr.mxu0 0.0
  %100 = vmatpush1.msra.mxu0 0.0
  %101 = vmatprep.subr.mxu0 0.0
  %102 = vmatpush1.msra.mxu0 0.0
  %103 = vmatprep.subr.mxu0 0.0
  %104 = vmatpush1.msra.mxu0 0.0
  %105 = vmatprep.subr.mxu0 0.0
  %106 = vmatpush1.msra.mxu0 0.0
  %107 = vmatprep.subr.mxu0 0.0
  %108 = vmatpush1.msra.mxu0 0.0
  %109 = vmatprep.subr.mxu0 0.0
  %110 = vmatpush1.msra.mxu0 0.0
  %111 = vmatprep.subr.mxu0 0.0
  %112 = vmatpush1.msra.mxu0 0.0
  %113 = vmatprep.subr.mxu0 0.0
  %114 = vmatpush1.msra.mxu0 0.0
  %115 = vmatprep.mubr.f32.mxu0 0.0
  %116 = vmatmul.mubr.f32.gmra.mrb[0].mxu0 %v46
  %v117 = vpop.f32.mrb[0].mxu0
  %v118 = vadd.f32 %v37, %v117
  %v119 = vpop.f32.mrb[0].mxu0
  %v120 = vadd.f32 %v41, %v119
  %121 = vmatprep.mubr.f32.mxu0 0.0
  %122 = vmatmul.mubr.f32.gmra.mrb[0].mxu0 %v49
  %v123 = vpop.f32.mrb[0].mxu0
  %v124 = vadd.f32 %v37, %v123
  %v125 = vpop.f32.mrb[0].mxu0
  %v126 = vadd.f32 %v41, %v125
  %127 = vdwg.mxu0
  %128 = vst [vmem:[%s3] sm:$0xff] %v118
  %129 = vst.msk [vmem:[%s3 + $0x8] sm:$0xff] %vm44, %v120
  %130 = vst [vmem:[%s3 + $0x10] sm:$0xff] %v124
  %131 = vst.msk [vmem:[%s3 + $0x18] sm:$0xff] %vm44, %v126
  // Predicated region
  $region14: #{multi_decoder_layer.17} parent=0 // pred_check
    _
  $region15: #{multi_decoder_layer.17} parent=0 // pred_check_branch
    %133 = sbr.rel (0) target = $region17
  $region16: #{multi_decoder_layer.17} parent=0 // pred_region
    _
  $region17: #{multi_decoder_layer.17} parent=0 // pred_fallthru
    _
  // Predicated region
  $region18: #{multi_decoder_layer.17} parent=0 // pred_check
    _
  $region19: #{multi_decoder_layer.17} parent=0 // pred_check_branch
    %135 = sbr.rel (0) target = $region21
  $region20: #{multi_decoder_layer.17} parent=0 // pred_region
    _
  $region21: #{multi_decoder_layer.17} parent=0 // pred_fallthru
    _

// kernel: multi_decoder_layer.20
$region0: #{multi_decoder_layer.20}
  #allocation0 [shape = 'u32[]', space=smem, size = 0x4, offset = 0x4, fixed_abs, tag = 'smem constant byte address 0x4 - core index']
  #allocation1 [shape = 'u32[144,128]{1,0:T(1,128)}', space=vmem, size = 0x12000, scoped, tag = 'internal scratch']
  %s0 = inlined_call_operand.vmem [shape: f32[16,64], index: 0, kind: input, shape index: {}]
  %s1 = inlined_call_operand.vmem [shape: f32[64,64], index: 1, kind: input, shape index: {}]
  %s2 = inlined_call_operand.vmem [shape: f32[1,64], index: 2, kind: input, shape index: {}]
  %s3 = inlined_call_operand.vmem [shape: f32[16,64], index: 3, kind: output, shape index: {}]
  %s4 = sld [smem:[#allocation0]]
  $region22: #{multi_decoder_layer.20} parent=0
    _
  %s6 = ssub.s32 1, %s4
  %s7 = scalar_select 0, %s6, %s4
  // Predicated region
  $region2: #{multi_decoder_layer.20} parent=0 // pred_check
    _
  $region3: #{multi_decoder_layer.20} parent=0 // pred_check_branch
    %9 = sbr.rel (0) target = $region5
  $region4: #{multi_decoder_layer.20} parent=0 // pred_region
    _
  $region5: #{multi_decoder_layer.20} parent=0 // pred_fallthru
    _
  // Predicated region
  $region6: #{multi_decoder_layer.20} parent=0 // pred_check
    _
  $region7: #{multi_decoder_layer.20} parent=0 // pred_check_branch
    %11 = sbr.rel (0) target = $region9
  $region8: #{multi_decoder_layer.20} parent=0 // pred_region
    _
  $region9: #{multi_decoder_layer.20} parent=0 // pred_fallthru
    _
  // Predicated region
  $region10: #{multi_decoder_layer.20} parent=0 // pred_check
    _
  $region11: #{multi_decoder_layer.20} parent=0 // pred_check_branch
    %13 = sbr.rel (0) target = $region13
  $region12: #{multi_decoder_layer.20} parent=0 // pred_region
    _
  $region13: #{multi_decoder_layer.20} parent=0 // pred_fallthru
    _
  %v14 = vld [vmem:[%s0] sm:$0xff]
  %v15 = vld [vmem:[%s0 + $0x8] sm:$0xff]
  %v16 = vld [vmem:[%s1] sm:$0xff]
  %v17 = vld [vmem:[%s1 + $0x8] sm:$0xff]
  %v18 = vld [vmem:[%s1 + $0x10] sm:$0xff]
  %v19 = vld [vmem:[%s1 + $0x18] sm:$0xff]
  %v20 = vld [vmem:[%s1 + $0x20] sm:$0xff]
  %v21 = vld [vmem:[%s1 + $0x28] sm:$0xff]
  %v22 = vld [vmem:[%s1 + $0x30] sm:$0xff]
  %v23 = vld [vmem:[%s1 + $0x38] sm:$0xff]
  %v24 = vld [vmem:[%s2] sm:$0x1]
  %v26 = vlaneseq
  %v27 = vshrl.u32 %v26, 7
  %v28 = vsub.s32 0, %v27
  %v29 = vrot.slane %v24, %v28
  %vm31 = vcmask 523264
  %v33 = vsel %vm31, %v14, 0
  %v36 = vsel %vm31, %v15, 0
  %38 = vmatprep.subr.mxu0 0.0
  %39 = vmatpush1.msra.mxu0 %v16
  %40 = vmatprep.subr.mxu0 0.0
  %41 = vmatpush1.msra.mxu0 %v17
  %42 = vmatprep.subr.mxu0 0.0
  %43 = vmatpush1.msra.mxu0 %v18
  %44 = vmatprep.subr.mxu0 0.0
  %45 = vmatpush1.msra.mxu0 %v19
  %46 = vmatprep.subr.mxu0 0.0
  %47 = vmatpush1.msra.mxu0 %v20
  %48 = vmatprep.subr.mxu0 0.0
  %49 = vmatpush1.msra.mxu0 %v21
  %50 = vmatprep.subr.mxu0 0.0
  %51 = vmatpush1.msra.mxu0 %v22
  %52 = vmatprep.subr.mxu0 0.0
  %53 = vmatpush1.msra.mxu0 %v23
  %54 = vmatprep.subr.mxu0 0.0
  %55 = vmatpush1.msra.mxu0 0.0
  %56 = vmatprep.subr.mxu0 0.0
  %57 = vmatpush1.msra.mxu0 0.0
  %58 = vmatprep.subr.mxu0 0.0
  %59 = vmatpush1.msra.mxu0 0.0
  %60 = vmatprep.subr.mxu0 0.0
  %61 = vmatpush1.msra.mxu0 0.0
  %62 = vmatprep.subr.mxu0 0.0
  %63 = vmatpush1.msra.mxu0 0.0
  %64 = vmatprep.subr.mxu0 0.0
  %65 = vmatpush1.msra.mxu0 0.0
  %66 = vmatprep.subr.mxu0 0.0
  %67 = vmatpush1.msra.mxu0 0.0
  %68 = vmatprep.subr.mxu0 0.0
  %69 = vmatpush1.msra.mxu0 0.0
  %70 = vmatprep.subr.mxu0 0.0
  %71 = vmatpush1.msra.mxu0 0.0
  %72 = vmatprep.subr.mxu0 0.0
  %73 = vmatpush1.msra.mxu0 0.0
  %74 = vmatprep.subr.mxu0 0.0
  %75 = vmatpush1.msra.mxu0 0.0
  %76 = vmatprep.subr.mxu0 0.0
  %77 = vmatpush1.msra.mxu0 0.0
  %78 = vmatprep.subr.mxu0 0.0
  %79 = vmatpush1.msra.mxu0 0.0
  %80 = vmatprep.subr.mxu0 0.0
  %81 = vmatpush1.msra.mxu0 0.0
  %82 = vmatprep.subr.mxu0 0.0
  %83 = vmatpush1.msra.mxu0 0.0
  %84 = vmatprep.subr.mxu0 0.0
  %85 = vmatpush1.msra.mxu0 0.0
  %86 = vmatprep.subr.mxu0 0.0
  %87 = vmatpush1.msra.mxu0 0.0
  %88 = vmatprep.subr.mxu0 0.0
  %89 = vmatpush1.msra.mxu0 0.0
  %90 = vmatprep.subr.mxu0 0.0
  %91 = vmatpush1.msra.mxu0 0.0
  %92 = vmatprep.subr.mxu0 0.0
  %93 = vmatpush1.msra.mxu0 0.0
  %94 = vmatprep.subr.mxu0 0.0
  %95 = vmatpush1.msra.mxu0 0.0
  %96 = vmatprep.subr.mxu0 0.0
  %97 = vmatpush1.msra.mxu0 0.0
  %98 = vmatprep.subr.mxu0 0.0
  %99 = vmatpush1.msra.mxu0 0.0
  %100 = vmatprep.subr.mxu0 0.0
  %101 = vmatpush1.msra.mxu0 0.0
  %102 = vmatprep.mubr.f32.mxu0 0.0
  %103 = vmatmul.mubr.f32.gmra.mrb[0].mxu0 %v33
  %v104 = vpop.f32.mrb[0].mxu0
  %v105 = vadd.f32 %v29, %v104
  %v106 = vpop.f32.mrb[0].mxu0
  %107 = vmatprep.mubr.f32.mxu0 0.0
  %108 = vmatmul.mubr.f32.gmra.mrb[0].mxu0 %v36
  %v109 = vpop.f32.mrb[0].mxu0
  %v110 = vadd.f32 %v29, %v109
  %v111 = vpop.f32.mrb[0].mxu0
  %112 = vdwg.mxu0
  %113 = vst.msk [vmem:[%s3] sm:$0xff] %vm31, %v105
  %114 = vst.msk [vmem:[%s3 + $0x8] sm:$0xff] %vm31, %v110
  // Predicated region
  $region14: #{multi_decoder_layer.20} parent=0 // pred_check
    _
  $region15: #{multi_decoder_layer.20} parent=0 // pred_check_branch
    %116 = sbr.rel (0) target = $region17
  $region16: #{multi_decoder_layer.20} parent=0 // pred_region
    _
  $region17: #{multi_decoder_layer.20} parent=0 // pred_fallthru
    _
  // Predicated region
  $region18: #{multi_decoder_layer.20} parent=0 // pred_check
    _
  $region19: #{multi_decoder_layer.20} parent=0 // pred_check_branch
    %118 = sbr.rel (0) target = $region21
  $region20: #{multi_decoder_layer.20} parent=0 // pred_region
    _
  $region21: #{multi_decoder_layer.20} parent=0 // pred_fallthru
    _

// kernel: multi_decoder_layer.19
$region0: #{multi_decoder_layer.19}
  #allocation0 [shape = 'u32[]', space=smem, size = 0x4, offset = 0x4, fixed_abs, tag = 'smem constant byte address 0x4 - core index']
  #allocation1 [shape = 'u32[144,128]{1,0:T(1,128)}', space=vmem, size = 0x12000, scoped, tag = 'internal scratch']
  %s0 = inlined_call_operand.vmem [shape: f32[16,64], index: 0, kind: input, shape index: {}]
  %s1 = inlined_call_operand.vmem [shape: f32[64,64], index: 1, kind: input, shape index: {}]
  %s2 = inlined_call_operand.vmem [shape: f32[1,64], index: 2, kind: input, shape index: {}]
  %s3 = inlined_call_operand.vmem [shape: f32[16,64], index: 3, kind: input, shape index: {}]
  %s4 = inlined_call_operand.vmem [shape: f32[1,64], index: 4, kind: input, shape index: {}]
  %s5 = inlined_call_operand.vmem [shape: f32[1,64], index: 5, kind: input, shape index: {}]
  %s6 = inlined_call_operand.vmem [shape: f32[16,64], index: 6, kind: output, shape index: {}]
  %s7 = sld [smem:[#allocation0]]
  $region34: #{multi_decoder_layer.19} parent=0
    _
  %s9 = ssub.s32 1, %s7
  %s10 = scalar_select 0, %s9, %s7
  // Predicated region
  $region2: #{multi_decoder_layer.19} parent=0 // pred_check
    _
  $region3: #{multi_decoder_layer.19} parent=0 // pred_check_branch
    %12 = sbr.rel (0) target = $region5
  $region4: #{multi_decoder_layer.19} parent=0 // pred_region
    _
  $region5: #{multi_decoder_layer.19} parent=0 // pred_fallthru
    _
  // Predicated region
  $region6: #{multi_decoder_layer.19} parent=0 // pred_check
    _
  $region7: #{multi_decoder_layer.19} parent=0 // pred_check_branch
    %14 = sbr.rel (0) target = $region9
  $region8: #{multi_decoder_layer.19} parent=0 // pred_region
    _
  $region9: #{multi_decoder_layer.19} parent=0 // pred_fallthru
    _
  // Predicated region
  $region10: #{multi_decoder_layer.19} parent=0 // pred_check
    _
  $region11: #{multi_decoder_layer.19} parent=0 // pred_check_branch
    %16 = sbr.rel (0) target = $region13
  $region12: #{multi_decoder_layer.19} parent=0 // pred_region
    _
  $region13: #{multi_decoder_layer.19} parent=0 // pred_fallthru
    _
  // Predicated region
  $region14: #{multi_decoder_layer.19} parent=0 // pred_check
    _
  $region15: #{multi_decoder_layer.19} parent=0 // pred_check_branch
    %18 = sbr.rel (0) target = $region17
  $region16: #{multi_decoder_layer.19} parent=0 // pred_region
    _
  $region17: #{multi_decoder_layer.19} parent=0 // pred_fallthru
    _
  // Predicated region
  $region18: #{multi_decoder_layer.19} parent=0 // pred_check
    _
  $region19: #{multi_decoder_layer.19} parent=0 // pred_check_branch
    %20 = sbr.rel (0) target = $region21
  $region20: #{multi_decoder_layer.19} parent=0 // pred_region
    _
  $region21: #{multi_decoder_layer.19} parent=0 // pred_fallthru
    _
  // Predicated region
  $region22: #{multi_decoder_layer.19} parent=0 // pred_check
    _
  $region23: #{multi_decoder_layer.19} parent=0 // pred_check_branch
    %22 = sbr.rel (0) target = $region25
  $region24: #{multi_decoder_layer.19} parent=0 // pred_region
    _
  $region25: #{multi_decoder_layer.19} parent=0 // pred_fallthru
    _
  %v23 = vld [vmem:[%s0] sm:$0xff]
  %v24 = vld [vmem:[%s0 + $0x8] sm:$0xff]
  %v25 = vld [vmem:[%s1] sm:$0xff]
  %v26 = vld [vmem:[%s1 + $0x8] sm:$0xff]
  %v27 = vld [vmem:[%s1 + $0x10] sm:$0xff]
  %v28 = vld [vmem:[%s1 + $0x18] sm:$0xff]
  %v29 = vld [vmem:[%s1 + $0x20] sm:$0xff]
  %v30 = vld [vmem:[%s1 + $0x28] sm:$0xff]
  %v31 = vld [vmem:[%s1 + $0x30] sm:$0xff]
  %v32 = vld [vmem:[%s1 + $0x38] sm:$0xff]
  %v33 = vld [vmem:[%s2] sm:$0x1]
  %v35 = vlaneseq
  %v36 = vshrl.u32 %v35, 7
  %v37 = vsub.s32 0, %v36
  %v38 = vrot.slane %v33, %v37
  %vm40 = vcmask 523264
  %v42 = vsel %vm40, %v23, 0
  %v45 = vsel %vm40, %v24, 0
  %47 = vmatprep.subr.mxu0 0.0
  %48 = vmatpush1.msra.mxu0 %v25
  %49 = vmatprep.subr.mxu0 0.0
  %50 = vmatpush1.msra.mxu0 %v26
  %51 = vmatprep.subr.mxu0 0.0
  %52 = vmatpush1.msra.mxu0 %v27
  %53 = vmatprep.subr.mxu0 0.0
  %54 = vmatpush1.msra.mxu0 %v28
  %55 = vmatprep.subr.mxu0 0.0
  %56 = vmatpush1.msra.mxu0 %v29
  %57 = vmatprep.subr.mxu0 0.0
  %58 = vmatpush1.msra.mxu0 %v30
  %59 = vmatprep.subr.mxu0 0.0
  %60 = vmatpush1.msra.mxu0 %v31
  %61 = vmatprep.subr.mxu0 0.0
  %62 = vmatpush1.msra.mxu0 %v32
  %63 = vmatprep.subr.mxu0 0.0
  %64 = vmatpush1.msra.mxu0 0.0
  %65 = vmatprep.subr.mxu0 0.0
  %66 = vmatpush1.msra.mxu0 0.0
  %67 = vmatprep.subr.mxu0 0.0
  %68 = vmatpush1.msra.mxu0 0.0
  %69 = vmatprep.subr.mxu0 0.0
  %70 = vmatpush1.msra.mxu0 0.0
  %71 = vmatprep.subr.mxu0 0.0
  %72 = vmatpush1.msra.mxu0 0.0
  %73 = vmatprep.subr.mxu0 0.0
  %74 = vmatpush1.msra.mxu0 0.0
  %75 = vmatprep.subr.mxu0 0.0
  %76 = vmatpush1.msra.mxu0 0.0
  %77 = vmatprep.subr.mxu0 0.0
  %78 = vmatpush1.msra.mxu0 0.0
  %79 = vmatprep.subr.mxu0 0.0
  %80 = vmatpush1.msra.mxu0 0.0
  %81 = vmatprep.subr.mxu0 0.0
  %82 = vmatpush1.msra.mxu0 0.0
  %83 = vmatprep.subr.mxu0 0.0
  %84 = vmatpush1.msra.mxu0 0.0
  %85 = vmatprep.subr.mxu0 0.0
  %86 = vmatpush1.msra.mxu0 0.0
  %87 = vmatprep.subr.mxu0 0.0
  %88 = vmatpush1.msra.mxu0 0.0
  %89 = vmatprep.subr.mxu0 0.0
  %90 = vmatpush1.msra.mxu0 0.0
  %91 = vmatprep.subr.mxu0 0.0
  %92 = vmatpush1.msra.mxu0 0.0
  %93 = vmatprep.subr.mxu0 0.0
  %94 = vmatpush1.msra.mxu0 0.0
  %95 = vmatprep.subr.mxu0 0.0
  %96 = vmatpush1.msra.mxu0 0.0
  %97 = vmatprep.subr.mxu0 0.0
  %98 = vmatpush1.msra.mxu0 0.0
  %99 = vmatprep.subr.mxu0 0.0
  %100 = vmatpush1.msra.mxu0 0.0
  %101 = vmatprep.subr.mxu0 0.0
  %102 = vmatpush1.msra.mxu0 0.0
  %103 = vmatprep.subr.mxu0 0.0
  %104 = vmatpush1.msra.mxu0 0.0
  %105 = vmatprep.subr.mxu0 0.0
  %106 = vmatpush1.msra.mxu0 0.0
  %107 = vmatprep.subr.mxu0 0.0
  %108 = vmatpush1.msra.mxu0 0.0
  %109 = vmatprep.subr.mxu0 0.0
  %110 = vmatpush1.msra.mxu0 0.0
  %111 = vmatprep.mubr.f32.mxu0 0.0
  %112 = vmatmul.mubr.f32.gmra.mrb[0].mxu0 %v42
  %v113 = vpop.f32.mrb[0].mxu0
  %v114 = vadd.f32 %v38, %v113
  %v115 = vpop.f32.mrb[0].mxu0
  %116 = vmatprep.mubr.f32.mxu0 0.0
  %117 = vmatmul.mubr.f32.gmra.mrb[0].mxu0 %v45
  %v118 = vpop.f32.mrb[0].mxu0
  %v119 = vadd.f32 %v38, %v118
  %v120 = vpop.f32.mrb[0].mxu0
  %121 = vdwg.mxu0
  %v122 = vld [vmem:[%s3] sm:$0xff]
  %v123 = vld [vmem:[%s3 + $0x8] sm:$0xff]
  %v124 = vadd.f32 %v114, %v122
  %v125 = vadd.f32 %v119, %v123
  %v126 = vld [vmem:[%s4] sm:$0x1]
  %v127 = vld [vmem:[%s5] sm:$0x1]
  %v128 = vsel %vm40, %v124, 0.0
  %129 = vadd.xlane.f32.xlu0 %v128
  %v130 = vpop.xlane.xlu0 %129
  %v131 = vsel %vm40, %v125, 0.0
  %132 = vadd.xlane.f32.xlu0 %v131
  %v133 = vpop.xlane.xlu0 %132
  %v134 = vrcp.pop 64.0
  %v135 = vmul.f32 %v130, %v134
  %v136 = vmul.f32 %v133, %v134
  %v137 = vsub.f32 %v124, %v135
  %v138 = vsub.f32 %v125, %v136
  %v139 = vmul.f32 %v137, %v137
  %v140 = vmul.f32 %v138, %v138
  %v141 = vsel %vm40, %v139, 0.0
  %142 = vadd.xlane.f32.xlu0 %v141
  %v143 = vpop.xlane.xlu0 %142
  %v144 = vsel %vm40, %v140, 0.0
  %145 = vadd.xlane.f32.xlu0 %v144
  %v146 = vpop.xlane.xlu0 %145
  %v147 = vmul.f32 %v143, %v134
  %v148 = vmul.f32 %v146, %v134
  %v149 = vadd.f32 %v147, 1e-05
  %v150 = vadd.f32 %v148, 1e-05
  %v151 = vrsqrt.pop %v149
  %v152 = vrsqrt.pop %v150
  %v153 = vmul.f32 %v137, %v151
  %v154 = vmul.f32 %v138, %v152
  %v156 = vlaneseq
  %v157 = vshrl.u32 %v156, 7
  %v158 = vsub.s32 0, %v157
  %v159 = vrot.slane %v126, %v158
  %v161 = vmul.f32 %v153, %v159
  %v162 = vmul.f32 %v154, %v159
  %v164 = vlaneseq
  %v165 = vshrl.u32 %v164, 7
  %v166 = vsub.s32 0, %v165
  %v167 = vrot.slane %v127, %v166
  %v169 = vadd.f32 %v161, %v167
  %v170 = vadd.f32 %v162, %v167
  %171 = vst.msk [vmem:[%s6] sm:$0xff] %vm40, %v169
  %172 = vst.msk [vmem:[%s6 + $0x8] sm:$0xff] %vm40, %v170
  // Predicated region
  $region26: #{multi_decoder_layer.19} parent=0 // pred_check
    _
  $region27: #{multi_decoder_layer.19} parent=0 // pred_check_branch
    %174 = sbr.rel (0) target = $region29
  $region28: #{multi_decoder_layer.19} parent=0 // pred_region
    _
  $region29: #{multi_decoder_layer.19} parent=0 // pred_fallthru
    _
  // Predicated region
  $region30: #{multi_decoder_layer.19} parent=0 // pred_check
    _
  $region31: #{multi_decoder_layer.19} parent=0 // pred_check_branch
    %176 = sbr.rel (0) target = $region33
  $region32: #{multi_decoder_layer.19} parent=0 // pred_region
    _
  $region33: #{multi_decoder_layer.19} parent=0 // pred_fallthru
    _

// kernel: multi_decoder_layer.18
$region0: #{multi_decoder_layer.18}
  #allocation0 [shape = 'u32[]', space=smem, size = 0x4, offset = 0x4, fixed_abs, tag = 'smem constant byte address 0x4 - core index']
  #allocation1 [shape = 'u32[144,128]{1,0:T(1,128)}', space=vmem, size = 0x12000, scoped, tag = 'internal scratch']
  %s0 = inlined_call_operand.vmem [shape: f32[2,4,8,16], index: 0, kind: input, shape index: {}]
  %s1 = inlined_call_operand.vmem [shape: f32[2,4,8,16], index: 1, kind: input, shape index: {}]
  %s2 = inlined_call_operand.vmem [shape: f32[2,4,8,16], index: 2, kind: input, shape index: {}]
  %s3 = inlined_call_operand.vmem [shape: f32[2,8,8], index: 3, kind: input, shape index: {}]
  %s4 = inlined_call_operand.vmem [shape: f32[2,4,8,16], index: 4, kind: output, shape index: {}]
  %s5 = sld [smem:[#allocation0]]
  $region49: #{multi_decoder_layer.18} parent=0
    _
  %s7 = ssub.s32 1, %s5
  %s8 = scalar_select 0, %s7, %s5
  loop: start=0, step=1, limit=4
  $region2: #{multi_decoder_layer.18} parent=0 // loop_pre_header
    _
  $region3: #{multi_decoder_layer.18} parent=0 // loop_header
    %s10 = sphi 0, %s14
    %p11 = scmp.ge.s32.totalorder %s10, 4
    %s20 = sphi 0, %s22
    %s23 = sphi 0, %s20
    %s24 = sphi 0, %s23
    %s40 = sphi 0, %s24
    %s46 = sphi 0, %s48
    %s49 = sphi 0, %s46
    %s50 = sphi 0, %s49
    %s66 = sphi 0, %s50
    %s72 = sphi 0, %s74
    %s75 = sphi 0, %s72
    %s76 = sphi 0, %s75
    %s92 = sphi 0, %s76
    %s98 = sphi 0, %s100
    %s101 = sphi 0, %s98
    %s102 = sphi 0, %s101
    %s118 = sphi 0, %s102
    %s124 = sphi 0, %s126
    %s127 = sphi 0, %s124
    %s128 = sphi 0, %s127
    %s144 = sphi 0, %s128
  $region4: #{multi_decoder_layer.18} parent=0 // loop_header_branch
    %13 = sbr.rel (%p11) target = $region8
  $region5: #{multi_decoder_layer.18} parent=0 // loop_body
    %s15 = ssub.s32 %s10, 1
    %s16 = ssub.s32 %s10, 2
    %s17 = sadd.s32 %s10, 1
    %s18 = ssub.s32 %s10, %s17
    %p19 = scmp.eq.s32.totalorder %s18, 0
    %s21 = sadd.s32 %s20, 1
    %s22 = scalar_select %p19, %s20, %s21
    %p25 = pneg %p19
    %p26 = scmp.eq.s32.totalorder %s10, 1
    %p27 = por %p25, %p26
    %p28 = scmp.ne.s32.totalorder %s20, %s23
    %p29 = scmp.eq.s32.totalorder %s10, 0
    %p30 = por %p28, %p29
    %p31 = scmp.ne.s32.totalorder %s20, %s23
    %p32 = scmp.eq.s32.totalorder %s15, 1
    %p33 = por %p31, %p32
    %p34 = scmp.ne.s32.totalorder %s23, %s24
    %p35 = scmp.eq.s32.totalorder %s15, 0
    %p36 = por %p34, %p35
    %p37 = scmp.ne.s32.totalorder %s23, %s24
    %p38 = scmp.eq.s32.totalorder %s16, 1
    %p39 = por %p37, %p38
    %p41 = scmp.ne.s32.totalorder %s24, %s40
    %p42 = scmp.eq.s32.totalorder %s16, 0
    %p43 = por %p41, %p42
    %s44 = ssub.s32 %s10, %s17
    %p45 = scmp.eq.s32.totalorder %s44, 0
    %s47 = sadd.s32 %s46, 1
    %s48 = scalar_select %p45, %s46, %s47
    %p51 = pneg %p45
    %p52 = scmp.eq.s32.totalorder %s10, 1
    %p53 = por %p51, %p52
    %p54 = scmp.ne.s32.totalorder %s46, %s49
    %p55 = scmp.eq.s32.totalorder %s10, 0
    %p56 = por %p54, %p55
    %p57 = scmp.ne.s32.totalorder %s46, %s49
    %p58 = scmp.eq.s32.totalorder %s15, 1
    %p59 = por %p57, %p58
    %p60 = scmp.ne.s32.totalorder %s49, %s50
    %p61 = scmp.eq.s32.totalorder %s15, 0
    %p62 = por %p60, %p61
    %p63 = scmp.ne.s32.totalorder %s49, %s50
    %p64 = scmp.eq.s32.totalorder %s16, 1
    %p65 = por %p63, %p64
    %p67 = scmp.ne.s32.totalorder %s50, %s66
    %p68 = scmp.eq.s32.totalorder %s16, 0
    %p69 = por %p67, %p68
    %s70 = ssub.s32 %s10, %s17
    %p71 = scmp.eq.s32.totalorder %s70, 0
    %s73 = sadd.s32 %s72, 1
    %s74 = scalar_select %p71, %s72, %s73
    %p77 = pneg %p71
    %p78 = scmp.eq.s32.totalorder %s10, 1
    %p79 = por %p77, %p78
    %p80 = scmp.ne.s32.totalorder %s72, %s75
    %p81 = scmp.eq.s32.totalorder %s10, 0
    %p82 = por %p80, %p81
    %p83 = scmp.ne.s32.totalorder %s72, %s75
    %p84 = scmp.eq.s32.totalorder %s15, 1
    %p85 = por %p83, %p84
    %p86 = scmp.ne.s32.totalorder %s75, %s76
    %p87 = scmp.eq.s32.totalorder %s15, 0
    %p88 = por %p86, %p87
    %p89 = scmp.ne.s32.totalorder %s75, %s76
    %p90 = scmp.eq.s32.totalorder %s16, 1
    %p91 = por %p89, %p90
    %p93 = scmp.ne.s32.totalorder %s76, %s92
    %p94 = scmp.eq.s32.totalorder %s16, 0
    %p95 = por %p93, %p94
    %s96 = ssub.s32 %s10, %s17
    %p97 = scmp.eq.s32.totalorder %s96, 0
    %s99 = sadd.s32 %s98, 1
    %s100 = scalar_select %p97, %s98, %s99
    %p103 = pneg %p97
    %p104 = scmp.eq.s32.totalorder %s10, 1
    %p105 = por %p103, %p104
    %p106 = scmp.ne.s32.totalorder %s98, %s101
    %p107 = scmp.eq.s32.totalorder %s10, 0
    %p108 = por %p106, %p107
    %p109 = scmp.ne.s32.totalorder %s98, %s101
    %p110 = scmp.eq.s32.totalorder %s15, 1
    %p111 = por %p109, %p110
    %p112 = scmp.ne.s32.totalorder %s101, %s102
    %p113 = scmp.eq.s32.totalorder %s15, 0
    %p114 = por %p112, %p113
    %p115 = scmp.ne.s32.totalorder %s101, %s102
    %p116 = scmp.eq.s32.totalorder %s16, 1
    %p117 = por %p115, %p116
    %p119 = scmp.ne.s32.totalorder %s102, %s118
    %p120 = scmp.eq.s32.totalorder %s16, 0
    %p121 = por %p119, %p120
    %s122 = ssub.s32 %s10, %s17
    %p123 = scmp.eq.s32.totalorder %s122, 0
    %s125 = sadd.s32 %s124, 1
    %s126 = scalar_select %p123, %s124, %s125
    %p129 = pneg %p123
    %p130 = scmp.eq.s32.totalorder %s10, 1
    %p131 = por %p129, %p130
    %p132 = scmp.ne.s32.totalorder %s124, %s127
    %p133 = scmp.eq.s32.totalorder %s10, 0
    %p134 = por %p132, %p133
    %p135 = scmp.ne.s32.totalorder %s124, %s127
    %p136 = scmp.eq.s32.totalorder %s15, 1
    %p137 = por %p135, %p136
    %p138 = scmp.ne.s32.totalorder %s127, %s128
    %p139 = scmp.eq.s32.totalorder %s15, 0
    %p140 = por %p138, %p139
    %p141 = scmp.ne.s32.totalorder %s127, %s128
    %p142 = scmp.eq.s32.totalorder %s16, 1
    %p143 = por %p141, %p142
    %p145 = scmp.ne.s32.totalorder %s128, %s144
    %p146 = scmp.eq.s32.totalorder %s16, 0
    %p147 = por %p145, %p146
    %p148 = scmp.le.s32.totalorder 1, %s10
    %p149 = scmp.lt.s32.totalorder %s10, 3
    %p150 = pnand %p148, %p149
    %p151 = pneg %p150
    // Predicated region
    $region9: #{multi_decoder_layer.18} parent=5 // pred_check
      _
    $region10: #{multi_decoder_layer.18} parent=5 // pred_check_branch
      %153 = sbr.rel (%p150) target = $region12
    $region11: #{multi_decoder_layer.18} parent=5 // pred_region
      %s154 = ssub.s32 %s10, 1
    $region12: #{multi_decoder_layer.18} parent=5 // pred_fallthru
      _
    %p155 = scmp.lt.s32.totalorder %s10, 2
    // Predicated region
    $region13: #{multi_decoder_layer.18} parent=5 // pred_check
      %p156 = pneg %p155
    $region14: #{multi_decoder_layer.18} parent=5 // pred_check_branch
      %158 = sbr.rel (%p156) target = $region16
    $region15: #{multi_decoder_layer.18} parent=5 // pred_region
      // Predicated region
      $region17: #{multi_decoder_layer.18} parent=15 // pred_check
        %p159 = pneg %p30
      $region18: #{multi_decoder_layer.18} parent=15 // pred_check_branch
        %161 = sbr.rel (%p159) target = $region20
      $region19: #{multi_decoder_layer.18} parent=15 // pred_region
        %p162 = scmp.lt.s32.totalorder %s10, 1
        %s163 = scalar_select %p162, %s10, 1
        %s164 = smul.addr %s163, 4
        %s165 = smul.addr %s164, 8
        %s166 = scalar_lea.vmem %s0, %s165
      $region20: #{multi_decoder_layer.18} parent=15 // pred_fallthru
        _
      // Predicated region
      $region21: #{multi_decoder_layer.18} parent=15 // pred_check
        %p167 = pneg %p56
      $region22: #{multi_decoder_layer.18} parent=15 // pred_check_branch
        %169 = sbr.rel (%p167) target = $region24
      $region23: #{multi_decoder_layer.18} parent=15 // pred_region
        %p170 = scmp.lt.s32.totalorder %s10, 1
        %s171 = scalar_select %p170, %s10, 1
        %s172 = smul.addr %s171, 4
        %s173 = smul.addr %s172, 8
        %s174 = scalar_lea.vmem %s1, %s173
      $region24: #{multi_decoder_layer.18} parent=15 // pred_fallthru
        _
      // Predicated region
      $region25: #{multi_decoder_layer.18} parent=15 // pred_check
        %p175 = pneg %p82
      $region26: #{multi_decoder_layer.18} parent=15 // pred_check_branch
        %177 = sbr.rel (%p175) target = $region28
      $region27: #{multi_decoder_layer.18} parent=15 // pred_region
        %p178 = scmp.lt.s32.totalorder %s10, 1
        %s179 = scalar_select %p178, %s10, 1
        %s180 = smul.addr %s179, 4
        %s181 = smul.addr %s180, 8
        %s182 = scalar_lea.vmem %s2, %s181
      $region28: #{multi_decoder_layer.18} parent=15 // pred_fallthru
        _
      // Predicated region
      $region29: #{multi_decoder_layer.18} parent=15 // pred_check
        %p183 = pneg %p108
      $region30: #{multi_decoder_layer.18} parent=15 // pred_check_branch
        %185 = sbr.rel (%p183) target = $region32
      $region31: #{multi_decoder_layer.18} parent=15 // pred_region
        %p186 = scmp.lt.s32.totalorder %s10, 1
        %s187 = scalar_select %p186, %s10, 1
        %s188 = smul.addr %s187, 8
        %s189 = scalar_lea.vmem %s3, %s188
      $region32: #{multi_decoder_layer.18} parent=15 // pred_fallthru
        _
    $region16: #{multi_decoder_layer.18} parent=5 // pred_fallthru
      _
    %p190 = scmp.le.s32.totalorder 1, %s10
    %p191 = scmp.lt.s32.totalorder %s10, 3
    %p192 = pnand %p190, %p191
    %p193 = pneg %p192
    // Predicated region
    $region33: #{multi_decoder_layer.18} parent=5 // pred_check
      _
    $region34: #{multi_decoder_layer.18} parent=5 // pred_check_branch
      %195 = sbr.rel (%p192) target = $region36
    $region35: #{multi_decoder_layer.18} parent=5 // pred_region
      %s196 = ssub.s32 %s10, 1
      %p197 = scmp.lt.s32.totalorder %s15, 1
      %s198 = scalar_select %p197, %s15, 1
      %s199 = smul.addr %s198, 4
      %s200 = smul.addr %s199, 8
      %s201 = scalar_lea.vmem %s0, %s200
      %p202 = pneg %p36
      %p203 = pneg %p33
      %p204 = scmp.lt.s32.totalorder %s15, 1
      %s205 = scalar_select %p204, %s15, 1
      %s206 = smul.addr %s205, 4
      %s207 = smul.addr %s206, 8
      %s208 = scalar_lea.vmem %s1, %s207
      %p209 = pneg %p62
      %p210 = pneg %p59
      %p211 = scmp.lt.s32.totalorder %s15, 1
      %s212 = scalar_select %p211, %s15, 1
      %s213 = smul.addr %s212, 4
      %s214 = smul.addr %s213, 8
      %s215 = scalar_lea.vmem %s2, %s214
      %p216 = pneg %p88
      %p217 = pneg %p85
      %p218 = scmp.lt.s32.totalorder %s15, 1
      %s219 = scalar_select %p218, %s15, 1
      %s220 = smul.addr %s219, 8
      %s221 = scalar_lea.vmem %s3, %s220
      %p222 = pneg %p114
      %p223 = pneg %p111
      %p224 = pneg %p140
      %p225 = pneg %p137
      %p226 = scmp.lt.s32.totalorder %s15, 1
      %s227 = scalar_select %p226, %s15, 1
      %s228 = smul.addr %s227, 4
      %s229 = smul.addr %s228, 8
      %s230 = scalar_lea.vmem %s4, %s229
      %p231 = scmp.lt.s32.totalorder %s15, 1
      %s232 = scalar_select %p231, %s15, 1
      %s233 = smul.addr %s232, 4
      %s234 = smul.addr %s233, 8
      %s235 = scalar_lea.vmem %s0, %s234
      %p236 = scmp.lt.s32.totalorder %s15, 1
      %s237 = scalar_select %p236, %s15, 1
      %s238 = smul.addr %s237, 4
      %s239 = smul.addr %s238, 8
      %s240 = scalar_lea.vmem %s1, %s239
      %p241 = scmp.lt.s32.totalorder %s15, 1
      %s242 = scalar_select %p241, %s15, 1
      %s243 = smul.addr %s242, 4
      %s244 = smul.addr %s243, 8
      %s245 = scalar_lea.vmem %s2, %s244
      %p246 = scmp.lt.s32.totalorder %s15, 1
      %s247 = scalar_select %p246, %s15, 1
      %s248 = smul.addr %s247, 8
      %s249 = scalar_lea.vmem %s3, %s248
      %p250 = scmp.lt.s32.totalorder %s15, 1
      %s251 = scalar_select %p250, %s15, 1
      %s252 = smul.addr %s251, 4
      %s253 = smul.addr %s252, 8
      %s254 = scalar_lea.vmem %s4, %s253
      %v255 = vld [vmem:[%s235] sm:$0xff]
      %v256 = vld [vmem:[%s235 + $0x8] sm:$0xff]
      %v257 = vld [vmem:[%s235 + $0x10] sm:$0xff]
      %v258 = vld [vmem:[%s235 + $0x18] sm:$0xff]
      %v259 = vmul.f32 %v255, 0.25
      %v260 = vmul.f32 %v256, 0.25
      %v261 = vmul.f32 %v257, 0.25
      %v262 = vmul.f32 %v258, 0.25
      %v263 = vld [vmem:[%s240] sm:$0xff]
      %v264 = vld [vmem:[%s240 + $0x8] sm:$0xff]
      %v265 = vld [vmem:[%s240 + $0x10] sm:$0xff]
      %v266 = vld [vmem:[%s240 + $0x18] sm:$0xff]
      %v267 = vld [vmem:[%s249] sm:$0xff]
      %vm268 = vcmask 130048
      %v270 = vsel %vm268, %v259, 0
      %v273 = vsel %vm268, %v263, 0
      %275 = vmatprep.subr.mxu0 0.0
      %276 = vmatpush1.xpose.msra.mxu0 %v273
      %277 = vmatprep.subr.mxu0 0.0
      %278 = vmatpush1.xpose.msra.mxu0 0.0
      %279 = vmatprep.subr.mxu0 0.0
      %280 = vmatpush1.xpose.msra.mxu0 0.0
      %281 = vmatprep.subr.mxu0 0.0
      %282 = vmatpush1.xpose.msra.mxu0 0.0
      %283 = vmatprep.subr.mxu0 0.0
      %284 = vmatpush1.xpose.msra.mxu0 0.0
      %285 = vmatprep.subr.mxu0 0.0
      %286 = vmatpush1.xpose.msra.mxu0 0.0
      %287 = vmatprep.subr.mxu0 0.0
      %288 = vmatpush1.xpose.msra.mxu0 0.0
      %289 = vmatprep.subr.mxu0 0.0
      %290 = vmatpush1.xpose.msra.mxu0 0.0
      %291 = vmatprep.subr.mxu0 0.0
      %292 = vmatpush1.xpose.msra.mxu0 0.0
      %293 = vmatprep.subr.mxu0 0.0
      %294 = vmatpush1.xpose.msra.mxu0 0.0
      %295 = vmatprep.subr.mxu0 0.0
      %296 = vmatpush1.xpose.msra.mxu0 0.0
      %297 = vmatprep.subr.mxu0 0.0
      %298 = vmatpush1.xpose.msra.mxu0 0.0
      %299 = vmatprep.subr.mxu0 0.0
      %300 = vmatpush1.xpose.msra.mxu0 0.0
      %301 = vmatprep.subr.mxu0 0.0
      %302 = vmatpush1.xpose.msra.mxu0 0.0
      %303 = vmatprep.subr.mxu0 0.0
      %304 = vmatpush1.xpose.msra.mxu0 0.0
      %305 = vmatprep.subr.mxu0 0.0
      %306 = vmatpush1.xpose.msra.mxu0 0.0
      %307 = vmatprep.subr.mxu0 0.0
      %308 = vmatpush1.xpose.msra.mxu0 0.0
      %309 = vmatprep.subr.mxu0 0.0
      %310 = vmatpush1.xpose.msra.mxu0 0.0
      %311 = vmatprep.subr.mxu0 0.0
      %312 = vmatpush1.xpose.msra.mxu0 0.0
      %313 = vmatprep.subr.mxu0 0.0
      %314 = vmatpush1.xpose.msra.mxu0 0.0
      %315 = vmatprep.subr.mxu0 0.0
      %316 = vmatpush1.xpose.msra.mxu0 0.0
      %317 = vmatprep.subr.mxu0 0.0
      %318 = vmatpush1.xpose.msra.mxu0 0.0
      %319 = vmatprep.subr.mxu0 0.0
      %320 = vmatpush1.xpose.msra.mxu0 0.0
      %321 = vmatprep.subr.mxu0 0.0
      %322 = vmatpush1.xpose.msra.mxu0 0.0
      %323 = vmatprep.subr.mxu0 0.0
      %324 = vmatpush1.xpose.msra.mxu0 0.0
      %325 = vmatprep.subr.mxu0 0.0
      %326 = vmatpush1.xpose.msra.mxu0 0.0
      %327 = vmatprep.subr.mxu0 0.0
      %328 = vmatpush1.xpose.msra.mxu0 0.0
      %329 = vmatprep.subr.mxu0 0.0
      %330 = vmatpush1.xpose.msra.mxu0 0.0
      %331 = vmatprep.subr.mxu0 0.0
      %332 = vmatpush1.xpose.msra.mxu0 0.0
      %333 = vmatprep.subr.mxu0 0.0
      %334 = vmatpush1.xpose.msra.mxu0 0.0
      %335 = vmatprep.subr.mxu0 0.0
      %336 = vmatpush1.xpose.msra.mxu0 0.0
      %337 = vmatprep.subr.mxu0 0.0
      %338 = vmatpush1.xpose.msra.mxu0 0.0
      %339 = vmatprep.mubr.f32.mxu0 0.0
      %340 = vmatmul.mubr.f32.gmra.mrb[0].mxu0 %v270
      %v341 = vpop.f32.mrb[0].mxu0
      %v342 = vadd.f32 %v267, %v341
      %v343 = vpop.f32.mrb[0].mxu0
      %344 = vdwg.mxu0
      %v346 = vsel %vm268, %v260, 0
      %v349 = vsel %vm268, %v264, 0
      %351 = vmatprep.subr.mxu0 0.0
      %352 = vmatpush1.xpose.msra.mxu0 %v349
      %353 = vmatprep.subr.mxu0 0.0
      %354 = vmatpush1.xpose.msra.mxu0 0.0
      %355 = vmatprep.subr.mxu0 0.0
      %356 = vmatpush1.xpose.msra.mxu0 0.0
      %357 = vmatprep.subr.mxu0 0.0
      %358 = vmatpush1.xpose.msra.mxu0 0.0
      %359 = vmatprep.subr.mxu0 0.0
      %360 = vmatpush1.xpose.msra.mxu0 0.0
      %361 = vmatprep.subr.mxu0 0.0
      %362 = vmatpush1.xpose.msra.mxu0 0.0
      %363 = vmatprep.subr.mxu0 0.0
      %364 = vmatpush1.xpose.msra.mxu0 0.0
      %365 = vmatprep.subr.mxu0 0.0
      %366 = vmatpush1.xpose.msra.mxu0 0.0
      %367 = vmatprep.subr.mxu0 0.0
      %368 = vmatpush1.xpose.msra.mxu0 0.0
      %369 = vmatprep.subr.mxu0 0.0
      %370 = vmatpush1.xpose.msra.mxu0 0.0
      %371 = vmatprep.subr.mxu0 0.0
      %372 = vmatpush1.xpose.msra.mxu0 0.0
      %373 = vmatprep.subr.mxu0 0.0
      %374 = vmatpush1.xpose.msra.mxu0 0.0
      %375 = vmatprep.subr.mxu0 0.0
      %376 = vmatpush1.xpose.msra.mxu0 0.0
      %377 = vmatprep.subr.mxu0 0.0
      %378 = vmatpush1.xpose.msra.mxu0 0.0
      %379 = vmatprep.subr.mxu0 0.0
      %380 = vmatpush1.xpose.msra.mxu0 0.0
      %381 = vmatprep.subr.mxu0 0.0
      %382 = vmatpush1.xpose.msra.mxu0 0.0
      %383 = vmatprep.subr.mxu0 0.0
      %384 = vmatpush1.xpose.msra.mxu0 0.0
      %385 = vmatprep.subr.mxu0 0.0
      %386 = vmatpush1.xpose.msra.mxu0 0.0
      %387 = vmatprep.subr.mxu0 0.0
      %388 = vmatpush1.xpose.msra.mxu0 0.0
      %389 = vmatprep.subr.mxu0 0.0
      %390 = vmatpush1.xpose.msra.mxu0 0.0
      %391 = vmatprep.subr.mxu0 0.0
      %392 = vmatpush1.xpose.msra.mxu0 0.0
      %393 = vmatprep.subr.mxu0 0.0
      %394 = vmatpush1.xpose.msra.mxu0 0.0
      %395 = vmatprep.subr.mxu0 0.0
      %396 = vmatpush1.xpose.msra.mxu0 0.0
      %397 = vmatprep.subr.mxu0 0.0
      %398 = vmatpush1.xpose.msra.mxu0 0.0
      %399 = vmatprep.subr.mxu0 0.0
      %400 = vmatpush1.xpose.msra.mxu0 0.0
      %401 = vmatprep.subr.mxu0 0.0
      %402 = vmatpush1.xpose.msra.mxu0 0.0
      %403 = vmatprep.subr.mxu0 0.0
      %404 = vmatpush1.xpose.msra.mxu0 0.0
      %405 = vmatprep.subr.mxu0 0.0
      %406 = vmatpush1.xpose.msra.mxu0 0.0
      %407 = vmatprep.subr.mxu0 0.0
      %408 = vmatpush1.xpose.msra.mxu0 0.0
      %409 = vmatprep.subr.mxu0 0.0
      %410 = vmatpush1.xpose.msra.mxu0 0.0
      %411 = vmatprep.subr.mxu0 0.0
      %412 = vmatpush1.xpose.msra.mxu0 0.0
      %413 = vmatprep.subr.mxu0 0.0
      %414 = vmatpush1.xpose.msra.mxu0 0.0
      %415 = vmatprep.mubr.f32.mxu0 0.0
      %416 = vmatmul.mubr.f32.gmra.mrb[0].mxu0 %v346
      %v417 = vpop.f32.mrb[0].mxu0
      %v418 = vadd.f32 %v267, %v417
      %v419 = vpop.f32.mrb[0].mxu0
      %420 = vdwg.mxu0
      %v422 = vsel %vm268, %v261, 0
      %v425 = vsel %vm268, %v265, 0
      %427 = vmatprep.subr.mxu0 0.0
      %428 = vmatpush1.xpose.msra.mxu0 %v425
      %429 = vmatprep.subr.mxu0 0.0
      %430 = vmatpush1.xpose.msra.mxu0 0.0
      %431 = vmatprep.subr.mxu0 0.0
      %432 = vmatpush1.xpose.msra.mxu0 0.0
      %433 = vmatprep.subr.mxu0 0.0
      %434 = vmatpush1.xpose.msra.mxu0 0.0
      %435 = vmatprep.subr.mxu0 0.0
      %436 = vmatpush1.xpose.msra.mxu0 0.0
      %437 = vmatprep.subr.mxu0 0.0
      %438 = vmatpush1.xpose.msra.mxu0 0.0
      %439 = vmatprep.subr.mxu0 0.0
      %440 = vmatpush1.xpose.msra.mxu0 0.0
      %441 = vmatprep.subr.mxu0 0.0
      %442 = vmatpush1.xpose.msra.mxu0 0.0
      %443 = vmatprep.subr.mxu0 0.0
      %444 = vmatpush1.xpose.msra.mxu0 0.0
      %445 = vmatprep.subr.mxu0 0.0
      %446 = vmatpush1.xpose.msra.mxu0 0.0
      %447 = vmatprep.subr.mxu0 0.0
      %448 = vmatpush1.xpose.msra.mxu0 0.0
      %449 = vmatprep.subr.mxu0 0.0
      %450 = vmatpush1.xpose.msra.mxu0 0.0
      %451 = vmatprep.subr.mxu0 0.0
      %452 = vmatpush1.xpose.msra.mxu0 0.0
      %453 = vmatprep.subr.mxu0 0.0
      %454 = vmatpush1.xpose.msra.mxu0 0.0
      %455 = vmatprep.subr.mxu0 0.0
      %456 = vmatpush1.xpose.msra.mxu0 0.0
      %457 = vmatprep.subr.mxu0 0.0
      %458 = vmatpush1.xpose.msra.mxu0 0.0
      %459 = vmatprep.subr.mxu0 0.0
      %460 = vmatpush1.xpose.msra.mxu0 0.0
      %461 = vmatprep.subr.mxu0 0.0
      %462 = vmatpush1.xpose.msra.mxu0 0.0
      %463 = vmatprep.subr.mxu0 0.0
      %464 = vmatpush1.xpose.msra.mxu0 0.0
      %465 = vmatprep.subr.mxu0 0.0
      %466 = vmatpush1.xpose.msra.mxu0 0.0
      %467 = vmatprep.subr.mxu0 0.0
      %468 = vmatpush1.xpose.msra.mxu0 0.0
      %469 = vmatprep.subr.mxu0 0.0
      %470 = vmatpush1.xpose.msra.mxu0 0.0
      %471 = vmatprep.subr.mxu0 0.0
      %472 = vmatpush1.xpose.msra.mxu0 0.0
      %473 = vmatprep.subr.mxu0 0.0
      %474 = vmatpush1.xpose.msra.mxu0 0.0
      %475 = vmatprep.subr.mxu0 0.0
      %476 = vmatpush1.xpose.msra.mxu0 0.0
      %477 = vmatprep.subr.mxu0 0.0
      %478 = vmatpush1.xpose.msra.mxu0 0.0
      %479 = vmatprep.subr.mxu0 0.0
      %480 = vmatpush1.xpose.msra.mxu0 0.0
      %481 = vmatprep.subr.mxu0 0.0
      %482 = vmatpush1.xpose.msra.mxu0 0.0
      %483 = vmatprep.subr.mxu0 0.0
      %484 = vmatpush1.xpose.msra.mxu0 0.0
      %485 = vmatprep.subr.mxu0 0.0
      %486 = vmatpush1.xpose.msra.mxu0 0.0
      %487 = vmatprep.subr.mxu0 0.0
      %488 = vmatpush1.xpose.msra.mxu0 0.0
      %489 = vmatprep.subr.mxu0 0.0
      %490 = vmatpush1.xpose.msra.mxu0 0.0
      %491 = vmatprep.mubr.f32.mxu0 0.0
      %492 = vmatmul.mubr.f32.gmra.mrb[0].mxu0 %v422
      %v493 = vpop.f32.mrb[0].mxu0
      %v494 = vadd.f32 %v267, %v493
      %v495 = vpop.f32.mrb[0].mxu0
      %496 = vdwg.mxu0
      %v498 = vsel %vm268, %v262, 0
      %v501 = vsel %vm268, %v266, 0
      %503 = vmatprep.subr.mxu0 0.0
      %504 = vmatpush1.xpose.msra.mxu0 %v501
      %505 = vmatprep.subr.mxu0 0.0
      %506 = vmatpush1.xpose.msra.mxu0 0.0
      %507 = vmatprep.subr.mxu0 0.0
      %508 = vmatpush1.xpose.msra.mxu0 0.0
      %509 = vmatprep.subr.mxu0 0.0
      %510 = vmatpush1.xpose.msra.mxu0 0.0
      %511 = vmatprep.subr.mxu0 0.0
      %512 = vmatpush1.xpose.msra.mxu0 0.0
      %513 = vmatprep.subr.mxu0 0.0
      %514 = vmatpush1.xpose.msra.mxu0 0.0
      %515 = vmatprep.subr.mxu0 0.0
      %516 = vmatpush1.xpose.msra.mxu0 0.0
      %517 = vmatprep.subr.mxu0 0.0
      %518 = vmatpush1.xpose.msra.mxu0 0.0
      %519 = vmatprep.subr.mxu0 0.0
      %520 = vmatpush1.xpose.msra.mxu0 0.0
      %521 = vmatprep.subr.mxu0 0.0
      %522 = vmatpush1.xpose.msra.mxu0 0.0
      %523 = vmatprep.subr.mxu0 0.0
      %524 = vmatpush1.xpose.msra.mxu0 0.0
      %525 = vmatprep.subr.mxu0 0.0
      %526 = vmatpush1.xpose.msra.mxu0 0.0
      %527 = vmatprep.subr.mxu0 0.0
      %528 = vmatpush1.xpose.msra.mxu0 0.0
      %529 = vmatprep.subr.mxu0 0.0
      %530 = vmatpush1.xpose.msra.mxu0 0.0
      %531 = vmatprep.subr.mxu0 0.0
      %532 = vmatpush1.xpose.msra.mxu0 0.0
      %533 = vmatprep.subr.mxu0 0.0
      %534 = vmatpush1.xpose.msra.mxu0 0.0
      %535 = vmatprep.subr.mxu0 0.0
      %536 = vmatpush1.xpose.msra.mxu0 0.0
      %537 = vmatprep.subr.mxu0 0.0
      %538 = vmatpush1.xpose.msra.mxu0 0.0
      %539 = vmatprep.subr.mxu0 0.0
      %540 = vmatpush1.xpose.msra.mxu0 0.0
      %541 = vmatprep.subr.mxu0 0.0
      %542 = vmatpush1.xpose.msra.mxu0 0.0
      %543 = vmatprep.subr.mxu0 0.0
      %544 = vmatpush1.xpose.msra.mxu0 0.0
      %545 = vmatprep.subr.mxu0 0.0
      %546 = vmatpush1.xpose.msra.mxu0 0.0
      %547 = vmatprep.subr.mxu0 0.0
      %548 = vmatpush1.xpose.msra.mxu0 0.0
      %549 = vmatprep.subr.mxu0 0.0
      %550 = vmatpush1.xpose.msra.mxu0 0.0
      %551 = vmatprep.subr.mxu0 0.0
      %552 = vmatpush1.xpose.msra.mxu0 0.0
      %553 = vmatprep.subr.mxu0 0.0
      %554 = vmatpush1.xpose.msra.mxu0 0.0
      %555 = vmatprep.subr.mxu0 0.0
      %556 = vmatpush1.xpose.msra.mxu0 0.0
      %557 = vmatprep.subr.mxu0 0.0
      %558 = vmatpush1.xpose.msra.mxu0 0.0
      %559 = vmatprep.subr.mxu0 0.0
      %560 = vmatpush1.xpose.msra.mxu0 0.0
      %561 = vmatprep.subr.mxu0 0.0
      %562 = vmatpush1.xpose.msra.mxu0 0.0
      %563 = vmatprep.subr.mxu0 0.0
      %564 = vmatpush1.xpose.msra.mxu0 0.0
      %565 = vmatprep.subr.mxu0 0.0
      %566 = vmatpush1.xpose.msra.mxu0 0.0
      %567 = vmatprep.mubr.f32.mxu0 0.0
      %568 = vmatmul.mubr.f32.gmra.mrb[0].mxu0 %v498
      %v569 = vpop.f32.mrb[0].mxu0
      %v570 = vadd.f32 %v267, %v569
      %v571 = vpop.f32.mrb[0].mxu0
      %572 = vdwg.mxu0
      %vm573 = vcmask 64512
      %v574 = vsel %vm573, %v342, -inf
      %575 = vmax.xlane.f32.xlu0 %v574
      %v576 = vpop.xlane.xlu0 %575
      %v577 = vsel %vm573, %v418, -inf
      %578 = vmax.xlane.f32.xlu0 %v577
      %v579 = vpop.xlane.xlu0 %578
      %v580 = vsel %vm573, %v494, -inf
      %581 = vmax.xlane.f32.xlu0 %v580
      %v582 = vpop.xlane.xlu0 %581
      %v583 = vsel %vm573, %v570, -inf
      %584 = vmax.xlane.f32.xlu0 %v583
      %v585 = vpop.xlane.xlu0 %584
      %v586 = vsub.f32 %v342, %v576
      %v587 = vsub.f32 %v418, %v579
      %v588 = vsub.f32 %v494, %v582
      %v589 = vsub.f32 %v570, %v585
      %v590 = vmul.f32 %v586, 1.442695
      %v591 = vpow.pop %v590
      %v592 = vmul.f32 %v587, 1.442695
      %v593 = vpow.pop %v592
      %v594 = vmul.f32 %v588, 1.442695
      %v595 = vpow.pop %v594
      %v596 = vmul.f32 %v589, 1.442695
      %v597 = vpow.pop %v596
      %v598 = vsel %vm573, %v591, 0.0
      %599 = vadd.xlane.f32.xlu0 %v598
      %v600 = vpop.xlane.xlu0 %599
      %v601 = vsel %vm573, %v593, 0.0
      %602 = vadd.xlane.f32.xlu0 %v601
      %v603 = vpop.xlane.xlu0 %602
      %v604 = vsel %vm573, %v595, 0.0
      %605 = vadd.xlane.f32.xlu0 %v604
      %v606 = vpop.xlane.xlu0 %605
      %v607 = vsel %vm573, %v597, 0.0
      %608 = vadd.xlane.f32.xlu0 %v607
      %v609 = vpop.xlane.xlu0 %608
      %v610 = vrcp.pop %v600
      %v611 = vmul.f32 %v591, %v610
      %v612 = vrcp.pop %v603
      %v613 = vmul.f32 %v593, %v612
      %v614 = vrcp.pop %v606
      %v615 = vmul.f32 %v595, %v614
      %v616 = vrcp.pop %v609
      %v617 = vmul.f32 %v597, %v616
      %v618 = vld [vmem:[%s245] sm:$0xff]
      %v619 = vld [vmem:[%s245 + $0x8] sm:$0xff]
      %v620 = vld [vmem:[%s245 + $0x10] sm:$0xff]
      %v621 = vld [vmem:[%s245 + $0x18] sm:$0xff]
      %v623 = vsel %vm573, %v611, 0
      %625 = vmatprep.subr.mxu0 0.0
      %626 = vmatpush1.msra.mxu0 %v618
      %627 = vmatprep.subr.mxu0 0.0
      %628 = vmatpush1.msra.mxu0 0.0
      %629 = vmatprep.subr.mxu0 0.0
      %630 = vmatpush1.msra.mxu0 0.0
      %631 = vmatprep.subr.mxu0 0.0
      %632 = vmatpush1.msra.mxu0 0.0
      %633 = vmatprep.subr.mxu0 0.0
      %634 = vmatpush1.msra.mxu0 0.0
      %635 = vmatprep.subr.mxu0 0.0
      %636 = vmatpush1.msra.mxu0 0.0
      %637 = vmatprep.subr.mxu0 0.0
      %638 = vmatpush1.msra.mxu0 0.0
      %639 = vmatprep.subr.mxu0 0.0
      %640 = vmatpush1.msra.mxu0 0.0
      %641 = vmatprep.subr.mxu0 0.0
      %642 = vmatpush1.msra.mxu0 0.0
      %643 = vmatprep.subr.mxu0 0.0
      %644 = vmatpush1.msra.mxu0 0.0
      %645 = vmatprep.subr.mxu0 0.0
      %646 = vmatpush1.msra.mxu0 0.0
      %647 = vmatprep.subr.mxu0 0.0
      %648 = vmatpush1.msra.mxu0 0.0
      %649 = vmatprep.subr.mxu0 0.0
      %650 = vmatpush1.msra.mxu0 0.0
      %651 = vmatprep.subr.mxu0 0.0
      %652 = vmatpush1.msra.mxu0 0.0
      %653 = vmatprep.subr.mxu0 0.0
      %654 = vmatpush1.msra.mxu0 0.0
      %655 = vmatprep.subr.mxu0 0.0
      %656 = vmatpush1.msra.mxu0 0.0
      %657 = vmatprep.subr.mxu0 0.0
      %658 = vmatpush1.msra.mxu0 0.0
      %659 = vmatprep.subr.mxu0 0.0
      %660 = vmatpush1.msra.mxu0 0.0
      %661 = vmatprep.subr.mxu0 0.0
      %662 = vmatpush1.msra.mxu0 0.0
      %663 = vmatprep.subr.mxu0 0.0
      %664 = vmatpush1.msra.mxu0 0.0
      %665 = vmatprep.subr.mxu0 0.0
      %666 = vmatpush1.msra.mxu0 0.0
      %667 = vmatprep.subr.mxu0 0.0
      %668 = vmatpush1.msra.mxu0 0.0
      %669 = vmatprep.subr.mxu0 0.0
      %670 = vmatpush1.msra.mxu0 0.0
      %671 = vmatprep.subr.mxu0 0.0
      %672 = vmatpush1.msra.mxu0 0.0
      %673 = vmatprep.subr.mxu0 0.0
      %674 = vmatpush1.msra.mxu0 0.0
      %675 = vmatprep.subr.mxu0 0.0
      %676 = vmatpush1.msra.mxu0 0.0
      %677 = vmatprep.subr.mxu0 0.0
      %678 = vmatpush1.msra.mxu0 0.0
      %679 = vmatprep.subr.mxu0 0.0
      %680 = vmatpush1.msra.mxu0 0.0
      %681 = vmatprep.subr.mxu0 0.0
      %682 = vmatpush1.msra.mxu0 0.0
      %683 = vmatprep.subr.mxu0 0.0
      %684 = vmatpush1.msra.mxu0 0.0
      %685 = vmatprep.subr.mxu0 0.0
      %686 = vmatpush1.msra.mxu0 0.0
      %687 = vmatprep.subr.mxu0 0.0
      %688 = vmatpush1.msra.mxu0 0.0
      %689 = vmatprep.mubr.f32.mxu0 0.0
      %690 = vmatmul.mubr.f32.gmra.mrb[0].mxu0 %v623
      %v691 = vpop.f32.mrb[0].mxu0
      %v692 = vadd.f32 0.0, %v691
      %v693 = vpop.f32.mrb[0].mxu0
      %694 = vdwg.mxu0
      %v696 = vsel %vm573, %v613, 0
      %698 = vmatprep.subr.mxu0 0.0
      %699 = vmatpush1.msra.mxu0 %v619
      %700 = vmatprep.subr.mxu0 0.0
      %701 = vmatpush1.msra.mxu0 0.0
      %702 = vmatprep.subr.mxu0 0.0
      %703 = vmatpush1.msra.mxu0 0.0
      %704 = vmatprep.subr.mxu0 0.0
      %705 = vmatpush1.msra.mxu0 0.0
      %706 = vmatprep.subr.mxu0 0.0
      %707 = vmatpush1.msra.mxu0 0.0
      %708 = vmatprep.subr.mxu0 0.0
      %709 = vmatpush1.msra.mxu0 0.0
      %710 = vmatprep.subr.mxu0 0.0
      %711 = vmatpush1.msra.mxu0 0.0
      %712 = vmatprep.subr.mxu0 0.0
      %713 = vmatpush1.msra.mxu0 0.0
      %714 = vmatprep.subr.mxu0 0.0
      %715 = vmatpush1.msra.mxu0 0.0
      %716 = vmatprep.subr.mxu0 0.0
      %717 = vmatpush1.msra.mxu0 0.0
      %718 = vmatprep.subr.mxu0 0.0
      %719 = vmatpush1.msra.mxu0 0.0
      %720 = vmatprep.subr.mxu0 0.0
      %721 = vmatpush1.msra.mxu0 0.0
      %722 = vmatprep.subr.mxu0 0.0
      %723 = vmatpush1.msra.mxu0 0.0
      %724 = vmatprep.subr.mxu0 0.0
      %725 = vmatpush1.msra.mxu0 0.0
      %726 = vmatprep.subr.mxu0 0.0
      %727 = vmatpush1.msra.mxu0 0.0
      %728 = vmatprep.subr.mxu0 0.0
      %729 = vmatpush1.msra.mxu0 0.0
      %730 = vmatprep.subr.mxu0 0.0
      %731 = vmatpush1.msra.mxu0 0.0
      %732 = vmatprep.subr.mxu0 0.0
      %733 = vmatpush1.msra.mxu0 0.0
      %734 = vmatprep.subr.mxu0 0.0
      %735 = vmatpush1.msra.mxu0 0.0
      %736 = vmatprep.subr.mxu0 0.0
      %737 = vmatpush1.msra.mxu0 0.0
      %738 = vmatprep.subr.mxu0 0.0
      %739 = vmatpush1.msra.mxu0 0.0
      %740 = vmatprep.subr.mxu0 0.0
      %741 = vmatpush1.msra.mxu0 0.0
      %742 = vmatprep.subr.mxu0 0.0
      %743 = vmatpush1.msra.mxu0 0.0
      %744 = vmatprep.subr.mxu0 0.0
      %745 = vmatpush1.msra.mxu0 0.0
      %746 = vmatprep.subr.mxu0 0.0
      %747 = vmatpush1.msra.mxu0 0.0
      %748 = vmatprep.subr.mxu0 0.0
      %749 = vmatpush1.msra.mxu0 0.0
      %750 = vmatprep.subr.mxu0 0.0
      %751 = vmatpush1.msra.mxu0 0.0
      %752 = vmatprep.subr.mxu0 0.0
      %753 = vmatpush1.msra.mxu0 0.0
      %754 = vmatprep.subr.mxu0 0.0
      %755 = vmatpush1.msra.mxu0 0.0
      %756 = vmatprep.subr.mxu0 0.0
      %757 = vmatpush1.msra.mxu0 0.0
      %758 = vmatprep.subr.mxu0 0.0
      %759 = vmatpush1.msra.mxu0 0.0
      %760 = vmatprep.subr.mxu0 0.0
      %761 = vmatpush1.msra.mxu0 0.0
      %762 = vmatprep.mubr.f32.mxu0 0.0
      %763 = vmatmul.mubr.f32.gmra.mrb[0].mxu0 %v696
      %v764 = vpop.f32.mrb[0].mxu0
      %v765 = vadd.f32 0.0, %v764
      %v766 = vpop.f32.mrb[0].mxu0
      %767 = vdwg.mxu0
      %v769 = vsel %vm573, %v615, 0
      %771 = vmatprep.subr.mxu0 0.0
      %772 = vmatpush1.msra.mxu0 %v620
      %773 = vmatprep.subr.mxu0 0.0
      %774 = vmatpush1.msra.mxu0 0.0
      %775 = vmatprep.subr.mxu0 0.0
      %776 = vmatpush1.msra.mxu0 0.0
      %777 = vmatprep.subr.mxu0 0.0
      %778 = vmatpush1.msra.mxu0 0.0
      %779 = vmatprep.subr.mxu0 0.0
      %780 = vmatpush1.msra.mxu0 0.0
      %781 = vmatprep.subr.mxu0 0.0
      %782 = vmatpush1.msra.mxu0 0.0
      %783 = vmatprep.subr.mxu0 0.0
      %784 = vmatpush1.msra.mxu0 0.0
      %785 = vmatprep.subr.mxu0 0.0
      %786 = vmatpush1.msra.mxu0 0.0
      %787 = vmatprep.subr.mxu0 0.0
      %788 = vmatpush1.msra.mxu0 0.0
      %789 = vmatprep.subr.mxu0 0.0
      %790 = vmatpush1.msra.mxu0 0.0
      %791 = vmatprep.subr.mxu0 0.0
      %792 = vmatpush1.msra.mxu0 0.0
      %793 = vmatprep.subr.mxu0 0.0
      %794 = vmatpush1.msra.mxu0 0.0
      %795 = vmatprep.subr.mxu0 0.0
      %796 = vmatpush1.msra.mxu0 0.0
      %797 = vmatprep.subr.mxu0 0.0
      %798 = vmatpush1.msra.mxu0 0.0
      %799 = vmatprep.subr.mxu0 0.0
      %800 = vmatpush1.msra.mxu0 0.0
      %801 = vmatprep.subr.mxu0 0.0
      %802 = vmatpush1.msra.mxu0 0.0
      %803 = vmatprep.subr.mxu0 0.0
      %804 = vmatpush1.msra.mxu0 0.0
      %805 = vmatprep.subr.mxu0 0.0
      %806 = vmatpush1.msra.mxu0 0.0
      %807 = vmatprep.subr.mxu0 0.0
      %808 = vmatpush1.msra.mxu0 0.0
      %809 = vmatprep.subr.mxu0 0.0
      %810 = vmatpush1.msra.mxu0 0.0
      %811 = vmatprep.subr.mxu0 0.0
      %812 = vmatpush1.msra.mxu0 0.0
      %813 = vmatprep.subr.mxu0 0.0
      %814 = vmatpush1.msra.mxu0 0.0
      %815 = vmatprep.subr.mxu0 0.0
      %816 = vmatpush1.msra.mxu0 0.0
      %817 = vmatprep.subr.mxu0 0.0
      %818 = vmatpush1.msra.mxu0 0.0
      %819 = vmatprep.subr.mxu0 0.0
      %820 = vmatpush1.msra.mxu0 0.0
      %821 = vmatprep.subr.mxu0 0.0
      %822 = vmatpush1.msra.mxu0 0.0
      %823 = vmatprep.subr.mxu0 0.0
      %824 = vmatpush1.msra.mxu0 0.0
      %825 = vmatprep.subr.mxu0 0.0
      %826 = vmatpush1.msra.mxu0 0.0
      %827 = vmatprep.subr.mxu0 0.0
      %828 = vmatpush1.msra.mxu0 0.0
      %829 = vmatprep.subr.mxu0 0.0
      %830 = vmatpush1.msra.mxu0 0.0
      %831 = vmatprep.subr.mxu0 0.0
      %832 = vmatpush1.msra.mxu0 0.0
      %833 = vmatprep.subr.mxu0 0.0
      %834 = vmatpush1.msra.mxu0 0.0
      %835 = vmatprep.mubr.f32.mxu0 0.0
      %836 = vmatmul.mubr.f32.gmra.mrb[0].mxu0 %v769
      %v837 = vpop.f32.mrb[0].mxu0
      %v838 = vadd.f32 0.0, %v837
      %v839 = vpop.f32.mrb[0].mxu0
      %840 = vdwg.mxu0
      %v842 = vsel %vm573, %v617, 0
      %844 = vmatprep.subr.mxu0 0.0
      %845 = vmatpush1.msra.mxu0 %v621
      %846 = vmatprep.subr.mxu0 0.0
      %847 = vmatpush1.msra.mxu0 0.0
      %848 = vmatprep.subr.mxu0 0.0
      %849 = vmatpush1.msra.mxu0 0.0
      %850 = vmatprep.subr.mxu0 0.0
      %851 = vmatpush1.msra.mxu0 0.0
      %852 = vmatprep.subr.mxu0 0.0
      %853 = vmatpush1.msra.mxu0 0.0
      %854 = vmatprep.subr.mxu0 0.0
      %855 = vmatpush1.msra.mxu0 0.0
      %856 = vmatprep.subr.mxu0 0.0
      %857 = vmatpush1.msra.mxu0 0.0
      %858 = vmatprep.subr.mxu0 0.0
      %859 = vmatpush1.msra.mxu0 0.0
      %860 = vmatprep.subr.mxu0 0.0
      %861 = vmatpush1.msra.mxu0 0.0
      %862 = vmatprep.subr.mxu0 0.0
      %863 = vmatpush1.msra.mxu0 0.0
      %864 = vmatprep.subr.mxu0 0.0
      %865 = vmatpush1.msra.mxu0 0.0
      %866 = vmatprep.subr.mxu0 0.0
      %867 = vmatpush1.msra.mxu0 0.0
      %868 = vmatprep.subr.mxu0 0.0
      %869 = vmatpush1.msra.mxu0 0.0
      %870 = vmatprep.subr.mxu0 0.0
      %871 = vmatpush1.msra.mxu0 0.0
      %872 = vmatprep.subr.mxu0 0.0
      %873 = vmatpush1.msra.mxu0 0.0
      %874 = vmatprep.subr.mxu0 0.0
      %875 = vmatpush1.msra.mxu0 0.0
      %876 = vmatprep.subr.mxu0 0.0
      %877 = vmatpush1.msra.mxu0 0.0
      %878 = vmatprep.subr.mxu0 0.0
      %879 = vmatpush1.msra.mxu0 0.0
      %880 = vmatprep.subr.mxu0 0.0
      %881 = vmatpush1.msra.mxu0 0.0
      %882 = vmatprep.subr.mxu0 0.0
      %883 = vmatpush1.msra.mxu0 0.0
      %884 = vmatprep.subr.mxu0 0.0
      %885 = vmatpush1.msra.mxu0 0.0
      %886 = vmatprep.subr.mxu0 0.0
      %887 = vmatpush1.msra.mxu0 0.0
      %888 = vmatprep.subr.mxu0 0.0
      %889 = vmatpush1.msra.mxu0 0.0
      %890 = vmatprep.subr.mxu0 0.0
      %891 = vmatpush1.msra.mxu0 0.0
      %892 = vmatprep.subr.mxu0 0.0
      %893 = vmatpush1.msra.mxu0 0.0
      %894 = vmatprep.subr.mxu0 0.0
      %895 = vmatpush1.msra.mxu0 0.0
      %896 = vmatprep.subr.mxu0 0.0
      %897 = vmatpush1.msra.mxu0 0.0
      %898 = vmatprep.subr.mxu0 0.0
      %899 = vmatpush1.msra.mxu0 0.0
      %900 = vmatprep.subr.mxu0 0.0
      %901 = vmatpush1.msra.mxu0 0.0
      %902 = vmatprep.subr.mxu0 0.0
      %903 = vmatpush1.msra.mxu0 0.0
      %904 = vmatprep.subr.mxu0 0.0
      %905 = vmatpush1.msra.mxu0 0.0
      %906 = vmatprep.subr.mxu0 0.0
      %907 = vmatpush1.msra.mxu0 0.0
      %908 = vmatprep.mubr.f32.mxu0 0.0
      %909 = vmatmul.mubr.f32.gmra.mrb[0].mxu0 %v842
      %v910 = vpop.f32.mrb[0].mxu0
      %v911 = vadd.f32 0.0, %v910
      %v912 = vpop.f32.mrb[0].mxu0
      %913 = vdwg.mxu0
      %914 = vst.msk [vmem:[%s254] sm:$0xff] %vm268, %v692
      %915 = vst.msk [vmem:[%s254 + $0x8] sm:$0xff] %vm268, %v765
      %916 = vst.msk [vmem:[%s254 + $0x10] sm:$0xff] %vm268, %v838
      %917 = vst.msk [vmem:[%s254 + $0x18] sm:$0xff] %vm268, %v911
      %p918 = scmp.lt.s32.totalorder %s15, 1
      %s919 = scalar_select %p918, %s15, 1
      %s920 = smul.addr %s919, 4
      %s921 = smul.addr %s920, 8
      %s922 = scalar_lea.vmem %s4, %s921
      // Predicated region
      $region37: #{multi_decoder_layer.18} parent=35 // pred_check
        %p923 = pneg %p137
      $region38: #{multi_decoder_layer.18} parent=35 // pred_check_branch
        %925 = sbr.rel (%p923) target = $region40
      $region39: #{multi_decoder_layer.18} parent=35 // pred_region
        _
      $region40: #{multi_decoder_layer.18} parent=35 // pred_fallthru
        _
    $region36: #{multi_decoder_layer.18} parent=5 // pred_fallthru
      _
    %p926 = scmp.le.s32.totalorder 2, %s10
    // Predicated region
    $region41: #{multi_decoder_layer.18} parent=5 // pred_check
      %p927 = pneg %p926
    $region42: #{multi_decoder_layer.18} parent=5 // pred_check_branch
      %929 = sbr.rel (%p927) target = $region44
    $region43: #{multi_decoder_layer.18} parent=5 // pred_region
      %s930 = ssub.s32 %s10, 2
      // Predicated region
      $region45: #{multi_decoder_layer.18} parent=43 // pred_check
        %p931 = pneg %p143
      $region46: #{multi_decoder_layer.18} parent=43 // pred_check_branch
        %933 = sbr.rel (%p931) target = $region48
      $region47: #{multi_decoder_layer.18} parent=43 // pred_region
        %p934 = scmp.lt.s32.totalorder %s16, 1
        %s935 = scalar_select %p934, %s16, 1
        %s936 = smul.addr %s935, 4
        %s937 = smul.addr %s936, 8
        %s938 = scalar_lea.vmem %s4, %s937
      $region48: #{multi_decoder_layer.18} parent=43 // pred_fallthru
        _
    $region44: #{multi_decoder_layer.18} parent=5 // pred_fallthru
      _
  $region6: #{multi_decoder_layer.18} parent=0 // loop_footer
    %s14 = sadd.s32 1, %s10
  $region7: #{multi_decoder_layer.18} parent=0 // loop_footer_branch
    %9 = sbr.rel target = $region3
  $region8: #{multi_decoder_layer.18} parent=0 // loop_exit
    _

// kernel: multi_decoder_layer.21
$region0: #{multi_decoder_layer.21}
  #allocation0 [shape = 'u32[]', space=smem, size = 0x4, offset = 0x4, fixed_abs, tag = 'smem constant byte address 0x4 - core index']
  #allocation1 [shape = 'u32[144,128]{1,0:T(1,128)}', space=vmem, size = 0x12000, scoped, tag = 'internal scratch']
  %s0 = inlined_call_operand.vmem [shape: f32[24,64], index: 0, kind: input, shape index: {}]
  %s1 = inlined_call_operand.vmem [shape: f32[64,128], index: 1, kind: input, shape index: {}]
  %s2 = inlined_call_operand.vmem [shape: f32[1,128], index: 2, kind: input, shape index: {}]
  %s3 = inlined_call_operand.vmem [shape: f32[24,128], index: 3, kind: output, shape index: {}]
  %s4 = sld [smem:[#allocation0]]
  $region22: #{multi_decoder_layer.21} parent=0
    _
  %s6 = ssub.s32 1, %s4
  %s7 = scalar_select 0, %s6, %s4
  // Predicated region
  $region2: #{multi_decoder_layer.21} parent=0 // pred_check
    _
  $region3: #{multi_decoder_layer.21} parent=0 // pred_check_branch
    %9 = sbr.rel (0) target = $region5
  $region4: #{multi_decoder_layer.21} parent=0 // pred_region
    _
  $region5: #{multi_decoder_layer.21} parent=0 // pred_fallthru
    _
  // Predicated region
  $region6: #{multi_decoder_layer.21} parent=0 // pred_check
    _
  $region7: #{multi_decoder_layer.21} parent=0 // pred_check_branch
    %11 = sbr.rel (0) target = $region9
  $region8: #{multi_decoder_layer.21} parent=0 // pred_region
    _
  $region9: #{multi_decoder_layer.21} parent=0 // pred_fallthru
    _
  // Predicated region
  $region10: #{multi_decoder_layer.21} parent=0 // pred_check
    _
  $region11: #{multi_decoder_layer.21} parent=0 // pred_check_branch
    %13 = sbr.rel (0) target = $region13
  $region12: #{multi_decoder_layer.21} parent=0 // pred_region
    _
  $region13: #{multi_decoder_layer.21} parent=0 // pred_fallthru
    _
  %v14 = vld [vmem:[%s0] sm:$0xff]
  %v15 = vld [vmem:[%s0 + $0x8] sm:$0xff]
  %v16 = vld [vmem:[%s0 + $0x10] sm:$0xff]
  %v17 = vld [vmem:[%s1] sm:$0xff]
  %v18 = vld [vmem:[%s1 + $0x8] sm:$0xff]
  %v19 = vld [vmem:[%s1 + $0x10] sm:$0xff]
  %v20 = vld [vmem:[%s1 + $0x18] sm:$0xff]
  %v21 = vld [vmem:[%s1 + $0x20] sm:$0xff]
  %v22 = vld [vmem:[%s1 + $0x28] sm:$0xff]
  %v23 = vld [vmem:[%s1 + $0x30] sm:$0xff]
  %v24 = vld [vmem:[%s1 + $0x38] sm:$0xff]
  %v25 = vld [vmem:[%s2] sm:$0x1]
  %v27 = vlaneseq
  %v28 = vshrl.u32 %v27, 7
  %v29 = vsub.s32 0, %v28
  %v30 = vrot.slane %v25, %v29
  %vm32 = vcmask 523264
  %v34 = vsel %vm32, %v14, 0
  %v37 = vsel %vm32, %v15, 0
  %v40 = vsel %vm32, %v16, 0
  %42 = vmatprep.subr.mxu0 0.0
  %43 = vmatpush1.msra.mxu0 %v17
  %44 = vmatprep.subr.mxu0 0.0
  %45 = vmatpush1.msra.mxu0 %v18
  %46 = vmatprep.subr.mxu0 0.0
  %47 = vmatpush1.msra.mxu0 %v19
  %48 = vmatprep.subr.mxu0 0.0
  %49 = vmatpush1.msra.mxu0 %v20
  %50 = vmatprep.subr.mxu0 0.0
  %51 = vmatpush1.msra.mxu0 %v21
  %52 = vmatprep.subr.mxu0 0.0
  %53 = vmatpush1.msra.mxu0 %v22
  %54 = vmatprep.subr.mxu0 0.0
  %55 = vmatpush1.msra.mxu0 %v23
  %56 = vmatprep.subr.mxu0 0.0
  %57 = vmatpush1.msra.mxu0 %v24
  %58 = vmatprep.subr.mxu0 0.0
  %59 = vmatpush1.msra.mxu0 0.0
  %60 = vmatprep.subr.mxu0 0.0
  %61 = vmatpush1.msra.mxu0 0.0
  %62 = vmatprep.subr.mxu0 0.0
  %63 = vmatpush1.msra.mxu0 0.0
  %64 = vmatprep.subr.mxu0 0.0
  %65 = vmatpush1.msra.mxu0 0.0
  %66 = vmatprep.subr.mxu0 0.0
  %67 = vmatpush1.msra.mxu0 0.0
  %68 = vmatprep.subr.mxu0 0.0
  %69 = vmatpush1.msra.mxu0 0.0
  %70 = vmatprep.subr.mxu0 0.0
  %71 = vmatpush1.msra.mxu0 0.0
  %72 = vmatprep.subr.mxu0 0.0
  %73 = vmatpush1.msra.mxu0 0.0
  %74 = vmatprep.subr.mxu0 0.0
  %75 = vmatpush1.msra.mxu0 0.0
  %76 = vmatprep.subr.mxu0 0.0
  %77 = vmatpush1.msra.mxu0 0.0
  %78 = vmatprep.subr.mxu0 0.0
  %79 = vmatpush1.msra.mxu0 0.0
  %80 = vmatprep.subr.mxu0 0.0
  %81 = vmatpush1.msra.mxu0 0.0
  %82 = vmatprep.subr.mxu0 0.0
  %83 = vmatpush1.msra.mxu0 0.0
  %84 = vmatprep.subr.mxu0 0.0
  %85 = vmatpush1.msra.mxu0 0.0
  %86 = vmatprep.subr.mxu0 0.0
  %87 = vmatpush1.msra.mxu0 0.0
  %88 = vmatprep.subr.mxu0 0.0
  %89 = vmatpush1.msra.mxu0 0.0
  %90 = vmatprep.subr.mxu0 0.0
  %91 = vmatpush1.msra.mxu0 0.0
  %92 = vmatprep.subr.mxu0 0.0
  %93 = vmatpush1.msra.mxu0 0.0
  %94 = vmatprep.subr.mxu0 0.0
  %95 = vmatpush1.msra.mxu0 0.0
  %96 = vmatprep.subr.mxu0 0.0
  %97 = vmatpush1.msra.mxu0 0.0
  %98 = vmatprep.subr.mxu0 0.0
  %99 = vmatpush1.msra.mxu0 0.0
  %100 = vmatprep.subr.mxu0 0.0
  %101 = vmatpush1.msra.mxu0 0.0
  %102 = vmatprep.subr.mxu0 0.0
  %103 = vmatpush1.msra.mxu0 0.0
  %104 = vmatprep.subr.mxu0 0.0
  %105 = vmatpush1.msra.mxu0 0.0
  %106 = vmatprep.mubr.f32.mxu0 0.0
  %107 = vmatmul.mubr.f32.gmra.mrb[0].mxu0 %v34
  %v108 = vpop.f32.mrb[0].mxu0
  %v109 = vadd.f32 %v30, %v108
  %v110 = vpop.f32.mrb[0].mxu0
  %111 = vmatprep.mubr.f32.mxu0 0.0
  %112 = vmatmul.mubr.f32.gmra.mrb[0].mxu0 %v37
  %v113 = vpop.f32.mrb[0].mxu0
  %v114 = vadd.f32 %v30, %v113
  %v115 = vpop.f32.mrb[0].mxu0
  %116 = vmatprep.mubr.f32.mxu0 0.0
  %117 = vmatmul.mubr.f32.gmra.mrb[0].mxu0 %v40
  %v118 = vpop.f32.mrb[0].mxu0
  %v119 = vadd.f32 %v30, %v118
  %v120 = vpop.f32.mrb[0].mxu0
  %121 = vdwg.mxu0
  %122 = vst [vmem:[%s3] sm:$0xff] %v109
  %123 = vst [vmem:[%s3 + $0x8] sm:$0xff] %v114
  %124 = vst [vmem:[%s3 + $0x10] sm:$0xff] %v119
  // Predicated region
  $region14: #{multi_decoder_layer.21} parent=0 // pred_check
    _
  $region15: #{multi_decoder_layer.21} parent=0 // pred_check_branch
    %126 = sbr.rel (0) target = $region17
  $region16: #{multi_decoder_layer.21} parent=0 // pred_region
    _
  $region17: #{multi_decoder_layer.21} parent=0 // pred_fallthru
    _
  // Predicated region
  $region18: #{multi_decoder_layer.21} parent=0 // pred_check
    _
  $region19: #{multi_decoder_layer.21} parent=0 // pred_check_branch
    %128 = sbr.rel (0) target = $region21
  $region20: #{multi_decoder_layer.21} parent=0 // pred_region
    _
  $region21: #{multi_decoder_layer.21} parent=0 // pred_fallthru
    _

// kernel: multi_decoder_layer.22
$region0: #{multi_decoder_layer.22}
  #allocation0 [shape = 'u32[]', space=smem, size = 0x4, offset = 0x4, fixed_abs, tag = 'smem constant byte address 0x4 - core index']
  #allocation1 [shape = 'u32[144,128]{1,0:T(1,128)}', space=vmem, size = 0x12000, scoped, tag = 'internal scratch']
  %s0 = inlined_call_operand.vmem [shape: f32[2,4,8,16], index: 0, kind: input, shape index: {}]
  %s1 = inlined_call_operand.vmem [shape: f32[2,4,12,16], index: 1, kind: input, shape index: {}]
  %s2 = inlined_call_operand.vmem [shape: f32[2,4,12,16], index: 2, kind: input, shape index: {}]
  %s3 = inlined_call_operand.vmem [shape: f32[2,8,12], index: 3, kind: input, shape index: {}]
  %s4 = inlined_call_operand.vmem [shape: f32[2,4,8,16], index: 4, kind: output, shape index: {}]
  %s5 = sld [smem:[#allocation0]]
  $region49: #{multi_decoder_layer.22} parent=0
    _
  %s7 = ssub.s32 1, %s5
  %s8 = scalar_select 0, %s7, %s5
  loop: start=0, step=1, limit=4
  $region2: #{multi_decoder_layer.22} parent=0 // loop_pre_header
    _
  $region3: #{multi_decoder_layer.22} parent=0 // loop_header
    %s10 = sphi 0, %s14
    %p11 = scmp.ge.s32.totalorder %s10, 4
    %s20 = sphi 0, %s22
    %s23 = sphi 0, %s20
    %s24 = sphi 0, %s23
    %s40 = sphi 0, %s24
    %s46 = sphi 0, %s48
    %s49 = sphi 0, %s46
    %s50 = sphi 0, %s49
    %s66 = sphi 0, %s50
    %s72 = sphi 0, %s74
    %s75 = sphi 0, %s72
    %s76 = sphi 0, %s75
    %s92 = sphi 0, %s76
    %s98 = sphi 0, %s100
    %s101 = sphi 0, %s98
    %s102 = sphi 0, %s101
    %s118 = sphi 0, %s102
    %s124 = sphi 0, %s126
    %s127 = sphi 0, %s124
    %s128 = sphi 0, %s127
    %s144 = sphi 0, %s128
  $region4: #{multi_decoder_layer.22} parent=0 // loop_header_branch
    %13 = sbr.rel (%p11) target = $region8
  $region5: #{multi_decoder_layer.22} parent=0 // loop_body
    %s15 = ssub.s32 %s10, 1
    %s16 = ssub.s32 %s10, 2
    %s17 = sadd.s32 %s10, 1
    %s18 = ssub.s32 %s10, %s17
    %p19 = scmp.eq.s32.totalorder %s18, 0
    %s21 = sadd.s32 %s20, 1
    %s22 = scalar_select %p19, %s20, %s21
    %p25 = pneg %p19
    %p26 = scmp.eq.s32.totalorder %s10, 1
    %p27 = por %p25, %p26
    %p28 = scmp.ne.s32.totalorder %s20, %s23
    %p29 = scmp.eq.s32.totalorder %s10, 0
    %p30 = por %p28, %p29
    %p31 = scmp.ne.s32.totalorder %s20, %s23
    %p32 = scmp.eq.s32.totalorder %s15, 1
    %p33 = por %p31, %p32
    %p34 = scmp.ne.s32.totalorder %s23, %s24
    %p35 = scmp.eq.s32.totalorder %s15, 0
    %p36 = por %p34, %p35
    %p37 = scmp.ne.s32.totalorder %s23, %s24
    %p38 = scmp.eq.s32.totalorder %s16, 1
    %p39 = por %p37, %p38
    %p41 = scmp.ne.s32.totalorder %s24, %s40
    %p42 = scmp.eq.s32.totalorder %s16, 0
    %p43 = por %p41, %p42
    %s44 = ssub.s32 %s10, %s17
    %p45 = scmp.eq.s32.totalorder %s44, 0
    %s47 = sadd.s32 %s46, 1
    %s48 = scalar_select %p45, %s46, %s47
    %p51 = pneg %p45
    %p52 = scmp.eq.s32.totalorder %s10, 1
    %p53 = por %p51, %p52
    %p54 = scmp.ne.s32.totalorder %s46, %s49
    %p55 = scmp.eq.s32.totalorder %s10, 0
    %p56 = por %p54, %p55
    %p57 = scmp.ne.s32.totalorder %s46, %s49
    %p58 = scmp.eq.s32.totalorder %s15, 1
    %p59 = por %p57, %p58
    %p60 = scmp.ne.s32.totalorder %s49, %s50
    %p61 = scmp.eq.s32.totalorder %s15, 0
    %p62 = por %p60, %p61
    %p63 = scmp.ne.s32.totalorder %s49, %s50
    %p64 = scmp.eq.s32.totalorder %s16, 1
    %p65 = por %p63, %p64
    %p67 = scmp.ne.s32.totalorder %s50, %s66
    %p68 = scmp.eq.s32.totalorder %s16, 0
    %p69 = por %p67, %p68
    %s70 = ssub.s32 %s10, %s17
    %p71 = scmp.eq.s32.totalorder %s70, 0
    %s73 = sadd.s32 %s72, 1
    %s74 = scalar_select %p71, %s72, %s73
    %p77 = pneg %p71
    %p78 = scmp.eq.s32.totalorder %s10, 1
    %p79 = por %p77, %p78
    %p80 = scmp.ne.s32.totalorder %s72, %s75
    %p81 = scmp.eq.s32.totalorder %s10, 0
    %p82 = por %p80, %p81
    %p83 = scmp.ne.s32.totalorder %s72, %s75
    %p84 = scmp.eq.s32.totalorder %s15, 1
    %p85 = por %p83, %p84
    %p86 = scmp.ne.s32.totalorder %s75, %s76
    %p87 = scmp.eq.s32.totalorder %s15, 0
    %p88 = por %p86, %p87
    %p89 = scmp.ne.s32.totalorder %s75, %s76
    %p90 = scmp.eq.s32.totalorder %s16, 1
    %p91 = por %p89, %p90
    %p93 = scmp.ne.s32.totalorder %s76, %s92
    %p94 = scmp.eq.s32.totalorder %s16, 0
    %p95 = por %p93, %p94
    %s96 = ssub.s32 %s10, %s17
    %p97 = scmp.eq.s32.totalorder %s96, 0
    %s99 = sadd.s32 %s98, 1
    %s100 = scalar_select %p97, %s98, %s99
    %p103 = pneg %p97
    %p104 = scmp.eq.s32.totalorder %s10, 1
    %p105 = por %p103, %p104
    %p106 = scmp.ne.s32.totalorder %s98, %s101
    %p107 = scmp.eq.s32.totalorder %s10, 0
    %p108 = por %p106, %p107
    %p109 = scmp.ne.s32.totalorder %s98, %s101
    %p110 = scmp.eq.s32.totalorder %s15, 1
    %p111 = por %p109, %p110
    %p112 = scmp.ne.s32.totalorder %s101, %s102
    %p113 = scmp.eq.s32.totalorder %s15, 0
    %p114 = por %p112, %p113
    %p115 = scmp.ne.s32.totalorder %s101, %s102
    %p116 = scmp.eq.s32.totalorder %s16, 1
    %p117 = por %p115, %p116
    %p119 = scmp.ne.s32.totalorder %s102, %s118
    %p120 = scmp.eq.s32.totalorder %s16, 0
    %p121 = por %p119, %p120
    %s122 = ssub.s32 %s10, %s17
    %p123 = scmp.eq.s32.totalorder %s122, 0
    %s125 = sadd.s32 %s124, 1
    %s126 = scalar_select %p123, %s124, %s125
    %p129 = pneg %p123
    %p130 = scmp.eq.s32.totalorder %s10, 1
    %p131 = por %p129, %p130
    %p132 = scmp.ne.s32.totalorder %s124, %s127
    %p133 = scmp.eq.s32.totalorder %s10, 0
    %p134 = por %p132, %p133
    %p135 = scmp.ne.s32.totalorder %s124, %s127
    %p136 = scmp.eq.s32.totalorder %s15, 1
    %p137 = por %p135, %p136
    %p138 = scmp.ne.s32.totalorder %s127, %s128
    %p139 = scmp.eq.s32.totalorder %s15, 0
    %p140 = por %p138, %p139
    %p141 = scmp.ne.s32.totalorder %s127, %s128
    %p142 = scmp.eq.s32.totalorder %s16, 1
    %p143 = por %p141, %p142
    %p145 = scmp.ne.s32.totalorder %s128, %s144
    %p146 = scmp.eq.s32.totalorder %s16, 0
    %p147 = por %p145, %p146
    %p148 = scmp.le.s32.totalorder 1, %s10
    %p149 = scmp.lt.s32.totalorder %s10, 3
    %p150 = pnand %p148, %p149
    %p151 = pneg %p150
    // Predicated region
    $region9: #{multi_decoder_layer.22} parent=5 // pred_check
      _
    $region10: #{multi_decoder_layer.22} parent=5 // pred_check_branch
      %153 = sbr.rel (%p150) target = $region12
    $region11: #{multi_decoder_layer.22} parent=5 // pred_region
      %s154 = ssub.s32 %s10, 1
    $region12: #{multi_decoder_layer.22} parent=5 // pred_fallthru
      _
    %p155 = scmp.lt.s32.totalorder %s10, 2
    // Predicated region
    $region13: #{multi_decoder_layer.22} parent=5 // pred_check
      %p156 = pneg %p155
    $region14: #{multi_decoder_layer.22} parent=5 // pred_check_branch
      %158 = sbr.rel (%p156) target = $region16
    $region15: #{multi_decoder_layer.22} parent=5 // pred_region
      // Predicated region
      $region17: #{multi_decoder_layer.22} parent=15 // pred_check
        %p159 = pneg %p30
      $region18: #{multi_decoder_layer.22} parent=15 // pred_check_branch
        %161 = sbr.rel (%p159) target = $region20
      $region19: #{multi_decoder_layer.22} parent=15 // pred_region
        %p162 = scmp.lt.s32.totalorder %s10, 1
        %s163 = scalar_select %p162, %s10, 1
        %s164 = smul.addr %s163, 4
        %s165 = smul.addr %s164, 8
        %s166 = scalar_lea.vmem %s0, %s165
      $region20: #{multi_decoder_layer.22} parent=15 // pred_fallthru
        _
      // Predicated region
      $region21: #{multi_decoder_layer.22} parent=15 // pred_check
        %p167 = pneg %p56
      $region22: #{multi_decoder_layer.22} parent=15 // pred_check_branch
        %169 = sbr.rel (%p167) target = $region24
      $region23: #{multi_decoder_layer.22} parent=15 // pred_region
        %p170 = scmp.lt.s32.totalorder %s10, 1
        %s171 = scalar_select %p170, %s10, 1
        %s172 = smul.addr %s171, 8
        %s173 = smul.addr %s172, 8
        %s174 = scalar_lea.vmem %s1, %s173
      $region24: #{multi_decoder_layer.22} parent=15 // pred_fallthru
        _
      // Predicated region
      $region25: #{multi_decoder_layer.22} parent=15 // pred_check
        %p175 = pneg %p82
      $region26: #{multi_decoder_layer.22} parent=15 // pred_check_branch
        %177 = sbr.rel (%p175) target = $region28
      $region27: #{multi_decoder_layer.22} parent=15 // pred_region
        %p178 = scmp.lt.s32.totalorder %s10, 1
        %s179 = scalar_select %p178, %s10, 1
        %s180 = smul.addr %s179, 8
        %s181 = smul.addr %s180, 8
        %s182 = scalar_lea.vmem %s2, %s181
      $region28: #{multi_decoder_layer.22} parent=15 // pred_fallthru
        _
      // Predicated region
      $region29: #{multi_decoder_layer.22} parent=15 // pred_check
        %p183 = pneg %p108
      $region30: #{multi_decoder_layer.22} parent=15 // pred_check_branch
        %185 = sbr.rel (%p183) target = $region32
      $region31: #{multi_decoder_layer.22} parent=15 // pred_region
        %p186 = scmp.lt.s32.totalorder %s10, 1
        %s187 = scalar_select %p186, %s10, 1
        %s188 = smul.addr %s187, 8
        %s189 = scalar_lea.vmem %s3, %s188
      $region32: #{multi_decoder_layer.22} parent=15 // pred_fallthru
        _
    $region16: #{multi_decoder_layer.22} parent=5 // pred_fallthru
      _
    %p190 = scmp.le.s32.totalorder 1, %s10
    %p191 = scmp.lt.s32.totalorder %s10, 3
    %p192 = pnand %p190, %p191
    %p193 = pneg %p192
    // Predicated region
    $region33: #{multi_decoder_layer.22} parent=5 // pred_check
      _
    $region34: #{multi_decoder_layer.22} parent=5 // pred_check_branch
      %195 = sbr.rel (%p192) target = $region36
    $region35: #{multi_decoder_layer.22} parent=5 // pred_region
      %s196 = ssub.s32 %s10, 1
      %p197 = scmp.lt.s32.totalorder %s15, 1
      %s198 = scalar_select %p197, %s15, 1
      %s199 = smul.addr %s198, 4
      %s200 = smul.addr %s199, 8
      %s201 = scalar_lea.vmem %s0, %s200
      %p202 = pneg %p36
      %p203 = pneg %p33
      %p204 = scmp.lt.s32.totalorder %s15, 1
      %s205 = scalar_select %p204, %s15, 1
      %s206 = smul.addr %s205, 8
      %s207 = smul.addr %s206, 8
      %s208 = scalar_lea.vmem %s1, %s207
      %p209 = pneg %p62
      %p210 = pneg %p59
      %p211 = scmp.lt.s32.totalorder %s15, 1
      %s212 = scalar_select %p211, %s15, 1
      %s213 = smul.addr %s212, 8
      %s214 = smul.addr %s213, 8
      %s215 = scalar_lea.vmem %s2, %s214
      %p216 = pneg %p88
      %p217 = pneg %p85
      %p218 = scmp.lt.s32.totalorder %s15, 1
      %s219 = scalar_select %p218, %s15, 1
      %s220 = smul.addr %s219, 8
      %s221 = scalar_lea.vmem %s3, %s220
      %p222 = pneg %p114
      %p223 = pneg %p111
      %p224 = pneg %p140
      %p225 = pneg %p137
      %p226 = scmp.lt.s32.totalorder %s15, 1
      %s227 = scalar_select %p226, %s15, 1
      %s228 = smul.addr %s227, 4
      %s229 = smul.addr %s228, 8
      %s230 = scalar_lea.vmem %s4, %s229
      %p231 = scmp.lt.s32.totalorder %s15, 1
      %s232 = scalar_select %p231, %s15, 1
      %s233 = smul.addr %s232, 4
      %s234 = smul.addr %s233, 8
      %s235 = scalar_lea.vmem %s0, %s234
      %p236 = scmp.lt.s32.totalorder %s15, 1
      %s237 = scalar_select %p236, %s15, 1
      %s238 = smul.addr %s237, 8
      %s239 = smul.addr %s238, 8
      %s240 = scalar_lea.vmem %s1, %s239
      %p241 = scmp.lt.s32.totalorder %s15, 1
      %s242 = scalar_select %p241, %s15, 1
      %s243 = smul.addr %s242, 8
      %s244 = smul.addr %s243, 8
      %s245 = scalar_lea.vmem %s2, %s244
      %p246 = scmp.lt.s32.totalorder %s15, 1
      %s247 = scalar_select %p246, %s15, 1
      %s248 = smul.addr %s247, 8
      %s249 = scalar_lea.vmem %s3, %s248
      %p250 = scmp.lt.s32.totalorder %s15, 1
      %s251 = scalar_select %p250, %s15, 1
      %s252 = smul.addr %s251, 4
      %s253 = smul.addr %s252, 8
      %s254 = scalar_lea.vmem %s4, %s253
      %v255 = vld [vmem:[%s235] sm:$0xff]
      %v256 = vld [vmem:[%s235 + $0x8] sm:$0xff]
      %v257 = vld [vmem:[%s235 + $0x10] sm:$0xff]
      %v258 = vld [vmem:[%s235 + $0x18] sm:$0xff]
      %v259 = vmul.f32 %v255, 0.25
      %v260 = vmul.f32 %v256, 0.25
      %v261 = vmul.f32 %v257, 0.25
      %v262 = vmul.f32 %v258, 0.25
      %v263 = vld [vmem:[%s240] sm:$0xff]
      %v264 = vld [vmem:[%s240 + $0x8] sm:$0xf]
      %v265 = vld [vmem:[%s240 + $0x10] sm:$0xff]
      %v266 = vld [vmem:[%s240 + $0x18] sm:$0xf]
      %v267 = vld [vmem:[%s240 + $0x20] sm:$0xff]
      %v268 = vld [vmem:[%s240 + $0x28] sm:$0xf]
      %v269 = vld [vmem:[%s240 + $0x30] sm:$0xff]
      %v270 = vld [vmem:[%s240 + $0x38] sm:$0xf]
      %v271 = vld [vmem:[%s249] sm:$0xff]
      %vm272 = vcmask 130048
      %v274 = vsel %vm272, %v259, 0
      %v277 = vsel %vm272, %v263, 0
      %v280 = vsel %vm272, %v264, 0
      %282 = vmatprep.subr.mxu0 0.0
      %283 = vmatpush1.xpose.msra.mxu0 %v277
      %284 = vmatprep.subr.mxu0 0.0
      %285 = vmatpush1.xpose.msra.mxu0 %v280
      %286 = vmatprep.subr.mxu0 0.0
      %287 = vmatpush1.xpose.msra.mxu0 0.0
      %288 = vmatprep.subr.mxu0 0.0
      %289 = vmatpush1.xpose.msra.mxu0 0.0
      %290 = vmatprep.subr.mxu0 0.0
      %291 = vmatpush1.xpose.msra.mxu0 0.0
      %292 = vmatprep.subr.mxu0 0.0
      %293 = vmatpush1.xpose.msra.mxu0 0.0
      %294 = vmatprep.subr.mxu0 0.0
      %295 = vmatpush1.xpose.msra.mxu0 0.0
      %296 = vmatprep.subr.mxu0 0.0
      %297 = vmatpush1.xpose.msra.mxu0 0.0
      %298 = vmatprep.subr.mxu0 0.0
      %299 = vmatpush1.xpose.msra.mxu0 0.0
      %300 = vmatprep.subr.mxu0 0.0
      %301 = vmatpush1.xpose.msra.mxu0 0.0
      %302 = vmatprep.subr.mxu0 0.0
      %303 = vmatpush1.xpose.msra.mxu0 0.0
      %304 = vmatprep.subr.mxu0 0.0
      %305 = vmatpush1.xpose.msra.mxu0 0.0
      %306 = vmatprep.subr.mxu0 0.0
      %307 = vmatpush1.xpose.msra.mxu0 0.0
      %308 = vmatprep.subr.mxu0 0.0
      %309 = vmatpush1.xpose.msra.mxu0 0.0
      %310 = vmatprep.subr.mxu0 0.0
      %311 = vmatpush1.xpose.msra.mxu0 0.0
      %312 = vmatprep.subr.mxu0 0.0
      %313 = vmatpush1.xpose.msra.mxu0 0.0
      %314 = vmatprep.subr.mxu0 0.0
      %315 = vmatpush1.xpose.msra.mxu0 0.0
      %316 = vmatprep.subr.mxu0 0.0
      %317 = vmatpush1.xpose.msra.mxu0 0.0
      %318 = vmatprep.subr.mxu0 0.0
      %319 = vmatpush1.xpose.msra.mxu0 0.0
      %320 = vmatprep.subr.mxu0 0.0
      %321 = vmatpush1.xpose.msra.mxu0 0.0
      %322 = vmatprep.subr.mxu0 0.0
      %323 = vmatpush1.xpose.msra.mxu0 0.0
      %324 = vmatprep.subr.mxu0 0.0
      %325 = vmatpush1.xpose.msra.mxu0 0.0
      %326 = vmatprep.subr.mxu0 0.0
      %327 = vmatpush1.xpose.msra.mxu0 0.0
      %328 = vmatprep.subr.mxu0 0.0
      %329 = vmatpush1.xpose.msra.mxu0 0.0
      %330 = vmatprep.subr.mxu0 0.0
      %331 = vmatpush1.xpose.msra.mxu0 0.0
      %332 = vmatprep.subr.mxu0 0.0
      %333 = vmatpush1.xpose.msra.mxu0 0.0
      %334 = vmatprep.subr.mxu0 0.0
      %335 = vmatpush1.xpose.msra.mxu0 0.0
      %336 = vmatprep.subr.mxu0 0.0
      %337 = vmatpush1.xpose.msra.mxu0 0.0
      %338 = vmatprep.subr.mxu0 0.0
      %339 = vmatpush1.xpose.msra.mxu0 0.0
      %340 = vmatprep.subr.mxu0 0.0
      %341 = vmatpush1.xpose.msra.mxu0 0.0
      %342 = vmatprep.subr.mxu0 0.0
      %343 = vmatpush1.xpose.msra.mxu0 0.0
      %344 = vmatprep.subr.mxu0 0.0
      %345 = vmatpush1.xpose.msra.mxu0 0.0
      %346 = vmatprep.mubr.f32.mxu0 0.0
      %347 = vmatmul.mubr.f32.gmra.mrb[0].mxu0 %v274
      %v348 = vpop.f32.mrb[0].mxu0
      %v349 = vadd.f32 %v271, %v348
      %v350 = vpop.f32.mrb[0].mxu0
      %351 = vdwg.mxu0
      %v353 = vsel %vm272, %v260, 0
      %v356 = vsel %vm272, %v265, 0
      %v359 = vsel %vm272, %v266, 0
      %361 = vmatprep.subr.mxu0 0.0
      %362 = vmatpush1.xpose.msra.mxu0 %v356
      %363 = vmatprep.subr.mxu0 0.0
      %364 = vmatpush1.xpose.msra.mxu0 %v359
      %365 = vmatprep.subr.mxu0 0.0
      %366 = vmatpush1.xpose.msra.mxu0 0.0
      %367 = vmatprep.subr.mxu0 0.0
      %368 = vmatpush1.xpose.msra.mxu0 0.0
      %369 = vmatprep.subr.mxu0 0.0
      %370 = vmatpush1.xpose.msra.mxu0 0.0
      %371 = vmatprep.subr.mxu0 0.0
      %372 = vmatpush1.xpose.msra.mxu0 0.0
      %373 = vmatprep.subr.mxu0 0.0
      %374 = vmatpush1.xpose.msra.mxu0 0.0
      %375 = vmatprep.subr.mxu0 0.0
      %376 = vmatpush1.xpose.msra.mxu0 0.0
      %377 = vmatprep.subr.mxu0 0.0
      %378 = vmatpush1.xpose.msra.mxu0 0.0
      %379 = vmatprep.subr.mxu0 0.0
      %380 = vmatpush1.xpose.msra.mxu0 0.0
      %381 = vmatprep.subr.mxu0 0.0
      %382 = vmatpush1.xpose.msra.mxu0 0.0
      %383 = vmatprep.subr.mxu0 0.0
      %384 = vmatpush1.xpose.msra.mxu0 0.0
      %385 = vmatprep.subr.mxu0 0.0
      %386 = vmatpush1.xpose.msra.mxu0 0.0
      %387 = vmatprep.subr.mxu0 0.0
      %388 = vmatpush1.xpose.msra.mxu0 0.0
      %389 = vmatprep.subr.mxu0 0.0
      %390 = vmatpush1.xpose.msra.mxu0 0.0
      %391 = vmatprep.subr.mxu0 0.0
      %392 = vmatpush1.xpose.msra.mxu0 0.0
      %393 = vmatprep.subr.mxu0 0.0
      %394 = vmatpush1.xpose.msra.mxu0 0.0
      %395 = vmatprep.subr.mxu0 0.0
      %396 = vmatpush1.xpose.msra.mxu0 0.0
      %397 = vmatprep.subr.mxu0 0.0
      %398 = vmatpush1.xpose.msra.mxu0 0.0
      %399 = vmatprep.subr.mxu0 0.0
      %400 = vmatpush1.xpose.msra.mxu0 0.0
      %401 = vmatprep.subr.mxu0 0.0
      %402 = vmatpush1.xpose.msra.mxu0 0.0
      %403 = vmatprep.subr.mxu0 0.0
      %404 = vmatpush1.xpose.msra.mxu0 0.0
      %405 = vmatprep.subr.mxu0 0.0
      %406 = vmatpush1.xpose.msra.mxu0 0.0
      %407 = vmatprep.subr.mxu0 0.0
      %408 = vmatpush1.xpose.msra.mxu0 0.0
      %409 = vmatprep.subr.mxu0 0.0
      %410 = vmatpush1.xpose.msra.mxu0 0.0
      %411 = vmatprep.subr.mxu0 0.0
      %412 = vmatpush1.xpose.msra.mxu0 0.0
      %413 = vmatprep.subr.mxu0 0.0
      %414 = vmatpush1.xpose.msra.mxu0 0.0
      %415 = vmatprep.subr.mxu0 0.0
      %416 = vmatpush1.xpose.msra.mxu0 0.0
      %417 = vmatprep.subr.mxu0 0.0
      %418 = vmatpush1.xpose.msra.mxu0 0.0
      %419 = vmatprep.subr.mxu0 0.0
      %420 = vmatpush1.xpose.msra.mxu0 0.0
      %421 = vmatprep.subr.mxu0 0.0
      %422 = vmatpush1.xpose.msra.mxu0 0.0
      %423 = vmatprep.subr.mxu0 0.0
      %424 = vmatpush1.xpose.msra.mxu0 0.0
      %425 = vmatprep.mubr.f32.mxu0 0.0
      %426 = vmatmul.mubr.f32.gmra.mrb[0].mxu0 %v353
      %v427 = vpop.f32.mrb[0].mxu0
      %v428 = vadd.f32 %v271, %v427
      %v429 = vpop.f32.mrb[0].mxu0
      %430 = vdwg.mxu0
      %v432 = vsel %vm272, %v261, 0
      %v435 = vsel %vm272, %v267, 0
      %v438 = vsel %vm272, %v268, 0
      %440 = vmatprep.subr.mxu0 0.0
      %441 = vmatpush1.xpose.msra.mxu0 %v435
      %442 = vmatprep.subr.mxu0 0.0
      %443 = vmatpush1.xpose.msra.mxu0 %v438
      %444 = vmatprep.subr.mxu0 0.0
      %445 = vmatpush1.xpose.msra.mxu0 0.0
      %446 = vmatprep.subr.mxu0 0.0
      %447 = vmatpush1.xpose.msra.mxu0 0.0
      %448 = vmatprep.subr.mxu0 0.0
      %449 = vmatpush1.xpose.msra.mxu0 0.0
      %450 = vmatprep.subr.mxu0 0.0
      %451 = vmatpush1.xpose.msra.mxu0 0.0
      %452 = vmatprep.subr.mxu0 0.0
      %453 = vmatpush1.xpose.msra.mxu0 0.0
      %454 = vmatprep.subr.mxu0 0.0
      %455 = vmatpush1.xpose.msra.mxu0 0.0
      %456 = vmatprep.subr.mxu0 0.0
      %457 = vmatpush1.xpose.msra.mxu0 0.0
      %458 = vmatprep.subr.mxu0 0.0
      %459 = vmatpush1.xpose.msra.mxu0 0.0
      %460 = vmatprep.subr.mxu0 0.0
      %461 = vmatpush1.xpose.msra.mxu0 0.0
      %462 = vmatprep.subr.mxu0 0.0
      %463 = vmatpush1.xpose.msra.mxu0 0.0
      %464 = vmatprep.subr.mxu0 0.0
      %465 = vmatpush1.xpose.msra.mxu0 0.0
      %466 = vmatprep.subr.mxu0 0.0
      %467 = vmatpush1.xpose.msra.mxu0 0.0
      %468 = vmatprep.subr.mxu0 0.0
      %469 = vmatpush1.xpose.msra.mxu0 0.0
      %470 = vmatprep.subr.mxu0 0.0
      %471 = vmatpush1.xpose.msra.mxu0 0.0
      %472 = vmatprep.subr.mxu0 0.0
      %473 = vmatpush1.xpose.msra.mxu0 0.0
      %474 = vmatprep.subr.mxu0 0.0
      %475 = vmatpush1.xpose.msra.mxu0 0.0
      %476 = vmatprep.subr.mxu0 0.0
      %477 = vmatpush1.xpose.msra.mxu0 0.0
      %478 = vmatprep.subr.mxu0 0.0
      %479 = vmatpush1.xpose.msra.mxu0 0.0
      %480 = vmatprep.subr.mxu0 0.0
      %481 = vmatpush1.xpose.msra.mxu0 0.0
      %482 = vmatprep.subr.mxu0 0.0
      %483 = vmatpush1.xpose.msra.mxu0 0.0
      %484 = vmatprep.subr.mxu0 0.0
      %485 = vmatpush1.xpose.msra.mxu0 0.0
      %486 = vmatprep.subr.mxu0 0.0
      %487 = vmatpush1.xpose.msra.mxu0 0.0
      %488 = vmatprep.subr.mxu0 0.0
      %489 = vmatpush1.xpose.msra.mxu0 0.0
      %490 = vmatprep.subr.mxu0 0.0
      %491 = vmatpush1.xpose.msra.mxu0 0.0
      %492 = vmatprep.subr.mxu0 0.0
      %493 = vmatpush1.xpose.msra.mxu0 0.0
      %494 = vmatprep.subr.mxu0 0.0
      %495 = vmatpush1.xpose.msra.mxu0 0.0
      %496 = vmatprep.subr.mxu0 0.0
      %497 = vmatpush1.xpose.msra.mxu0 0.0
      %498 = vmatprep.subr.mxu0 0.0
      %499 = vmatpush1.xpose.msra.mxu0 0.0
      %500 = vmatprep.subr.mxu0 0.0
      %501 = vmatpush1.xpose.msra.mxu0 0.0
      %502 = vmatprep.subr.mxu0 0.0
      %503 = vmatpush1.xpose.msra.mxu0 0.0
      %504 = vmatprep.mubr.f32.mxu0 0.0
      %505 = vmatmul.mubr.f32.gmra.mrb[0].mxu0 %v432
      %v506 = vpop.f32.mrb[0].mxu0
      %v507 = vadd.f32 %v271, %v506
      %v508 = vpop.f32.mrb[0].mxu0
      %509 = vdwg.mxu0
      %v511 = vsel %vm272, %v262, 0
      %v514 = vsel %vm272, %v269, 0
      %v517 = vsel %vm272, %v270, 0
      %519 = vmatprep.subr.mxu0 0.0
      %520 = vmatpush1.xpose.msra.mxu0 %v514
      %521 = vmatprep.subr.mxu0 0.0
      %522 = vmatpush1.xpose.msra.mxu0 %v517
      %523 = vmatprep.subr.mxu0 0.0
      %524 = vmatpush1.xpose.msra.mxu0 0.0
      %525 = vmatprep.subr.mxu0 0.0
      %526 = vmatpush1.xpose.msra.mxu0 0.0
      %527 = vmatprep.subr.mxu0 0.0
      %528 = vmatpush1.xpose.msra.mxu0 0.0
      %529 = vmatprep.subr.mxu0 0.0
      %530 = vmatpush1.xpose.msra.mxu0 0.0
      %531 = vmatprep.subr.mxu0 0.0
      %532 = vmatpush1.xpose.msra.mxu0 0.0
      %533 = vmatprep.subr.mxu0 0.0
      %534 = vmatpush1.xpose.msra.mxu0 0.0
      %535 = vmatprep.subr.mxu0 0.0
      %536 = vmatpush1.xpose.msra.mxu0 0.0
      %537 = vmatprep.subr.mxu0 0.0
      %538 = vmatpush1.xpose.msra.mxu0 0.0
      %539 = vmatprep.subr.mxu0 0.0
      %540 = vmatpush1.xpose.msra.mxu0 0.0
      %541 = vmatprep.subr.mxu0 0.0
      %542 = vmatpush1.xpose.msra.mxu0 0.0
      %543 = vmatprep.subr.mxu0 0.0
      %544 = vmatpush1.xpose.msra.mxu0 0.0
      %545 = vmatprep.subr.mxu0 0.0
      %546 = vmatpush1.xpose.msra.mxu0 0.0
      %547 = vmatprep.subr.mxu0 0.0
      %548 = vmatpush1.xpose.msra.mxu0 0.0
      %549 = vmatprep.subr.mxu0 0.0
      %550 = vmatpush1.xpose.msra.mxu0 0.0
      %551 = vmatprep.subr.mxu0 0.0
      %552 = vmatpush1.xpose.msra.mxu0 0.0
      %553 = vmatprep.subr.mxu0 0.0
      %554 = vmatpush1.xpose.msra.mxu0 0.0
      %555 = vmatprep.subr.mxu0 0.0
      %556 = vmatpush1.xpose.msra.mxu0 0.0
      %557 = vmatprep.subr.mxu0 0.0
      %558 = vmatpush1.xpose.msra.mxu0 0.0
      %559 = vmatprep.subr.mxu0 0.0
      %560 = vmatpush1.xpose.msra.mxu0 0.0
      %561 = vmatprep.subr.mxu0 0.0
      %562 = vmatpush1.xpose.msra.mxu0 0.0
      %563 = vmatprep.subr.mxu0 0.0
      %564 = vmatpush1.xpose.msra.mxu0 0.0
      %565 = vmatprep.subr.mxu0 0.0
      %566 = vmatpush1.xpose.msra.mxu0 0.0
      %567 = vmatprep.subr.mxu0 0.0
      %568 = vmatpush1.xpose.msra.mxu0 0.0
      %569 = vmatprep.subr.mxu0 0.0
      %570 = vmatpush1.xpose.msra.mxu0 0.0
      %571 = vmatprep.subr.mxu0 0.0
      %572 = vmatpush1.xpose.msra.mxu0 0.0
      %573 = vmatprep.subr.mxu0 0.0
      %574 = vmatpush1.xpose.msra.mxu0 0.0
      %575 = vmatprep.subr.mxu0 0.0
      %576 = vmatpush1.xpose.msra.mxu0 0.0
      %577 = vmatprep.subr.mxu0 0.0
      %578 = vmatpush1.xpose.msra.mxu0 0.0
      %579 = vmatprep.subr.mxu0 0.0
      %580 = vmatpush1.xpose.msra.mxu0 0.0
      %581 = vmatprep.subr.mxu0 0.0
      %582 = vmatpush1.xpose.msra.mxu0 0.0
      %583 = vmatprep.mubr.f32.mxu0 0.0
      %584 = vmatmul.mubr.f32.gmra.mrb[0].mxu0 %v511
      %v585 = vpop.f32.mrb[0].mxu0
      %v586 = vadd.f32 %v271, %v585
      %v587 = vpop.f32.mrb[0].mxu0
      %588 = vdwg.mxu0
      %vm589 = vcmask 97280
      %v590 = vsel %vm589, %v349, -inf
      %591 = vmax.xlane.f32.xlu0 %v590
      %v592 = vpop.xlane.xlu0 %591
      %v593 = vsel %vm589, %v428, -inf
      %594 = vmax.xlane.f32.xlu0 %v593
      %v595 = vpop.xlane.xlu0 %594
      %v596 = vsel %vm589, %v507, -inf
      %597 = vmax.xlane.f32.xlu0 %v596
      %v598 = vpop.xlane.xlu0 %597
      %v599 = vsel %vm589, %v586, -inf
      %600 = vmax.xlane.f32.xlu0 %v599
      %v601 = vpop.xlane.xlu0 %600
      %v602 = vsub.f32 %v349, %v592
      %v603 = vsub.f32 %v428, %v595
      %v604 = vsub.f32 %v507, %v598
      %v605 = vsub.f32 %v586, %v601
      %v606 = vmul.f32 %v602, 1.442695
      %v607 = vpow.pop %v606
      %v608 = vmul.f32 %v603, 1.442695
      %v609 = vpow.pop %v608
      %v610 = vmul.f32 %v604, 1.442695
      %v611 = vpow.pop %v610
      %v612 = vmul.f32 %v605, 1.442695
      %v613 = vpow.pop %v612
      %v614 = vsel %vm589, %v607, 0.0
      %615 = vadd.xlane.f32.xlu0 %v614
      %v616 = vpop.xlane.xlu0 %615
      %v617 = vsel %vm589, %v609, 0.0
      %618 = vadd.xlane.f32.xlu0 %v617
      %v619 = vpop.xlane.xlu0 %618
      %v620 = vsel %vm589, %v611, 0.0
      %621 = vadd.xlane.f32.xlu0 %v620
      %v622 = vpop.xlane.xlu0 %621
      %v623 = vsel %vm589, %v613, 0.0
      %624 = vadd.xlane.f32.xlu0 %v623
      %v625 = vpop.xlane.xlu0 %624
      %v626 = vrcp.pop %v616
      %v627 = vmul.f32 %v607, %v626
      %v628 = vrcp.pop %v619
      %v629 = vmul.f32 %v609, %v628
      %v630 = vrcp.pop %v622
      %v631 = vmul.f32 %v611, %v630
      %v632 = vrcp.pop %v625
      %v633 = vmul.f32 %v613, %v632
      %v634 = vld [vmem:[%s245] sm:$0xff]
      %v635 = vld [vmem:[%s245 + $0x8] sm:$0xf]
      %v636 = vld [vmem:[%s245 + $0x10] sm:$0xff]
      %v637 = vld [vmem:[%s245 + $0x18] sm:$0xf]
      %v638 = vld [vmem:[%s245 + $0x20] sm:$0xff]
      %v639 = vld [vmem:[%s245 + $0x28] sm:$0xf]
      %v640 = vld [vmem:[%s245 + $0x30] sm:$0xff]
      %v641 = vld [vmem:[%s245 + $0x38] sm:$0xf]
      %v643 = vsel %vm589, %v627, 0
      %vm645 = vcmask 1043456
      %v647 = vsel %vm645, %v635, 0
      %649 = vmatprep.subr.mxu0 0.0
      %650 = vmatpush1.msra.mxu0 %v634
      %651 = vmatprep.subr.mxu0 0.0
      %652 = vmatpush1.msra.mxu0 %v647
      %653 = vmatprep.subr.mxu0 0.0
      %654 = vmatpush1.msra.mxu0 0.0
      %655 = vmatprep.subr.mxu0 0.0
      %656 = vmatpush1.msra.mxu0 0.0
      %657 = vmatprep.subr.mxu0 0.0
      %658 = vmatpush1.msra.mxu0 0.0
      %659 = vmatprep.subr.mxu0 0.0
      %660 = vmatpush1.msra.mxu0 0.0
      %661 = vmatprep.subr.mxu0 0.0
      %662 = vmatpush1.msra.mxu0 0.0
      %663 = vmatprep.subr.mxu0 0.0
      %664 = vmatpush1.msra.mxu0 0.0
      %665 = vmatprep.subr.mxu0 0.0
      %666 = vmatpush1.msra.mxu0 0.0
      %667 = vmatprep.subr.mxu0 0.0
      %668 = vmatpush1.msra.mxu0 0.0
      %669 = vmatprep.subr.mxu0 0.0
      %670 = vmatpush1.msra.mxu0 0.0
      %671 = vmatprep.subr.mxu0 0.0
      %672 = vmatpush1.msra.mxu0 0.0
      %673 = vmatprep.subr.mxu0 0.0
      %674 = vmatpush1.msra.mxu0 0.0
      %675 = vmatprep.subr.mxu0 0.0
      %676 = vmatpush1.msra.mxu0 0.0
      %677 = vmatprep.subr.mxu0 0.0
      %678 = vmatpush1.msra.mxu0 0.0
      %679 = vmatprep.subr.mxu0 0.0
      %680 = vmatpush1.msra.mxu0 0.0
      %681 = vmatprep.subr.mxu0 0.0
      %682 = vmatpush1.msra.mxu0 0.0
      %683 = vmatprep.subr.mxu0 0.0
      %684 = vmatpush1.msra.mxu0 0.0
      %685 = vmatprep.subr.mxu0 0.0
      %686 = vmatpush1.msra.mxu0 0.0
      %687 = vmatprep.subr.mxu0 0.0
      %688 = vmatpush1.msra.mxu0 0.0
      %689 = vmatprep.subr.mxu0 0.0
      %690 = vmatpush1.msra.mxu0 0.0
      %691 = vmatprep.subr.mxu0 0.0
      %692 = vmatpush1.msra.mxu0 0.0
      %693 = vmatprep.subr.mxu0 0.0
      %694 = vmatpush1.msra.mxu0 0.0
      %695 = vmatprep.subr.mxu0 0.0
      %696 = vmatpush1.msra.mxu0 0.0
      %697 = vmatprep.subr.mxu0 0.0
      %698 = vmatpush1.msra.mxu0 0.0
      %699 = vmatprep.subr.mxu0 0.0
      %700 = vmatpush1.msra.mxu0 0.0
      %701 = vmatprep.subr.mxu0 0.0
      %702 = vmatpush1.msra.mxu0 0.0
      %703 = vmatprep.subr.mxu0 0.0
      %704 = vmatpush1.msra.mxu0 0.0
      %705 = vmatprep.subr.mxu0 0.0
      %706 = vmatpush1.msra.mxu0 0.0
      %707 = vmatprep.subr.mxu0 0.0
      %708 = vmatpush1.msra.mxu0 0.0
      %709 = vmatprep.subr.mxu0 0.0
      %710 = vmatpush1.msra.mxu0 0.0
      %711 = vmatprep.subr.mxu0 0.0
      %712 = vmatpush1.msra.mxu0 0.0
      %713 = vmatprep.mubr.f32.mxu0 0.0
      %714 = vmatmul.mubr.f32.gmra.mrb[0].mxu0 %v643
      %v715 = vpop.f32.mrb[0].mxu0
      %v716 = vadd.f32 0.0, %v715
      %v717 = vpop.f32.mrb[0].mxu0
      %718 = vdwg.mxu0
      %v720 = vsel %vm589, %v629, 0
      %v723 = vsel %vm645, %v637, 0
      %725 = vmatprep.subr.mxu0 0.0
      %726 = vmatpush1.msra.mxu0 %v636
      %727 = vmatprep.subr.mxu0 0.0
      %728 = vmatpush1.msra.mxu0 %v723
      %729 = vmatprep.subr.mxu0 0.0
      %730 = vmatpush1.msra.mxu0 0.0
      %731 = vmatprep.subr.mxu0 0.0
      %732 = vmatpush1.msra.mxu0 0.0
      %733 = vmatprep.subr.mxu0 0.0
      %734 = vmatpush1.msra.mxu0 0.0
      %735 = vmatprep.subr.mxu0 0.0
      %736 = vmatpush1.msra.mxu0 0.0
      %737 = vmatprep.subr.mxu0 0.0
      %738 = vmatpush1.msra.mxu0 0.0
      %739 = vmatprep.subr.mxu0 0.0
      %740 = vmatpush1.msra.mxu0 0.0
      %741 = vmatprep.subr.mxu0 0.0
      %742 = vmatpush1.msra.mxu0 0.0
      %743 = vmatprep.subr.mxu0 0.0
      %744 = vmatpush1.msra.mxu0 0.0
      %745 = vmatprep.subr.mxu0 0.0
      %746 = vmatpush1.msra.mxu0 0.0
      %747 = vmatprep.subr.mxu0 0.0
      %748 = vmatpush1.msra.mxu0 0.0
      %749 = vmatprep.subr.mxu0 0.0
      %750 = vmatpush1.msra.mxu0 0.0
      %751 = vmatprep.subr.mxu0 0.0
      %752 = vmatpush1.msra.mxu0 0.0
      %753 = vmatprep.subr.mxu0 0.0
      %754 = vmatpush1.msra.mxu0 0.0
      %755 = vmatprep.subr.mxu0 0.0
      %756 = vmatpush1.msra.mxu0 0.0
      %757 = vmatprep.subr.mxu0 0.0
      %758 = vmatpush1.msra.mxu0 0.0
      %759 = vmatprep.subr.mxu0 0.0
      %760 = vmatpush1.msra.mxu0 0.0
      %761 = vmatprep.subr.mxu0 0.0
      %762 = vmatpush1.msra.mxu0 0.0
      %763 = vmatprep.subr.mxu0 0.0
      %764 = vmatpush1.msra.mxu0 0.0
      %765 = vmatprep.subr.mxu0 0.0
      %766 = vmatpush1.msra.mxu0 0.0
      %767 = vmatprep.subr.mxu0 0.0
      %768 = vmatpush1.msra.mxu0 0.0
      %769 = vmatprep.subr.mxu0 0.0
      %770 = vmatpush1.msra.mxu0 0.0
      %771 = vmatprep.subr.mxu0 0.0
      %772 = vmatpush1.msra.mxu0 0.0
      %773 = vmatprep.subr.mxu0 0.0
      %774 = vmatpush1.msra.mxu0 0.0
      %775 = vmatprep.subr.mxu0 0.0
      %776 = vmatpush1.msra.mxu0 0.0
      %777 = vmatprep.subr.mxu0 0.0
      %778 = vmatpush1.msra.mxu0 0.0
      %779 = vmatprep.subr.mxu0 0.0
      %780 = vmatpush1.msra.mxu0 0.0
      %781 = vmatprep.subr.mxu0 0.0
      %782 = vmatpush1.msra.mxu0 0.0
      %783 = vmatprep.subr.mxu0 0.0
      %784 = vmatpush1.msra.mxu0 0.0
      %785 = vmatprep.subr.mxu0 0.0
      %786 = vmatpush1.msra.mxu0 0.0
      %787 = vmatprep.subr.mxu0 0.0
      %788 = vmatpush1.msra.mxu0 0.0
      %789 = vmatprep.mubr.f32.mxu0 0.0
      %790 = vmatmul.mubr.f32.gmra.mrb[0].mxu0 %v720
      %v791 = vpop.f32.mrb[0].mxu0
      %v792 = vadd.f32 0.0, %v791
      %v793 = vpop.f32.mrb[0].mxu0
      %794 = vdwg.mxu0
      %v796 = vsel %vm589, %v631, 0
      %v799 = vsel %vm645, %v639, 0
      %801 = vmatprep.subr.mxu0 0.0
      %802 = vmatpush1.msra.mxu0 %v638
      %803 = vmatprep.subr.mxu0 0.0
      %804 = vmatpush1.msra.mxu0 %v799
      %805 = vmatprep.subr.mxu0 0.0
      %806 = vmatpush1.msra.mxu0 0.0
      %807 = vmatprep.subr.mxu0 0.0
      %808 = vmatpush1.msra.mxu0 0.0
      %809 = vmatprep.subr.mxu0 0.0
      %810 = vmatpush1.msra.mxu0 0.0
      %811 = vmatprep.subr.mxu0 0.0
      %812 = vmatpush1.msra.mxu0 0.0
      %813 = vmatprep.subr.mxu0 0.0
      %814 = vmatpush1.msra.mxu0 0.0
      %815 = vmatprep.subr.mxu0 0.0
      %816 = vmatpush1.msra.mxu0 0.0
      %817 = vmatprep.subr.mxu0 0.0
      %818 = vmatpush1.msra.mxu0 0.0
      %819 = vmatprep.subr.mxu0 0.0
      %820 = vmatpush1.msra.mxu0 0.0
      %821 = vmatprep.subr.mxu0 0.0
      %822 = vmatpush1.msra.mxu0 0.0
      %823 = vmatprep.subr.mxu0 0.0
      %824 = vmatpush1.msra.mxu0 0.0
      %825 = vmatprep.subr.mxu0 0.0
      %826 = vmatpush1.msra.mxu0 0.0
      %827 = vmatprep.subr.mxu0 0.0
      %828 = vmatpush1.msra.mxu0 0.0
      %829 = vmatprep.subr.mxu0 0.0
      %830 = vmatpush1.msra.mxu0 0.0
      %831 = vmatprep.subr.mxu0 0.0
      %832 = vmatpush1.msra.mxu0 0.0
      %833 = vmatprep.subr.mxu0 0.0
      %834 = vmatpush1.msra.mxu0 0.0
      %835 = vmatprep.subr.mxu0 0.0
      %836 = vmatpush1.msra.mxu0 0.0
      %837 = vmatprep.subr.mxu0 0.0
      %838 = vmatpush1.msra.mxu0 0.0
      %839 = vmatprep.subr.mxu0 0.0
      %840 = vmatpush1.msra.mxu0 0.0
      %841 = vmatprep.subr.mxu0 0.0
      %842 = vmatpush1.msra.mxu0 0.0
      %843 = vmatprep.subr.mxu0 0.0
      %844 = vmatpush1.msra.mxu0 0.0
      %845 = vmatprep.subr.mxu0 0.0
      %846 = vmatpush1.msra.mxu0 0.0
      %847 = vmatprep.subr.mxu0 0.0
      %848 = vmatpush1.msra.mxu0 0.0
      %849 = vmatprep.subr.mxu0 0.0
      %850 = vmatpush1.msra.mxu0 0.0
      %851 = vmatprep.subr.mxu0 0.0
      %852 = vmatpush1.msra.mxu0 0.0
      %853 = vmatprep.subr.mxu0 0.0
      %854 = vmatpush1.msra.mxu0 0.0
      %855 = vmatprep.subr.mxu0 0.0
      %856 = vmatpush1.msra.mxu0 0.0
      %857 = vmatprep.subr.mxu0 0.0
      %858 = vmatpush1.msra.mxu0 0.0
      %859 = vmatprep.subr.mxu0 0.0
      %860 = vmatpush1.msra.mxu0 0.0
      %861 = vmatprep.subr.mxu0 0.0
      %862 = vmatpush1.msra.mxu0 0.0
      %863 = vmatprep.subr.mxu0 0.0
      %864 = vmatpush1.msra.mxu0 0.0
      %865 = vmatprep.mubr.f32.mxu0 0.0
      %866 = vmatmul.mubr.f32.gmra.mrb[0].mxu0 %v796
      %v867 = vpop.f32.mrb[0].mxu0
      %v868 = vadd.f32 0.0, %v867
      %v869 = vpop.f32.mrb[0].mxu0
      %870 = vdwg.mxu0
      %v872 = vsel %vm589, %v633, 0
      %v875 = vsel %vm645, %v641, 0
      %877 = vmatprep.subr.mxu0 0.0
      %878 = vmatpush1.msra.mxu0 %v640
      %879 = vmatprep.subr.mxu0 0.0
      %880 = vmatpush1.msra.mxu0 %v875
      %881 = vmatprep.subr.mxu0 0.0
      %882 = vmatpush1.msra.mxu0 0.0
      %883 = vmatprep.subr.mxu0 0.0
      %884 = vmatpush1.msra.mxu0 0.0
      %885 = vmatprep.subr.mxu0 0.0
      %886 = vmatpush1.msra.mxu0 0.0
      %887 = vmatprep.subr.mxu0 0.0
      %888 = vmatpush1.msra.mxu0 0.0
      %889 = vmatprep.subr.mxu0 0.0
      %890 = vmatpush1.msra.mxu0 0.0
      %891 = vmatprep.subr.mxu0 0.0
      %892 = vmatpush1.msra.mxu0 0.0
      %893 = vmatprep.subr.mxu0 0.0
      %894 = vmatpush1.msra.mxu0 0.0
      %895 = vmatprep.subr.mxu0 0.0
      %896 = vmatpush1.msra.mxu0 0.0
      %897 = vmatprep.subr.mxu0 0.0
      %898 = vmatpush1.msra.mxu0 0.0
      %899 = vmatprep.subr.mxu0 0.0
      %900 = vmatpush1.msra.mxu0 0.0
      %901 = vmatprep.subr.mxu0 0.0
      %902 = vmatpush1.msra.mxu0 0.0
      %903 = vmatprep.subr.mxu0 0.0
      %904 = vmatpush1.msra.mxu0 0.0
      %905 = vmatprep.subr.mxu0 0.0
      %906 = vmatpush1.msra.mxu0 0.0
      %907 = vmatprep.subr.mxu0 0.0
      %908 = vmatpush1.msra.mxu0 0.0
      %909 = vmatprep.subr.mxu0 0.0
      %910 = vmatpush1.msra.mxu0 0.0
      %911 = vmatprep.subr.mxu0 0.0
      %912 = vmatpush1.msra.mxu0 0.0
      %913 = vmatprep.subr.mxu0 0.0
      %914 = vmatpush1.msra.mxu0 0.0
      %915 = vmatprep.subr.mxu0 0.0
      %916 = vmatpush1.msra.mxu0 0.0
      %917 = vmatprep.subr.mxu0 0.0
      %918 = vmatpush1.msra.mxu0 0.0
      %919 = vmatprep.subr.mxu0 0.0
      %920 = vmatpush1.msra.mxu0 0.0
      %921 = vmatprep.subr.mxu0 0.0
      %922 = vmatpush1.msra.mxu0 0.0
      %923 = vmatprep.subr.mxu0 0.0
      %924 = vmatpush1.msra.mxu0 0.0
      %925 = vmatprep.subr.mxu0 0.0
      %926 = vmatpush1.msra.mxu0 0.0
      %927 = vmatprep.subr.mxu0 0.0
      %928 = vmatpush1.msra.mxu0 0.0
      %929 = vmatprep.subr.mxu0 0.0
      %930 = vmatpush1.msra.mxu0 0.0
      %931 = vmatprep.subr.mxu0 0.0
      %932 = vmatpush1.msra.mxu0 0.0
      %933 = vmatprep.subr.mxu0 0.0
      %934 = vmatpush1.msra.mxu0 0.0
      %935 = vmatprep.subr.mxu0 0.0
      %936 = vmatpush1.msra.mxu0 0.0
      %937 = vmatprep.subr.mxu0 0.0
      %938 = vmatpush1.msra.mxu0 0.0
      %939 = vmatprep.subr.mxu0 0.0
      %940 = vmatpush1.msra.mxu0 0.0
      %941 = vmatprep.mubr.f32.mxu0 0.0
      %942 = vmatmul.mubr.f32.gmra.mrb[0].mxu0 %v872
      %v943 = vpop.f32.mrb[0].mxu0
      %v944 = vadd.f32 0.0, %v943
      %v945 = vpop.f32.mrb[0].mxu0
      %946 = vdwg.mxu0
      %947 = vst.msk [vmem:[%s254] sm:$0xff] %vm272, %v716
      %948 = vst.msk [vmem:[%s254 + $0x8] sm:$0xff] %vm272, %v792
      %949 = vst.msk [vmem:[%s254 + $0x10] sm:$0xff] %vm272, %v868
      %950 = vst.msk [vmem:[%s254 + $0x18] sm:$0xff] %vm272, %v944
      %p951 = scmp.lt.s32.totalorder %s15, 1
      %s952 = scalar_select %p951, %s15, 1
      %s953 = smul.addr %s952, 4
      %s954 = smul.addr %s953, 8
      %s955 = scalar_lea.vmem %s4, %s954
      // Predicated region
      $region37: #{multi_decoder_layer.22} parent=35 // pred_check
        %p956 = pneg %p137
      $region38: #{multi_decoder_layer.22} parent=35 // pred_check_branch
        %958 = sbr.rel (%p956) target = $region40
      $region39: #{multi_decoder_layer.22} parent=35 // pred_region
        _
      $region40: #{multi_decoder_layer.22} parent=35 // pred_fallthru
        _
    $region36: #{multi_decoder_layer.22} parent=5 // pred_fallthru
      _
    %p959 = scmp.le.s32.totalorder 2, %s10
    // Predicated region
    $region41: #{multi_decoder_layer.22} parent=5 // pred_check
      %p960 = pneg %p959
    $region42: #{multi_decoder_layer.22} parent=5 // pred_check_branch
      %962 = sbr.rel (%p960) target = $region44
    $region43: #{multi_decoder_layer.22} parent=5 // pred_region
      %s963 = ssub.s32 %s10, 2
      // Predicated region
      $region45: #{multi_decoder_layer.22} parent=43 // pred_check
        %p964 = pneg %p143
      $region46: #{multi_decoder_layer.22} parent=43 // pred_check_branch
        %966 = sbr.rel (%p964) target = $region48
      $region47: #{multi_decoder_layer.22} parent=43 // pred_region
        %p967 = scmp.lt.s32.totalorder %s16, 1
        %s968 = scalar_select %p967, %s16, 1
        %s969 = smul.addr %s968, 4
        %s970 = smul.addr %s969, 8
        %s971 = scalar_lea.vmem %s4, %s970
      $region48: #{multi_decoder_layer.22} parent=43 // pred_fallthru
        _
    $region44: #{multi_decoder_layer.22} parent=5 // pred_fallthru
      _
  $region6: #{multi_decoder_layer.22} parent=0 // loop_footer
    %s14 = sadd.s32 1, %s10
  $region7: #{multi_decoder_layer.22} parent=0 // loop_footer_branch
    %9 = sbr.rel target = $region3
  $region8: #{multi_decoder_layer.22} parent=0 // loop_exit
    _

// kernel: multi_decoder_layer.29
$region0: #{multi_decoder_layer.29}
  #allocation0 [shape = 'u32[]', space=smem, size = 0x4, offset = 0x4, fixed_abs, tag = 'smem constant byte address 0x4 - core index']
  #allocation1 [shape = 'u32[144,128]{1,0:T(1,128)}', space=vmem, size = 0x12000, scoped, tag = 'internal scratch']
  %s0 = inlined_call_operand.vmem [shape: f32[16,64], index: 0, kind: input, shape index: {}]
  %s1 = inlined_call_operand.vmem [shape: f32[64,128], index: 1, kind: input, shape index: {}]
  %s2 = inlined_call_operand.vmem [shape: f32[1,128], index: 2, kind: input, shape index: {}]
  %s3 = inlined_call_operand.vmem [shape: f32[16,128], index: 3, kind: output, shape index: {}]
  %s4 = sld [smem:[#allocation0]]
  $region22: #{multi_decoder_layer.29} parent=0
    _
  %s6 = ssub.s32 1, %s4
  %s7 = scalar_select 0, %s6, %s4
  // Predicated region
  $region2: #{multi_decoder_layer.29} parent=0 // pred_check
    _
  $region3: #{multi_decoder_layer.29} parent=0 // pred_check_branch
    %9 = sbr.rel (0) target = $region5
  $region4: #{multi_decoder_layer.29} parent=0 // pred_region
    _
  $region5: #{multi_decoder_layer.29} parent=0 // pred_fallthru
    _
  // Predicated region
  $region6: #{multi_decoder_layer.29} parent=0 // pred_check
    _
  $region7: #{multi_decoder_layer.29} parent=0 // pred_check_branch
    %11 = sbr.rel (0) target = $region9
  $region8: #{multi_decoder_layer.29} parent=0 // pred_region
    _
  $region9: #{multi_decoder_layer.29} parent=0 // pred_fallthru
    _
  // Predicated region
  $region10: #{multi_decoder_layer.29} parent=0 // pred_check
    _
  $region11: #{multi_decoder_layer.29} parent=0 // pred_check_branch
    %13 = sbr.rel (0) target = $region13
  $region12: #{multi_decoder_layer.29} parent=0 // pred_region
    _
  $region13: #{multi_decoder_layer.29} parent=0 // pred_fallthru
    _
  %v14 = vld [vmem:[%s0] sm:$0xff]
  %v15 = vld [vmem:[%s0 + $0x8] sm:$0xff]
  %v16 = vld [vmem:[%s1] sm:$0xff]
  %v17 = vld [vmem:[%s1 + $0x8] sm:$0xff]
  %v18 = vld [vmem:[%s1 + $0x10] sm:$0xff]
  %v19 = vld [vmem:[%s1 + $0x18] sm:$0xff]
  %v20 = vld [vmem:[%s1 + $0x20] sm:$0xff]
  %v21 = vld [vmem:[%s1 + $0x28] sm:$0xff]
  %v22 = vld [vmem:[%s1 + $0x30] sm:$0xff]
  %v23 = vld [vmem:[%s1 + $0x38] sm:$0xff]
  %v24 = vld [vmem:[%s2] sm:$0x1]
  %v26 = vlaneseq
  %v27 = vshrl.u32 %v26, 7
  %v28 = vsub.s32 0, %v27
  %v29 = vrot.slane %v24, %v28
  %vm31 = vcmask 523264
  %v33 = vsel %vm31, %v14, 0
  %v36 = vsel %vm31, %v15, 0
  %38 = vmatprep.subr.mxu0 0.0
  %39 = vmatpush1.msra.mxu0 %v16
  %40 = vmatprep.subr.mxu0 0.0
  %41 = vmatpush1.msra.mxu0 %v17
  %42 = vmatprep.subr.mxu0 0.0
  %43 = vmatpush1.msra.mxu0 %v18
  %44 = vmatprep.subr.mxu0 0.0
  %45 = vmatpush1.msra.mxu0 %v19
  %46 = vmatprep.subr.mxu0 0.0
  %47 = vmatpush1.msra.mxu0 %v20
  %48 = vmatprep.subr.mxu0 0.0
  %49 = vmatpush1.msra.mxu0 %v21
  %50 = vmatprep.subr.mxu0 0.0
  %51 = vmatpush1.msra.mxu0 %v22
  %52 = vmatprep.subr.mxu0 0.0
  %53 = vmatpush1.msra.mxu0 %v23
  %54 = vmatprep.subr.mxu0 0.0
  %55 = vmatpush1.msra.mxu0 0.0
  %56 = vmatprep.subr.mxu0 0.0
  %57 = vmatpush1.msra.mxu0 0.0
  %58 = vmatprep.subr.mxu0 0.0
  %59 = vmatpush1.msra.mxu0 0.0
  %60 = vmatprep.subr.mxu0 0.0
  %61 = vmatpush1.msra.mxu0 0.0
  %62 = vmatprep.subr.mxu0 0.0
  %63 = vmatpush1.msra.mxu0 0.0
  %64 = vmatprep.subr.mxu0 0.0
  %65 = vmatpush1.msra.mxu0 0.0
  %66 = vmatprep.subr.mxu0 0.0
  %67 = vmatpush1.msra.mxu0 0.0
  %68 = vmatprep.subr.mxu0 0.0
  %69 = vmatpush1.msra.mxu0 0.0
  %70 = vmatprep.subr.mxu0 0.0
  %71 = vmatpush1.msra.mxu0 0.0
  %72 = vmatprep.subr.mxu0 0.0
  %73 = vmatpush1.msra.mxu0 0.0
  %74 = vmatprep.subr.mxu0 0.0
  %75 = vmatpush1.msra.mxu0 0.0
  %76 = vmatprep.subr.mxu0 0.0
  %77 = vmatpush1.msra.mxu0 0.0
  %78 = vmatprep.subr.mxu0 0.0
  %79 = vmatpush1.msra.mxu0 0.0
  %80 = vmatprep.subr.mxu0 0.0
  %81 = vmatpush1.msra.mxu0 0.0
  %82 = vmatprep.subr.mxu0 0.0
  %83 = vmatpush1.msra.mxu0 0.0
  %84 = vmatprep.subr.mxu0 0.0
  %85 = vmatpush1.msra.mxu0 0.0
  %86 = vmatprep.subr.mxu0 0.0
  %87 = vmatpush1.msra.mxu0 0.0
  %88 = vmatprep.subr.mxu0 0.0
  %89 = vmatpush1.msra.mxu0 0.0
  %90 = vmatprep.subr.mxu0 0.0
  %91 = vmatpush1.msra.mxu0 0.0
  %92 = vmatprep.subr.mxu0 0.0
  %93 = vmatpush1.msra.mxu0 0.0
  %94 = vmatprep.subr.mxu0 0.0
  %95 = vmatpush1.msra.mxu0 0.0
  %96 = vmatprep.subr.mxu0 0.0
  %97 = vmatpush1.msra.mxu0 0.0
  %98 = vmatprep.subr.mxu0 0.0
  %99 = vmatpush1.msra.mxu0 0.0
  %100 = vmatprep.subr.mxu0 0.0
  %101 = vmatpush1.msra.mxu0 0.0
  %102 = vmatprep.mubr.f32.mxu0 0.0
  %103 = vmatmul.mubr.f32.gmra.mrb[0].mxu0 %v33
  %v104 = vpop.f32.mrb[0].mxu0
  %v105 = vadd.f32 %v29, %v104
  %v106 = vpop.f32.mrb[0].mxu0
  %107 = vmatprep.mubr.f32.mxu0 0.0
  %108 = vmatmul.mubr.f32.gmra.mrb[0].mxu0 %v36
  %v109 = vpop.f32.mrb[0].mxu0
  %v110 = vadd.f32 %v29, %v109
  %v111 = vpop.f32.mrb[0].mxu0
  %112 = vdwg.mxu0
  %113 = vst [vmem:[%s3] sm:$0xff] %v105
  %114 = vst [vmem:[%s3 + $0x8] sm:$0xff] %v110
  // Predicated region
  $region14: #{multi_decoder_layer.29} parent=0 // pred_check
    _
  $region15: #{multi_decoder_layer.29} parent=0 // pred_check_branch
    %116 = sbr.rel (0) target = $region17
  $region16: #{multi_decoder_layer.29} parent=0 // pred_region
    _
  $region17: #{multi_decoder_layer.29} parent=0 // pred_fallthru
    _
  // Predicated region
  $region18: #{multi_decoder_layer.29} parent=0 // pred_check
    _
  $region19: #{multi_decoder_layer.29} parent=0 // pred_check_branch
    %118 = sbr.rel (0) target = $region21
  $region20: #{multi_decoder_layer.29} parent=0 // pred_region
    _
  $region21: #{multi_decoder_layer.29} parent=0 // pred_fallthru
    _

// kernel: multi_decoder_layer.26
$region0: #{multi_decoder_layer.26}
  #allocation0 [shape = 'u32[]', space=smem, size = 0x4, offset = 0x4, fixed_abs, tag = 'smem constant byte address 0x4 - core index']
  #allocation1 [shape = 'u32[144,128]{1,0:T(1,128)}', space=vmem, size = 0x12000, scoped, tag = 'internal scratch']
  %s0 = inlined_call_operand.vmem [shape: f32[2,4,8,16], index: 0, kind: input, shape index: {}]
  %s1 = inlined_call_operand.vmem [shape: f32[2,4,10,16], index: 1, kind: input, shape index: {}]
  %s2 = inlined_call_operand.vmem [shape: f32[2,4,10,16], index: 2, kind: input, shape index: {}]
  %s3 = inlined_call_operand.vmem [shape: f32[2,8,10], index: 3, kind: input, shape index: {}]
  %s4 = inlined_call_operand.vmem [shape: f32[2,4,8,16], index: 4, kind: output, shape index: {}]
  %s5 = sld [smem:[#allocation0]]
  $region49: #{multi_decoder_layer.26} parent=0
    _
  %s7 = ssub.s32 1, %s5
  %s8 = scalar_select 0, %s7, %s5
  loop: start=0, step=1, limit=4
  $region2: #{multi_decoder_layer.26} parent=0 // loop_pre_header
    _
  $region3: #{multi_decoder_layer.26} parent=0 // loop_header
    %s10 = sphi 0, %s14
    %p11 = scmp.ge.s32.totalorder %s10, 4
    %s20 = sphi 0, %s22
    %s23 = sphi 0, %s20
    %s24 = sphi 0, %s23
    %s40 = sphi 0, %s24
    %s46 = sphi 0, %s48
    %s49 = sphi 0, %s46
    %s50 = sphi 0, %s49
    %s66 = sphi 0, %s50
    %s72 = sphi 0, %s74
    %s75 = sphi 0, %s72
    %s76 = sphi 0, %s75
    %s92 = sphi 0, %s76
    %s98 = sphi 0, %s100
    %s101 = sphi 0, %s98
    %s102 = sphi 0, %s101
    %s118 = sphi 0, %s102
    %s124 = sphi 0, %s126
    %s127 = sphi 0, %s124
    %s128 = sphi 0, %s127
    %s144 = sphi 0, %s128
  $region4: #{multi_decoder_layer.26} parent=0 // loop_header_branch
    %13 = sbr.rel (%p11) target = $region8
  $region5: #{multi_decoder_layer.26} parent=0 // loop_body
    %s15 = ssub.s32 %s10, 1
    %s16 = ssub.s32 %s10, 2
    %s17 = sadd.s32 %s10, 1
    %s18 = ssub.s32 %s10, %s17
    %p19 = scmp.eq.s32.totalorder %s18, 0
    %s21 = sadd.s32 %s20, 1
    %s22 = scalar_select %p19, %s20, %s21
    %p25 = pneg %p19
    %p26 = scmp.eq.s32.totalorder %s10, 1
    %p27 = por %p25, %p26
    %p28 = scmp.ne.s32.totalorder %s20, %s23
    %p29 = scmp.eq.s32.totalorder %s10, 0
    %p30 = por %p28, %p29
    %p31 = scmp.ne.s32.totalorder %s20, %s23
    %p32 = scmp.eq.s32.totalorder %s15, 1
    %p33 = por %p31, %p32
    %p34 = scmp.ne.s32.totalorder %s23, %s24
    %p35 = scmp.eq.s32.totalorder %s15, 0
    %p36 = por %p34, %p35
    %p37 = scmp.ne.s32.totalorder %s23, %s24
    %p38 = scmp.eq.s32.totalorder %s16, 1
    %p39 = por %p37, %p38
    %p41 = scmp.ne.s32.totalorder %s24, %s40
    %p42 = scmp.eq.s32.totalorder %s16, 0
    %p43 = por %p41, %p42
    %s44 = ssub.s32 %s10, %s17
    %p45 = scmp.eq.s32.totalorder %s44, 0
    %s47 = sadd.s32 %s46, 1
    %s48 = scalar_select %p45, %s46, %s47
    %p51 = pneg %p45
    %p52 = scmp.eq.s32.totalorder %s10, 1
    %p53 = por %p51, %p52
    %p54 = scmp.ne.s32.totalorder %s46, %s49
    %p55 = scmp.eq.s32.totalorder %s10, 0
    %p56 = por %p54, %p55
    %p57 = scmp.ne.s32.totalorder %s46, %s49
    %p58 = scmp.eq.s32.totalorder %s15, 1
    %p59 = por %p57, %p58
    %p60 = scmp.ne.s32.totalorder %s49, %s50
    %p61 = scmp.eq.s32.totalorder %s15, 0
    %p62 = por %p60, %p61
    %p63 = scmp.ne.s32.totalorder %s49, %s50
    %p64 = scmp.eq.s32.totalorder %s16, 1
    %p65 = por %p63, %p64
    %p67 = scmp.ne.s32.totalorder %s50, %s66
    %p68 = scmp.eq.s32.totalorder %s16, 0
    %p69 = por %p67, %p68
    %s70 = ssub.s32 %s10, %s17
    %p71 = scmp.eq.s32.totalorder %s70, 0
    %s73 = sadd.s32 %s72, 1
    %s74 = scalar_select %p71, %s72, %s73
    %p77 = pneg %p71
    %p78 = scmp.eq.s32.totalorder %s10, 1
    %p79 = por %p77, %p78
    %p80 = scmp.ne.s32.totalorder %s72, %s75
    %p81 = scmp.eq.s32.totalorder %s10, 0
    %p82 = por %p80, %p81
    %p83 = scmp.ne.s32.totalorder %s72, %s75
    %p84 = scmp.eq.s32.totalorder %s15, 1
    %p85 = por %p83, %p84
    %p86 = scmp.ne.s32.totalorder %s75, %s76
    %p87 = scmp.eq.s32.totalorder %s15, 0
    %p88 = por %p86, %p87
    %p89 = scmp.ne.s32.totalorder %s75, %s76
    %p90 = scmp.eq.s32.totalorder %s16, 1
    %p91 = por %p89, %p90
    %p93 = scmp.ne.s32.totalorder %s76, %s92
    %p94 = scmp.eq.s32.totalorder %s16, 0
    %p95 = por %p93, %p94
    %s96 = ssub.s32 %s10, %s17
    %p97 = scmp.eq.s32.totalorder %s96, 0
    %s99 = sadd.s32 %s98, 1
    %s100 = scalar_select %p97, %s98, %s99
    %p103 = pneg %p97
    %p104 = scmp.eq.s32.totalorder %s10, 1
    %p105 = por %p103, %p104
    %p106 = scmp.ne.s32.totalorder %s98, %s101
    %p107 = scmp.eq.s32.totalorder %s10, 0
    %p108 = por %p106, %p107
    %p109 = scmp.ne.s32.totalorder %s98, %s101
    %p110 = scmp.eq.s32.totalorder %s15, 1
    %p111 = por %p109, %p110
    %p112 = scmp.ne.s32.totalorder %s101, %s102
    %p113 = scmp.eq.s32.totalorder %s15, 0
    %p114 = por %p112, %p113
    %p115 = scmp.ne.s32.totalorder %s101, %s102
    %p116 = scmp.eq.s32.totalorder %s16, 1
    %p117 = por %p115, %p116
    %p119 = scmp.ne.s32.totalorder %s102, %s118
    %p120 = scmp.eq.s32.totalorder %s16, 0
    %p121 = por %p119, %p120
    %s122 = ssub.s32 %s10, %s17
    %p123 = scmp.eq.s32.totalorder %s122, 0
    %s125 = sadd.s32 %s124, 1
    %s126 = scalar_select %p123, %s124, %s125
    %p129 = pneg %p123
    %p130 = scmp.eq.s32.totalorder %s10, 1
    %p131 = por %p129, %p130
    %p132 = scmp.ne.s32.totalorder %s124, %s127
    %p133 = scmp.eq.s32.totalorder %s10, 0
    %p134 = por %p132, %p133
    %p135 = scmp.ne.s32.totalorder %s124, %s127
    %p136 = scmp.eq.s32.totalorder %s15, 1
    %p137 = por %p135, %p136
    %p138 = scmp.ne.s32.totalorder %s127, %s128
    %p139 = scmp.eq.s32.totalorder %s15, 0
    %p140 = por %p138, %p139
    %p141 = scmp.ne.s32.totalorder %s127, %s128
    %p142 = scmp.eq.s32.totalorder %s16, 1
    %p143 = por %p141, %p142
    %p145 = scmp.ne.s32.totalorder %s128, %s144
    %p146 = scmp.eq.s32.totalorder %s16, 0
    %p147 = por %p145, %p146
    %p148 = scmp.le.s32.totalorder 1, %s10
    %p149 = scmp.lt.s32.totalorder %s10, 3
    %p150 = pnand %p148, %p149
    %p151 = pneg %p150
    // Predicated region
    $region9: #{multi_decoder_layer.26} parent=5 // pred_check
      _
    $region10: #{multi_decoder_layer.26} parent=5 // pred_check_branch
      %153 = sbr.rel (%p150) target = $region12
    $region11: #{multi_decoder_layer.26} parent=5 // pred_region
      %s154 = ssub.s32 %s10, 1
    $region12: #{multi_decoder_layer.26} parent=5 // pred_fallthru
      _
    %p155 = scmp.lt.s32.totalorder %s10, 2
    // Predicated region
    $region13: #{multi_decoder_layer.26} parent=5 // pred_check
      %p156 = pneg %p155
    $region14: #{multi_decoder_layer.26} parent=5 // pred_check_branch
      %158 = sbr.rel (%p156) target = $region16
    $region15: #{multi_decoder_layer.26} parent=5 // pred_region
      // Predicated region
      $region17: #{multi_decoder_layer.26} parent=15 // pred_check
        %p159 = pneg %p30
      $region18: #{multi_decoder_layer.26} parent=15 // pred_check_branch
        %161 = sbr.rel (%p159) target = $region20
      $region19: #{multi_decoder_layer.26} parent=15 // pred_region
        %p162 = scmp.lt.s32.totalorder %s10, 1
        %s163 = scalar_select %p162, %s10, 1
        %s164 = smul.addr %s163, 4
        %s165 = smul.addr %s164, 8
        %s166 = scalar_lea.vmem %s0, %s165
      $region20: #{multi_decoder_layer.26} parent=15 // pred_fallthru
        _
      // Predicated region
      $region21: #{multi_decoder_layer.26} parent=15 // pred_check
        %p167 = pneg %p56
      $region22: #{multi_decoder_layer.26} parent=15 // pred_check_branch
        %169 = sbr.rel (%p167) target = $region24
      $region23: #{multi_decoder_layer.26} parent=15 // pred_region
        %p170 = scmp.lt.s32.totalorder %s10, 1
        %s171 = scalar_select %p170, %s10, 1
        %s172 = smul.addr %s171, 8
        %s173 = smul.addr %s172, 8
        %s174 = scalar_lea.vmem %s1, %s173
      $region24: #{multi_decoder_layer.26} parent=15 // pred_fallthru
        _
      // Predicated region
      $region25: #{multi_decoder_layer.26} parent=15 // pred_check
        %p175 = pneg %p82
      $region26: #{multi_decoder_layer.26} parent=15 // pred_check_branch
        %177 = sbr.rel (%p175) target = $region28
      $region27: #{multi_decoder_layer.26} parent=15 // pred_region
        %p178 = scmp.lt.s32.totalorder %s10, 1
        %s179 = scalar_select %p178, %s10, 1
        %s180 = smul.addr %s179, 8
        %s181 = smul.addr %s180, 8
        %s182 = scalar_lea.vmem %s2, %s181
      $region28: #{multi_decoder_layer.26} parent=15 // pred_fallthru
        _
      // Predicated region
      $region29: #{multi_decoder_layer.26} parent=15 // pred_check
        %p183 = pneg %p108
      $region30: #{multi_decoder_layer.26} parent=15 // pred_check_branch
        %185 = sbr.rel (%p183) target = $region32
      $region31: #{multi_decoder_layer.26} parent=15 // pred_region
        %p186 = scmp.lt.s32.totalorder %s10, 1
        %s187 = scalar_select %p186, %s10, 1
        %s188 = smul.addr %s187, 8
        %s189 = scalar_lea.vmem %s3, %s188
      $region32: #{multi_decoder_layer.26} parent=15 // pred_fallthru
        _
    $region16: #{multi_decoder_layer.26} parent=5 // pred_fallthru
      _
    %p190 = scmp.le.s32.totalorder 1, %s10
    %p191 = scmp.lt.s32.totalorder %s10, 3
    %p192 = pnand %p190, %p191
    %p193 = pneg %p192
    // Predicated region
    $region33: #{multi_decoder_layer.26} parent=5 // pred_check
      _
    $region34: #{multi_decoder_layer.26} parent=5 // pred_check_branch
      %195 = sbr.rel (%p192) target = $region36
    $region35: #{multi_decoder_layer.26} parent=5 // pred_region
      %s196 = ssub.s32 %s10, 1
      %p197 = scmp.lt.s32.totalorder %s15, 1
      %s198 = scalar_select %p197, %s15, 1
      %s199 = smul.addr %s198, 4
      %s200 = smul.addr %s199, 8
      %s201 = scalar_lea.vmem %s0, %s200
      %p202 = pneg %p36
      %p203 = pneg %p33
      %p204 = scmp.lt.s32.totalorder %s15, 1
      %s205 = scalar_select %p204, %s15, 1
      %s206 = smul.addr %s205, 8
      %s207 = smul.addr %s206, 8
      %s208 = scalar_lea.vmem %s1, %s207
      %p209 = pneg %p62
      %p210 = pneg %p59
      %p211 = scmp.lt.s32.totalorder %s15, 1
      %s212 = scalar_select %p211, %s15, 1
      %s213 = smul.addr %s212, 8
      %s214 = smul.addr %s213, 8
      %s215 = scalar_lea.vmem %s2, %s214
      %p216 = pneg %p88
      %p217 = pneg %p85
      %p218 = scmp.lt.s32.totalorder %s15, 1
      %s219 = scalar_select %p218, %s15, 1
      %s220 = smul.addr %s219, 8
      %s221 = scalar_lea.vmem %s3, %s220
      %p222 = pneg %p114
      %p223 = pneg %p111
      %p224 = pneg %p140
      %p225 = pneg %p137
      %p226 = scmp.lt.s32.totalorder %s15, 1
      %s227 = scalar_select %p226, %s15, 1
      %s228 = smul.addr %s227, 4
      %s229 = smul.addr %s228, 8
      %s230 = scalar_lea.vmem %s4, %s229
      %p231 = scmp.lt.s32.totalorder %s15, 1
      %s232 = scalar_select %p231, %s15, 1
      %s233 = smul.addr %s232, 4
      %s234 = smul.addr %s233, 8
      %s235 = scalar_lea.vmem %s0, %s234
      %p236 = scmp.lt.s32.totalorder %s15, 1
      %s237 = scalar_select %p236, %s15, 1
      %s238 = smul.addr %s237, 8
      %s239 = smul.addr %s238, 8
      %s240 = scalar_lea.vmem %s1, %s239
      %p241 = scmp.lt.s32.totalorder %s15, 1
      %s242 = scalar_select %p241, %s15, 1
      %s243 = smul.addr %s242, 8
      %s244 = smul.addr %s243, 8
      %s245 = scalar_lea.vmem %s2, %s244
      %p246 = scmp.lt.s32.totalorder %s15, 1
      %s247 = scalar_select %p246, %s15, 1
      %s248 = smul.addr %s247, 8
      %s249 = scalar_lea.vmem %s3, %s248
      %p250 = scmp.lt.s32.totalorder %s15, 1
      %s251 = scalar_select %p250, %s15, 1
      %s252 = smul.addr %s251, 4
      %s253 = smul.addr %s252, 8
      %s254 = scalar_lea.vmem %s4, %s253
      %v255 = vld [vmem:[%s235] sm:$0xff]
      %v256 = vld [vmem:[%s235 + $0x8] sm:$0xff]
      %v257 = vld [vmem:[%s235 + $0x10] sm:$0xff]
      %v258 = vld [vmem:[%s235 + $0x18] sm:$0xff]
      %v259 = vmul.f32 %v255, 0.25
      %v260 = vmul.f32 %v256, 0.25
      %v261 = vmul.f32 %v257, 0.25
      %v262 = vmul.f32 %v258, 0.25
      %v263 = vld [vmem:[%s240] sm:$0xff]
      %v264 = vld [vmem:[%s240 + $0x8] sm:$0x3]
      %v265 = vld [vmem:[%s240 + $0x10] sm:$0xff]
      %v266 = vld [vmem:[%s240 + $0x18] sm:$0x3]
      %v267 = vld [vmem:[%s240 + $0x20] sm:$0xff]
      %v268 = vld [vmem:[%s240 + $0x28] sm:$0x3]
      %v269 = vld [vmem:[%s240 + $0x30] sm:$0xff]
      %v270 = vld [vmem:[%s240 + $0x38] sm:$0x3]
      %v271 = vld [vmem:[%s249] sm:$0xff]
      %vm272 = vcmask 130048
      %v274 = vsel %vm272, %v259, 0
      %v277 = vsel %vm272, %v263, 0
      %v280 = vsel %vm272, %v264, 0
      %282 = vmatprep.subr.mxu0 0.0
      %283 = vmatpush1.xpose.msra.mxu0 %v277
      %284 = vmatprep.subr.mxu0 0.0
      %285 = vmatpush1.xpose.msra.mxu0 %v280
      %286 = vmatprep.subr.mxu0 0.0
      %287 = vmatpush1.xpose.msra.mxu0 0.0
      %288 = vmatprep.subr.mxu0 0.0
      %289 = vmatpush1.xpose.msra.mxu0 0.0
      %290 = vmatprep.subr.mxu0 0.0
      %291 = vmatpush1.xpose.msra.mxu0 0.0
      %292 = vmatprep.subr.mxu0 0.0
      %293 = vmatpush1.xpose.msra.mxu0 0.0
      %294 = vmatprep.subr.mxu0 0.0
      %295 = vmatpush1.xpose.msra.mxu0 0.0
      %296 = vmatprep.subr.mxu0 0.0
      %297 = vmatpush1.xpose.msra.mxu0 0.0
      %298 = vmatprep.subr.mxu0 0.0
      %299 = vmatpush1.xpose.msra.mxu0 0.0
      %300 = vmatprep.subr.mxu0 0.0
      %301 = vmatpush1.xpose.msra.mxu0 0.0
      %302 = vmatprep.subr.mxu0 0.0
      %303 = vmatpush1.xpose.msra.mxu0 0.0
      %304 = vmatprep.subr.mxu0 0.0
      %305 = vmatpush1.xpose.msra.mxu0 0.0
      %306 = vmatprep.subr.mxu0 0.0
      %307 = vmatpush1.xpose.msra.mxu0 0.0
      %308 = vmatprep.subr.mxu0 0.0
      %309 = vmatpush1.xpose.msra.mxu0 0.0
      %310 = vmatprep.subr.mxu0 0.0
      %311 = vmatpush1.xpose.msra.mxu0 0.0
      %312 = vmatprep.subr.mxu0 0.0
      %313 = vmatpush1.xpose.msra.mxu0 0.0
      %314 = vmatprep.subr.mxu0 0.0
      %315 = vmatpush1.xpose.msra.mxu0 0.0
      %316 = vmatprep.subr.mxu0 0.0
      %317 = vmatpush1.xpose.msra.mxu0 0.0
      %318 = vmatprep.subr.mxu0 0.0
      %319 = vmatpush1.xpose.msra.mxu0 0.0
      %320 = vmatprep.subr.mxu0 0.0
      %321 = vmatpush1.xpose.msra.mxu0 0.0
      %322 = vmatprep.subr.mxu0 0.0
      %323 = vmatpush1.xpose.msra.mxu0 0.0
      %324 = vmatprep.subr.mxu0 0.0
      %325 = vmatpush1.xpose.msra.mxu0 0.0
      %326 = vmatprep.subr.mxu0 0.0
      %327 = vmatpush1.xpose.msra.mxu0 0.0
      %328 = vmatprep.subr.mxu0 0.0
      %329 = vmatpush1.xpose.msra.mxu0 0.0
      %330 = vmatprep.subr.mxu0 0.0
      %331 = vmatpush1.xpose.msra.mxu0 0.0
      %332 = vmatprep.subr.mxu0 0.0
      %333 = vmatpush1.xpose.msra.mxu0 0.0
      %334 = vmatprep.subr.mxu0 0.0
      %335 = vmatpush1.xpose.msra.mxu0 0.0
      %336 = vmatprep.subr.mxu0 0.0
      %337 = vmatpush1.xpose.msra.mxu0 0.0
      %338 = vmatprep.subr.mxu0 0.0
      %339 = vmatpush1.xpose.msra.mxu0 0.0
      %340 = vmatprep.subr.mxu0 0.0
      %341 = vmatpush1.xpose.msra.mxu0 0.0
      %342 = vmatprep.subr.mxu0 0.0
      %343 = vmatpush1.xpose.msra.mxu0 0.0
      %344 = vmatprep.subr.mxu0 0.0
      %345 = vmatpush1.xpose.msra.mxu0 0.0
      %346 = vmatprep.mubr.f32.mxu0 0.0
      %347 = vmatmul.mubr.f32.gmra.mrb[0].mxu0 %v274
      %v348 = vpop.f32.mrb[0].mxu0
      %v349 = vadd.f32 %v271, %v348
      %v350 = vpop.f32.mrb[0].mxu0
      %351 = vdwg.mxu0
      %v353 = vsel %vm272, %v260, 0
      %v356 = vsel %vm272, %v265, 0
      %v359 = vsel %vm272, %v266, 0
      %361 = vmatprep.subr.mxu0 0.0
      %362 = vmatpush1.xpose.msra.mxu0 %v356
      %363 = vmatprep.subr.mxu0 0.0
      %364 = vmatpush1.xpose.msra.mxu0 %v359
      %365 = vmatprep.subr.mxu0 0.0
      %366 = vmatpush1.xpose.msra.mxu0 0.0
      %367 = vmatprep.subr.mxu0 0.0
      %368 = vmatpush1.xpose.msra.mxu0 0.0
      %369 = vmatprep.subr.mxu0 0.0
      %370 = vmatpush1.xpose.msra.mxu0 0.0
      %371 = vmatprep.subr.mxu0 0.0
      %372 = vmatpush1.xpose.msra.mxu0 0.0
      %373 = vmatprep.subr.mxu0 0.0
      %374 = vmatpush1.xpose.msra.mxu0 0.0
      %375 = vmatprep.subr.mxu0 0.0
      %376 = vmatpush1.xpose.msra.mxu0 0.0
      %377 = vmatprep.subr.mxu0 0.0
      %378 = vmatpush1.xpose.msra.mxu0 0.0
      %379 = vmatprep.subr.mxu0 0.0
      %380 = vmatpush1.xpose.msra.mxu0 0.0
      %381 = vmatprep.subr.mxu0 0.0
      %382 = vmatpush1.xpose.msra.mxu0 0.0
      %383 = vmatprep.subr.mxu0 0.0
      %384 = vmatpush1.xpose.msra.mxu0 0.0
      %385 = vmatprep.subr.mxu0 0.0
      %386 = vmatpush1.xpose.msra.mxu0 0.0
      %387 = vmatprep.subr.mxu0 0.0
      %388 = vmatpush1.xpose.msra.mxu0 0.0
      %389 = vmatprep.subr.mxu0 0.0
      %390 = vmatpush1.xpose.msra.mxu0 0.0
      %391 = vmatprep.subr.mxu0 0.0
      %392 = vmatpush1.xpose.msra.mxu0 0.0
      %393 = vmatprep.subr.mxu0 0.0
      %394 = vmatpush1.xpose.msra.mxu0 0.0
      %395 = vmatprep.subr.mxu0 0.0
      %396 = vmatpush1.xpose.msra.mxu0 0.0
      %397 = vmatprep.subr.mxu0 0.0
      %398 = vmatpush1.xpose.msra.mxu0 0.0
      %399 = vmatprep.subr.mxu0 0.0
      %400 = vmatpush1.xpose.msra.mxu0 0.0
      %401 = vmatprep.subr.mxu0 0.0
      %402 = vmatpush1.xpose.msra.mxu0 0.0
      %403 = vmatprep.subr.mxu0 0.0
      %404 = vmatpush1.xpose.msra.mxu0 0.0
      %405 = vmatprep.subr.mxu0 0.0
      %406 = vmatpush1.xpose.msra.mxu0 0.0
      %407 = vmatprep.subr.mxu0 0.0
      %408 = vmatpush1.xpose.msra.mxu0 0.0
      %409 = vmatprep.subr.mxu0 0.0
      %410 = vmatpush1.xpose.msra.mxu0 0.0
      %411 = vmatprep.subr.mxu0 0.0
      %412 = vmatpush1.xpose.msra.mxu0 0.0
      %413 = vmatprep.subr.mxu0 0.0
      %414 = vmatpush1.xpose.msra.mxu0 0.0
      %415 = vmatprep.subr.mxu0 0.0
      %416 = vmatpush1.xpose.msra.mxu0 0.0
      %417 = vmatprep.subr.mxu0 0.0
      %418 = vmatpush1.xpose.msra.mxu0 0.0
      %419 = vmatprep.subr.mxu0 0.0
      %420 = vmatpush1.xpose.msra.mxu0 0.0
      %421 = vmatprep.subr.mxu0 0.0
      %422 = vmatpush1.xpose.msra.mxu0 0.0
      %423 = vmatprep.subr.mxu0 0.0
      %424 = vmatpush1.xpose.msra.mxu0 0.0
      %425 = vmatprep.mubr.f32.mxu0 0.0
      %426 = vmatmul.mubr.f32.gmra.mrb[0].mxu0 %v353
      %v427 = vpop.f32.mrb[0].mxu0
      %v428 = vadd.f32 %v271, %v427
      %v429 = vpop.f32.mrb[0].mxu0
      %430 = vdwg.mxu0
      %v432 = vsel %vm272, %v261, 0
      %v435 = vsel %vm272, %v267, 0
      %v438 = vsel %vm272, %v268, 0
      %440 = vmatprep.subr.mxu0 0.0
      %441 = vmatpush1.xpose.msra.mxu0 %v435
      %442 = vmatprep.subr.mxu0 0.0
      %443 = vmatpush1.xpose.msra.mxu0 %v438
      %444 = vmatprep.subr.mxu0 0.0
      %445 = vmatpush1.xpose.msra.mxu0 0.0
      %446 = vmatprep.subr.mxu0 0.0
      %447 = vmatpush1.xpose.msra.mxu0 0.0
      %448 = vmatprep.subr.mxu0 0.0
      %449 = vmatpush1.xpose.msra.mxu0 0.0
      %450 = vmatprep.subr.mxu0 0.0
      %451 = vmatpush1.xpose.msra.mxu0 0.0
      %452 = vmatprep.subr.mxu0 0.0
      %453 = vmatpush1.xpose.msra.mxu0 0.0
      %454 = vmatprep.subr.mxu0 0.0
      %455 = vmatpush1.xpose.msra.mxu0 0.0
      %456 = vmatprep.subr.mxu0 0.0
      %457 = vmatpush1.xpose.msra.mxu0 0.0
      %458 = vmatprep.subr.mxu0 0.0
      %459 = vmatpush1.xpose.msra.mxu0 0.0
      %460 = vmatprep.subr.mxu0 0.0
      %461 = vmatpush1.xpose.msra.mxu0 0.0
      %462 = vmatprep.subr.mxu0 0.0
      %463 = vmatpush1.xpose.msra.mxu0 0.0
      %464 = vmatprep.subr.mxu0 0.0
      %465 = vmatpush1.xpose.msra.mxu0 0.0
      %466 = vmatprep.subr.mxu0 0.0
      %467 = vmatpush1.xpose.msra.mxu0 0.0
      %468 = vmatprep.subr.mxu0 0.0
      %469 = vmatpush1.xpose.msra.mxu0 0.0
      %470 = vmatprep.subr.mxu0 0.0
      %471 = vmatpush1.xpose.msra.mxu0 0.0
      %472 = vmatprep.subr.mxu0 0.0
      %473 = vmatpush1.xpose.msra.mxu0 0.0
      %474 = vmatprep.subr.mxu0 0.0
      %475 = vmatpush1.xpose.msra.mxu0 0.0
      %476 = vmatprep.subr.mxu0 0.0
      %477 = vmatpush1.xpose.msra.mxu0 0.0
      %478 = vmatprep.subr.mxu0 0.0
      %479 = vmatpush1.xpose.msra.mxu0 0.0
      %480 = vmatprep.subr.mxu0 0.0
      %481 = vmatpush1.xpose.msra.mxu0 0.0
      %482 = vmatprep.subr.mxu0 0.0
      %483 = vmatpush1.xpose.msra.mxu0 0.0
      %484 = vmatprep.subr.mxu0 0.0
      %485 = vmatpush1.xpose.msra.mxu0 0.0
      %486 = vmatprep.subr.mxu0 0.0
      %487 = vmatpush1.xpose.msra.mxu0 0.0
      %488 = vmatprep.subr.mxu0 0.0
      %489 = vmatpush1.xpose.msra.mxu0 0.0
      %490 = vmatprep.subr.mxu0 0.0
      %491 = vmatpush1.xpose.msra.mxu0 0.0
      %492 = vmatprep.subr.mxu0 0.0
      %493 = vmatpush1.xpose.msra.mxu0 0.0
      %494 = vmatprep.subr.mxu0 0.0
      %495 = vmatpush1.xpose.msra.mxu0 0.0
      %496 = vmatprep.subr.mxu0 0.0
      %497 = vmatpush1.xpose.msra.mxu0 0.0
      %498 = vmatprep.subr.mxu0 0.0
      %499 = vmatpush1.xpose.msra.mxu0 0.0
      %500 = vmatprep.subr.mxu0 0.0
      %501 = vmatpush1.xpose.msra.mxu0 0.0
      %502 = vmatprep.subr.mxu0 0.0
      %503 = vmatpush1.xpose.msra.mxu0 0.0
      %504 = vmatprep.mubr.f32.mxu0 0.0
      %505 = vmatmul.mubr.f32.gmra.mrb[0].mxu0 %v432
      %v506 = vpop.f32.mrb[0].mxu0
      %v507 = vadd.f32 %v271, %v506
      %v508 = vpop.f32.mrb[0].mxu0
      %509 = vdwg.mxu0
      %v511 = vsel %vm272, %v262, 0
      %v514 = vsel %vm272, %v269, 0
      %v517 = vsel %vm272, %v270, 0
      %519 = vmatprep.subr.mxu0 0.0
      %520 = vmatpush1.xpose.msra.mxu0 %v514
      %521 = vmatprep.subr.mxu0 0.0
      %522 = vmatpush1.xpose.msra.mxu0 %v517
      %523 = vmatprep.subr.mxu0 0.0
      %524 = vmatpush1.xpose.msra.mxu0 0.0
      %525 = vmatprep.subr.mxu0 0.0
      %526 = vmatpush1.xpose.msra.mxu0 0.0
      %527 = vmatprep.subr.mxu0 0.0
      %528 = vmatpush1.xpose.msra.mxu0 0.0
      %529 = vmatprep.subr.mxu0 0.0
      %530 = vmatpush1.xpose.msra.mxu0 0.0
      %531 = vmatprep.subr.mxu0 0.0
      %532 = vmatpush1.xpose.msra.mxu0 0.0
      %533 = vmatprep.subr.mxu0 0.0
      %534 = vmatpush1.xpose.msra.mxu0 0.0
      %535 = vmatprep.subr.mxu0 0.0
      %536 = vmatpush1.xpose.msra.mxu0 0.0
      %537 = vmatprep.subr.mxu0 0.0
      %538 = vmatpush1.xpose.msra.mxu0 0.0
      %539 = vmatprep.subr.mxu0 0.0
      %540 = vmatpush1.xpose.msra.mxu0 0.0
      %541 = vmatprep.subr.mxu0 0.0
      %542 = vmatpush1.xpose.msra.mxu0 0.0
      %543 = vmatprep.subr.mxu0 0.0
      %544 = vmatpush1.xpose.msra.mxu0 0.0
      %545 = vmatprep.subr.mxu0 0.0
      %546 = vmatpush1.xpose.msra.mxu0 0.0
      %547 = vmatprep.subr.mxu0 0.0
      %548 = vmatpush1.xpose.msra.mxu0 0.0
      %549 = vmatprep.subr.mxu0 0.0
      %550 = vmatpush1.xpose.msra.mxu0 0.0
      %551 = vmatprep.subr.mxu0 0.0
      %552 = vmatpush1.xpose.msra.mxu0 0.0
      %553 = vmatprep.subr.mxu0 0.0
      %554 = vmatpush1.xpose.msra.mxu0 0.0
      %555 = vmatprep.subr.mxu0 0.0
      %556 = vmatpush1.xpose.msra.mxu0 0.0
      %557 = vmatprep.subr.mxu0 0.0
      %558 = vmatpush1.xpose.msra.mxu0 0.0
      %559 = vmatprep.subr.mxu0 0.0
      %560 = vmatpush1.xpose.msra.mxu0 0.0
      %561 = vmatprep.subr.mxu0 0.0
      %562 = vmatpush1.xpose.msra.mxu0 0.0
      %563 = vmatprep.subr.mxu0 0.0
      %564 = vmatpush1.xpose.msra.mxu0 0.0
      %565 = vmatprep.subr.mxu0 0.0
      %566 = vmatpush1.xpose.msra.mxu0 0.0
      %567 = vmatprep.subr.mxu0 0.0
      %568 = vmatpush1.xpose.msra.mxu0 0.0
      %569 = vmatprep.subr.mxu0 0.0
      %570 = vmatpush1.xpose.msra.mxu0 0.0
      %571 = vmatprep.subr.mxu0 0.0
      %572 = vmatpush1.xpose.msra.mxu0 0.0
      %573 = vmatprep.subr.mxu0 0.0
      %574 = vmatpush1.xpose.msra.mxu0 0.0
      %575 = vmatprep.subr.mxu0 0.0
      %576 = vmatpush1.xpose.msra.mxu0 0.0
      %577 = vmatprep.subr.mxu0 0.0
      %578 = vmatpush1.xpose.msra.mxu0 0.0
      %579 = vmatprep.subr.mxu0 0.0
      %580 = vmatpush1.xpose.msra.mxu0 0.0
      %581 = vmatprep.subr.mxu0 0.0
      %582 = vmatpush1.xpose.msra.mxu0 0.0
      %583 = vmatprep.mubr.f32.mxu0 0.0
      %584 = vmatmul.mubr.f32.gmra.mrb[0].mxu0 %v511
      %v585 = vpop.f32.mrb[0].mxu0
      %v586 = vadd.f32 %v271, %v585
      %v587 = vpop.f32.mrb[0].mxu0
      %588 = vdwg.mxu0
      %vm589 = vcmask 80896
      %v590 = vsel %vm589, %v349, -inf
      %591 = vmax.xlane.f32.xlu0 %v590
      %v592 = vpop.xlane.xlu0 %591
      %v593 = vsel %vm589, %v428, -inf
      %594 = vmax.xlane.f32.xlu0 %v593
      %v595 = vpop.xlane.xlu0 %594
      %v596 = vsel %vm589, %v507, -inf
      %597 = vmax.xlane.f32.xlu0 %v596
      %v598 = vpop.xlane.xlu0 %597
      %v599 = vsel %vm589, %v586, -inf
      %600 = vmax.xlane.f32.xlu0 %v599
      %v601 = vpop.xlane.xlu0 %600
      %v602 = vsub.f32 %v349, %v592
      %v603 = vsub.f32 %v428, %v595
      %v604 = vsub.f32 %v507, %v598
      %v605 = vsub.f32 %v586, %v601
      %v606 = vmul.f32 %v602, 1.442695
      %v607 = vpow.pop %v606
      %v608 = vmul.f32 %v603, 1.442695
      %v609 = vpow.pop %v608
      %v610 = vmul.f32 %v604, 1.442695
      %v611 = vpow.pop %v610
      %v612 = vmul.f32 %v605, 1.442695
      %v613 = vpow.pop %v612
      %v614 = vsel %vm589, %v607, 0.0
      %615 = vadd.xlane.f32.xlu0 %v614
      %v616 = vpop.xlane.xlu0 %615
      %v617 = vsel %vm589, %v609, 0.0
      %618 = vadd.xlane.f32.xlu0 %v617
      %v619 = vpop.xlane.xlu0 %618
      %v620 = vsel %vm589, %v611, 0.0
      %621 = vadd.xlane.f32.xlu0 %v620
      %v622 = vpop.xlane.xlu0 %621
      %v623 = vsel %vm589, %v613, 0.0
      %624 = vadd.xlane.f32.xlu0 %v623
      %v625 = vpop.xlane.xlu0 %624
      %v626 = vrcp.pop %v616
      %v627 = vmul.f32 %v607, %v626
      %v628 = vrcp.pop %v619
      %v629 = vmul.f32 %v609, %v628
      %v630 = vrcp.pop %v622
      %v631 = vmul.f32 %v611, %v630
      %v632 = vrcp.pop %v625
      %v633 = vmul.f32 %v613, %v632
      %v634 = vld [vmem:[%s245] sm:$0xff]
      %v635 = vld [vmem:[%s245 + $0x8] sm:$0x3]
      %v636 = vld [vmem:[%s245 + $0x10] sm:$0xff]
      %v637 = vld [vmem:[%s245 + $0x18] sm:$0x3]
      %v638 = vld [vmem:[%s245 + $0x20] sm:$0xff]
      %v639 = vld [vmem:[%s245 + $0x28] sm:$0x3]
      %v640 = vld [vmem:[%s245 + $0x30] sm:$0xff]
      %v641 = vld [vmem:[%s245 + $0x38] sm:$0x3]
      %v643 = vsel %vm589, %v627, 0
      %vm645 = vcmask 1041408
      %v647 = vsel %vm645, %v635, 0
      %649 = vmatprep.subr.mxu0 0.0
      %650 = vmatpush1.msra.mxu0 %v634
      %651 = vmatprep.subr.mxu0 0.0
      %652 = vmatpush1.msra.mxu0 %v647
      %653 = vmatprep.subr.mxu0 0.0
      %654 = vmatpush1.msra.mxu0 0.0
      %655 = vmatprep.subr.mxu0 0.0
      %656 = vmatpush1.msra.mxu0 0.0
      %657 = vmatprep.subr.mxu0 0.0
      %658 = vmatpush1.msra.mxu0 0.0
      %659 = vmatprep.subr.mxu0 0.0
      %660 = vmatpush1.msra.mxu0 0.0
      %661 = vmatprep.subr.mxu0 0.0
      %662 = vmatpush1.msra.mxu0 0.0
      %663 = vmatprep.subr.mxu0 0.0
      %664 = vmatpush1.msra.mxu0 0.0
      %665 = vmatprep.subr.mxu0 0.0
      %666 = vmatpush1.msra.mxu0 0.0
      %667 = vmatprep.subr.mxu0 0.0
      %668 = vmatpush1.msra.mxu0 0.0
      %669 = vmatprep.subr.mxu0 0.0
      %670 = vmatpush1.msra.mxu0 0.0
      %671 = vmatprep.subr.mxu0 0.0
      %672 = vmatpush1.msra.mxu0 0.0
      %673 = vmatprep.subr.mxu0 0.0
      %674 = vmatpush1.msra.mxu0 0.0
      %675 = vmatprep.subr.mxu0 0.0
      %676 = vmatpush1.msra.mxu0 0.0
      %677 = vmatprep.subr.mxu0 0.0
      %678 = vmatpush1.msra.mxu0 0.0
      %679 = vmatprep.subr.mxu0 0.0
      %680 = vmatpush1.msra.mxu0 0.0
      %681 = vmatprep.subr.mxu0 0.0
      %682 = vmatpush1.msra.mxu0 0.0
      %683 = vmatprep.subr.mxu0 0.0
      %684 = vmatpush1.msra.mxu0 0.0
      %685 = vmatprep.subr.mxu0 0.0
      %686 = vmatpush1.msra.mxu0 0.0
      %687 = vmatprep.subr.mxu0 0.0
      %688 = vmatpush1.msra.mxu0 0.0
      %689 = vmatprep.subr.mxu0 0.0
      %690 = vmatpush1.msra.mxu0 0.0
      %691 = vmatprep.subr.mxu0 0.0
      %692 = vmatpush1.msra.mxu0 0.0
      %693 = vmatprep.subr.mxu0 0.0
      %694 = vmatpush1.msra.mxu0 0.0
      %695 = vmatprep.subr.mxu0 0.0
      %696 = vmatpush1.msra.mxu0 0.0
      %697 = vmatprep.subr.mxu0 0.0
      %698 = vmatpush1.msra.mxu0 0.0
      %699 = vmatprep.subr.mxu0 0.0
      %700 = vmatpush1.msra.mxu0 0.0
      %701 = vmatprep.subr.mxu0 0.0
      %702 = vmatpush1.msra.mxu0 0.0
      %703 = vmatprep.subr.mxu0 0.0
      %704 = vmatpush1.msra.mxu0 0.0
      %705 = vmatprep.subr.mxu0 0.0
      %706 = vmatpush1.msra.mxu0 0.0
      %707 = vmatprep.subr.mxu0 0.0
      %708 = vmatpush1.msra.mxu0 0.0
      %709 = vmatprep.subr.mxu0 0.0
      %710 = vmatpush1.msra.mxu0 0.0
      %711 = vmatprep.subr.mxu0 0.0
      %712 = vmatpush1.msra.mxu0 0.0
      %713 = vmatprep.mubr.f32.mxu0 0.0
      %714 = vmatmul.mubr.f32.gmra.mrb[0].mxu0 %v643
      %v715 = vpop.f32.mrb[0].mxu0
      %v716 = vadd.f32 0.0, %v715
      %v717 = vpop.f32.mrb[0].mxu0
      %718 = vdwg.mxu0
      %v720 = vsel %vm589, %v629, 0
      %v723 = vsel %vm645, %v637, 0
      %725 = vmatprep.subr.mxu0 0.0
      %726 = vmatpush1.msra.mxu0 %v636
      %727 = vmatprep.subr.mxu0 0.0
      %728 = vmatpush1.msra.mxu0 %v723
      %729 = vmatprep.subr.mxu0 0.0
      %730 = vmatpush1.msra.mxu0 0.0
      %731 = vmatprep.subr.mxu0 0.0
      %732 = vmatpush1.msra.mxu0 0.0
      %733 = vmatprep.subr.mxu0 0.0
      %734 = vmatpush1.msra.mxu0 0.0
      %735 = vmatprep.subr.mxu0 0.0
      %736 = vmatpush1.msra.mxu0 0.0
      %737 = vmatprep.subr.mxu0 0.0
      %738 = vmatpush1.msra.mxu0 0.0
      %739 = vmatprep.subr.mxu0 0.0
      %740 = vmatpush1.msra.mxu0 0.0
      %741 = vmatprep.subr.mxu0 0.0
      %742 = vmatpush1.msra.mxu0 0.0
      %743 = vmatprep.subr.mxu0 0.0
      %744 = vmatpush1.msra.mxu0 0.0
      %745 = vmatprep.subr.mxu0 0.0
      %746 = vmatpush1.msra.mxu0 0.0
      %747 = vmatprep.subr.mxu0 0.0
      %748 = vmatpush1.msra.mxu0 0.0
      %749 = vmatprep.subr.mxu0 0.0
      %750 = vmatpush1.msra.mxu0 0.0
      %751 = vmatprep.subr.mxu0 0.0
      %752 = vmatpush1.msra.mxu0 0.0
      %753 = vmatprep.subr.mxu0 0.0
      %754 = vmatpush1.msra.mxu0 0.0
      %755 = vmatprep.subr.mxu0 0.0
      %756 = vmatpush1.msra.mxu0 0.0
      %757 = vmatprep.subr.mxu0 0.0
      %758 = vmatpush1.msra.mxu0 0.0
      %759 = vmatprep.subr.mxu0 0.0
      %760 = vmatpush1.msra.mxu0 0.0
      %761 = vmatprep.subr.mxu0 0.0
      %762 = vmatpush1.msra.mxu0 0.0
      %763 = vmatprep.subr.mxu0 0.0
      %764 = vmatpush1.msra.mxu0 0.0
      %765 = vmatprep.subr.mxu0 0.0
      %766 = vmatpush1.msra.mxu0 0.0
      %767 = vmatprep.subr.mxu0 0.0
      %768 = vmatpush1.msra.mxu0 0.0
      %769 = vmatprep.subr.mxu0 0.0
      %770 = vmatpush1.msra.mxu0 0.0
      %771 = vmatprep.subr.mxu0 0.0
      %772 = vmatpush1.msra.mxu0 0.0
      %773 = vmatprep.subr.mxu0 0.0
      %774 = vmatpush1.msra.mxu0 0.0
      %775 = vmatprep.subr.mxu0 0.0
      %776 = vmatpush1.msra.mxu0 0.0
      %777 = vmatprep.subr.mxu0 0.0
      %778 = vmatpush1.msra.mxu0 0.0
      %779 = vmatprep.subr.mxu0 0.0
      %780 = vmatpush1.msra.mxu0 0.0
      %781 = vmatprep.subr.mxu0 0.0
      %782 = vmatpush1.msra.mxu0 0.0
      %783 = vmatprep.subr.mxu0 0.0
      %784 = vmatpush1.msra.mxu0 0.0
      %785 = vmatprep.subr.mxu0 0.0
      %786 = vmatpush1.msra.mxu0 0.0
      %787 = vmatprep.subr.mxu0 0.0
      %788 = vmatpush1.msra.mxu0 0.0
      %789 = vmatprep.mubr.f32.mxu0 0.0
      %790 = vmatmul.mubr.f32.gmra.mrb[0].mxu0 %v720
      %v791 = vpop.f32.mrb[0].mxu0
      %v792 = vadd.f32 0.0, %v791
      %v793 = vpop.f32.mrb[0].mxu0
      %794 = vdwg.mxu0
      %v796 = vsel %vm589, %v631, 0
      %v799 = vsel %vm645, %v639, 0
      %801 = vmatprep.subr.mxu0 0.0
      %802 = vmatpush1.msra.mxu0 %v638
      %803 = vmatprep.subr.mxu0 0.0
      %804 = vmatpush1.msra.mxu0 %v799
      %805 = vmatprep.subr.mxu0 0.0
      %806 = vmatpush1.msra.mxu0 0.0
      %807 = vmatprep.subr.mxu0 0.0
      %808 = vmatpush1.msra.mxu0 0.0
      %809 = vmatprep.subr.mxu0 0.0
      %810 = vmatpush1.msra.mxu0 0.0
      %811 = vmatprep.subr.mxu0 0.0
      %812 = vmatpush1.msra.mxu0 0.0
      %813 = vmatprep.subr.mxu0 0.0
      %814 = vmatpush1.msra.mxu0 0.0
      %815 = vmatprep.subr.mxu0 0.0
      %816 = vmatpush1.msra.mxu0 0.0
      %817 = vmatprep.subr.mxu0 0.0
      %818 = vmatpush1.msra.mxu0 0.0
      %819 = vmatprep.subr.mxu0 0.0
      %820 = vmatpush1.msra.mxu0 0.0
      %821 = vmatprep.subr.mxu0 0.0
      %822 = vmatpush1.msra.mxu0 0.0
      %823 = vmatprep.subr.mxu0 0.0
      %824 = vmatpush1.msra.mxu0 0.0
      %825 = vmatprep.subr.mxu0 0.0
      %826 = vmatpush1.msra.mxu0 0.0
      %827 = vmatprep.subr.mxu0 0.0
      %828 = vmatpush1.msra.mxu0 0.0
      %829 = vmatprep.subr.mxu0 0.0
      %830 = vmatpush1.msra.mxu0 0.0
      %831 = vmatprep.subr.mxu0 0.0
      %832 = vmatpush1.msra.mxu0 0.0
      %833 = vmatprep.subr.mxu0 0.0
      %834 = vmatpush1.msra.mxu0 0.0
      %835 = vmatprep.subr.mxu0 0.0
      %836 = vmatpush1.msra.mxu0 0.0
      %837 = vmatprep.subr.mxu0 0.0
      %838 = vmatpush1.msra.mxu0 0.0
      %839 = vmatprep.subr.mxu0 0.0
      %840 = vmatpush1.msra.mxu0 0.0
      %841 = vmatprep.subr.mxu0 0.0
      %842 = vmatpush1.msra.mxu0 0.0
      %843 = vmatprep.subr.mxu0 0.0
      %844 = vmatpush1.msra.mxu0 0.0
      %845 = vmatprep.subr.mxu0 0.0
      %846 = vmatpush1.msra.mxu0 0.0
      %847 = vmatprep.subr.mxu0 0.0
      %848 = vmatpush1.msra.mxu0 0.0
      %849 = vmatprep.subr.mxu0 0.0
      %850 = vmatpush1.msra.mxu0 0.0
      %851 = vmatprep.subr.mxu0 0.0
      %852 = vmatpush1.msra.mxu0 0.0
      %853 = vmatprep.subr.mxu0 0.0
      %854 = vmatpush1.msra.mxu0 0.0
      %855 = vmatprep.subr.mxu0 0.0
      %856 = vmatpush1.msra.mxu0 0.0
      %857 = vmatprep.subr.mxu0 0.0
      %858 = vmatpush1.msra.mxu0 0.0
      %859 = vmatprep.subr.mxu0 0.0
      %860 = vmatpush1.msra.mxu0 0.0
      %861 = vmatprep.subr.mxu0 0.0
      %862 = vmatpush1.msra.mxu0 0.0
      %863 = vmatprep.subr.mxu0 0.0
      %864 = vmatpush1.msra.mxu0 0.0
      %865 = vmatprep.mubr.f32.mxu0 0.0
      %866 = vmatmul.mubr.f32.gmra.mrb[0].mxu0 %v796
      %v867 = vpop.f32.mrb[0].mxu0
      %v868 = vadd.f32 0.0, %v867
      %v869 = vpop.f32.mrb[0].mxu0
      %870 = vdwg.mxu0
      %v872 = vsel %vm589, %v633, 0
      %v875 = vsel %vm645, %v641, 0
      %877 = vmatprep.subr.mxu0 0.0
      %878 = vmatpush1.msra.mxu0 %v640
      %879 = vmatprep.subr.mxu0 0.0
      %880 = vmatpush1.msra.mxu0 %v875
      %881 = vmatprep.subr.mxu0 0.0
      %882 = vmatpush1.msra.mxu0 0.0
      %883 = vmatprep.subr.mxu0 0.0
      %884 = vmatpush1.msra.mxu0 0.0
      %885 = vmatprep.subr.mxu0 0.0
      %886 = vmatpush1.msra.mxu0 0.0
      %887 = vmatprep.subr.mxu0 0.0
      %888 = vmatpush1.msra.mxu0 0.0
      %889 = vmatprep.subr.mxu0 0.0
      %890 = vmatpush1.msra.mxu0 0.0
      %891 = vmatprep.subr.mxu0 0.0
      %892 = vmatpush1.msra.mxu0 0.0
      %893 = vmatprep.subr.mxu0 0.0
      %894 = vmatpush1.msra.mxu0 0.0
      %895 = vmatprep.subr.mxu0 0.0
      %896 = vmatpush1.msra.mxu0 0.0
      %897 = vmatprep.subr.mxu0 0.0
      %898 = vmatpush1.msra.mxu0 0.0
      %899 = vmatprep.subr.mxu0 0.0
      %900 = vmatpush1.msra.mxu0 0.0
      %901 = vmatprep.subr.mxu0 0.0
      %902 = vmatpush1.msra.mxu0 0.0
      %903 = vmatprep.subr.mxu0 0.0
      %904 = vmatpush1.msra.mxu0 0.0
      %905 = vmatprep.subr.mxu0 0.0
      %906 = vmatpush1.msra.mxu0 0.0
      %907 = vmatprep.subr.mxu0 0.0
      %908 = vmatpush1.msra.mxu0 0.0
      %909 = vmatprep.subr.mxu0 0.0
      %910 = vmatpush1.msra.mxu0 0.0
      %911 = vmatprep.subr.mxu0 0.0
      %912 = vmatpush1.msra.mxu0 0.0
      %913 = vmatprep.subr.mxu0 0.0
      %914 = vmatpush1.msra.mxu0 0.0
      %915 = vmatprep.subr.mxu0 0.0
      %916 = vmatpush1.msra.mxu0 0.0
      %917 = vmatprep.subr.mxu0 0.0
      %918 = vmatpush1.msra.mxu0 0.0
      %919 = vmatprep.subr.mxu0 0.0
      %920 = vmatpush1.msra.mxu0 0.0
      %921 = vmatprep.subr.mxu0 0.0
      %922 = vmatpush1.msra.mxu0 0.0
      %923 = vmatprep.subr.mxu0 0.0
      %924 = vmatpush1.msra.mxu0 0.0
      %925 = vmatprep.subr.mxu0 0.0
      %926 = vmatpush1.msra.mxu0 0.0
      %927 = vmatprep.subr.mxu0 0.0
      %928 = vmatpush1.msra.mxu0 0.0
      %929 = vmatprep.subr.mxu0 0.0
      %930 = vmatpush1.msra.mxu0 0.0
      %931 = vmatprep.subr.mxu0 0.0
      %932 = vmatpush1.msra.mxu0 0.0
      %933 = vmatprep.subr.mxu0 0.0
      %934 = vmatpush1.msra.mxu0 0.0
      %935 = vmatprep.subr.mxu0 0.0
      %936 = vmatpush1.msra.mxu0 0.0
      %937 = vmatprep.subr.mxu0 0.0
      %938 = vmatpush1.msra.mxu0 0.0
      %939 = vmatprep.subr.mxu0 0.0
      %940 = vmatpush1.msra.mxu0 0.0
      %941 = vmatprep.mubr.f32.mxu0 0.0
      %942 = vmatmul.mubr.f32.gmra.mrb[0].mxu0 %v872
      %v943 = vpop.f32.mrb[0].mxu0
      %v944 = vadd.f32 0.0, %v943
      %v945 = vpop.f32.mrb[0].mxu0
      %946 = vdwg.mxu0
      %947 = vst.msk [vmem:[%s254] sm:$0xff] %vm272, %v716
      %948 = vst.msk [vmem:[%s254 + $0x8] sm:$0xff] %vm272, %v792
      %949 = vst.msk [vmem:[%s254 + $0x10] sm:$0xff] %vm272, %v868
      %950 = vst.msk [vmem:[%s254 + $0x18] sm:$0xff] %vm272, %v944
      %p951 = scmp.lt.s32.totalorder %s15, 1
      %s952 = scalar_select %p951, %s15, 1
      %s953 = smul.addr %s952, 4
      %s954 = smul.addr %s953, 8
      %s955 = scalar_lea.vmem %s4, %s954
      // Predicated region
      $region37: #{multi_decoder_layer.26} parent=35 // pred_check
        %p956 = pneg %p137
      $region38: #{multi_decoder_layer.26} parent=35 // pred_check_branch
        %958 = sbr.rel (%p956) target = $region40
      $region39: #{multi_decoder_layer.26} parent=35 // pred_region
        _
      $region40: #{multi_decoder_layer.26} parent=35 // pred_fallthru
        _
    $region36: #{multi_decoder_layer.26} parent=5 // pred_fallthru
      _
    %p959 = scmp.le.s32.totalorder 2, %s10
    // Predicated region
    $region41: #{multi_decoder_layer.26} parent=5 // pred_check
      %p960 = pneg %p959
    $region42: #{multi_decoder_layer.26} parent=5 // pred_check_branch
      %962 = sbr.rel (%p960) target = $region44
    $region43: #{multi_decoder_layer.26} parent=5 // pred_region
      %s963 = ssub.s32 %s10, 2
      // Predicated region
      $region45: #{multi_decoder_layer.26} parent=43 // pred_check
        %p964 = pneg %p143
      $region46: #{multi_decoder_layer.26} parent=43 // pred_check_branch
        %966 = sbr.rel (%p964) target = $region48
      $region47: #{multi_decoder_layer.26} parent=43 // pred_region
        %p967 = scmp.lt.s32.totalorder %s16, 1
        %s968 = scalar_select %p967, %s16, 1
        %s969 = smul.addr %s968, 4
        %s970 = smul.addr %s969, 8
        %s971 = scalar_lea.vmem %s4, %s970
      $region48: #{multi_decoder_layer.26} parent=43 // pred_fallthru
        _
    $region44: #{multi_decoder_layer.26} parent=5 // pred_fallthru
      _
  $region6: #{multi_decoder_layer.26} parent=0 // loop_footer
    %s14 = sadd.s32 1, %s10
  $region7: #{multi_decoder_layer.26} parent=0 // loop_footer_branch
    %9 = sbr.rel target = $region3
  $region8: #{multi_decoder_layer.26} parent=0 // loop_exit
    _

// kernel: multi_decoder_layer.30
$region0: #{multi_decoder_layer.30}
  #allocation0 [shape = 'u32[]', space=smem, size = 0x4, offset = 0x4, fixed_abs, tag = 'smem constant byte address 0x4 - core index']
  #allocation1 [shape = 'u32[144,128]{1,0:T(1,128)}', space=vmem, size = 0x12000, scoped, tag = 'internal scratch']
  %s0 = inlined_call_operand.vmem [shape: f32[2,4,8,16], index: 0, kind: input, shape index: {}]
  %s1 = inlined_call_operand.vmem [shape: f32[2,4,6,16], index: 1, kind: input, shape index: {}]
  %s2 = inlined_call_operand.vmem [shape: f32[2,4,6,16], index: 2, kind: input, shape index: {}]
  %s3 = inlined_call_operand.vmem [shape: f32[2,8,6], index: 3, kind: input, shape index: {}]
  %s4 = inlined_call_operand.vmem [shape: f32[2,4,8,16], index: 4, kind: output, shape index: {}]
  %s5 = sld [smem:[#allocation0]]
  $region49: #{multi_decoder_layer.30} parent=0
    _
  %s7 = ssub.s32 1, %s5
  %s8 = scalar_select 0, %s7, %s5
  loop: start=0, step=1, limit=4
  $region2: #{multi_decoder_layer.30} parent=0 // loop_pre_header
    _
  $region3: #{multi_decoder_layer.30} parent=0 // loop_header
    %s10 = sphi 0, %s14
    %p11 = scmp.ge.s32.totalorder %s10, 4
    %s20 = sphi 0, %s22
    %s23 = sphi 0, %s20
    %s24 = sphi 0, %s23
    %s40 = sphi 0, %s24
    %s46 = sphi 0, %s48
    %s49 = sphi 0, %s46
    %s50 = sphi 0, %s49
    %s66 = sphi 0, %s50
    %s72 = sphi 0, %s74
    %s75 = sphi 0, %s72
    %s76 = sphi 0, %s75
    %s92 = sphi 0, %s76
    %s98 = sphi 0, %s100
    %s101 = sphi 0, %s98
    %s102 = sphi 0, %s101
    %s118 = sphi 0, %s102
    %s124 = sphi 0, %s126
    %s127 = sphi 0, %s124
    %s128 = sphi 0, %s127
    %s144 = sphi 0, %s128
  $region4: #{multi_decoder_layer.30} parent=0 // loop_header_branch
    %13 = sbr.rel (%p11) target = $region8
  $region5: #{multi_decoder_layer.30} parent=0 // loop_body
    %s15 = ssub.s32 %s10, 1
    %s16 = ssub.s32 %s10, 2
    %s17 = sadd.s32 %s10, 1
    %s18 = ssub.s32 %s10, %s17
    %p19 = scmp.eq.s32.totalorder %s18, 0
    %s21 = sadd.s32 %s20, 1
    %s22 = scalar_select %p19, %s20, %s21
    %p25 = pneg %p19
    %p26 = scmp.eq.s32.totalorder %s10, 1
    %p27 = por %p25, %p26
    %p28 = scmp.ne.s32.totalorder %s20, %s23
    %p29 = scmp.eq.s32.totalorder %s10, 0
    %p30 = por %p28, %p29
    %p31 = scmp.ne.s32.totalorder %s20, %s23
    %p32 = scmp.eq.s32.totalorder %s15, 1
    %p33 = por %p31, %p32
    %p34 = scmp.ne.s32.totalorder %s23, %s24
    %p35 = scmp.eq.s32.totalorder %s15, 0
    %p36 = por %p34, %p35
    %p37 = scmp.ne.s32.totalorder %s23, %s24
    %p38 = scmp.eq.s32.totalorder %s16, 1
    %p39 = por %p37, %p38
    %p41 = scmp.ne.s32.totalorder %s24, %s40
    %p42 = scmp.eq.s32.totalorder %s16, 0
    %p43 = por %p41, %p42
    %s44 = ssub.s32 %s10, %s17
    %p45 = scmp.eq.s32.totalorder %s44, 0
    %s47 = sadd.s32 %s46, 1
    %s48 = scalar_select %p45, %s46, %s47
    %p51 = pneg %p45
    %p52 = scmp.eq.s32.totalorder %s10, 1
    %p53 = por %p51, %p52
    %p54 = scmp.ne.s32.totalorder %s46, %s49
    %p55 = scmp.eq.s32.totalorder %s10, 0
    %p56 = por %p54, %p55
    %p57 = scmp.ne.s32.totalorder %s46, %s49
    %p58 = scmp.eq.s32.totalorder %s15, 1
    %p59 = por %p57, %p58
    %p60 = scmp.ne.s32.totalorder %s49, %s50
    %p61 = scmp.eq.s32.totalorder %s15, 0
    %p62 = por %p60, %p61
    %p63 = scmp.ne.s32.totalorder %s49, %s50
    %p64 = scmp.eq.s32.totalorder %s16, 1
    %p65 = por %p63, %p64
    %p67 = scmp.ne.s32.totalorder %s50, %s66
    %p68 = scmp.eq.s32.totalorder %s16, 0
    %p69 = por %p67, %p68
    %s70 = ssub.s32 %s10, %s17
    %p71 = scmp.eq.s32.totalorder %s70, 0
    %s73 = sadd.s32 %s72, 1
    %s74 = scalar_select %p71, %s72, %s73
    %p77 = pneg %p71
    %p78 = scmp.eq.s32.totalorder %s10, 1
    %p79 = por %p77, %p78
    %p80 = scmp.ne.s32.totalorder %s72, %s75
    %p81 = scmp.eq.s32.totalorder %s10, 0
    %p82 = por %p80, %p81
    %p83 = scmp.ne.s32.totalorder %s72, %s75
    %p84 = scmp.eq.s32.totalorder %s15, 1
    %p85 = por %p83, %p84
    %p86 = scmp.ne.s32.totalorder %s75, %s76
    %p87 = scmp.eq.s32.totalorder %s15, 0
    %p88 = por %p86, %p87
    %p89 = scmp.ne.s32.totalorder %s75, %s76
    %p90 = scmp.eq.s32.totalorder %s16, 1
    %p91 = por %p89, %p90
    %p93 = scmp.ne.s32.totalorder %s76, %s92
    %p94 = scmp.eq.s32.totalorder %s16, 0
    %p95 = por %p93, %p94
    %s96 = ssub.s32 %s10, %s17
    %p97 = scmp.eq.s32.totalorder %s96, 0
    %s99 = sadd.s32 %s98, 1
    %s100 = scalar_select %p97, %s98, %s99
    %p103 = pneg %p97
    %p104 = scmp.eq.s32.totalorder %s10, 1
    %p105 = por %p103, %p104
    %p106 = scmp.ne.s32.totalorder %s98, %s101
    %p107 = scmp.eq.s32.totalorder %s10, 0
    %p108 = por %p106, %p107
    %p109 = scmp.ne.s32.totalorder %s98, %s101
    %p110 = scmp.eq.s32.totalorder %s15, 1
    %p111 = por %p109, %p110
    %p112 = scmp.ne.s32.totalorder %s101, %s102
    %p113 = scmp.eq.s32.totalorder %s15, 0
    %p114 = por %p112, %p113
    %p115 = scmp.ne.s32.totalorder %s101, %s102
    %p116 = scmp.eq.s32.totalorder %s16, 1
    %p117 = por %p115, %p116
    %p119 = scmp.ne.s32.totalorder %s102, %s118
    %p120 = scmp.eq.s32.totalorder %s16, 0
    %p121 = por %p119, %p120
    %s122 = ssub.s32 %s10, %s17
    %p123 = scmp.eq.s32.totalorder %s122, 0
    %s125 = sadd.s32 %s124, 1
    %s126 = scalar_select %p123, %s124, %s125
    %p129 = pneg %p123
    %p130 = scmp.eq.s32.totalorder %s10, 1
    %p131 = por %p129, %p130
    %p132 = scmp.ne.s32.totalorder %s124, %s127
    %p133 = scmp.eq.s32.totalorder %s10, 0
    %p134 = por %p132, %p133
    %p135 = scmp.ne.s32.totalorder %s124, %s127
    %p136 = scmp.eq.s32.totalorder %s15, 1
    %p137 = por %p135, %p136
    %p138 = scmp.ne.s32.totalorder %s127, %s128
    %p139 = scmp.eq.s32.totalorder %s15, 0
    %p140 = por %p138, %p139
    %p141 = scmp.ne.s32.totalorder %s127, %s128
    %p142 = scmp.eq.s32.totalorder %s16, 1
    %p143 = por %p141, %p142
    %p145 = scmp.ne.s32.totalorder %s128, %s144
    %p146 = scmp.eq.s32.totalorder %s16, 0
    %p147 = por %p145, %p146
    %p148 = scmp.le.s32.totalorder 1, %s10
    %p149 = scmp.lt.s32.totalorder %s10, 3
    %p150 = pnand %p148, %p149
    %p151 = pneg %p150
    // Predicated region
    $region9: #{multi_decoder_layer.30} parent=5 // pred_check
      _
    $region10: #{multi_decoder_layer.30} parent=5 // pred_check_branch
      %153 = sbr.rel (%p150) target = $region12
    $region11: #{multi_decoder_layer.30} parent=5 // pred_region
      %s154 = ssub.s32 %s10, 1
    $region12: #{multi_decoder_layer.30} parent=5 // pred_fallthru
      _
    %p155 = scmp.lt.s32.totalorder %s10, 2
    // Predicated region
    $region13: #{multi_decoder_layer.30} parent=5 // pred_check
      %p156 = pneg %p155
    $region14: #{multi_decoder_layer.30} parent=5 // pred_check_branch
      %158 = sbr.rel (%p156) target = $region16
    $region15: #{multi_decoder_layer.30} parent=5 // pred_region
      // Predicated region
      $region17: #{multi_decoder_layer.30} parent=15 // pred_check
        %p159 = pneg %p30
      $region18: #{multi_decoder_layer.30} parent=15 // pred_check_branch
        %161 = sbr.rel (%p159) target = $region20
      $region19: #{multi_decoder_layer.30} parent=15 // pred_region
        %p162 = scmp.lt.s32.totalorder %s10, 1
        %s163 = scalar_select %p162, %s10, 1
        %s164 = smul.addr %s163, 4
        %s165 = smul.addr %s164, 8
        %s166 = scalar_lea.vmem %s0, %s165
      $region20: #{multi_decoder_layer.30} parent=15 // pred_fallthru
        _
      // Predicated region
      $region21: #{multi_decoder_layer.30} parent=15 // pred_check
        %p167 = pneg %p56
      $region22: #{multi_decoder_layer.30} parent=15 // pred_check_branch
        %169 = sbr.rel (%p167) target = $region24
      $region23: #{multi_decoder_layer.30} parent=15 // pred_region
        %p170 = scmp.lt.s32.totalorder %s10, 1
        %s171 = scalar_select %p170, %s10, 1
        %s172 = smul.addr %s171, 4
        %s173 = smul.addr %s172, 8
        %s174 = scalar_lea.vmem %s1, %s173
      $region24: #{multi_decoder_layer.30} parent=15 // pred_fallthru
        _
      // Predicated region
      $region25: #{multi_decoder_layer.30} parent=15 // pred_check
        %p175 = pneg %p82
      $region26: #{multi_decoder_layer.30} parent=15 // pred_check_branch
        %177 = sbr.rel (%p175) target = $region28
      $region27: #{multi_decoder_layer.30} parent=15 // pred_region
        %p178 = scmp.lt.s32.totalorder %s10, 1
        %s179 = scalar_select %p178, %s10, 1
        %s180 = smul.addr %s179, 4
        %s181 = smul.addr %s180, 8
        %s182 = scalar_lea.vmem %s2, %s181
      $region28: #{multi_decoder_layer.30} parent=15 // pred_fallthru
        _
      // Predicated region
      $region29: #{multi_decoder_layer.30} parent=15 // pred_check
        %p183 = pneg %p108
      $region30: #{multi_decoder_layer.30} parent=15 // pred_check_branch
        %185 = sbr.rel (%p183) target = $region32
      $region31: #{multi_decoder_layer.30} parent=15 // pred_region
        %p186 = scmp.lt.s32.totalorder %s10, 1
        %s187 = scalar_select %p186, %s10, 1
        %s188 = smul.addr %s187, 8
        %s189 = scalar_lea.vmem %s3, %s188
      $region32: #{multi_decoder_layer.30} parent=15 // pred_fallthru
        _
    $region16: #{multi_decoder_layer.30} parent=5 // pred_fallthru
      _
    %p190 = scmp.le.s32.totalorder 1, %s10
    %p191 = scmp.lt.s32.totalorder %s10, 3
    %p192 = pnand %p190, %p191
    %p193 = pneg %p192
    // Predicated region
    $region33: #{multi_decoder_layer.30} parent=5 // pred_check
      _
    $region34: #{multi_decoder_layer.30} parent=5 // pred_check_branch
      %195 = sbr.rel (%p192) target = $region36
    $region35: #{multi_decoder_layer.30} parent=5 // pred_region
      %s196 = ssub.s32 %s10, 1
      %p197 = scmp.lt.s32.totalorder %s15, 1
      %s198 = scalar_select %p197, %s15, 1
      %s199 = smul.addr %s198, 4
      %s200 = smul.addr %s199, 8
      %s201 = scalar_lea.vmem %s0, %s200
      %p202 = pneg %p36
      %p203 = pneg %p33
      %p204 = scmp.lt.s32.totalorder %s15, 1
      %s205 = scalar_select %p204, %s15, 1
      %s206 = smul.addr %s205, 4
      %s207 = smul.addr %s206, 8
      %s208 = scalar_lea.vmem %s1, %s207
      %p209 = pneg %p62
      %p210 = pneg %p59
      %p211 = scmp.lt.s32.totalorder %s15, 1
      %s212 = scalar_select %p211, %s15, 1
      %s213 = smul.addr %s212, 4
      %s214 = smul.addr %s213, 8
      %s215 = scalar_lea.vmem %s2, %s214
      %p216 = pneg %p88
      %p217 = pneg %p85
      %p218 = scmp.lt.s32.totalorder %s15, 1
      %s219 = scalar_select %p218, %s15, 1
      %s220 = smul.addr %s219, 8
      %s221 = scalar_lea.vmem %s3, %s220
      %p222 = pneg %p114
      %p223 = pneg %p111
      %p224 = pneg %p140
      %p225 = pneg %p137
      %p226 = scmp.lt.s32.totalorder %s15, 1
      %s227 = scalar_select %p226, %s15, 1
      %s228 = smul.addr %s227, 4
      %s229 = smul.addr %s228, 8
      %s230 = scalar_lea.vmem %s4, %s229
      %p231 = scmp.lt.s32.totalorder %s15, 1
      %s232 = scalar_select %p231, %s15, 1
      %s233 = smul.addr %s232, 4
      %s234 = smul.addr %s233, 8
      %s235 = scalar_lea.vmem %s0, %s234
      %p236 = scmp.lt.s32.totalorder %s15, 1
      %s237 = scalar_select %p236, %s15, 1
      %s238 = smul.addr %s237, 4
      %s239 = smul.addr %s238, 8
      %s240 = scalar_lea.vmem %s1, %s239
      %p241 = scmp.lt.s32.totalorder %s15, 1
      %s242 = scalar_select %p241, %s15, 1
      %s243 = smul.addr %s242, 4
      %s244 = smul.addr %s243, 8
      %s245 = scalar_lea.vmem %s2, %s244
      %p246 = scmp.lt.s32.totalorder %s15, 1
      %s247 = scalar_select %p246, %s15, 1
      %s248 = smul.addr %s247, 8
      %s249 = scalar_lea.vmem %s3, %s248
      %p250 = scmp.lt.s32.totalorder %s15, 1
      %s251 = scalar_select %p250, %s15, 1
      %s252 = smul.addr %s251, 4
      %s253 = smul.addr %s252, 8
      %s254 = scalar_lea.vmem %s4, %s253
      %v255 = vld [vmem:[%s235] sm:$0xff]
      %v256 = vld [vmem:[%s235 + $0x8] sm:$0xff]
      %v257 = vld [vmem:[%s235 + $0x10] sm:$0xff]
      %v258 = vld [vmem:[%s235 + $0x18] sm:$0xff]
      %v259 = vmul.f32 %v255, 0.25
      %v260 = vmul.f32 %v256, 0.25
      %v261 = vmul.f32 %v257, 0.25
      %v262 = vmul.f32 %v258, 0.25
      %v263 = vld [vmem:[%s240] sm:$0x3f]
      %v264 = vld [vmem:[%s240 + $0x8] sm:$0x3f]
      %v265 = vld [vmem:[%s240 + $0x10] sm:$0x3f]
      %v266 = vld [vmem:[%s240 + $0x18] sm:$0x3f]
      %v267 = vld [vmem:[%s249] sm:$0xff]
      %vm268 = vcmask 130048
      %v270 = vsel %vm268, %v259, 0
      %v273 = vsel %vm268, %v263, 0
      %275 = vmatprep.subr.mxu0 0.0
      %276 = vmatpush1.xpose.msra.mxu0 %v273
      %277 = vmatprep.subr.mxu0 0.0
      %278 = vmatpush1.xpose.msra.mxu0 0.0
      %279 = vmatprep.subr.mxu0 0.0
      %280 = vmatpush1.xpose.msra.mxu0 0.0
      %281 = vmatprep.subr.mxu0 0.0
      %282 = vmatpush1.xpose.msra.mxu0 0.0
      %283 = vmatprep.subr.mxu0 0.0
      %284 = vmatpush1.xpose.msra.mxu0 0.0
      %285 = vmatprep.subr.mxu0 0.0
      %286 = vmatpush1.xpose.msra.mxu0 0.0
      %287 = vmatprep.subr.mxu0 0.0
      %288 = vmatpush1.xpose.msra.mxu0 0.0
      %289 = vmatprep.subr.mxu0 0.0
      %290 = vmatpush1.xpose.msra.mxu0 0.0
      %291 = vmatprep.subr.mxu0 0.0
      %292 = vmatpush1.xpose.msra.mxu0 0.0
      %293 = vmatprep.subr.mxu0 0.0
      %294 = vmatpush1.xpose.msra.mxu0 0.0
      %295 = vmatprep.subr.mxu0 0.0
      %296 = vmatpush1.xpose.msra.mxu0 0.0
      %297 = vmatprep.subr.mxu0 0.0
      %298 = vmatpush1.xpose.msra.mxu0 0.0
      %299 = vmatprep.subr.mxu0 0.0
      %300 = vmatpush1.xpose.msra.mxu0 0.0
      %301 = vmatprep.subr.mxu0 0.0
      %302 = vmatpush1.xpose.msra.mxu0 0.0
      %303 = vmatprep.subr.mxu0 0.0
      %304 = vmatpush1.xpose.msra.mxu0 0.0
      %305 = vmatprep.subr.mxu0 0.0
      %306 = vmatpush1.xpose.msra.mxu0 0.0
      %307 = vmatprep.subr.mxu0 0.0
      %308 = vmatpush1.xpose.msra.mxu0 0.0
      %309 = vmatprep.subr.mxu0 0.0
      %310 = vmatpush1.xpose.msra.mxu0 0.0
      %311 = vmatprep.subr.mxu0 0.0
      %312 = vmatpush1.xpose.msra.mxu0 0.0
      %313 = vmatprep.subr.mxu0 0.0
      %314 = vmatpush1.xpose.msra.mxu0 0.0
      %315 = vmatprep.subr.mxu0 0.0
      %316 = vmatpush1.xpose.msra.mxu0 0.0
      %317 = vmatprep.subr.mxu0 0.0
      %318 = vmatpush1.xpose.msra.mxu0 0.0
      %319 = vmatprep.subr.mxu0 0.0
      %320 = vmatpush1.xpose.msra.mxu0 0.0
      %321 = vmatprep.subr.mxu0 0.0
      %322 = vmatpush1.xpose.msra.mxu0 0.0
      %323 = vmatprep.subr.mxu0 0.0
      %324 = vmatpush1.xpose.msra.mxu0 0.0
      %325 = vmatprep.subr.mxu0 0.0
      %326 = vmatpush1.xpose.msra.mxu0 0.0
      %327 = vmatprep.subr.mxu0 0.0
      %328 = vmatpush1.xpose.msra.mxu0 0.0
      %329 = vmatprep.subr.mxu0 0.0
      %330 = vmatpush1.xpose.msra.mxu0 0.0
      %331 = vmatprep.subr.mxu0 0.0
      %332 = vmatpush1.xpose.msra.mxu0 0.0
      %333 = vmatprep.subr.mxu0 0.0
      %334 = vmatpush1.xpose.msra.mxu0 0.0
      %335 = vmatprep.subr.mxu0 0.0
      %336 = vmatpush1.xpose.msra.mxu0 0.0
      %337 = vmatprep.subr.mxu0 0.0
      %338 = vmatpush1.xpose.msra.mxu0 0.0
      %339 = vmatprep.mubr.f32.mxu0 0.0
      %340 = vmatmul.mubr.f32.gmra.mrb[0].mxu0 %v270
      %v341 = vpop.f32.mrb[0].mxu0
      %v342 = vadd.f32 %v267, %v341
      %v343 = vpop.f32.mrb[0].mxu0
      %344 = vdwg.mxu0
      %v346 = vsel %vm268, %v260, 0
      %v349 = vsel %vm268, %v264, 0
      %351 = vmatprep.subr.mxu0 0.0
      %352 = vmatpush1.xpose.msra.mxu0 %v349
      %353 = vmatprep.subr.mxu0 0.0
      %354 = vmatpush1.xpose.msra.mxu0 0.0
      %355 = vmatprep.subr.mxu0 0.0
      %356 = vmatpush1.xpose.msra.mxu0 0.0
      %357 = vmatprep.subr.mxu0 0.0
      %358 = vmatpush1.xpose.msra.mxu0 0.0
      %359 = vmatprep.subr.mxu0 0.0
      %360 = vmatpush1.xpose.msra.mxu0 0.0
      %361 = vmatprep.subr.mxu0 0.0
      %362 = vmatpush1.xpose.msra.mxu0 0.0
      %363 = vmatprep.subr.mxu0 0.0
      %364 = vmatpush1.xpose.msra.mxu0 0.0
      %365 = vmatprep.subr.mxu0 0.0
      %366 = vmatpush1.xpose.msra.mxu0 0.0
      %367 = vmatprep.subr.mxu0 0.0
      %368 = vmatpush1.xpose.msra.mxu0 0.0
      %369 = vmatprep.subr.mxu0 0.0
      %370 = vmatpush1.xpose.msra.mxu0 0.0
      %371 = vmatprep.subr.mxu0 0.0
      %372 = vmatpush1.xpose.msra.mxu0 0.0
      %373 = vmatprep.subr.mxu0 0.0
      %374 = vmatpush1.xpose.msra.mxu0 0.0
      %375 = vmatprep.subr.mxu0 0.0
      %376 = vmatpush1.xpose.msra.mxu0 0.0
      %377 = vmatprep.subr.mxu0 0.0
      %378 = vmatpush1.xpose.msra.mxu0 0.0
      %379 = vmatprep.subr.mxu0 0.0
      %380 = vmatpush1.xpose.msra.mxu0 0.0
      %381 = vmatprep.subr.mxu0 0.0
      %382 = vmatpush1.xpose.msra.mxu0 0.0
      %383 = vmatprep.subr.mxu0 0.0
      %384 = vmatpush1.xpose.msra.mxu0 0.0
      %385 = vmatprep.subr.mxu0 0.0
      %386 = vmatpush1.xpose.msra.mxu0 0.0
      %387 = vmatprep.subr.mxu0 0.0
      %388 = vmatpush1.xpose.msra.mxu0 0.0
      %389 = vmatprep.subr.mxu0 0.0
      %390 = vmatpush1.xpose.msra.mxu0 0.0
      %391 = vmatprep.subr.mxu0 0.0
      %392 = vmatpush1.xpose.msra.mxu0 0.0
      %393 = vmatprep.subr.mxu0 0.0
      %394 = vmatpush1.xpose.msra.mxu0 0.0
      %395 = vmatprep.subr.mxu0 0.0
      %396 = vmatpush1.xpose.msra.mxu0 0.0
      %397 = vmatprep.subr.mxu0 0.0
      %398 = vmatpush1.xpose.msra.mxu0 0.0
      %399 = vmatprep.subr.mxu0 0.0
      %400 = vmatpush1.xpose.msra.mxu0 0.0
      %401 = vmatprep.subr.mxu0 0.0
      %402 = vmatpush1.xpose.msra.mxu0 0.0
      %403 = vmatprep.subr.mxu0 0.0
      %404 = vmatpush1.xpose.msra.mxu0 0.0
      %405 = vmatprep.subr.mxu0 0.0
      %406 = vmatpush1.xpose.msra.mxu0 0.0
      %407 = vmatprep.subr.mxu0 0.0
      %408 = vmatpush1.xpose.msra.mxu0 0.0
      %409 = vmatprep.subr.mxu0 0.0
      %410 = vmatpush1.xpose.msra.mxu0 0.0
      %411 = vmatprep.subr.mxu0 0.0
      %412 = vmatpush1.xpose.msra.mxu0 0.0
      %413 = vmatprep.subr.mxu0 0.0
      %414 = vmatpush1.xpose.msra.mxu0 0.0
      %415 = vmatprep.mubr.f32.mxu0 0.0
      %416 = vmatmul.mubr.f32.gmra.mrb[0].mxu0 %v346
      %v417 = vpop.f32.mrb[0].mxu0
      %v418 = vadd.f32 %v267, %v417
      %v419 = vpop.f32.mrb[0].mxu0
      %420 = vdwg.mxu0
      %v422 = vsel %vm268, %v261, 0
      %v425 = vsel %vm268, %v265, 0
      %427 = vmatprep.subr.mxu0 0.0
      %428 = vmatpush1.xpose.msra.mxu0 %v425
      %429 = vmatprep.subr.mxu0 0.0
      %430 = vmatpush1.xpose.msra.mxu0 0.0
      %431 = vmatprep.subr.mxu0 0.0
      %432 = vmatpush1.xpose.msra.mxu0 0.0
      %433 = vmatprep.subr.mxu0 0.0
      %434 = vmatpush1.xpose.msra.mxu0 0.0
      %435 = vmatprep.subr.mxu0 0.0
      %436 = vmatpush1.xpose.msra.mxu0 0.0
      %437 = vmatprep.subr.mxu0 0.0
      %438 = vmatpush1.xpose.msra.mxu0 0.0
      %439 = vmatprep.subr.mxu0 0.0
      %440 = vmatpush1.xpose.msra.mxu0 0.0
      %441 = vmatprep.subr.mxu0 0.0
      %442 = vmatpush1.xpose.msra.mxu0 0.0
      %443 = vmatprep.subr.mxu0 0.0
      %444 = vmatpush1.xpose.msra.mxu0 0.0
      %445 = vmatprep.subr.mxu0 0.0
      %446 = vmatpush1.xpose.msra.mxu0 0.0
      %447 = vmatprep.subr.mxu0 0.0
      %448 = vmatpush1.xpose.msra.mxu0 0.0
      %449 = vmatprep.subr.mxu0 0.0
      %450 = vmatpush1.xpose.msra.mxu0 0.0
      %451 = vmatprep.subr.mxu0 0.0
      %452 = vmatpush1.xpose.msra.mxu0 0.0
      %453 = vmatprep.subr.mxu0 0.0
      %454 = vmatpush1.xpose.msra.mxu0 0.0
      %455 = vmatprep.subr.mxu0 0.0
      %456 = vmatpush1.xpose.msra.mxu0 0.0
      %457 = vmatprep.subr.mxu0 0.0
      %458 = vmatpush1.xpose.msra.mxu0 0.0
      %459 = vmatprep.subr.mxu0 0.0
      %460 = vmatpush1.xpose.msra.mxu0 0.0
      %461 = vmatprep.subr.mxu0 0.0
      %462 = vmatpush1.xpose.msra.mxu0 0.0
      %463 = vmatprep.subr.mxu0 0.0
      %464 = vmatpush1.xpose.msra.mxu0 0.0
      %465 = vmatprep.subr.mxu0 0.0
      %466 = vmatpush1.xpose.msra.mxu0 0.0
      %467 = vmatprep.subr.mxu0 0.0
      %468 = vmatpush1.xpose.msra.mxu0 0.0
      %469 = vmatprep.subr.mxu0 0.0
      %470 = vmatpush1.xpose.msra.mxu0 0.0
      %471 = vmatprep.subr.mxu0 0.0
      %472 = vmatpush1.xpose.msra.mxu0 0.0
      %473 = vmatprep.subr.mxu0 0.0
      %474 = vmatpush1.xpose.msra.mxu0 0.0
      %475 = vmatprep.subr.mxu0 0.0
      %476 = vmatpush1.xpose.msra.mxu0 0.0
      %477 = vmatprep.subr.mxu0 0.0
      %478 = vmatpush1.xpose.msra.mxu0 0.0
      %479 = vmatprep.subr.mxu0 0.0
      %480 = vmatpush1.xpose.msra.mxu0 0.0
      %481 = vmatprep.subr.mxu0 0.0
      %482 = vmatpush1.xpose.msra.mxu0 0.0
      %483 = vmatprep.subr.mxu0 0.0
      %484 = vmatpush1.xpose.msra.mxu0 0.0
      %485 = vmatprep.subr.mxu0 0.0
      %486 = vmatpush1.xpose.msra.mxu0 0.0
      %487 = vmatprep.subr.mxu0 0.0
      %488 = vmatpush1.xpose.msra.mxu0 0.0
      %489 = vmatprep.subr.mxu0 0.0
      %490 = vmatpush1.xpose.msra.mxu0 0.0
      %491 = vmatprep.mubr.f32.mxu0 0.0
      %492 = vmatmul.mubr.f32.gmra.mrb[0].mxu0 %v422
      %v493 = vpop.f32.mrb[0].mxu0
      %v494 = vadd.f32 %v267, %v493
      %v495 = vpop.f32.mrb[0].mxu0
      %496 = vdwg.mxu0
      %v498 = vsel %vm268, %v262, 0
      %v501 = vsel %vm268, %v266, 0
      %503 = vmatprep.subr.mxu0 0.0
      %504 = vmatpush1.xpose.msra.mxu0 %v501
      %505 = vmatprep.subr.mxu0 0.0
      %506 = vmatpush1.xpose.msra.mxu0 0.0
      %507 = vmatprep.subr.mxu0 0.0
      %508 = vmatpush1.xpose.msra.mxu0 0.0
      %509 = vmatprep.subr.mxu0 0.0
      %510 = vmatpush1.xpose.msra.mxu0 0.0
      %511 = vmatprep.subr.mxu0 0.0
      %512 = vmatpush1.xpose.msra.mxu0 0.0
      %513 = vmatprep.subr.mxu0 0.0
      %514 = vmatpush1.xpose.msra.mxu0 0.0
      %515 = vmatprep.subr.mxu0 0.0
      %516 = vmatpush1.xpose.msra.mxu0 0.0
      %517 = vmatprep.subr.mxu0 0.0
      %518 = vmatpush1.xpose.msra.mxu0 0.0
      %519 = vmatprep.subr.mxu0 0.0
      %520 = vmatpush1.xpose.msra.mxu0 0.0
      %521 = vmatprep.subr.mxu0 0.0
      %522 = vmatpush1.xpose.msra.mxu0 0.0
      %523 = vmatprep.subr.mxu0 0.0
      %524 = vmatpush1.xpose.msra.mxu0 0.0
      %525 = vmatprep.subr.mxu0 0.0
      %526 = vmatpush1.xpose.msra.mxu0 0.0
      %527 = vmatprep.subr.mxu0 0.0
      %528 = vmatpush1.xpose.msra.mxu0 0.0
      %529 = vmatprep.subr.mxu0 0.0
      %530 = vmatpush1.xpose.msra.mxu0 0.0
      %531 = vmatprep.subr.mxu0 0.0
      %532 = vmatpush1.xpose.msra.mxu0 0.0
      %533 = vmatprep.subr.mxu0 0.0
      %534 = vmatpush1.xpose.msra.mxu0 0.0
      %535 = vmatprep.subr.mxu0 0.0
      %536 = vmatpush1.xpose.msra.mxu0 0.0
      %537 = vmatprep.subr.mxu0 0.0
      %538 = vmatpush1.xpose.msra.mxu0 0.0
      %539 = vmatprep.subr.mxu0 0.0
      %540 = vmatpush1.xpose.msra.mxu0 0.0
      %541 = vmatprep.subr.mxu0 0.0
      %542 = vmatpush1.xpose.msra.mxu0 0.0
      %543 = vmatprep.subr.mxu0 0.0
      %544 = vmatpush1.xpose.msra.mxu0 0.0
      %545 = vmatprep.subr.mxu0 0.0
      %546 = vmatpush1.xpose.msra.mxu0 0.0
      %547 = vmatprep.subr.mxu0 0.0
      %548 = vmatpush1.xpose.msra.mxu0 0.0
      %549 = vmatprep.subr.mxu0 0.0
      %550 = vmatpush1.xpose.msra.mxu0 0.0
      %551 = vmatprep.subr.mxu0 0.0
      %552 = vmatpush1.xpose.msra.mxu0 0.0
      %553 = vmatprep.subr.mxu0 0.0
      %554 = vmatpush1.xpose.msra.mxu0 0.0
      %555 = vmatprep.subr.mxu0 0.0
      %556 = vmatpush1.xpose.msra.mxu0 0.0
      %557 = vmatprep.subr.mxu0 0.0
      %558 = vmatpush1.xpose.msra.mxu0 0.0
      %559 = vmatprep.subr.mxu0 0.0
      %560 = vmatpush1.xpose.msra.mxu0 0.0
      %561 = vmatprep.subr.mxu0 0.0
      %562 = vmatpush1.xpose.msra.mxu0 0.0
      %563 = vmatprep.subr.mxu0 0.0
      %564 = vmatpush1.xpose.msra.mxu0 0.0
      %565 = vmatprep.subr.mxu0 0.0
      %566 = vmatpush1.xpose.msra.mxu0 0.0
      %567 = vmatprep.mubr.f32.mxu0 0.0
      %568 = vmatmul.mubr.f32.gmra.mrb[0].mxu0 %v498
      %v569 = vpop.f32.mrb[0].mxu0
      %v570 = vadd.f32 %v267, %v569
      %v571 = vpop.f32.mrb[0].mxu0
      %572 = vdwg.mxu0
      %vm573 = vcmask 48128
      %v574 = vsel %vm573, %v342, -inf
      %575 = vmax.xlane.f32.xlu0 %v574
      %v576 = vpop.xlane.xlu0 %575
      %v577 = vsel %vm573, %v418, -inf
      %578 = vmax.xlane.f32.xlu0 %v577
      %v579 = vpop.xlane.xlu0 %578
      %v580 = vsel %vm573, %v494, -inf
      %581 = vmax.xlane.f32.xlu0 %v580
      %v582 = vpop.xlane.xlu0 %581
      %v583 = vsel %vm573, %v570, -inf
      %584 = vmax.xlane.f32.xlu0 %v583
      %v585 = vpop.xlane.xlu0 %584
      %v586 = vsub.f32 %v342, %v576
      %v587 = vsub.f32 %v418, %v579
      %v588 = vsub.f32 %v494, %v582
      %v589 = vsub.f32 %v570, %v585
      %v590 = vmul.f32 %v586, 1.442695
      %v591 = vpow.pop %v590
      %v592 = vmul.f32 %v587, 1.442695
      %v593 = vpow.pop %v592
      %v594 = vmul.f32 %v588, 1.442695
      %v595 = vpow.pop %v594
      %v596 = vmul.f32 %v589, 1.442695
      %v597 = vpow.pop %v596
      %v598 = vsel %vm573, %v591, 0.0
      %599 = vadd.xlane.f32.xlu0 %v598
      %v600 = vpop.xlane.xlu0 %599
      %v601 = vsel %vm573, %v593, 0.0
      %602 = vadd.xlane.f32.xlu0 %v601
      %v603 = vpop.xlane.xlu0 %602
      %v604 = vsel %vm573, %v595, 0.0
      %605 = vadd.xlane.f32.xlu0 %v604
      %v606 = vpop.xlane.xlu0 %605
      %v607 = vsel %vm573, %v597, 0.0
      %608 = vadd.xlane.f32.xlu0 %v607
      %v609 = vpop.xlane.xlu0 %608
      %v610 = vrcp.pop %v600
      %v611 = vmul.f32 %v591, %v610
      %v612 = vrcp.pop %v603
      %v613 = vmul.f32 %v593, %v612
      %v614 = vrcp.pop %v606
      %v615 = vmul.f32 %v595, %v614
      %v616 = vrcp.pop %v609
      %v617 = vmul.f32 %v597, %v616
      %v618 = vld [vmem:[%s245] sm:$0x3f]
      %v619 = vld [vmem:[%s245 + $0x8] sm:$0x3f]
      %v620 = vld [vmem:[%s245 + $0x10] sm:$0x3f]
      %v621 = vld [vmem:[%s245 + $0x18] sm:$0x3f]
      %v623 = vsel %vm573, %v611, 0
      %vm625 = vcmask 1045504
      %v627 = vsel %vm625, %v618, 0
      %629 = vmatprep.subr.mxu0 0.0
      %630 = vmatpush1.msra.mxu0 %v627
      %631 = vmatprep.subr.mxu0 0.0
      %632 = vmatpush1.msra.mxu0 0.0
      %633 = vmatprep.subr.mxu0 0.0
      %634 = vmatpush1.msra.mxu0 0.0
      %635 = vmatprep.subr.mxu0 0.0
      %636 = vmatpush1.msra.mxu0 0.0
      %637 = vmatprep.subr.mxu0 0.0
      %638 = vmatpush1.msra.mxu0 0.0
      %639 = vmatprep.subr.mxu0 0.0
      %640 = vmatpush1.msra.mxu0 0.0
      %641 = vmatprep.subr.mxu0 0.0
      %642 = vmatpush1.msra.mxu0 0.0
      %643 = vmatprep.subr.mxu0 0.0
      %644 = vmatpush1.msra.mxu0 0.0
      %645 = vmatprep.subr.mxu0 0.0
      %646 = vmatpush1.msra.mxu0 0.0
      %647 = vmatprep.subr.mxu0 0.0
      %648 = vmatpush1.msra.mxu0 0.0
      %649 = vmatprep.subr.mxu0 0.0
      %650 = vmatpush1.msra.mxu0 0.0
      %651 = vmatprep.subr.mxu0 0.0
      %652 = vmatpush1.msra.mxu0 0.0
      %653 = vmatprep.subr.mxu0 0.0
      %654 = vmatpush1.msra.mxu0 0.0
      %655 = vmatprep.subr.mxu0 0.0
      %656 = vmatpush1.msra.mxu0 0.0
      %657 = vmatprep.subr.mxu0 0.0
      %658 = vmatpush1.msra.mxu0 0.0
      %659 = vmatprep.subr.mxu0 0.0
      %660 = vmatpush1.msra.mxu0 0.0
      %661 = vmatprep.subr.mxu0 0.0
      %662 = vmatpush1.msra.mxu0 0.0
      %663 = vmatprep.subr.mxu0 0.0
      %664 = vmatpush1.msra.mxu0 0.0
      %665 = vmatprep.subr.mxu0 0.0
      %666 = vmatpush1.msra.mxu0 0.0
      %667 = vmatprep.subr.mxu0 0.0
      %668 = vmatpush1.msra.mxu0 0.0
      %669 = vmatprep.subr.mxu0 0.0
      %670 = vmatpush1.msra.mxu0 0.0
      %671 = vmatprep.subr.mxu0 0.0
      %672 = vmatpush1.msra.mxu0 0.0
      %673 = vmatprep.subr.mxu0 0.0
      %674 = vmatpush1.msra.mxu0 0.0
      %675 = vmatprep.subr.mxu0 0.0
      %676 = vmatpush1.msra.mxu0 0.0
      %677 = vmatprep.subr.mxu0 0.0
      %678 = vmatpush1.msra.mxu0 0.0
      %679 = vmatprep.subr.mxu0 0.0
      %680 = vmatpush1.msra.mxu0 0.0
      %681 = vmatprep.subr.mxu0 0.0
      %682 = vmatpush1.msra.mxu0 0.0
      %683 = vmatprep.subr.mxu0 0.0
      %684 = vmatpush1.msra.mxu0 0.0
      %685 = vmatprep.subr.mxu0 0.0
      %686 = vmatpush1.msra.mxu0 0.0
      %687 = vmatprep.subr.mxu0 0.0
      %688 = vmatpush1.msra.mxu0 0.0
      %689 = vmatprep.subr.mxu0 0.0
      %690 = vmatpush1.msra.mxu0 0.0
      %691 = vmatprep.subr.mxu0 0.0
      %692 = vmatpush1.msra.mxu0 0.0
      %693 = vmatprep.mubr.f32.mxu0 0.0
      %694 = vmatmul.mubr.f32.gmra.mrb[0].mxu0 %v623
      %v695 = vpop.f32.mrb[0].mxu0
      %v696 = vadd.f32 0.0, %v695
      %v697 = vpop.f32.mrb[0].mxu0
      %698 = vdwg.mxu0
      %v700 = vsel %vm573, %v613, 0
      %v703 = vsel %vm625, %v619, 0
      %705 = vmatprep.subr.mxu0 0.0
      %706 = vmatpush1.msra.mxu0 %v703
      %707 = vmatprep.subr.mxu0 0.0
      %708 = vmatpush1.msra.mxu0 0.0
      %709 = vmatprep.subr.mxu0 0.0
      %710 = vmatpush1.msra.mxu0 0.0
      %711 = vmatprep.subr.mxu0 0.0
      %712 = vmatpush1.msra.mxu0 0.0
      %713 = vmatprep.subr.mxu0 0.0
      %714 = vmatpush1.msra.mxu0 0.0
      %715 = vmatprep.subr.mxu0 0.0
      %716 = vmatpush1.msra.mxu0 0.0
      %717 = vmatprep.subr.mxu0 0.0
      %718 = vmatpush1.msra.mxu0 0.0
      %719 = vmatprep.subr.mxu0 0.0
      %720 = vmatpush1.msra.mxu0 0.0
      %721 = vmatprep.subr.mxu0 0.0
      %722 = vmatpush1.msra.mxu0 0.0
      %723 = vmatprep.subr.mxu0 0.0
      %724 = vmatpush1.msra.mxu0 0.0
      %725 = vmatprep.subr.mxu0 0.0
      %726 = vmatpush1.msra.mxu0 0.0
      %727 = vmatprep.subr.mxu0 0.0
      %728 = vmatpush1.msra.mxu0 0.0
      %729 = vmatprep.subr.mxu0 0.0
      %730 = vmatpush1.msra.mxu0 0.0
      %731 = vmatprep.subr.mxu0 0.0
      %732 = vmatpush1.msra.mxu0 0.0
      %733 = vmatprep.subr.mxu0 0.0
      %734 = vmatpush1.msra.mxu0 0.0
      %735 = vmatprep.subr.mxu0 0.0
      %736 = vmatpush1.msra.mxu0 0.0
      %737 = vmatprep.subr.mxu0 0.0
      %738 = vmatpush1.msra.mxu0 0.0
      %739 = vmatprep.subr.mxu0 0.0
      %740 = vmatpush1.msra.mxu0 0.0
      %741 = vmatprep.subr.mxu0 0.0
      %742 = vmatpush1.msra.mxu0 0.0
      %743 = vmatprep.subr.mxu0 0.0
      %744 = vmatpush1.msra.mxu0 0.0
      %745 = vmatprep.subr.mxu0 0.0
      %746 = vmatpush1.msra.mxu0 0.0
      %747 = vmatprep.subr.mxu0 0.0
      %748 = vmatpush1.msra.mxu0 0.0
      %749 = vmatprep.subr.mxu0 0.0
      %750 = vmatpush1.msra.mxu0 0.0
      %751 = vmatprep.subr.mxu0 0.0
      %752 = vmatpush1.msra.mxu0 0.0
      %753 = vmatprep.subr.mxu0 0.0
      %754 = vmatpush1.msra.mxu0 0.0
      %755 = vmatprep.subr.mxu0 0.0
      %756 = vmatpush1.msra.mxu0 0.0
      %757 = vmatprep.subr.mxu0 0.0
      %758 = vmatpush1.msra.mxu0 0.0
      %759 = vmatprep.subr.mxu0 0.0
      %760 = vmatpush1.msra.mxu0 0.0
      %761 = vmatprep.subr.mxu0 0.0
      %762 = vmatpush1.msra.mxu0 0.0
      %763 = vmatprep.subr.mxu0 0.0
      %764 = vmatpush1.msra.mxu0 0.0
      %765 = vmatprep.subr.mxu0 0.0
      %766 = vmatpush1.msra.mxu0 0.0
      %767 = vmatprep.subr.mxu0 0.0
      %768 = vmatpush1.msra.mxu0 0.0
      %769 = vmatprep.mubr.f32.mxu0 0.0
      %770 = vmatmul.mubr.f32.gmra.mrb[0].mxu0 %v700
      %v771 = vpop.f32.mrb[0].mxu0
      %v772 = vadd.f32 0.0, %v771
      %v773 = vpop.f32.mrb[0].mxu0
      %774 = vdwg.mxu0
      %v776 = vsel %vm573, %v615, 0
      %v779 = vsel %vm625, %v620, 0
      %781 = vmatprep.subr.mxu0 0.0
      %782 = vmatpush1.msra.mxu0 %v779
      %783 = vmatprep.subr.mxu0 0.0
      %784 = vmatpush1.msra.mxu0 0.0
      %785 = vmatprep.subr.mxu0 0.0
      %786 = vmatpush1.msra.mxu0 0.0
      %787 = vmatprep.subr.mxu0 0.0
      %788 = vmatpush1.msra.mxu0 0.0
      %789 = vmatprep.subr.mxu0 0.0
      %790 = vmatpush1.msra.mxu0 0.0
      %791 = vmatprep.subr.mxu0 0.0
      %792 = vmatpush1.msra.mxu0 0.0
      %793 = vmatprep.subr.mxu0 0.0
      %794 = vmatpush1.msra.mxu0 0.0
      %795 = vmatprep.subr.mxu0 0.0
      %796 = vmatpush1.msra.mxu0 0.0
      %797 = vmatprep.subr.mxu0 0.0
      %798 = vmatpush1.msra.mxu0 0.0
      %799 = vmatprep.subr.mxu0 0.0
      %800 = vmatpush1.msra.mxu0 0.0
      %801 = vmatprep.subr.mxu0 0.0
      %802 = vmatpush1.msra.mxu0 0.0
      %803 = vmatprep.subr.mxu0 0.0
      %804 = vmatpush1.msra.mxu0 0.0
      %805 = vmatprep.subr.mxu0 0.0
      %806 = vmatpush1.msra.mxu0 0.0
      %807 = vmatprep.subr.mxu0 0.0
      %808 = vmatpush1.msra.mxu0 0.0
      %809 = vmatprep.subr.mxu0 0.0
      %810 = vmatpush1.msra.mxu0 0.0
      %811 = vmatprep.subr.mxu0 0.0
      %812 = vmatpush1.msra.mxu0 0.0
      %813 = vmatprep.subr.mxu0 0.0
      %814 = vmatpush1.msra.mxu0 0.0
      %815 = vmatprep.subr.mxu0 0.0
      %816 = vmatpush1.msra.mxu0 0.0
      %817 = vmatprep.subr.mxu0 0.0
      %818 = vmatpush1.msra.mxu0 0.0
      %819 = vmatprep.subr.mxu0 0.0
      %820 = vmatpush1.msra.mxu0 0.0
      %821 = vmatprep.subr.mxu0 0.0
      %822 = vmatpush1.msra.mxu0 0.0
      %823 = vmatprep.subr.mxu0 0.0
      %824 = vmatpush1.msra.mxu0 0.0
      %825 = vmatprep.subr.mxu0 0.0
      %826 = vmatpush1.msra.mxu0 0.0
      %827 = vmatprep.subr.mxu0 0.0
      %828 = vmatpush1.msra.mxu0 0.0
      %829 = vmatprep.subr.mxu0 0.0
      %830 = vmatpush1.msra.mxu0 0.0
      %831 = vmatprep.subr.mxu0 0.0
      %832 = vmatpush1.msra.mxu0 0.0
      %833 = vmatprep.subr.mxu0 0.0
      %834 = vmatpush1.msra.mxu0 0.0
      %835 = vmatprep.subr.mxu0 0.0
      %836 = vmatpush1.msra.mxu0 0.0
      %837 = vmatprep.subr.mxu0 0.0
      %838 = vmatpush1.msra.mxu0 0.0
      %839 = vmatprep.subr.mxu0 0.0
      %840 = vmatpush1.msra.mxu0 0.0
      %841 = vmatprep.subr.mxu0 0.0
      %842 = vmatpush1.msra.mxu0 0.0
      %843 = vmatprep.subr.mxu0 0.0
      %844 = vmatpush1.msra.mxu0 0.0
      %845 = vmatprep.mubr.f32.mxu0 0.0
      %846 = vmatmul.mubr.f32.gmra.mrb[0].mxu0 %v776
      %v847 = vpop.f32.mrb[0].mxu0
      %v848 = vadd.f32 0.0, %v847
      %v849 = vpop.f32.mrb[0].mxu0
      %850 = vdwg.mxu0
      %v852 = vsel %vm573, %v617, 0
      %v855 = vsel %vm625, %v621, 0
      %857 = vmatprep.subr.mxu0 0.0
      %858 = vmatpush1.msra.mxu0 %v855
      %859 = vmatprep.subr.mxu0 0.0
      %860 = vmatpush1.msra.mxu0 0.0
      %861 = vmatprep.subr.mxu0 0.0
      %862 = vmatpush1.msra.mxu0 0.0
      %863 = vmatprep.subr.mxu0 0.0
      %864 = vmatpush1.msra.mxu0 0.0
      %865 = vmatprep.subr.mxu0 0.0
      %866 = vmatpush1.msra.mxu0 0.0
      %867 = vmatprep.subr.mxu0 0.0
      %868 = vmatpush1.msra.mxu0 0.0
      %869 = vmatprep.subr.mxu0 0.0
      %870 = vmatpush1.msra.mxu0 0.0
      %871 = vmatprep.subr.mxu0 0.0
      %872 = vmatpush1.msra.mxu0 0.0
      %873 = vmatprep.subr.mxu0 0.0
      %874 = vmatpush1.msra.mxu0 0.0
      %875 = vmatprep.subr.mxu0 0.0
      %876 = vmatpush1.msra.mxu0 0.0
      %877 = vmatprep.subr.mxu0 0.0
      %878 = vmatpush1.msra.mxu0 0.0
      %879 = vmatprep.subr.mxu0 0.0
      %880 = vmatpush1.msra.mxu0 0.0
      %881 = vmatprep.subr.mxu0 0.0
      %882 = vmatpush1.msra.mxu0 0.0
      %883 = vmatprep.subr.mxu0 0.0
      %884 = vmatpush1.msra.mxu0 0.0
      %885 = vmatprep.subr.mxu0 0.0
      %886 = vmatpush1.msra.mxu0 0.0
      %887 = vmatprep.subr.mxu0 0.0
      %888 = vmatpush1.msra.mxu0 0.0
      %889 = vmatprep.subr.mxu0 0.0
      %890 = vmatpush1.msra.mxu0 0.0
      %891 = vmatprep.subr.mxu0 0.0
      %892 = vmatpush1.msra.mxu0 0.0
      %893 = vmatprep.subr.mxu0 0.0
      %894 = vmatpush1.msra.mxu0 0.0
      %895 = vmatprep.subr.mxu0 0.0
      %896 = vmatpush1.msra.mxu0 0.0
      %897 = vmatprep.subr.mxu0 0.0
      %898 = vmatpush1.msra.mxu0 0.0
      %899 = vmatprep.subr.mxu0 0.0
      %900 = vmatpush1.msra.mxu0 0.0
      %901 = vmatprep.subr.mxu0 0.0
      %902 = vmatpush1.msra.mxu0 0.0
      %903 = vmatprep.subr.mxu0 0.0
      %904 = vmatpush1.msra.mxu0 0.0
      %905 = vmatprep.subr.mxu0 0.0
      %906 = vmatpush1.msra.mxu0 0.0
      %907 = vmatprep.subr.mxu0 0.0
      %908 = vmatpush1.msra.mxu0 0.0
      %909 = vmatprep.subr.mxu0 0.0
      %910 = vmatpush1.msra.mxu0 0.0
      %911 = vmatprep.subr.mxu0 0.0
      %912 = vmatpush1.msra.mxu0 0.0
      %913 = vmatprep.subr.mxu0 0.0
      %914 = vmatpush1.msra.mxu0 0.0
      %915 = vmatprep.subr.mxu0 0.0
      %916 = vmatpush1.msra.mxu0 0.0
      %917 = vmatprep.subr.mxu0 0.0
      %918 = vmatpush1.msra.mxu0 0.0
      %919 = vmatprep.subr.mxu0 0.0
      %920 = vmatpush1.msra.mxu0 0.0
      %921 = vmatprep.mubr.f32.mxu0 0.0
      %922 = vmatmul.mubr.f32.gmra.mrb[0].mxu0 %v852
      %v923 = vpop.f32.mrb[0].mxu0
      %v924 = vadd.f32 0.0, %v923
      %v925 = vpop.f32.mrb[0].mxu0
      %926 = vdwg.mxu0
      %927 = vst.msk [vmem:[%s254] sm:$0xff] %vm268, %v696
      %928 = vst.msk [vmem:[%s254 + $0x8] sm:$0xff] %vm268, %v772
      %929 = vst.msk [vmem:[%s254 + $0x10] sm:$0xff] %vm268, %v848
      %930 = vst.msk [vmem:[%s254 + $0x18] sm:$0xff] %vm268, %v924
      %p931 = scmp.lt.s32.totalorder %s15, 1
      %s932 = scalar_select %p931, %s15, 1
      %s933 = smul.addr %s932, 4
      %s934 = smul.addr %s933, 8
      %s935 = scalar_lea.vmem %s4, %s934
      // Predicated region
      $region37: #{multi_decoder_layer.30} parent=35 // pred_check
        %p936 = pneg %p137
      $region38: #{multi_decoder_layer.30} parent=35 // pred_check_branch
        %938 = sbr.rel (%p936) target = $region40
      $region39: #{multi_decoder_layer.30} parent=35 // pred_region
        _
      $region40: #{multi_decoder_layer.30} parent=35 // pred_fallthru
        _
    $region36: #{multi_decoder_layer.30} parent=5 // pred_fallthru
      _
    %p939 = scmp.le.s32.totalorder 2, %s10
    // Predicated region
    $region41: #{multi_decoder_layer.30} parent=5 // pred_check
      %p940 = pneg %p939
    $region42: #{multi_decoder_layer.30} parent=5 // pred_check_branch
      %942 = sbr.rel (%p940) target = $region44
    $region43: #{multi_decoder_layer.30} parent=5 // pred_region
      %s943 = ssub.s32 %s10, 2
      // Predicated region
      $region45: #{multi_decoder_layer.30} parent=43 // pred_check
        %p944 = pneg %p143
      $region46: #{multi_decoder_layer.30} parent=43 // pred_check_branch
        %946 = sbr.rel (%p944) target = $region48
      $region47: #{multi_decoder_layer.30} parent=43 // pred_region
        %p947 = scmp.lt.s32.totalorder %s16, 1
        %s948 = scalar_select %p947, %s16, 1
        %s949 = smul.addr %s948, 4
        %s950 = smul.addr %s949, 8
        %s951 = scalar_lea.vmem %s4, %s950
      $region48: #{multi_decoder_layer.30} parent=43 // pred_fallthru
        _
    $region44: #{multi_decoder_layer.30} parent=5 // pred_fallthru
      _
  $region6: #{multi_decoder_layer.30} parent=0 // loop_footer
    %s14 = sadd.s32 1, %s10
  $region7: #{multi_decoder_layer.30} parent=0 // loop_footer_branch
    %9 = sbr.rel target = $region3
  $region8: #{multi_decoder_layer.30} parent=0 // loop_exit
    _

// kernel: multi_decoder_layer.32
$region0: #{multi_decoder_layer.32}
  #allocation0 [shape = 'u32[]', space=smem, size = 0x4, offset = 0x4, fixed_abs, tag = 'smem constant byte address 0x4 - core index']
  #allocation1 [shape = 'u32[144,128]{1,0:T(1,128)}', space=vmem, size = 0x12000, scoped, tag = 'internal scratch']
  %s0 = inlined_call_operand.vmem [shape: f32[16,192], index: 0, kind: input, shape index: {}]
  %s1 = inlined_call_operand.vmem [shape: f32[192,64], index: 1, kind: input, shape index: {}]
  %s2 = inlined_call_operand.vmem [shape: f32[1,64], index: 2, kind: input, shape index: {}]
  %s3 = inlined_call_operand.vmem [shape: f32[16,64], index: 3, kind: input, shape index: {}]
  %s4 = inlined_call_operand.vmem [shape: f32[1,64], index: 4, kind: input, shape index: {}]
  %s5 = inlined_call_operand.vmem [shape: f32[1,64], index: 5, kind: input, shape index: {}]
  %s6 = inlined_call_operand.vmem [shape: f32[16,64], index: 6, kind: output, shape index: {}]
  %s7 = sld [smem:[#allocation0]]
  $region34: #{multi_decoder_layer.32} parent=0
    _
  %s9 = ssub.s32 1, %s7
  %s10 = scalar_select 0, %s9, %s7
  // Predicated region
  $region2: #{multi_decoder_layer.32} parent=0 // pred_check
    _
  $region3: #{multi_decoder_layer.32} parent=0 // pred_check_branch
    %12 = sbr.rel (0) target = $region5
  $region4: #{multi_decoder_layer.32} parent=0 // pred_region
    _
  $region5: #{multi_decoder_layer.32} parent=0 // pred_fallthru
    _
  // Predicated region
  $region6: #{multi_decoder_layer.32} parent=0 // pred_check
    _
  $region7: #{multi_decoder_layer.32} parent=0 // pred_check_branch
    %14 = sbr.rel (0) target = $region9
  $region8: #{multi_decoder_layer.32} parent=0 // pred_region
    _
  $region9: #{multi_decoder_layer.32} parent=0 // pred_fallthru
    _
  // Predicated region
  $region10: #{multi_decoder_layer.32} parent=0 // pred_check
    _
  $region11: #{multi_decoder_layer.32} parent=0 // pred_check_branch
    %16 = sbr.rel (0) target = $region13
  $region12: #{multi_decoder_layer.32} parent=0 // pred_region
    _
  $region13: #{multi_decoder_layer.32} parent=0 // pred_fallthru
    _
  // Predicated region
  $region14: #{multi_decoder_layer.32} parent=0 // pred_check
    _
  $region15: #{multi_decoder_layer.32} parent=0 // pred_check_branch
    %18 = sbr.rel (0) target = $region17
  $region16: #{multi_decoder_layer.32} parent=0 // pred_region
    _
  $region17: #{multi_decoder_layer.32} parent=0 // pred_fallthru
    _
  // Predicated region
  $region18: #{multi_decoder_layer.32} parent=0 // pred_check
    _
  $region19: #{multi_decoder_layer.32} parent=0 // pred_check_branch
    %20 = sbr.rel (0) target = $region21
  $region20: #{multi_decoder_layer.32} parent=0 // pred_region
    _
  $region21: #{multi_decoder_layer.32} parent=0 // pred_fallthru
    _
  // Predicated region
  $region22: #{multi_decoder_layer.32} parent=0 // pred_check
    _
  $region23: #{multi_decoder_layer.32} parent=0 // pred_check_branch
    %22 = sbr.rel (0) target = $region25
  $region24: #{multi_decoder_layer.32} parent=0 // pred_region
    _
  $region25: #{multi_decoder_layer.32} parent=0 // pred_fallthru
    _
  %v23 = vld [vmem:[%s0] sm:$0xff]
  %v24 = vld [vmem:[%s0 + $0x8] sm:$0xff]
  %v25 = vld [vmem:[%s0 + $0x10] sm:$0xff]
  %v26 = vld [vmem:[%s0 + $0x18] sm:$0xff]
  %v27 = vld [vmem:[%s1] sm:$0xff]
  %v28 = vld [vmem:[%s1 + $0x8] sm:$0xff]
  %v29 = vld [vmem:[%s1 + $0x10] sm:$0xff]
  %v30 = vld [vmem:[%s1 + $0x18] sm:$0xff]
  %v31 = vld [vmem:[%s1 + $0x20] sm:$0xff]
  %v32 = vld [vmem:[%s1 + $0x28] sm:$0xff]
  %v33 = vld [vmem:[%s1 + $0x30] sm:$0xff]
  %v34 = vld [vmem:[%s1 + $0x38] sm:$0xff]
  %v35 = vld [vmem:[%s1 + $0x40] sm:$0xff]
  %v36 = vld [vmem:[%s1 + $0x48] sm:$0xff]
  %v37 = vld [vmem:[%s1 + $0x50] sm:$0xff]
  %v38 = vld [vmem:[%s1 + $0x58] sm:$0xff]
  %v39 = vld [vmem:[%s1 + $0x60] sm:$0xff]
  %v40 = vld [vmem:[%s1 + $0x68] sm:$0xff]
  %v41 = vld [vmem:[%s1 + $0x70] sm:$0xff]
  %v42 = vld [vmem:[%s1 + $0x78] sm:$0xff]
  %v43 = vld [vmem:[%s1 + $0x80] sm:$0xff]
  %v44 = vld [vmem:[%s1 + $0x88] sm:$0xff]
  %v45 = vld [vmem:[%s1 + $0x90] sm:$0xff]
  %v46 = vld [vmem:[%s1 + $0x98] sm:$0xff]
  %v47 = vld [vmem:[%s1 + $0xa0] sm:$0xff]
  %v48 = vld [vmem:[%s1 + $0xa8] sm:$0xff]
  %v49 = vld [vmem:[%s1 + $0xb0] sm:$0xff]
  %v50 = vld [vmem:[%s1 + $0xb8] sm:$0xff]
  %v51 = vld [vmem:[%s2] sm:$0x1]
  %v53 = vlaneseq
  %v54 = vshrl.u32 %v53, 7
  %v55 = vsub.s32 0, %v54
  %v56 = vrot.slane %v51, %v55
  %vm58 = vcmask 523264
  %v60 = vsel %vm58, %v24, 0
  %v63 = vsel %vm58, %v26, 0
  %65 = vmatprep.subr.mxu0 0.0
  %66 = vmatpush1.msra.mxu0 %v27
  %67 = vmatprep.subr.mxu0 0.0
  %68 = vmatpush1.msra.mxu0 %v28
  %69 = vmatprep.subr.mxu0 0.0
  %70 = vmatpush1.msra.mxu0 %v29
  %71 = vmatprep.subr.mxu0 0.0
  %72 = vmatpush1.msra.mxu0 %v30
  %73 = vmatprep.subr.mxu0 0.0
  %74 = vmatpush1.msra.mxu0 %v31
  %75 = vmatprep.subr.mxu0 0.0
  %76 = vmatpush1.msra.mxu0 %v32
  %77 = vmatprep.subr.mxu0 0.0
  %78 = vmatpush1.msra.mxu0 %v33
  %79 = vmatprep.subr.mxu0 0.0
  %80 = vmatpush1.msra.mxu0 %v34
  %81 = vmatprep.subr.mxu0 0.0
  %82 = vmatpush1.msra.mxu0 %v35
  %83 = vmatprep.subr.mxu0 0.0
  %84 = vmatpush1.msra.mxu0 %v36
  %85 = vmatprep.subr.mxu0 0.0
  %86 = vmatpush1.msra.mxu0 %v37
  %87 = vmatprep.subr.mxu0 0.0
  %88 = vmatpush1.msra.mxu0 %v38
  %89 = vmatprep.subr.mxu0 0.0
  %90 = vmatpush1.msra.mxu0 %v39
  %91 = vmatprep.subr.mxu0 0.0
  %92 = vmatpush1.msra.mxu0 %v40
  %93 = vmatprep.subr.mxu0 0.0
  %94 = vmatpush1.msra.mxu0 %v41
  %95 = vmatprep.subr.mxu0 0.0
  %96 = vmatpush1.msra.mxu0 %v42
  %97 = vmatprep.subr.mxu0 0.0
  %98 = vmatpush1.msra.mxu0 %v43
  %99 = vmatprep.subr.mxu0 0.0
  %100 = vmatpush1.msra.mxu0 %v44
  %101 = vmatprep.subr.mxu0 0.0
  %102 = vmatpush1.msra.mxu0 %v45
  %103 = vmatprep.subr.mxu0 0.0
  %104 = vmatpush1.msra.mxu0 %v46
  %105 = vmatprep.subr.mxu0 0.0
  %106 = vmatpush1.msra.mxu0 %v47
  %107 = vmatprep.subr.mxu0 0.0
  %108 = vmatpush1.msra.mxu0 %v48
  %109 = vmatprep.subr.mxu0 0.0
  %110 = vmatpush1.msra.mxu0 %v49
  %111 = vmatprep.subr.mxu0 0.0
  %112 = vmatpush1.msra.mxu0 %v50
  %113 = vmatprep.subr.mxu0 0.0
  %114 = vmatpush1.msra.mxu0 0.0
  %115 = vmatprep.subr.mxu0 0.0
  %116 = vmatpush1.msra.mxu0 0.0
  %117 = vmatprep.subr.mxu0 0.0
  %118 = vmatpush1.msra.mxu0 0.0
  %119 = vmatprep.subr.mxu0 0.0
  %120 = vmatpush1.msra.mxu0 0.0
  %121 = vmatprep.subr.mxu0 0.0
  %122 = vmatpush1.msra.mxu0 0.0
  %123 = vmatprep.subr.mxu0 0.0
  %124 = vmatpush1.msra.mxu0 0.0
  %125 = vmatprep.subr.mxu0 0.0
  %126 = vmatpush1.msra.mxu0 0.0
  %127 = vmatprep.subr.mxu0 0.0
  %128 = vmatpush1.msra.mxu0 0.0
  %129 = vmatprep.mubr.f32.mxu0 %v60
  %130 = vmatmul.mubr.f32.gmra.mrb[0].mxu0 %v23
  %v131 = vpop.f32.mrb[0].mxu0
  %v132 = vadd.f32 %v56, %v131
  %v133 = vpop.f32.mrb[0].mxu0
  %134 = vmatprep.mubr.f32.mxu0 %v63
  %135 = vmatmul.mubr.f32.gmra.mrb[0].mxu0 %v25
  %v136 = vpop.f32.mrb[0].mxu0
  %v137 = vadd.f32 %v56, %v136
  %v138 = vpop.f32.mrb[0].mxu0
  %139 = vdwg.mxu0
  %v140 = vld [vmem:[%s3] sm:$0xff]
  %v141 = vld [vmem:[%s3 + $0x8] sm:$0xff]
  %v142 = vadd.f32 %v132, %v140
  %v143 = vadd.f32 %v137, %v141
  %v144 = vld [vmem:[%s4] sm:$0x1]
  %v145 = vld [vmem:[%s5] sm:$0x1]
  %v146 = vsel %vm58, %v142, 0.0
  %147 = vadd.xlane.f32.xlu0 %v146
  %v148 = vpop.xlane.xlu0 %147
  %v149 = vsel %vm58, %v143, 0.0
  %150 = vadd.xlane.f32.xlu0 %v149
  %v151 = vpop.xlane.xlu0 %150
  %v152 = vrcp.pop 64.0
  %v153 = vmul.f32 %v148, %v152
  %v154 = vmul.f32 %v151, %v152
  %v155 = vsub.f32 %v142, %v153
  %v156 = vsub.f32 %v143, %v154
  %v157 = vmul.f32 %v155, %v155
  %v158 = vmul.f32 %v156, %v156
  %v159 = vsel %vm58, %v157, 0.0
  %160 = vadd.xlane.f32.xlu0 %v159
  %v161 = vpop.xlane.xlu0 %160
  %v162 = vsel %vm58, %v158, 0.0
  %163 = vadd.xlane.f32.xlu0 %v162
  %v164 = vpop.xlane.xlu0 %163
  %v165 = vmul.f32 %v161, %v152
  %v166 = vmul.f32 %v164, %v152
  %v167 = vadd.f32 %v165, 1e-05
  %v168 = vadd.f32 %v166, 1e-05
  %v169 = vrsqrt.pop %v167
  %v170 = vrsqrt.pop %v168
  %v171 = vmul.f32 %v155, %v169
  %v172 = vmul.f32 %v156, %v170
  %v174 = vlaneseq
  %v175 = vshrl.u32 %v174, 7
  %v176 = vsub.s32 0, %v175
  %v177 = vrot.slane %v144, %v176
  %v179 = vmul.f32 %v171, %v177
  %v180 = vmul.f32 %v172, %v177
  %v182 = vlaneseq
  %v183 = vshrl.u32 %v182, 7
  %v184 = vsub.s32 0, %v183
  %v185 = vrot.slane %v145, %v184
  %v187 = vadd.f32 %v179, %v185
  %v188 = vadd.f32 %v180, %v185
  %189 = vst.msk [vmem:[%s6] sm:$0xff] %vm58, %v187
  %190 = vst.msk [vmem:[%s6 + $0x8] sm:$0xff] %vm58, %v188
  // Predicated region
  $region26: #{multi_decoder_layer.32} parent=0 // pred_check
    _
  $region27: #{multi_decoder_layer.32} parent=0 // pred_check_branch
    %192 = sbr.rel (0) target = $region29
  $region28: #{multi_decoder_layer.32} parent=0 // pred_region
    _
  $region29: #{multi_decoder_layer.32} parent=0 // pred_fallthru
    _
  // Predicated region
  $region30: #{multi_decoder_layer.32} parent=0 // pred_check
    _
  $region31: #{multi_decoder_layer.32} parent=0 // pred_check_branch
    %194 = sbr.rel (0) target = $region33
  $region32: #{multi_decoder_layer.32} parent=0 // pred_region
    _
  $region33: #{multi_decoder_layer.32} parent=0 // pred_fallthru
    _

// kernel: multi_decoder_layer.33
$region0: #{multi_decoder_layer.33}
  #allocation0 [shape = 'u32[]', space=smem, size = 0x4, offset = 0x4, fixed_abs, tag = 'smem constant byte address 0x4 - core index']
  #allocation1 [shape = 'u32[144,128]{1,0:T(1,128)}', space=vmem, size = 0x12000, scoped, tag = 'internal scratch']
  %s0 = inlined_call_operand.vmem [shape: f32[16,64], index: 0, kind: input, shape index: {}, may-alias: {0,5}]
  %s1 = inlined_call_operand.vmem [shape: f32[64,128], index: 1, kind: input, shape index: {}]
  %s2 = inlined_call_operand.vmem [shape: f32[1,128], index: 2, kind: input, shape index: {}]
  %s3 = inlined_call_operand.vmem [shape: f32[128,64], index: 3, kind: input, shape index: {}]
  %s4 = inlined_call_operand.vmem [shape: f32[1,64], index: 4, kind: input, shape index: {}]
  %s5 = inlined_call_operand.vmem [shape: f32[16,64], index: 5, kind: input, shape index: {}, may-alias: {0,5}]
  %s6 = inlined_call_operand.vmem [shape: f32[1,64], index: 6, kind: input, shape index: {}]
  %s7 = inlined_call_operand.vmem [shape: f32[1,64], index: 7, kind: input, shape index: {}]
  %s8 = inlined_call_operand.hbm [shape: f32[16,64], index: 8, kind: output, shape index: {}]
  %s9 = sld [smem:[#allocation0]]
  $region42: #{multi_decoder_layer.33} parent=0
    _
  %s11 = ssub.s32 1, %s9
  %s12 = scalar_select 0, %s11, %s9
  $region1: #{multi_decoder_layer.33} parent=0
    #allocation2 [shape = 'u8[8192]{0}', space=vmem, size = 0x2000, scoped, tag = 'output window, operand 0, single buffered']
    #allocation3 [shape = 's32[1]{0}', space=sflag, size = 0x4, scoped, tag = 'scoped memory for multi_decoder_layer.33']
    %13 = vsyncpa [#allocation3], 0
    // Predicated region
    $region2: #{multi_decoder_layer.33} parent=1 // pred_check
      _
    $region3: #{multi_decoder_layer.33} parent=1 // pred_check_branch
      %15 = sbr.rel (0) target = $region5
    $region4: #{multi_decoder_layer.33} parent=1 // pred_region
      _
    $region5: #{multi_decoder_layer.33} parent=1 // pred_fallthru
      _
    // Predicated region
    $region6: #{multi_decoder_layer.33} parent=1 // pred_check
      _
    $region7: #{multi_decoder_layer.33} parent=1 // pred_check_branch
      %17 = sbr.rel (0) target = $region9
    $region8: #{multi_decoder_layer.33} parent=1 // pred_region
      _
    $region9: #{multi_decoder_layer.33} parent=1 // pred_fallthru
      _
    // Predicated region
    $region10: #{multi_decoder_layer.33} parent=1 // pred_check
      _
    $region11: #{multi_decoder_layer.33} parent=1 // pred_check_branch
      %19 = sbr.rel (0) target = $region13
    $region12: #{multi_decoder_layer.33} parent=1 // pred_region
      _
    $region13: #{multi_decoder_layer.33} parent=1 // pred_fallthru
      _
    // Predicated region
    $region14: #{multi_decoder_layer.33} parent=1 // pred_check
      _
    $region15: #{multi_decoder_layer.33} parent=1 // pred_check_branch
      %21 = sbr.rel (0) target = $region17
    $region16: #{multi_decoder_layer.33} parent=1 // pred_region
      _
    $region17: #{multi_decoder_layer.33} parent=1 // pred_fallthru
      _
    // Predicated region
    $region18: #{multi_decoder_layer.33} parent=1 // pred_check
      _
    $region19: #{multi_decoder_layer.33} parent=1 // pred_check_branch
      %23 = sbr.rel (0) target = $region21
    $region20: #{multi_decoder_layer.33} parent=1 // pred_region
      _
    $region21: #{multi_decoder_layer.33} parent=1 // pred_fallthru
      _
    // Predicated region
    $region22: #{multi_decoder_layer.33} parent=1 // pred_check
      _
    $region23: #{multi_decoder_layer.33} parent=1 // pred_check_branch
      %25 = sbr.rel (0) target = $region25
    $region24: #{multi_decoder_layer.33} parent=1 // pred_region
      _
    $region25: #{multi_decoder_layer.33} parent=1 // pred_fallthru
      _
    // Predicated region
    $region26: #{multi_decoder_layer.33} parent=1 // pred_check
      _
    $region27: #{multi_decoder_layer.33} parent=1 // pred_check_branch
      %27 = sbr.rel (0) target = $region29
    $region28: #{multi_decoder_layer.33} parent=1 // pred_region
      _
    $region29: #{multi_decoder_layer.33} parent=1 // pred_fallthru
      _
    // Predicated region
    $region30: #{multi_decoder_layer.33} parent=1 // pred_check
      _
    $region31: #{multi_decoder_layer.33} parent=1 // pred_check_branch
      %29 = sbr.rel (0) target = $region33
    $region32: #{multi_decoder_layer.33} parent=1 // pred_region
      _
    $region33: #{multi_decoder_layer.33} parent=1 // pred_fallthru
      _
    %v30 = vld [vmem:[%s0] sm:$0xff]
    %v31 = vld [vmem:[%s0 + $0x8] sm:$0xff]
    %v32 = vld [vmem:[%s1] sm:$0xff]
    %v33 = vld [vmem:[%s1 + $0x8] sm:$0xff]
    %v34 = vld [vmem:[%s1 + $0x10] sm:$0xff]
    %v35 = vld [vmem:[%s1 + $0x18] sm:$0xff]
    %v36 = vld [vmem:[%s1 + $0x20] sm:$0xff]
    %v37 = vld [vmem:[%s1 + $0x28] sm:$0xff]
    %v38 = vld [vmem:[%s1 + $0x30] sm:$0xff]
    %v39 = vld [vmem:[%s1 + $0x38] sm:$0xff]
    %v40 = vld [vmem:[%s2] sm:$0x1]
    %v42 = vlaneseq
    %v43 = vshrl.u32 %v42, 7
    %v44 = vsub.s32 0, %v43
    %v45 = vrot.slane %v40, %v44
    %vm47 = vcmask 523264
    %v49 = vsel %vm47, %v30, 0
    %v52 = vsel %vm47, %v31, 0
    %54 = vmatprep.subr.mxu0 0.0
    %55 = vmatpush1.msra.mxu0 %v32
    %56 = vmatprep.subr.mxu0 0.0
    %57 = vmatpush1.msra.mxu0 %v33
    %58 = vmatprep.subr.mxu0 0.0
    %59 = vmatpush1.msra.mxu0 %v34
    %60 = vmatprep.subr.mxu0 0.0
    %61 = vmatpush1.msra.mxu0 %v35
    %62 = vmatprep.subr.mxu0 0.0
    %63 = vmatpush1.msra.mxu0 %v36
    %64 = vmatprep.subr.mxu0 0.0
    %65 = vmatpush1.msra.mxu0 %v37
    %66 = vmatprep.subr.mxu0 0.0
    %67 = vmatpush1.msra.mxu0 %v38
    %68 = vmatprep.subr.mxu0 0.0
    %69 = vmatpush1.msra.mxu0 %v39
    %70 = vmatprep.subr.mxu0 0.0
    %71 = vmatpush1.msra.mxu0 0.0
    %72 = vmatprep.subr.mxu0 0.0
    %73 = vmatpush1.msra.mxu0 0.0
    %74 = vmatprep.subr.mxu0 0.0
    %75 = vmatpush1.msra.mxu0 0.0
    %76 = vmatprep.subr.mxu0 0.0
    %77 = vmatpush1.msra.mxu0 0.0
    %78 = vmatprep.subr.mxu0 0.0
    %79 = vmatpush1.msra.mxu0 0.0
    %80 = vmatprep.subr.mxu0 0.0
    %81 = vmatpush1.msra.mxu0 0.0
    %82 = vmatprep.subr.mxu0 0.0
    %83 = vmatpush1.msra.mxu0 0.0
    %84 = vmatprep.subr.mxu0 0.0
    %85 = vmatpush1.msra.mxu0 0.0
    %86 = vmatprep.subr.mxu0 0.0
    %87 = vmatpush1.msra.mxu0 0.0
    %88 = vmatprep.subr.mxu0 0.0
    %89 = vmatpush1.msra.mxu0 0.0
    %90 = vmatprep.subr.mxu0 0.0
    %91 = vmatpush1.msra.mxu0 0.0
    %92 = vmatprep.subr.mxu0 0.0
    %93 = vmatpush1.msra.mxu0 0.0
    %94 = vmatprep.subr.mxu0 0.0
    %95 = vmatpush1.msra.mxu0 0.0
    %96 = vmatprep.subr.mxu0 0.0
    %97 = vmatpush1.msra.mxu0 0.0
    %98 = vmatprep.subr.mxu0 0.0
    %99 = vmatpush1.msra.mxu0 0.0
    %100 = vmatprep.subr.mxu0 0.0
    %101 = vmatpush1.msra.mxu0 0.0
    %102 = vmatprep.subr.mxu0 0.0
    %103 = vmatpush1.msra.mxu0 0.0
    %104 = vmatprep.subr.mxu0 0.0
    %105 = vmatpush1.msra.mxu0 0.0
    %106 = vmatprep.subr.mxu0 0.0
    %107 = vmatpush1.msra.mxu0 0.0
    %108 = vmatprep.subr.mxu0 0.0
    %109 = vmatpush1.msra.mxu0 0.0
    %110 = vmatprep.subr.mxu0 0.0
    %111 = vmatpush1.msra.mxu0 0.0
    %112 = vmatprep.subr.mxu0 0.0
    %113 = vmatpush1.msra.mxu0 0.0
    %114 = vmatprep.subr.mxu0 0.0
    %115 = vmatpush1.msra.mxu0 0.0
    %116 = vmatprep.subr.mxu0 0.0
    %117 = vmatpush1.msra.mxu0 0.0
    %118 = vmatprep.mubr.f32.mxu0 0.0
    %119 = vmatmul.mubr.f32.gmra.mrb[0].mxu0 %v49
    %v120 = vpop.f32.mrb[0].mxu0
    %v121 = vadd.f32 %v45, %v120
    %v122 = vpop.f32.mrb[0].mxu0
    %123 = vmatprep.mubr.f32.mxu0 0.0
    %124 = vmatmul.mubr.f32.gmra.mrb[0].mxu0 %v52
    %v125 = vpop.f32.mrb[0].mxu0
    %v126 = vadd.f32 %v45, %v125
    %v127 = vpop.f32.mrb[0].mxu0
    %128 = vdwg.mxu0
    %v129 = vmul.f32 %v121, %v121
    %v130 = vmul.f32 %v126, %v126
    %v131 = vmul.f32 %v121, %v129
    %v132 = vmul.f32 %v126, %v130
    %v133 = vmul.f32 %v131, 0.044715
    %v134 = vmul.f32 %v132, 0.044715
    %v135 = vadd.f32 %v121, %v133
    %v136 = vadd.f32 %v126, %v134
    %v137 = vmul.f32 %v135, 0.7978846
    %v138 = vmul.f32 %v136, 0.7978846
    %v139 = vtanh.pop %v137
    %v140 = vtanh.pop %v138
    %v141 = vadd.f32 %v139, 1.0
    %v142 = vadd.f32 %v140, 1.0
    %v143 = vmul.f32 %v141, 0.5
    %v144 = vmul.f32 %v142, 0.5
    %v145 = vmul.f32 %v121, %v143
    %v146 = vmul.f32 %v126, %v144
    %v147 = vld [vmem:[%s3] sm:$0xff]
    %v148 = vld [vmem:[%s3 + $0x8] sm:$0xff]
    %v149 = vld [vmem:[%s3 + $0x10] sm:$0xff]
    %v150 = vld [vmem:[%s3 + $0x18] sm:$0xff]
    %v151 = vld [vmem:[%s3 + $0x20] sm:$0xff]
    %v152 = vld [vmem:[%s3 + $0x28] sm:$0xff]
    %v153 = vld [vmem:[%s3 + $0x30] sm:$0xff]
    %v154 = vld [vmem:[%s3 + $0x38] sm:$0xff]
    %v155 = vld [vmem:[%s3 + $0x40] sm:$0xff]
    %v156 = vld [vmem:[%s3 + $0x48] sm:$0xff]
    %v157 = vld [vmem:[%s3 + $0x50] sm:$0xff]
    %v158 = vld [vmem:[%s3 + $0x58] sm:$0xff]
    %v159 = vld [vmem:[%s3 + $0x60] sm:$0xff]
    %v160 = vld [vmem:[%s3 + $0x68] sm:$0xff]
    %v161 = vld [vmem:[%s3 + $0x70] sm:$0xff]
    %v162 = vld [vmem:[%s3 + $0x78] sm:$0xff]
    %v163 = vld [vmem:[%s4] sm:$0x1]
    %v165 = vlaneseq
    %v166 = vshrl.u32 %v165, 7
    %v167 = vsub.s32 0, %v166
    %v168 = vrot.slane %v163, %v167
    %170 = vmatprep.subr.mxu0 0.0
    %171 = vmatpush1.msra.mxu0 %v147
    %172 = vmatprep.subr.mxu0 0.0
    %173 = vmatpush1.msra.mxu0 %v148
    %174 = vmatprep.subr.mxu0 0.0
    %175 = vmatpush1.msra.mxu0 %v149
    %176 = vmatprep.subr.mxu0 0.0
    %177 = vmatpush1.msra.mxu0 %v150
    %178 = vmatprep.subr.mxu0 0.0
    %179 = vmatpush1.msra.mxu0 %v151
    %180 = vmatprep.subr.mxu0 0.0
    %181 = vmatpush1.msra.mxu0 %v152
    %182 = vmatprep.subr.mxu0 0.0
    %183 = vmatpush1.msra.mxu0 %v153
    %184 = vmatprep.subr.mxu0 0.0
    %185 = vmatpush1.msra.mxu0 %v154
    %186 = vmatprep.subr.mxu0 0.0
    %187 = vmatpush1.msra.mxu0 %v155
    %188 = vmatprep.subr.mxu0 0.0
    %189 = vmatpush1.msra.mxu0 %v156
    %190 = vmatprep.subr.mxu0 0.0
    %191 = vmatpush1.msra.mxu0 %v157
    %192 = vmatprep.subr.mxu0 0.0
    %193 = vmatpush1.msra.mxu0 %v158
    %194 = vmatprep.subr.mxu0 0.0
    %195 = vmatpush1.msra.mxu0 %v159
    %196 = vmatprep.subr.mxu0 0.0
    %197 = vmatpush1.msra.mxu0 %v160
    %198 = vmatprep.subr.mxu0 0.0
    %199 = vmatpush1.msra.mxu0 %v161
    %200 = vmatprep.subr.mxu0 0.0
    %201 = vmatpush1.msra.mxu0 %v162
    %202 = vmatprep.subr.mxu0 0.0
    %203 = vmatpush1.msra.mxu0 0.0
    %204 = vmatprep.subr.mxu0 0.0
    %205 = vmatpush1.msra.mxu0 0.0
    %206 = vmatprep.subr.mxu0 0.0
    %207 = vmatpush1.msra.mxu0 0.0
    %208 = vmatprep.subr.mxu0 0.0
    %209 = vmatpush1.msra.mxu0 0.0
    %210 = vmatprep.subr.mxu0 0.0
    %211 = vmatpush1.msra.mxu0 0.0
    %212 = vmatprep.subr.mxu0 0.0
    %213 = vmatpush1.msra.mxu0 0.0
    %214 = vmatprep.subr.mxu0 0.0
    %215 = vmatpush1.msra.mxu0 0.0
    %216 = vmatprep.subr.mxu0 0.0
    %217 = vmatpush1.msra.mxu0 0.0
    %218 = vmatprep.subr.mxu0 0.0
    %219 = vmatpush1.msra.mxu0 0.0
    %220 = vmatprep.subr.mxu0 0.0
    %221 = vmatpush1.msra.mxu0 0.0
    %222 = vmatprep.subr.mxu0 0.0
    %223 = vmatpush1.msra.mxu0 0.0
    %224 = vmatprep.subr.mxu0 0.0
    %225 = vmatpush1.msra.mxu0 0.0
    %226 = vmatprep.subr.mxu0 0.0
    %227 = vmatpush1.msra.mxu0 0.0
    %228 = vmatprep.subr.mxu0 0.0
    %229 = vmatpush1.msra.mxu0 0.0
    %230 = vmatprep.subr.mxu0 0.0
    %231 = vmatpush1.msra.mxu0 0.0
    %232 = vmatprep.subr.mxu0 0.0
    %233 = vmatpush1.msra.mxu0 0.0
    %234 = vmatprep.mubr.f32.mxu0 0.0
    %235 = vmatmul.mubr.f32.gmra.mrb[0].mxu0 %v145
    %v236 = vpop.f32.mrb[0].mxu0
    %v237 = vadd.f32 %v168, %v236
    %v238 = vpop.f32.mrb[0].mxu0
    %239 = vmatprep.mubr.f32.mxu0 0.0
    %240 = vmatmul.mubr.f32.gmra.mrb[0].mxu0 %v146
    %v241 = vpop.f32.mrb[0].mxu0
    %v242 = vadd.f32 %v168, %v241
    %v243 = vpop.f32.mrb[0].mxu0
    %244 = vdwg.mxu0
    %v245 = vld [vmem:[%s5] sm:$0xff]
    %v246 = vld [vmem:[%s5 + $0x8] sm:$0xff]
    %v247 = vadd.f32 %v237, %v245
    %v248 = vadd.f32 %v242, %v246
    %v249 = vld [vmem:[%s6] sm:$0x1]
    %v250 = vld [vmem:[%s7] sm:$0x1]
    %v251 = vsel %vm47, %v247, 0.0
    %252 = vadd.xlane.f32.xlu0 %v251
    %v253 = vpop.xlane.xlu0 %252
    %v254 = vsel %vm47, %v248, 0.0
    %255 = vadd.xlane.f32.xlu0 %v254
    %v256 = vpop.xlane.xlu0 %255
    %v257 = vrcp.pop 64.0
    %v258 = vmul.f32 %v253, %v257
    %v259 = vmul.f32 %v256, %v257
    %v260 = vsub.f32 %v247, %v258
    %v261 = vsub.f32 %v248, %v259
    %v262 = vmul.f32 %v260, %v260
    %v263 = vmul.f32 %v261, %v261
    %v264 = vsel %vm47, %v262, 0.0
    %265 = vadd.xlane.f32.xlu0 %v264
    %v266 = vpop.xlane.xlu0 %265
    %v267 = vsel %vm47, %v263, 0.0
    %268 = vadd.xlane.f32.xlu0 %v267
    %v269 = vpop.xlane.xlu0 %268
    %v270 = vmul.f32 %v266, %v257
    %v271 = vmul.f32 %v269, %v257
    %v272 = vadd.f32 %v270, 1e-05
    %v273 = vadd.f32 %v271, 1e-05
    %v274 = vrsqrt.pop %v272
    %v275 = vrsqrt.pop %v273
    %v276 = vmul.f32 %v260, %v274
    %v277 = vmul.f32 %v261, %v275
    %v279 = vlaneseq
    %v280 = vshrl.u32 %v279, 7
    %v281 = vsub.s32 0, %v280
    %v282 = vrot.slane %v249, %v281
    %v284 = vmul.f32 %v276, %v282
    %v285 = vmul.f32 %v277, %v282
    %v287 = vlaneseq
    %v288 = vshrl.u32 %v287, 7
    %v289 = vsub.s32 0, %v288
    %v290 = vrot.slane %v250, %v289
    %v292 = vadd.f32 %v284, %v290
    %v293 = vadd.f32 %v285, %v290
    %294 = vst.msk [vmem:[#allocation2] sm:$0xff] %vm47, %v292
    %295 = vst.msk [vmem:[#allocation2 + $0x8] sm:$0xff] %vm47, %v293
    // Predicated region
    $region34: #{multi_decoder_layer.33} parent=1 // pred_check
      _
    $region35: #{multi_decoder_layer.33} parent=1 // pred_check_branch
      %297 = sbr.rel (0) target = $region37
    $region36: #{multi_decoder_layer.33} parent=1 // pred_region
      %s299 = ssub.s32 256, 256
      %300 = vsyncadd [#allocation3], %s299
      %s301 = sshll.u32 [#allocation2], 4
      %s302 = int_to_ptr.vmem [resolvable:$true] %s301
      %307 = dma.vmem_to_hbm [thread:$0]  %s302, 256, %s8, [#allocation3], 128, 128, 8
    $region37: #{multi_decoder_layer.33} parent=1 // pred_fallthru
      _
    // Predicated region
    $region38: #{multi_decoder_layer.33} parent=1 // pred_check
      _
    $region39: #{multi_decoder_layer.33} parent=1 // pred_check_branch
      %309 = sbr.rel (0) target = $region41
    $region40: #{multi_decoder_layer.33} parent=1 // pred_region
      %310 = dma.done [#allocation3], 256
    $region41: #{multi_decoder_layer.33} parent=1 // pred_fallthru
      _
    %311 = vsyncpa [#allocation3], 1

</llo_original>
